<compile_context>
chip_gen: v7x
topology: tpu7x:2x2x1
jax: 0.10.0
libtpu: 0.0.40
codegen_flags: <defaults>
</compile_context>

<pallas_src>
import jax
import jax.numpy as jnp
from jax.experimental import pallas as pl
from jax.experimental.pallas import tpu as pltpu

VMEM_LIMIT = 32 * 1024 * 1024     # portable across v5e/v6e/v7x

D_FC = 12 * 11 * 11               # 1452
D_FC_PAD = 1536                   # 12 * 128 (ReLU-safe zero padding)
D_OUT = 500
D_OUT_PAD = 512
FC_TN = 768                       # fc1-output / fc2-contraction half-width
K1_PAD = 128                      # conv1 contraction 121 -> 128 (lane aligned)


def _round_up(v, m):
    return ((v + m - 1) // m) * m


def _m_tiling(m):
    """Pick (padded M, M tile) for the conv kernels: multiples of 16 (bf16
    sublane packing), >=2 tiles when feasible so v7x megacore has work, and
    ~512-row tiles so input DMAs pipeline against the MXU."""
    mp = _round_up(m, 16)
    if mp > 512:
        tm = 512
        mp = _round_up(m, tm)
    elif mp > 128:
        tm = _round_up((mp + 1) // 2, 16)
        mp = 2 * tm
    else:
        tm = mp
    return mp, tm


# ---------------------------------------------------------------------------
# Pallas kernels
# ---------------------------------------------------------------------------

def _conv_relu_pool_kernel(p0_ref, p1_ref, p2_ref, p3_ref, w_ref, b_ref, o_ref):
    """o = relu(max over 4 pool corners of (p_i @ w) + b).

    Fuses conv (im2col matmul, bf16 operands / f32 accumulate), 2x2 max-pool
    and ReLU into one store; the shared bias and monotonic ReLU commute with
    the max."""
    w = w_ref[...]
    m = jnp.maximum(
        jnp.maximum(jnp.dot(p0_ref[...], w, preferred_element_type=jnp.float32),
                    jnp.dot(p1_ref[...], w, preferred_element_type=jnp.float32)),
        jnp.maximum(jnp.dot(p2_ref[...], w, preferred_element_type=jnp.float32),
                    jnp.dot(p3_ref[...], w, preferred_element_type=jnp.float32)))
    o_ref[...] = jnp.maximum(m + b_ref[...], 0.0).astype(o_ref.dtype)


def _fc_partial_kernel(x_ref, w1_ref, b1_ref, w2_ref, o_ref):
    """One independent half of: out = relu(x @ w1 + b1) @ w2.

    Grid axis j = half of fc1's output columns == half of fc2's contraction
    rows.  Each program writes its own f32 partial (o_ref block (1, Mp, N2));
    the fc2 bias and the sum of partials happen in a tiny JAX epilogue, so
    both v7x TensorCores can run in parallel with no shared accumulator."""
    h = jnp.dot(x_ref[...], w1_ref[...], preferred_element_type=jnp.float32)
    h = jnp.maximum(h + b1_ref[...], 0.0)
    o_ref[0] = jnp.dot(h.astype(w2_ref.dtype), w2_ref[...],
                       preferred_element_type=jnp.float32).astype(o_ref.dtype)


# ---------------------------------------------------------------------------
# Wrappers around pallas_call
# ---------------------------------------------------------------------------

def _im2col_pooled(x, ksize, stride):
    """NHWC -> four (N*PH*PW, ksize*ksize*C) patch matrices, one per corner of
    the 2x2 max-pool window over the conv output (floor pool semantics).
    Column order is (kh, kw, ci), matching the (2,3,1,0) weight transpose."""
    # TODO(synk): could be replaced by lax.conv_general_dilated_patches to
    # shrink the glue HLO; kept as explicit slices for verified ordering.
    N, H, W, C = x.shape
    OH = (H - ksize) // stride + 1
    OW = (W - ksize) // stride + 1
    PH, PW = OH // 2, OW // 2
    corners = []
    for di in (0, 1):
        for dj in (0, 1):
            cols = []
            for kh in range(ksize):
                for kw in range(ksize):
                    r0 = stride * di + kh
                    c0 = stride * dj + kw
                    cols.append(
                        x[:, r0:r0 + 2 * stride * (PH - 1) + 1:2 * stride,
                             c0:c0 + 2 * stride * (PW - 1) + 1:2 * stride, :])
            patches = jnp.concatenate(cols, axis=-1)       # (N, PH, PW, k*k*C)
            corners.append(patches.reshape(N * PH * PW, ksize * ksize * C))
    return corners, (N, PH, PW)


def conv_relu_pool(x, w_mat, b, *, ksize, stride):
    """Fused Conv2d + ReLU + MaxPool2d(2,2).
    x: NHWC f32, w_mat: (Kp, Cout) bf16 (K zero-padded), b: (1, Cout) f32.
    Returns (N, PH, PW, Cout) f32."""
    corners, (N, PH, PW) = _im2col_pooled(x, ksize, stride)
    M = N * PH * PW
    Kp, Cout = w_mat.shape
    Mp, TM = _m_tiling(M)

    padded = []
    for c in corners:
        c = c.astype(jnp.bfloat16)                          # halve HBM traffic
        c = jnp.pad(c, ((0, Mp - M), (0, Kp - c.shape[1])))  # M tile + K lane pad
        padded.append(c)

    out = pl.pallas_call(
        _conv_relu_pool_kernel,
        out_shape=jax.ShapeDtypeStruct((Mp, Cout), jnp.float32),
        grid_spec=pltpu.PrefetchScalarGridSpec(
            num_scalar_prefetch=0,
            grid=(Mp // TM,),
            in_specs=[pl.BlockSpec((TM, Kp), lambda i: (i, 0))] * 4
                     + [pl.BlockSpec((Kp, Cout), lambda i: (0, 0)),
                        pl.BlockSpec((1, Cout), lambda i: (0, 0))],
            out_specs=pl.BlockSpec((TM, Cout), lambda i: (i, 0)),
        ),
        compiler_params=pltpu.CompilerParams(
            dimension_semantics=("parallel",),   # M tiles are independent
            vmem_limit_bytes=VMEM_LIMIT,
        ),
    )(*padded, w_mat, b)
    return out[:M].reshape(N, PH, PW, Cout)


def fc1_relu_fc2_partials(x, w1, b1, w2):
    """Fused Linear(1452,1452)+ReLU -> Linear(1452,500) (minus fc2 bias),
    returned as 2 f32 partials so both v7x TensorCores stream half the
    bf16 weights each.  x: (B, 1452) f32; w1: (1536, 1536) bf16;
    b1: (1, 1536) f32; w2: (1536, 512) bf16."""
    B, K = x.shape
    K1p, N1p = w1.shape
    _, N2p = w2.shape
    Mp = max(16, _round_up(B, 16))               # bf16 sublane packing
    xp = jnp.pad(x, ((0, Mp - B), (0, K1p - K))).astype(jnp.bfloat16)
    n_split = N1p // FC_TN                       # 1536 // 768 = 2

    partials = pl.pallas_call(
        _fc_partial_kernel,
        out_shape=jax.ShapeDtypeStruct((n_split, Mp, N2p), jnp.float32),
        grid_spec=pltpu.PrefetchScalarGridSpec(
            num_scalar_prefetch=0,
            grid=(n_split,),
            in_specs=[
                pl.BlockSpec((Mp, K1p), lambda j: (0, 0)),     # x: resident
                pl.BlockSpec((K1p, FC_TN), lambda j: (0, j)),  # w1 half streams
                pl.BlockSpec((1, FC_TN), lambda j: (0, j)),    # b1 half
                pl.BlockSpec((FC_TN, N2p), lambda j: (j, 0)),  # w2 half streams
            ],
            out_specs=pl.BlockSpec((1, Mp, N2p), lambda j: (j, 0, 0)),
        ),
        compiler_params=pltpu.CompilerParams(
            dimension_semantics=("parallel",),   # independent weight halves
            vmem_limit_bytes=VMEM_LIMIT,
        ),
    )(xp, w1, b1, w2)
    return partials                               # (2, Mp, N2p) f32


# ---------------------------------------------------------------------------
# Net forward
# ---------------------------------------------------------------------------

def net_forward(x_nchw, p):
    # Input NCHW (PyTorch) -> NHWC internally so channels map to lanes.
    x = jnp.transpose(x_nchw, (0, 2, 3, 1))
    x = conv_relu_pool(x, p["conv1_wm"], p["conv1_b"], ksize=11, stride=4)  # (N,27,27,6)
    x = conv_relu_pool(x, p["conv2_wm"], p["conv2_b"], ksize=5, stride=1)   # (N,11,11,12)
    n = x.shape[0]
    # Flatten in (C, H, W) order to match PyTorch's x.view(-1, 12*11*11).
    x = jnp.transpose(x, (0, 3, 1, 2)).reshape(n, D_FC)
    partials = fc1_relu_fc2_partials(x, p["fc1_w"], p["fc1_b"], p["fc2_w"])
    out = partials[0] + partials[1] + p["fc2_b"]   # tiny (Mp, 512) epilogue
    return out[:n, :D_OUT]


def prepare_params(params):
    """One-time weight transformation (outside the forward hot path):
    conv weights -> im2col matrices (bf16, conv1 K padded to 128);
    fc weights -> zero-padded bf16."""
    def pad2(a, rows, cols):
        return jnp.pad(a, ((0, rows - a.shape[0]), (0, cols - a.shape[1])))

    conv1_wm = jnp.transpose(params["conv1_w"], (2, 3, 1, 0)).reshape(11 * 11 * 1, 6)
    conv1_wm = pad2(conv1_wm, K1_PAD, 6).astype(jnp.bfloat16)
    conv2_wm = jnp.transpose(params["conv2_w"], (2, 3, 1, 0)).reshape(5 * 5 * 6, 12)
    conv2_wm = conv2_wm.astype(jnp.bfloat16)
    return {
        "conv1_wm": conv1_wm,
        "conv1_b": params["conv1_b"].reshape(1, 6),
        "conv2_wm": conv2_wm,
        "conv2_b": params["conv2_b"].reshape(1, 12),
        "fc1_w": pad2(params["fc1_w"], D_FC_PAD, D_FC_PAD).astype(jnp.bfloat16),
        "fc1_b": jnp.pad(params["fc1_b"], (0, D_FC_PAD - D_FC)).reshape(1, D_FC_PAD),
        "fc2_w": pad2(params["fc2_w"], D_FC_PAD, D_OUT_PAD).astype(jnp.bfloat16),
        "fc2_b": jnp.pad(params["fc2_b"], (0, D_OUT_PAD - D_OUT)).reshape(1, D_OUT_PAD),
    }


def init_params(key):
    """Deterministic synthetic params, PyTorch-default-style uniform init."""
    def uniform(k, shape, fan_in):
        bound = 1.0 / float(fan_in) ** 0.5
        return jax.random.uniform(k, shape, jnp.float32, -bound, bound)

    ks = jax.random.split(key, 8)
    d = D_FC  # 1452
    return {
        "conv1_w": uniform(ks[0], (6, 1, 11, 11), 1 * 11 * 11),   # torch layout
        "conv1_b": uniform(ks[1], (6,), 1 * 11 * 11),
        "conv2_w": uniform(ks[2], (12, 6, 5, 5), 6 * 5 * 5),      # torch layout
        "conv2_b": uniform(ks[3], (12,), 6 * 5 * 5),
        "fc1_w": uniform(ks[4], (d, d), d),                       # stored (in, out)
        "fc1_b": uniform(ks[5], (d,), d),
        "fc2_w": uniform(ks[6], (d, 500), d),                     # stored (in, out)
        "fc2_b": uniform(ks[7], (500,), d),
    }


if __name__ == "__main__":
    key = jax.random.PRNGKey(0)
    pkey, xkey = jax.random.split(key)
    params = init_params(pkey)
    prepared = prepare_params(params)
    # 12*11*11 fc1 input forces 227x227 spatial; batch kept small (2).
    x = jax.random.normal(xkey, (2, 1, 227, 227), jnp.float32)

    out = jax.jit(net_forward)(x, prepared)
    out = jax.block_until_ready(out)

    assert out.shape == (2, 500), out.shape
    assert bool(jnp.all(jnp.isfinite(out)))
    print("KERNEL_OK")
</pallas_src>

<mosaic_0001>
module attributes {stable_mosaic.version = 11 : i64} {
  func.func @_conv_relu_pool_kernel(%arg0: i32, %arg1: memref<512x128xbf16, #tpu.memory_space<vmem>>, %arg2: memref<512x128xbf16, #tpu.memory_space<vmem>>, %arg3: memref<512x128xbf16, #tpu.memory_space<vmem>>, %arg4: memref<512x128xbf16, #tpu.memory_space<vmem>>, %arg5: memref<128x6xbf16, #tpu.memory_space<vmem>>, %arg6: memref<1x6xf32, #tpu.memory_space<vmem>>, %arg7: memref<512x6xf32, #tpu.memory_space<vmem>>) attributes {dimension_semantics = [#tpu.dimension_semantics<parallel>], iteration_bounds = array<i64: 3>, scalar_prefetch = 0 : i64, scratch_operands = 0 : i64, tpu.core_type = #tpu.core_type<tc>, window_params = [{transform_indices = @transform_0, window_bounds = array<i64: 512, 128>}, {transform_indices = @transform_1, window_bounds = array<i64: 512, 128>}, {transform_indices = @transform_2, window_bounds = array<i64: 512, 128>}, {transform_indices = @transform_3, window_bounds = array<i64: 512, 128>}, {pipeline_mode = #tpu.pipeline_mode<synchronous>, transform_indices = @transform_4, window_bounds = array<i64: 128, 6>}, {pipeline_mode = #tpu.pipeline_mode<synchronous>, transform_indices = @transform_5, window_bounds = array<i64: 1, 6>}, {transform_indices = @transform_6, window_bounds = array<i64: 512, 6>}]} {
    %c0 = arith.constant 0 : index
    %c0_0 = arith.constant 0 : index
    %0 = vector.load %arg5[%c0, %c0_0] : memref<128x6xbf16, #tpu.memory_space<vmem>>, vector<128x6xbf16>
    %c0_1 = arith.constant 0 : index
    %c0_2 = arith.constant 0 : index
    %1 = vector.load %arg1[%c0_1, %c0_2] : memref<512x128xbf16, #tpu.memory_space<vmem>>, vector<512x128xbf16>
    %cst = arith.constant dense<0.000000e+00> : vector<512x6xf32>
    %2 = tpu.matmul %1, %0, %cst {dimension_numbers = #tpu.dot_dimension_numbers<[1], [0], [0], [1], [0, 0, 1, 1], [], []>} : vector<512x128xbf16>, vector<128x6xbf16>, vector<512x6xf32> -> vector<512x6xf32>
    %c0_3 = arith.constant 0 : index
    %c0_4 = arith.constant 0 : index
    %3 = vector.load %arg2[%c0_3, %c0_4] : memref<512x128xbf16, #tpu.memory_space<vmem>>, vector<512x128xbf16>
    %cst_5 = arith.constant dense<0.000000e+00> : vector<512x6xf32>
    %4 = tpu.matmul %3, %0, %cst_5 {dimension_numbers = #tpu.dot_dimension_numbers<[1], [0], [0], [1], [0, 0, 1, 1], [], []>} : vector<512x128xbf16>, vector<128x6xbf16>, vector<512x6xf32> -> vector<512x6xf32>
    %5 = arith.maximumf %2, %4 : vector<512x6xf32>
    %c0_6 = arith.constant 0 : index
    %c0_7 = arith.constant 0 : index
    %6 = vector.load %arg3[%c0_6, %c0_7] : memref<512x128xbf16, #tpu.memory_space<vmem>>, vector<512x128xbf16>
    %cst_8 = arith.constant dense<0.000000e+00> : vector<512x6xf32>
    %7 = tpu.matmul %6, %0, %cst_8 {dimension_numbers = #tpu.dot_dimension_numbers<[1], [0], [0], [1], [0, 0, 1, 1], [], []>} : vector<512x128xbf16>, vector<128x6xbf16>, vector<512x6xf32> -> vector<512x6xf32>
    %c0_9 = arith.constant 0 : index
    %c0_10 = arith.constant 0 : index
    %8 = vector.load %arg4[%c0_9, %c0_10] : memref<512x128xbf16, #tpu.memory_space<vmem>>, vector<512x128xbf16>
    %cst_11 = arith.constant dense<0.000000e+00> : vector<512x6xf32>
    %9 = tpu.matmul %8, %0, %cst_11 {dimension_numbers = #tpu.dot_dimension_numbers<[1], [0], [0], [1], [0, 0, 1, 1], [], []>} : vector<512x128xbf16>, vector<128x6xbf16>, vector<512x6xf32> -> vector<512x6xf32>
    %10 = arith.maximumf %7, %9 : vector<512x6xf32>
    %11 = arith.maximumf %5, %10 : vector<512x6xf32>
    %c0_12 = arith.constant 0 : index
    %c0_13 = arith.constant 0 : index
    %12 = vector.load %arg6[%c0_12, %c0_13] : memref<1x6xf32, #tpu.memory_space<vmem>>, vector<1x6xf32>
    %13 = vector.broadcast %12 : vector<1x6xf32> to vector<512x6xf32>
    %14 = arith.addf %11, %13 : vector<512x6xf32>
    %cst_14 = arith.constant 0.000000e+00 : f32
    %15 = vector.broadcast %cst_14 : f32 to vector<512x6xf32>
    %16 = arith.maximumf %14, %15 : vector<512x6xf32>
    %c0_15 = arith.constant 0 : index
    %c0_16 = arith.constant 0 : index
    %17 = vector.load %arg7[%c0_15, %c0_16] : memref<512x6xf32, #tpu.memory_space<vmem>>, vector<512x6xf32>
    tpu.vector_store %arg7[%c0_15, %c0_16], %16 {strides = array<i32>} : memref<512x6xf32, #tpu.memory_space<vmem>>, vector<512x6xf32>,
    return
  }
  func.func @transform_0(%arg0: i32) -> (i32, i32) {
    %c0_i32 = arith.constant 0 : i32
    %c0_i32_0 = arith.constant 0 : i32
    return %arg0, %c0_i32 : i32, i32
  }
  func.func @transform_1(%arg0: i32) -> (i32, i32) {
    %c0_i32 = arith.constant 0 : i32
    %c0_i32_0 = arith.constant 0 : i32
    return %arg0, %c0_i32 : i32, i32
  }
  func.func @transform_2(%arg0: i32) -> (i32, i32) {
    %c0_i32 = arith.constant 0 : i32
    %c0_i32_0 = arith.constant 0 : i32
    return %arg0, %c0_i32 : i32, i32
  }
  func.func @transform_3(%arg0: i32) -> (i32, i32) {
    %c0_i32 = arith.constant 0 : i32
    %c0_i32_0 = arith.constant 0 : i32
    return %arg0, %c0_i32 : i32, i32
  }
  func.func @transform_4(%arg0: i32) -> (i32, i32) {
    %c0_i32 = arith.constant 0 : i32
    %c0_i32_0 = arith.constant 0 : i32
    %c0_i32_1 = arith.constant 0 : i32
    return %c0_i32, %c0_i32_0 : i32, i32
  }
  func.func @transform_5(%arg0: i32) -> (i32, i32) {
    %c0_i32 = arith.constant 0 : i32
    %c0_i32_0 = arith.constant 0 : i32
    %c0_i32_1 = arith.constant 0 : i32
    return %c0_i32, %c0_i32_0 : i32, i32
  }
  func.func @transform_6(%arg0: i32) -> (i32, i32) {
    %c0_i32 = arith.constant 0 : i32
    %c0_i32_0 = arith.constant 0 : i32
    return %arg0, %c0_i32 : i32, i32
  }
}

module attributes {stable_mosaic.version = 11 : i64} {
  func.func @_conv_relu_pool_kernel(%arg0: i32, %arg1: memref<128x150xbf16, #tpu.memory_space<vmem>>, %arg2: memref<128x150xbf16, #tpu.memory_space<vmem>>, %arg3: memref<128x150xbf16, #tpu.memory_space<vmem>>, %arg4: memref<128x150xbf16, #tpu.memory_space<vmem>>, %arg5: memref<150x12xbf16, #tpu.memory_space<vmem>>, %arg6: memref<1x12xf32, #tpu.memory_space<vmem>>, %arg7: memref<128x12xf32, #tpu.memory_space<vmem>>) attributes {dimension_semantics = [#tpu.dimension_semantics<parallel>], iteration_bounds = array<i64: 2>, scalar_prefetch = 0 : i64, scratch_operands = 0 : i64, tpu.core_type = #tpu.core_type<tc>, window_params = [{transform_indices = @transform_0, window_bounds = array<i64: 128, 150>}, {transform_indices = @transform_1, window_bounds = array<i64: 128, 150>}, {transform_indices = @transform_2, window_bounds = array<i64: 128, 150>}, {transform_indices = @transform_3, window_bounds = array<i64: 128, 150>}, {pipeline_mode = #tpu.pipeline_mode<synchronous>, transform_indices = @transform_4, window_bounds = array<i64: 150, 12>}, {pipeline_mode = #tpu.pipeline_mode<synchronous>, transform_indices = @transform_5, window_bounds = array<i64: 1, 12>}, {transform_indices = @transform_6, window_bounds = array<i64: 128, 12>}]} {
    %c0 = arith.constant 0 : index
    %c0_0 = arith.constant 0 : index
    %0 = vector.load %arg5[%c0, %c0_0] : memref<150x12xbf16, #tpu.memory_space<vmem>>, vector<150x12xbf16>
    %c0_1 = arith.constant 0 : index
    %c0_2 = arith.constant 0 : index
    %1 = vector.load %arg1[%c0_1, %c0_2] : memref<128x150xbf16, #tpu.memory_space<vmem>>, vector<128x150xbf16>
    %cst = arith.constant dense<0.000000e+00> : vector<128x12xf32>
    %2 = tpu.matmul %1, %0, %cst {dimension_numbers = #tpu.dot_dimension_numbers<[1], [0], [0], [1], [0, 0, 1, 1], [], []>} : vector<128x150xbf16>, vector<150x12xbf16>, vector<128x12xf32> -> vector<128x12xf32>
    %c0_3 = arith.constant 0 : index
    %c0_4 = arith.constant 0 : index
    %3 = vector.load %arg2[%c0_3, %c0_4] : memref<128x150xbf16, #tpu.memory_space<vmem>>, vector<128x150xbf16>
    %cst_5 = arith.constant dense<0.000000e+00> : vector<128x12xf32>
    %4 = tpu.matmul %3, %0, %cst_5 {dimension_numbers = #tpu.dot_dimension_numbers<[1], [0], [0], [1], [0, 0, 1, 1], [], []>} : vector<128x150xbf16>, vector<150x12xbf16>, vector<128x12xf32> -> vector<128x12xf32>
    %5 = arith.maximumf %2, %4 : vector<128x12xf32>
    %c0_6 = arith.constant 0 : index
    %c0_7 = arith.constant 0 : index
    %6 = vector.load %arg3[%c0_6, %c0_7] : memref<128x150xbf16, #tpu.memory_space<vmem>>, vector<128x150xbf16>
    %cst_8 = arith.constant dense<0.000000e+00> : vector<128x12xf32>
    %7 = tpu.matmul %6, %0, %cst_8 {dimension_numbers = #tpu.dot_dimension_numbers<[1], [0], [0], [1], [0, 0, 1, 1], [], []>} : vector<128x150xbf16>, vector<150x12xbf16>, vector<128x12xf32> -> vector<128x12xf32>
    %c0_9 = arith.constant 0 : index
    %c0_10 = arith.constant 0 : index
    %8 = vector.load %arg4[%c0_9, %c0_10] : memref<128x150xbf16, #tpu.memory_space<vmem>>, vector<128x150xbf16>
    %cst_11 = arith.constant dense<0.000000e+00> : vector<128x12xf32>
    %9 = tpu.matmul %8, %0, %cst_11 {dimension_numbers = #tpu.dot_dimension_numbers<[1], [0], [0], [1], [0, 0, 1, 1], [], []>} : vector<128x150xbf16>, vector<150x12xbf16>, vector<128x12xf32> -> vector<128x12xf32>
    %10 = arith.maximumf %7, %9 : vector<128x12xf32>
    %11 = arith.maximumf %5, %10 : vector<128x12xf32>
    %c0_12 = arith.constant 0 : index
    %c0_13 = arith.constant 0 : index
    %12 = vector.load %arg6[%c0_12, %c0_13] : memref<1x12xf32, #tpu.memory_space<vmem>>, vector<1x12xf32>
    %13 = vector.broadcast %12 : vector<1x12xf32> to vector<128x12xf32>
    %14 = arith.addf %11, %13 : vector<128x12xf32>
    %cst_14 = arith.constant 0.000000e+00 : f32
    %15 = vector.broadcast %cst_14 : f32 to vector<128x12xf32>
    %16 = arith.maximumf %14, %15 : vector<128x12xf32>
    %c0_15 = arith.constant 0 : index
    %c0_16 = arith.constant 0 : index
    %17 = vector.load %arg7[%c0_15, %c0_16] : memref<128x12xf32, #tpu.memory_space<vmem>>, vector<128x12xf32>
    tpu.vector_store %arg7[%c0_15, %c0_16], %16 {strides = array<i32>} : memref<128x12xf32, #tpu.memory_space<vmem>>, vector<128x12xf32>,
    return
  }
  func.func @transform_0(%arg0: i32) -> (i32, i32) {
    %c0_i32 = arith.constant 0 : i32
    %c0_i32_0 = arith.constant 0 : i32
    return %arg0, %c0_i32 : i32, i32
  }
  func.func @transform_1(%arg0: i32) -> (i32, i32) {
    %c0_i32 = arith.constant 0 : i32
    %c0_i32_0 = arith.constant 0 : i32
    return %arg0, %c0_i32 : i32, i32
  }
  func.func @transform_2(%arg0: i32) -> (i32, i32) {
    %c0_i32 = arith.constant 0 : i32
    %c0_i32_0 = arith.constant 0 : i32
    return %arg0, %c0_i32 : i32, i32
  }
  func.func @transform_3(%arg0: i32) -> (i32, i32) {
    %c0_i32 = arith.constant 0 : i32
    %c0_i32_0 = arith.constant 0 : i32
    return %arg0, %c0_i32 : i32, i32
  }
  func.func @transform_4(%arg0: i32) -> (i32, i32) {
    %c0_i32 = arith.constant 0 : i32
    %c0_i32_0 = arith.constant 0 : i32
    %c0_i32_1 = arith.constant 0 : i32
    return %c0_i32, %c0_i32_0 : i32, i32
  }
  func.func @transform_5(%arg0: i32) -> (i32, i32) {
    %c0_i32 = arith.constant 0 : i32
    %c0_i32_0 = arith.constant 0 : i32
    %c0_i32_1 = arith.constant 0 : i32
    return %c0_i32, %c0_i32_0 : i32, i32
  }
  func.func @transform_6(%arg0: i32) -> (i32, i32) {
    %c0_i32 = arith.constant 0 : i32
    %c0_i32_0 = arith.constant 0 : i32
    return %arg0, %c0_i32 : i32, i32
  }
}

module attributes {stable_mosaic.version = 11 : i64} {
  func.func @_fc_partial_kernel(%arg0: i32, %arg1: memref<16x1536xbf16, #tpu.memory_space<vmem>>, %arg2: memref<1536x768xbf16, #tpu.memory_space<vmem>>, %arg3: memref<1x768xf32, #tpu.memory_space<vmem>>, %arg4: memref<768x512xbf16, #tpu.memory_space<vmem>>, %arg5: memref<1x16x512xf32, #tpu.memory_space<vmem>>) attributes {dimension_semantics = [#tpu.dimension_semantics<parallel>], iteration_bounds = array<i64: 2>, scalar_prefetch = 0 : i64, scratch_operands = 0 : i64, tpu.core_type = #tpu.core_type<tc>, window_params = [{pipeline_mode = #tpu.pipeline_mode<synchronous>, transform_indices = @transform_0, window_bounds = array<i64: 16, 1536>}, {transform_indices = @transform_1, window_bounds = array<i64: 1536, 768>}, {transform_indices = @transform_2, window_bounds = array<i64: 1, 768>}, {transform_indices = @transform_3, window_bounds = array<i64: 768, 512>}, {transform_indices = @transform_4, window_bounds = array<i64: 1, 16, 512>}]} {
    %c0 = arith.constant 0 : index
    %c0_0 = arith.constant 0 : index
    %0 = vector.load %arg1[%c0, %c0_0] : memref<16x1536xbf16, #tpu.memory_space<vmem>>, vector<16x1536xbf16>
    %c0_1 = arith.constant 0 : index
    %c0_2 = arith.constant 0 : index
    %1 = vector.load %arg2[%c0_1, %c0_2] : memref<1536x768xbf16, #tpu.memory_space<vmem>>, vector<1536x768xbf16>
    %cst = arith.constant dense<0.000000e+00> : vector<16x768xf32>
    %2 = tpu.matmul %0, %1, %cst {dimension_numbers = #tpu.dot_dimension_numbers<[1], [0], [0], [1], [0, 0, 1, 1], [], []>} : vector<16x1536xbf16>, vector<1536x768xbf16>, vector<16x768xf32> -> vector<16x768xf32>
    %c0_3 = arith.constant 0 : index
    %c0_4 = arith.constant 0 : index
    %3 = vector.load %arg3[%c0_3, %c0_4] : memref<1x768xf32, #tpu.memory_space<vmem>>, vector<1x768xf32>
    %4 = vector.broadcast %3 : vector<1x768xf32> to vector<16x768xf32>
    %5 = arith.addf %2, %4 : vector<16x768xf32>
    %cst_5 = arith.constant 0.000000e+00 : f32
    %6 = vector.broadcast %cst_5 : f32 to vector<16x768xf32>
    %7 = arith.maximumf %5, %6 : vector<16x768xf32>
    %8 = arith.truncf %7 : vector<16x768xf32> to vector<16x768xbf16>
    %c0_6 = arith.constant 0 : index
    %c0_7 = arith.constant 0 : index
    %9 = vector.load %arg4[%c0_6, %c0_7] : memref<768x512xbf16, #tpu.memory_space<vmem>>, vector<768x512xbf16>
    %cst_8 = arith.constant dense<0.000000e+00> : vector<16x512xf32>
    %10 = tpu.matmul %8, %9, %cst_8 {dimension_numbers = #tpu.dot_dimension_numbers<[1], [0], [0], [1], [0, 0, 1, 1], [], []>} : vector<16x768xbf16>, vector<768x512xbf16>, vector<16x512xf32> -> vector<16x512xf32>
    %c0_9 = arith.constant 0 : index
    %c0_10 = arith.constant 0 : index
    %c0_11 = arith.constant 0 : index
    %11 = vector.load %arg5[%c0_9, %c0_10, %c0_11] : memref<1x16x512xf32, #tpu.memory_space<vmem>>, vector<1x16x512xf32>
    %12 = vector.shape_cast %11 : vector<1x16x512xf32> to vector<16x512xf32>
    %13 = vector.shape_cast %10 : vector<16x512xf32> to vector<1x16x512xf32>
    tpu.vector_store %arg5[%c0_9, %c0_10, %c0_11], %13 {strides = array<i32>} : memref<1x16x512xf32, #tpu.memory_space<vmem>>, vector<1x16x512xf32>,
    return
  }
  func.func @transform_0(%arg0: i32) -> (i32, i32) {
    %c0_i32 = arith.constant 0 : i32
    %c0_i32_0 = arith.constant 0 : i32
    %c0_i32_1 = arith.constant 0 : i32
    return %c0_i32, %c0_i32_0 : i32, i32
  }
  func.func @transform_1(%arg0: i32) -> (i32, i32) {
    %c0_i32 = arith.constant 0 : i32
    %c0_i32_0 = arith.constant 0 : i32
    return %c0_i32, %arg0 : i32, i32
  }
  func.func @transform_2(%arg0: i32) -> (i32, i32) {
    %c0_i32 = arith.constant 0 : i32
    %c0_i32_0 = arith.constant 0 : i32
    return %c0_i32, %arg0 : i32, i32
  }
  func.func @transform_3(%arg0: i32) -> (i32, i32) {
    %c0_i32 = arith.constant 0 : i32
    %c0_i32_0 = arith.constant 0 : i32
    return %arg0, %c0_i32 : i32, i32
  }
  func.func @transform_4(%arg0: i32) -> (i32, i32, i32) {
    %c0_i32 = arith.constant 0 : i32
    %c0_i32_0 = arith.constant 0 : i32
    %c0_i32_1 = arith.constant 0 : i32
    return %arg0, %c0_i32, %c0_i32_0 : i32, i32, i32
  }
}

</mosaic_0001>

<llo_original>
// kernel: net_forward.3
$region0: #{net_forward.3}
  #allocation0 [shape = 'u32[]', space=smem, size = 0x4, offset = 0x4, fixed_abs, tag = 'smem constant byte address 0x4 - core index']
  #allocation1 [shape = 'u32[144,128]{1,0:T(1,128)}', space=vmem, size = 0x12000, scoped, tag = 'internal scratch']
  %s0 = inlined_call_operand.vmem [shape: bf16[1536,128], index: 0, kind: input, shape index: {}]
  %s1 = inlined_call_operand.vmem [shape: bf16[1536,128], index: 1, kind: input, shape index: {}]
  %s2 = inlined_call_operand.vmem [shape: bf16[1536,128], index: 2, kind: input, shape index: {}]
  %s3 = inlined_call_operand.vmem [shape: bf16[1536,128], index: 3, kind: input, shape index: {}]
  %s4 = inlined_call_operand.vmem [shape: bf16[128,6], index: 4, kind: input, shape index: {}]
  %s5 = inlined_call_operand.vmem [shape: f32[1,6], index: 5, kind: input, shape index: {}]
  %s6 = inlined_call_operand.vmem [shape: f32[1536,6], index: 6, kind: output, shape index: {}]
  %s7 = sld [smem:[#allocation0]]
  $region57: #{net_forward.3} parent=0
    _
  %s9 = ssub.s32 1, %s7
  %s10 = scalar_select 0, %s9, %s7
  loop: start=0, step=1, limit=5
  $region2: #{net_forward.3} parent=0 // loop_pre_header
    _
  $region3: #{net_forward.3} parent=0 // loop_header
    %s12 = sphi 0, %s16
    %p13 = scmp.ge.s32.totalorder %s12, 5
    %s22 = sphi 0, %s24
    %s25 = sphi 0, %s22
    %s26 = sphi 0, %s25
    %s42 = sphi 0, %s26
    %s48 = sphi 0, %s50
    %s51 = sphi 0, %s48
    %s52 = sphi 0, %s51
    %s68 = sphi 0, %s52
    %s74 = sphi 0, %s76
    %s77 = sphi 0, %s74
    %s78 = sphi 0, %s77
    %s94 = sphi 0, %s78
    %s100 = sphi 0, %s102
    %s103 = sphi 0, %s100
    %s104 = sphi 0, %s103
    %s120 = sphi 0, %s104
    %s124 = sphi 0, %s124
    %s126 = sphi 0, %s124
    %s127 = sphi 0, %s126
    %s141 = sphi 0, %s127
    %s145 = sphi 0, %s145
    %s147 = sphi 0, %s145
    %s148 = sphi 0, %s147
    %s162 = sphi 0, %s148
    %s168 = sphi 0, %s170
    %s171 = sphi 0, %s168
    %s172 = sphi 0, %s171
    %s188 = sphi 0, %s172
  $region4: #{net_forward.3} parent=0 // loop_header_branch
    %15 = sbr.rel (%p13) target = $region8
  $region5: #{net_forward.3} parent=0 // loop_body
    %s17 = ssub.s32 %s12, 1
    %s18 = ssub.s32 %s12, 2
    %s19 = sadd.s32 %s12, 1
    %s20 = ssub.s32 %s12, %s19
    %p21 = scmp.eq.s32.totalorder %s20, 0
    %s23 = sadd.s32 %s22, 1
    %s24 = scalar_select %p21, %s22, %s23
    %p27 = pneg %p21
    %p28 = scmp.eq.s32.totalorder %s12, 2
    %p29 = por %p27, %p28
    %p30 = scmp.ne.s32.totalorder %s22, %s25
    %p31 = scmp.eq.s32.totalorder %s12, 0
    %p32 = por %p30, %p31
    %p33 = scmp.ne.s32.totalorder %s22, %s25
    %p34 = scmp.eq.s32.totalorder %s17, 2
    %p35 = por %p33, %p34
    %p36 = scmp.ne.s32.totalorder %s25, %s26
    %p37 = scmp.eq.s32.totalorder %s17, 0
    %p38 = por %p36, %p37
    %p39 = scmp.ne.s32.totalorder %s25, %s26
    %p40 = scmp.eq.s32.totalorder %s18, 2
    %p41 = por %p39, %p40
    %p43 = scmp.ne.s32.totalorder %s26, %s42
    %p44 = scmp.eq.s32.totalorder %s18, 0
    %p45 = por %p43, %p44
    %s46 = ssub.s32 %s12, %s19
    %p47 = scmp.eq.s32.totalorder %s46, 0
    %s49 = sadd.s32 %s48, 1
    %s50 = scalar_select %p47, %s48, %s49
    %p53 = pneg %p47
    %p54 = scmp.eq.s32.totalorder %s12, 2
    %p55 = por %p53, %p54
    %p56 = scmp.ne.s32.totalorder %s48, %s51
    %p57 = scmp.eq.s32.totalorder %s12, 0
    %p58 = por %p56, %p57
    %p59 = scmp.ne.s32.totalorder %s48, %s51
    %p60 = scmp.eq.s32.totalorder %s17, 2
    %p61 = por %p59, %p60
    %p62 = scmp.ne.s32.totalorder %s51, %s52
    %p63 = scmp.eq.s32.totalorder %s17, 0
    %p64 = por %p62, %p63
    %p65 = scmp.ne.s32.totalorder %s51, %s52
    %p66 = scmp.eq.s32.totalorder %s18, 2
    %p67 = por %p65, %p66
    %p69 = scmp.ne.s32.totalorder %s52, %s68
    %p70 = scmp.eq.s32.totalorder %s18, 0
    %p71 = por %p69, %p70
    %s72 = ssub.s32 %s12, %s19
    %p73 = scmp.eq.s32.totalorder %s72, 0
    %s75 = sadd.s32 %s74, 1
    %s76 = scalar_select %p73, %s74, %s75
    %p79 = pneg %p73
    %p80 = scmp.eq.s32.totalorder %s12, 2
    %p81 = por %p79, %p80
    %p82 = scmp.ne.s32.totalorder %s74, %s77
    %p83 = scmp.eq.s32.totalorder %s12, 0
    %p84 = por %p82, %p83
    %p85 = scmp.ne.s32.totalorder %s74, %s77
    %p86 = scmp.eq.s32.totalorder %s17, 2
    %p87 = por %p85, %p86
    %p88 = scmp.ne.s32.totalorder %s77, %s78
    %p89 = scmp.eq.s32.totalorder %s17, 0
    %p90 = por %p88, %p89
    %p91 = scmp.ne.s32.totalorder %s77, %s78
    %p92 = scmp.eq.s32.totalorder %s18, 2
    %p93 = por %p91, %p92
    %p95 = scmp.ne.s32.totalorder %s78, %s94
    %p96 = scmp.eq.s32.totalorder %s18, 0
    %p97 = por %p95, %p96
    %s98 = ssub.s32 %s12, %s19
    %p99 = scmp.eq.s32.totalorder %s98, 0
    %s101 = sadd.s32 %s100, 1
    %s102 = scalar_select %p99, %s100, %s101
    %p105 = pneg %p99
    %p106 = scmp.eq.s32.totalorder %s12, 2
    %p107 = por %p105, %p106
    %p108 = scmp.ne.s32.totalorder %s100, %s103
    %p109 = scmp.eq.s32.totalorder %s12, 0
    %p110 = por %p108, %p109
    %p111 = scmp.ne.s32.totalorder %s100, %s103
    %p112 = scmp.eq.s32.totalorder %s17, 2
    %p113 = por %p111, %p112
    %p114 = scmp.ne.s32.totalorder %s103, %s104
    %p115 = scmp.eq.s32.totalorder %s17, 0
    %p116 = por %p114, %p115
    %p117 = scmp.ne.s32.totalorder %s103, %s104
    %p118 = scmp.eq.s32.totalorder %s18, 2
    %p119 = por %p117, %p118
    %p121 = scmp.ne.s32.totalorder %s104, %s120
    %p122 = scmp.eq.s32.totalorder %s18, 0
    %p123 = por %p121, %p122
    %s125 = sadd.s32 %s124, 1
    %p128 = scmp.eq.s32.totalorder %s12, 2
    %p129 = scmp.ne.s32.totalorder %s124, %s126
    %p130 = scmp.eq.s32.totalorder %s12, 0
    %p131 = por %p129, %p130
    %p132 = scmp.ne.s32.totalorder %s124, %s126
    %p133 = scmp.eq.s32.totalorder %s17, 2
    %p134 = por %p132, %p133
    %p135 = scmp.ne.s32.totalorder %s126, %s127
    %p136 = scmp.eq.s32.totalorder %s17, 0
    %p137 = por %p135, %p136
    %p138 = scmp.ne.s32.totalorder %s126, %s127
    %p139 = scmp.eq.s32.totalorder %s18, 2
    %p140 = por %p138, %p139
    %p142 = scmp.ne.s32.totalorder %s127, %s141
    %p143 = scmp.eq.s32.totalorder %s18, 0
    %p144 = por %p142, %p143
    %s146 = sadd.s32 %s145, 1
    %p149 = scmp.eq.s32.totalorder %s12, 2
    %p150 = scmp.ne.s32.totalorder %s145, %s147
    %p151 = scmp.eq.s32.totalorder %s12, 0
    %p152 = por %p150, %p151
    %p153 = scmp.ne.s32.totalorder %s145, %s147
    %p154 = scmp.eq.s32.totalorder %s17, 2
    %p155 = por %p153, %p154
    %p156 = scmp.ne.s32.totalorder %s147, %s148
    %p157 = scmp.eq.s32.totalorder %s17, 0
    %p158 = por %p156, %p157
    %p159 = scmp.ne.s32.totalorder %s147, %s148
    %p160 = scmp.eq.s32.totalorder %s18, 2
    %p161 = por %p159, %p160
    %p163 = scmp.ne.s32.totalorder %s148, %s162
    %p164 = scmp.eq.s32.totalorder %s18, 0
    %p165 = por %p163, %p164
    %s166 = ssub.s32 %s12, %s19
    %p167 = scmp.eq.s32.totalorder %s166, 0
    %s169 = sadd.s32 %s168, 1
    %s170 = scalar_select %p167, %s168, %s169
    %p173 = pneg %p167
    %p174 = scmp.eq.s32.totalorder %s12, 2
    %p175 = por %p173, %p174
    %p176 = scmp.ne.s32.totalorder %s168, %s171
    %p177 = scmp.eq.s32.totalorder %s12, 0
    %p178 = por %p176, %p177
    %p179 = scmp.ne.s32.totalorder %s168, %s171
    %p180 = scmp.eq.s32.totalorder %s17, 2
    %p181 = por %p179, %p180
    %p182 = scmp.ne.s32.totalorder %s171, %s172
    %p183 = scmp.eq.s32.totalorder %s17, 0
    %p184 = por %p182, %p183
    %p185 = scmp.ne.s32.totalorder %s171, %s172
    %p186 = scmp.eq.s32.totalorder %s18, 2
    %p187 = por %p185, %p186
    %p189 = scmp.ne.s32.totalorder %s172, %s188
    %p190 = scmp.eq.s32.totalorder %s18, 0
    %p191 = por %p189, %p190
    %p192 = scmp.le.s32.totalorder 1, %s12
    %p193 = scmp.lt.s32.totalorder %s12, 4
    %p194 = pnand %p192, %p193
    %p195 = pneg %p194
    // Predicated region
    $region9: #{net_forward.3} parent=5 // pred_check
      _
    $region10: #{net_forward.3} parent=5 // pred_check_branch
      %197 = sbr.rel (%p194) target = $region12
    $region11: #{net_forward.3} parent=5 // pred_region
      %s198 = ssub.s32 %s12, 1
      // Predicated region
      $region13: #{net_forward.3} parent=11 // pred_check
        %p199 = pneg %p137
      $region14: #{net_forward.3} parent=11 // pred_check_branch
        %201 = sbr.rel (%p199) target = $region16
      $region15: #{net_forward.3} parent=11 // pred_region
        _
      $region16: #{net_forward.3} parent=11 // pred_fallthru
        _
      // Predicated region
      $region17: #{net_forward.3} parent=11 // pred_check
        %p202 = pneg %p158
      $region18: #{net_forward.3} parent=11 // pred_check_branch
        %204 = sbr.rel (%p202) target = $region20
      $region19: #{net_forward.3} parent=11 // pred_region
        _
      $region20: #{net_forward.3} parent=11 // pred_fallthru
        _
    $region12: #{net_forward.3} parent=5 // pred_fallthru
      _
    %p205 = scmp.lt.s32.totalorder %s12, 3
    // Predicated region
    $region21: #{net_forward.3} parent=5 // pred_check
      %p206 = pneg %p205
    $region22: #{net_forward.3} parent=5 // pred_check_branch
      %208 = sbr.rel (%p206) target = $region24
    $region23: #{net_forward.3} parent=5 // pred_region
      // Predicated region
      $region25: #{net_forward.3} parent=23 // pred_check
        %p209 = pneg %p32
      $region26: #{net_forward.3} parent=23 // pred_check_branch
        %211 = sbr.rel (%p209) target = $region28
      $region27: #{net_forward.3} parent=23 // pred_region
        %s212 = smul.u32 64, %s12
        %p213 = scmp.lt.s32.totalorder %s212, 191
        %s214 = scalar_select %p213, %s212, 191
        %s215 = smul.addr %s214, 4
        %s216 = scalar_lea.vmem %s0, %s215
        %s217 = smul.u32 64, %s12
      $region28: #{net_forward.3} parent=23 // pred_fallthru
        _
      // Predicated region
      $region29: #{net_forward.3} parent=23 // pred_check
        %p218 = pneg %p58
      $region30: #{net_forward.3} parent=23 // pred_check_branch
        %220 = sbr.rel (%p218) target = $region32
      $region31: #{net_forward.3} parent=23 // pred_region
        %s221 = smul.u32 64, %s12
        %p222 = scmp.lt.s32.totalorder %s221, 191
        %s223 = scalar_select %p222, %s221, 191
        %s224 = smul.addr %s223, 4
        %s225 = scalar_lea.vmem %s1, %s224
        %s226 = smul.u32 64, %s12
      $region32: #{net_forward.3} parent=23 // pred_fallthru
        _
      // Predicated region
      $region33: #{net_forward.3} parent=23 // pred_check
        %p227 = pneg %p84
      $region34: #{net_forward.3} parent=23 // pred_check_branch
        %229 = sbr.rel (%p227) target = $region36
      $region35: #{net_forward.3} parent=23 // pred_region
        %s230 = smul.u32 64, %s12
        %p231 = scmp.lt.s32.totalorder %s230, 191
        %s232 = scalar_select %p231, %s230, 191
        %s233 = smul.addr %s232, 4
        %s234 = scalar_lea.vmem %s2, %s233
        %s235 = smul.u32 64, %s12
      $region36: #{net_forward.3} parent=23 // pred_fallthru
        _
      // Predicated region
      $region37: #{net_forward.3} parent=23 // pred_check
        %p236 = pneg %p110
      $region38: #{net_forward.3} parent=23 // pred_check_branch
        %238 = sbr.rel (%p236) target = $region40
      $region39: #{net_forward.3} parent=23 // pred_region
        %s239 = smul.u32 64, %s12
        %p240 = scmp.lt.s32.totalorder %s239, 191
        %s241 = scalar_select %p240, %s239, 191
        %s242 = smul.addr %s241, 4
        %s243 = scalar_lea.vmem %s3, %s242
        %s244 = smul.u32 64, %s12
      $region40: #{net_forward.3} parent=23 // pred_fallthru
        _
    $region24: #{net_forward.3} parent=5 // pred_fallthru
      _
    %p245 = scmp.le.s32.totalorder 1, %s12
    %p246 = scmp.lt.s32.totalorder %s12, 4
    %p247 = pnand %p245, %p246
    %p248 = pneg %p247
    // Predicated region
    $region41: #{net_forward.3} parent=5 // pred_check
      _
    $region42: #{net_forward.3} parent=5 // pred_check_branch
      %250 = sbr.rel (%p247) target = $region44
    $region43: #{net_forward.3} parent=5 // pred_region
      %s251 = ssub.s32 %s12, 1
      %s252 = smul.u32 64, %s17
      %p253 = scmp.lt.s32.totalorder %s252, 191
      %s254 = scalar_select %p253, %s252, 191
      %s255 = smul.addr %s254, 4
      %s256 = scalar_lea.vmem %s0, %s255
      %p257 = pneg %p38
      %p258 = pneg %p35
      %s259 = smul.u32 64, %s17
      %p260 = scmp.lt.s32.totalorder %s259, 191
      %s261 = scalar_select %p260, %s259, 191
      %s262 = smul.addr %s261, 4
      %s263 = scalar_lea.vmem %s1, %s262
      %p264 = pneg %p64
      %p265 = pneg %p61
      %s266 = smul.u32 64, %s17
      %p267 = scmp.lt.s32.totalorder %s266, 191
      %s268 = scalar_select %p267, %s266, 191
      %s269 = smul.addr %s268, 4
      %s270 = scalar_lea.vmem %s2, %s269
      %p271 = pneg %p90
      %p272 = pneg %p87
      %s273 = smul.u32 64, %s17
      %p274 = scmp.lt.s32.totalorder %s273, 191
      %s275 = scalar_select %p274, %s273, 191
      %s276 = smul.addr %s275, 4
      %s277 = scalar_lea.vmem %s3, %s276
      %p278 = pneg %p116
      %p279 = pneg %p113
      %p280 = pneg %p137
      %p281 = pneg %p134
      %p282 = pneg %p158
      %p283 = pneg %p155
      %p284 = pneg %p184
      %p285 = pneg %p181
      %s286 = smul.u32 64, %s17
      %p287 = scmp.lt.s32.totalorder %s286, 191
      %s288 = scalar_select %p287, %s286, 191
      %s289 = smul.addr %s288, 8
      %s290 = scalar_lea.vmem %s6, %s289
      %s291 = smul.u32 64, %s17
      %p292 = scmp.lt.s32.totalorder %s291, 191
      %s293 = scalar_select %p292, %s291, 191
      %s294 = smul.addr %s293, 4
      %s295 = scalar_lea.vmem %s0, %s294
      %s296 = smul.u32 64, %s17
      %s297 = smul.u32 64, %s17
      %p298 = scmp.lt.s32.totalorder %s297, 191
      %s299 = scalar_select %p298, %s297, 191
      %s300 = smul.addr %s299, 4
      %s301 = scalar_lea.vmem %s1, %s300
      %s302 = smul.u32 64, %s17
      %s303 = smul.u32 64, %s17
      %p304 = scmp.lt.s32.totalorder %s303, 191
      %s305 = scalar_select %p304, %s303, 191
      %s306 = smul.addr %s305, 4
      %s307 = scalar_lea.vmem %s2, %s306
      %s308 = smul.u32 64, %s17
      %s309 = smul.u32 64, %s17
      %p310 = scmp.lt.s32.totalorder %s309, 191
      %s311 = scalar_select %p310, %s309, 191
      %s312 = smul.addr %s311, 4
      %s313 = scalar_lea.vmem %s3, %s312
      %s314 = smul.u32 64, %s17
      %s315 = smul.u32 64, %s17
      %p316 = scmp.lt.s32.totalorder %s315, 191
      %s317 = scalar_select %p316, %s315, 191
      %s318 = smul.addr %s317, 8
      %s319 = scalar_lea.vmem %s6, %s318
      %s320 = smul.u32 64, %s17
      %v322 = vld [vmem:[%s4] sm:$0xf]
      %v323 = vld [vmem:[%s4 + $0x4] sm:$0xf]
      %v324 = vld [vmem:[%s4 + $0x8] sm:$0xf]
      %v325 = vld [vmem:[%s4 + $0xc] sm:$0xf]
      %v326 = vld [vmem:[%s4 + $0x10] sm:$0xf]
      %v327 = vld [vmem:[%s4 + $0x14] sm:$0xf]
      %v328 = vld [vmem:[%s4 + $0x18] sm:$0xf]
      %v329 = vld [vmem:[%s4 + $0x1c] sm:$0xf]
      %v330 = vld [vmem:[%s4 + $0x20] sm:$0xf]
      %v331 = vld [vmem:[%s4 + $0x24] sm:$0xf]
      %v332 = vld [vmem:[%s4 + $0x28] sm:$0xf]
      %v333 = vld [vmem:[%s4 + $0x2c] sm:$0xf]
      %v334 = vld [vmem:[%s4 + $0x30] sm:$0xf]
      %v335 = vld [vmem:[%s4 + $0x34] sm:$0xf]
      %v336 = vld [vmem:[%s4 + $0x38] sm:$0xf]
      %v337 = vld [vmem:[%s4 + $0x3c] sm:$0xf]
      %v338 = vld [vmem:[%s295] sm:$0xf]
      %v339 = vld [vmem:[%s295 + $0x4] sm:$0xf]
      %v340 = vld [vmem:[%s295 + $0x8] sm:$0xf]
      %v341 = vld [vmem:[%s295 + $0xc] sm:$0xf]
      %v342 = vld [vmem:[%s295 + $0x10] sm:$0xf]
      %v343 = vld [vmem:[%s295 + $0x14] sm:$0xf]
      %v344 = vld [vmem:[%s295 + $0x18] sm:$0xf]
      %v345 = vld [vmem:[%s295 + $0x1c] sm:$0xf]
      %v346 = vld [vmem:[%s295 + $0x20] sm:$0xf]
      %v347 = vld [vmem:[%s295 + $0x24] sm:$0xf]
      %v348 = vld [vmem:[%s295 + $0x28] sm:$0xf]
      %v349 = vld [vmem:[%s295 + $0x2c] sm:$0xf]
      %v350 = vld [vmem:[%s295 + $0x30] sm:$0xf]
      %v351 = vld [vmem:[%s295 + $0x34] sm:$0xf]
      %v352 = vld [vmem:[%s295 + $0x38] sm:$0xf]
      %v353 = vld [vmem:[%s295 + $0x3c] sm:$0xf]
      %v354 = vld [vmem:[%s295 + $0x40] sm:$0xf]
      %v355 = vld [vmem:[%s295 + $0x44] sm:$0xf]
      %v356 = vld [vmem:[%s295 + $0x48] sm:$0xf]
      %v357 = vld [vmem:[%s295 + $0x4c] sm:$0xf]
      %v358 = vld [vmem:[%s295 + $0x50] sm:$0xf]
      %v359 = vld [vmem:[%s295 + $0x54] sm:$0xf]
      %v360 = vld [vmem:[%s295 + $0x58] sm:$0xf]
      %v361 = vld [vmem:[%s295 + $0x5c] sm:$0xf]
      %v362 = vld [vmem:[%s295 + $0x60] sm:$0xf]
      %v363 = vld [vmem:[%s295 + $0x64] sm:$0xf]
      %v364 = vld [vmem:[%s295 + $0x68] sm:$0xf]
      %v365 = vld [vmem:[%s295 + $0x6c] sm:$0xf]
      %v366 = vld [vmem:[%s295 + $0x70] sm:$0xf]
      %v367 = vld [vmem:[%s295 + $0x74] sm:$0xf]
      %v368 = vld [vmem:[%s295 + $0x78] sm:$0xf]
      %v369 = vld [vmem:[%s295 + $0x7c] sm:$0xf]
      %v370 = vld [vmem:[%s295 + $0x80] sm:$0xf]
      %v371 = vld [vmem:[%s295 + $0x84] sm:$0xf]
      %v372 = vld [vmem:[%s295 + $0x88] sm:$0xf]
      %v373 = vld [vmem:[%s295 + $0x8c] sm:$0xf]
      %v374 = vld [vmem:[%s295 + $0x90] sm:$0xf]
      %v375 = vld [vmem:[%s295 + $0x94] sm:$0xf]
      %v376 = vld [vmem:[%s295 + $0x98] sm:$0xf]
      %v377 = vld [vmem:[%s295 + $0x9c] sm:$0xf]
      %v378 = vld [vmem:[%s295 + $0xa0] sm:$0xf]
      %v379 = vld [vmem:[%s295 + $0xa4] sm:$0xf]
      %v380 = vld [vmem:[%s295 + $0xa8] sm:$0xf]
      %v381 = vld [vmem:[%s295 + $0xac] sm:$0xf]
      %v382 = vld [vmem:[%s295 + $0xb0] sm:$0xf]
      %v383 = vld [vmem:[%s295 + $0xb4] sm:$0xf]
      %v384 = vld [vmem:[%s295 + $0xb8] sm:$0xf]
      %v385 = vld [vmem:[%s295 + $0xbc] sm:$0xf]
      %v386 = vld [vmem:[%s295 + $0xc0] sm:$0xf]
      %v387 = vld [vmem:[%s295 + $0xc4] sm:$0xf]
      %v388 = vld [vmem:[%s295 + $0xc8] sm:$0xf]
      %v389 = vld [vmem:[%s295 + $0xcc] sm:$0xf]
      %v390 = vld [vmem:[%s295 + $0xd0] sm:$0xf]
      %v391 = vld [vmem:[%s295 + $0xd4] sm:$0xf]
      %v392 = vld [vmem:[%s295 + $0xd8] sm:$0xf]
      %v393 = vld [vmem:[%s295 + $0xdc] sm:$0xf]
      %v394 = vld [vmem:[%s295 + $0xe0] sm:$0xf]
      %v395 = vld [vmem:[%s295 + $0xe4] sm:$0xf]
      %v396 = vld [vmem:[%s295 + $0xe8] sm:$0xf]
      %v397 = vld [vmem:[%s295 + $0xec] sm:$0xf]
      %v398 = vld [vmem:[%s295 + $0xf0] sm:$0xf]
      %v399 = vld [vmem:[%s295 + $0xf4] sm:$0xf]
      %v400 = vld [vmem:[%s295 + $0xf8] sm:$0xf]
      %v401 = vld [vmem:[%s295 + $0xfc] sm:$0xf]
      %v466 = vunpack.c.l.b16 %v338
      %v467 = vunpack.c.l.b16 %v339
      %v468 = vunpack.c.l.b16 %v340
      %v469 = vunpack.c.l.b16 %v341
      %v470 = vunpack.c.l.b16 %v342
      %v471 = vunpack.c.l.b16 %v343
      %v472 = vunpack.c.l.b16 %v344
      %v473 = vunpack.c.l.b16 %v345
      %v474 = vunpack.c.l.b16 %v346
      %v475 = vunpack.c.l.b16 %v347
      %v476 = vunpack.c.l.b16 %v348
      %v477 = vunpack.c.l.b16 %v349
      %v478 = vunpack.c.l.b16 %v350
      %v479 = vunpack.c.l.b16 %v351
      %v480 = vunpack.c.l.b16 %v352
      %v481 = vunpack.c.l.b16 %v353
      %v482 = vunpack.c.l.b16 %v354
      %v483 = vunpack.c.l.b16 %v355
      %v484 = vunpack.c.l.b16 %v356
      %v485 = vunpack.c.l.b16 %v357
      %v486 = vunpack.c.l.b16 %v358
      %v487 = vunpack.c.l.b16 %v359
      %v488 = vunpack.c.l.b16 %v360
      %v489 = vunpack.c.l.b16 %v361
      %v490 = vunpack.c.l.b16 %v362
      %v491 = vunpack.c.l.b16 %v363
      %v492 = vunpack.c.l.b16 %v364
      %v493 = vunpack.c.l.b16 %v365
      %v494 = vunpack.c.l.b16 %v366
      %v495 = vunpack.c.l.b16 %v367
      %v496 = vunpack.c.l.b16 %v368
      %v497 = vunpack.c.l.b16 %v369
      %v498 = vunpack.c.l.b16 %v370
      %v499 = vunpack.c.l.b16 %v371
      %v500 = vunpack.c.l.b16 %v372
      %v501 = vunpack.c.l.b16 %v373
      %v502 = vunpack.c.l.b16 %v374
      %v503 = vunpack.c.l.b16 %v375
      %v504 = vunpack.c.l.b16 %v376
      %v505 = vunpack.c.l.b16 %v377
      %v506 = vunpack.c.l.b16 %v378
      %v507 = vunpack.c.l.b16 %v379
      %v508 = vunpack.c.l.b16 %v380
      %v509 = vunpack.c.l.b16 %v381
      %v510 = vunpack.c.l.b16 %v382
      %v511 = vunpack.c.l.b16 %v383
      %v512 = vunpack.c.l.b16 %v384
      %v513 = vunpack.c.l.b16 %v385
      %v514 = vunpack.c.l.b16 %v386
      %v515 = vunpack.c.l.b16 %v387
      %v516 = vunpack.c.l.b16 %v388
      %v517 = vunpack.c.l.b16 %v389
      %v518 = vunpack.c.l.b16 %v390
      %v519 = vunpack.c.l.b16 %v391
      %v520 = vunpack.c.l.b16 %v392
      %v521 = vunpack.c.l.b16 %v393
      %v522 = vunpack.c.l.b16 %v394
      %v523 = vunpack.c.l.b16 %v395
      %v524 = vunpack.c.l.b16 %v396
      %v525 = vunpack.c.l.b16 %v397
      %v526 = vunpack.c.l.b16 %v398
      %v527 = vunpack.c.l.b16 %v399
      %v528 = vunpack.c.l.b16 %v400
      %v529 = vunpack.c.l.b16 %v401
      %v530 = vpack.c.b16 %v467, %v466
      %v531 = vpack.c.b16 %v469, %v468
      %v532 = vpack.c.b16 %v471, %v470
      %v533 = vpack.c.b16 %v473, %v472
      %v534 = vpack.c.b16 %v475, %v474
      %v535 = vpack.c.b16 %v477, %v476
      %v536 = vpack.c.b16 %v479, %v478
      %v537 = vpack.c.b16 %v481, %v480
      %v538 = vpack.c.b16 %v483, %v482
      %v539 = vpack.c.b16 %v485, %v484
      %v540 = vpack.c.b16 %v487, %v486
      %v541 = vpack.c.b16 %v489, %v488
      %v542 = vpack.c.b16 %v491, %v490
      %v543 = vpack.c.b16 %v493, %v492
      %v544 = vpack.c.b16 %v495, %v494
      %v545 = vpack.c.b16 %v497, %v496
      %v546 = vpack.c.b16 %v499, %v498
      %v547 = vpack.c.b16 %v501, %v500
      %v548 = vpack.c.b16 %v503, %v502
      %v549 = vpack.c.b16 %v505, %v504
      %v550 = vpack.c.b16 %v507, %v506
      %v551 = vpack.c.b16 %v509, %v508
      %v552 = vpack.c.b16 %v511, %v510
      %v553 = vpack.c.b16 %v513, %v512
      %v554 = vpack.c.b16 %v515, %v514
      %v555 = vpack.c.b16 %v517, %v516
      %v556 = vpack.c.b16 %v519, %v518
      %v557 = vpack.c.b16 %v521, %v520
      %v558 = vpack.c.b16 %v523, %v522
      %v559 = vpack.c.b16 %v525, %v524
      %v560 = vpack.c.b16 %v527, %v526
      %v561 = vpack.c.b16 %v529, %v528
      %v610 = vunpack.c.l.b16 %v322
      %v611 = vunpack.c.l.b16 %v323
      %v612 = vunpack.c.l.b16 %v324
      %v613 = vunpack.c.l.b16 %v325
      %v614 = vunpack.c.l.b16 %v326
      %v615 = vunpack.c.l.b16 %v327
      %v616 = vunpack.c.l.b16 %v328
      %v617 = vunpack.c.l.b16 %v329
      %v618 = vunpack.c.l.b16 %v330
      %v619 = vunpack.c.l.b16 %v331
      %v620 = vunpack.c.l.b16 %v332
      %v621 = vunpack.c.l.b16 %v333
      %v622 = vunpack.c.l.b16 %v334
      %v623 = vunpack.c.l.b16 %v335
      %v624 = vunpack.c.l.b16 %v336
      %v625 = vunpack.c.l.b16 %v337
      %v626 = vpack.c.b16 %v611, %v610
      %v627 = vpack.c.b16 %v613, %v612
      %v628 = vpack.c.b16 %v615, %v614
      %v629 = vpack.c.b16 %v617, %v616
      %v630 = vpack.c.b16 %v619, %v618
      %v631 = vpack.c.b16 %v621, %v620
      %v632 = vpack.c.b16 %v623, %v622
      %v633 = vpack.c.b16 %v625, %v624
      %642 = vmatprep.subr.bf16.mxu0 0
      %643 = vmatpush1.bf16.msra.mxu0 %v626
      %644 = vmatprep.subr.bf16.mxu0 0
      %645 = vmatpush1.bf16.msra.mxu0 %v627
      %646 = vmatprep.subr.bf16.mxu0 0
      %647 = vmatpush1.bf16.msra.mxu0 %v628
      %648 = vmatprep.subr.bf16.mxu0 0
      %649 = vmatpush1.bf16.msra.mxu0 %v629
      %650 = vmatprep.subr.bf16.mxu0 0
      %651 = vmatpush1.bf16.msra.mxu0 %v630
      %652 = vmatprep.subr.bf16.mxu0 0
      %653 = vmatpush1.bf16.msra.mxu0 %v631
      %654 = vmatprep.subr.bf16.mxu0 0
      %655 = vmatpush1.bf16.msra.mxu0 %v632
      %656 = vmatprep.subr.bf16.mxu0 0
      %657 = vmatpush1.bf16.msra.mxu0 %v633
      %658 = vmatprep.subr.bf16.mxu0 0
      %659 = vmatpush1.bf16.msra.mxu0 0
      %660 = vmatprep.subr.bf16.mxu0 0
      %661 = vmatpush1.bf16.msra.mxu0 0
      %662 = vmatprep.subr.bf16.mxu0 0
      %663 = vmatpush1.bf16.msra.mxu0 0
      %664 = vmatprep.subr.bf16.mxu0 0
      %665 = vmatpush1.bf16.msra.mxu0 0
      %666 = vmatprep.subr.bf16.mxu0 0
      %667 = vmatpush1.bf16.msra.mxu0 0
      %668 = vmatprep.subr.bf16.mxu0 0
      %669 = vmatpush1.bf16.msra.mxu0 0
      %670 = vmatprep.subr.bf16.mxu0 0
      %671 = vmatpush1.bf16.msra.mxu0 0
      %672 = vmatprep.subr.bf16.mxu0 0
      %673 = vmatpush1.bf16.msra.mxu0 0
      %674 = vmatprep.mubr.bf16.mxu0 0
      %675 = vmatmul.mubr.bf16.gmra.mrb[0].mxu0 %v530
      %v676 = vpop.f32.mrb[0].mxu0
      %v677 = vadd.f32 0.0, %v676
      %v678 = vpop.f32.mrb[0].mxu0
      %v679 = vpop.f32.mrb[0].mxu0
      %v680 = vadd.f32 0.0, %v679
      %v681 = vpop.f32.mrb[0].mxu0
      %682 = vmatprep.mubr.bf16.mxu0 0
      %683 = vmatmul.mubr.bf16.gmra.mrb[0].mxu0 %v531
      %v684 = vpop.f32.mrb[0].mxu0
      %v685 = vadd.f32 0.0, %v684
      %v686 = vpop.f32.mrb[0].mxu0
      %v687 = vpop.f32.mrb[0].mxu0
      %v688 = vadd.f32 0.0, %v687
      %v689 = vpop.f32.mrb[0].mxu0
      %690 = vmatprep.mubr.bf16.mxu0 0
      %691 = vmatmul.mubr.bf16.gmra.mrb[0].mxu0 %v532
      %v692 = vpop.f32.mrb[0].mxu0
      %v693 = vadd.f32 0.0, %v692
      %v694 = vpop.f32.mrb[0].mxu0
      %v695 = vpop.f32.mrb[0].mxu0
      %v696 = vadd.f32 0.0, %v695
      %v697 = vpop.f32.mrb[0].mxu0
      %698 = vmatprep.mubr.bf16.mxu0 0
      %699 = vmatmul.mubr.bf16.gmra.mrb[0].mxu0 %v533
      %v700 = vpop.f32.mrb[0].mxu0
      %v701 = vadd.f32 0.0, %v700
      %v702 = vpop.f32.mrb[0].mxu0
      %v703 = vpop.f32.mrb[0].mxu0
      %v704 = vadd.f32 0.0, %v703
      %v705 = vpop.f32.mrb[0].mxu0
      %706 = vmatprep.mubr.bf16.mxu0 0
      %707 = vmatmul.mubr.bf16.gmra.mrb[0].mxu0 %v534
      %v708 = vpop.f32.mrb[0].mxu0
      %v709 = vadd.f32 0.0, %v708
      %v710 = vpop.f32.mrb[0].mxu0
      %v711 = vpop.f32.mrb[0].mxu0
      %v712 = vadd.f32 0.0, %v711
      %v713 = vpop.f32.mrb[0].mxu0
      %714 = vmatprep.mubr.bf16.mxu0 0
      %715 = vmatmul.mubr.bf16.gmra.mrb[0].mxu0 %v535
      %v716 = vpop.f32.mrb[0].mxu0
      %v717 = vadd.f32 0.0, %v716
      %v718 = vpop.f32.mrb[0].mxu0
      %v719 = vpop.f32.mrb[0].mxu0
      %v720 = vadd.f32 0.0, %v719
      %v721 = vpop.f32.mrb[0].mxu0
      %722 = vmatprep.mubr.bf16.mxu0 0
      %723 = vmatmul.mubr.bf16.gmra.mrb[0].mxu0 %v536
      %v724 = vpop.f32.mrb[0].mxu0
      %v725 = vadd.f32 0.0, %v724
      %v726 = vpop.f32.mrb[0].mxu0
      %v727 = vpop.f32.mrb[0].mxu0
      %v728 = vadd.f32 0.0, %v727
      %v729 = vpop.f32.mrb[0].mxu0
      %730 = vmatprep.mubr.bf16.mxu0 0
      %731 = vmatmul.mubr.bf16.gmra.mrb[0].mxu0 %v537
      %v732 = vpop.f32.mrb[0].mxu0
      %v733 = vadd.f32 0.0, %v732
      %v734 = vpop.f32.mrb[0].mxu0
      %v735 = vpop.f32.mrb[0].mxu0
      %v736 = vadd.f32 0.0, %v735
      %v737 = vpop.f32.mrb[0].mxu0
      %738 = vmatprep.mubr.bf16.mxu0 0
      %739 = vmatmul.mubr.bf16.gmra.mrb[0].mxu0 %v538
      %v740 = vpop.f32.mrb[0].mxu0
      %v741 = vadd.f32 0.0, %v740
      %v742 = vpop.f32.mrb[0].mxu0
      %v743 = vpop.f32.mrb[0].mxu0
      %v744 = vadd.f32 0.0, %v743
      %v745 = vpop.f32.mrb[0].mxu0
      %746 = vmatprep.mubr.bf16.mxu0 0
      %747 = vmatmul.mubr.bf16.gmra.mrb[0].mxu0 %v539
      %v748 = vpop.f32.mrb[0].mxu0
      %v749 = vadd.f32 0.0, %v748
      %v750 = vpop.f32.mrb[0].mxu0
      %v751 = vpop.f32.mrb[0].mxu0
      %v752 = vadd.f32 0.0, %v751
      %v753 = vpop.f32.mrb[0].mxu0
      %754 = vmatprep.mubr.bf16.mxu0 0
      %755 = vmatmul.mubr.bf16.gmra.mrb[0].mxu0 %v540
      %v756 = vpop.f32.mrb[0].mxu0
      %v757 = vadd.f32 0.0, %v756
      %v758 = vpop.f32.mrb[0].mxu0
      %v759 = vpop.f32.mrb[0].mxu0
      %v760 = vadd.f32 0.0, %v759
      %v761 = vpop.f32.mrb[0].mxu0
      %762 = vmatprep.mubr.bf16.mxu0 0
      %763 = vmatmul.mubr.bf16.gmra.mrb[0].mxu0 %v541
      %v764 = vpop.f32.mrb[0].mxu0
      %v765 = vadd.f32 0.0, %v764
      %v766 = vpop.f32.mrb[0].mxu0
      %v767 = vpop.f32.mrb[0].mxu0
      %v768 = vadd.f32 0.0, %v767
      %v769 = vpop.f32.mrb[0].mxu0
      %770 = vmatprep.mubr.bf16.mxu0 0
      %771 = vmatmul.mubr.bf16.gmra.mrb[0].mxu0 %v542
      %v772 = vpop.f32.mrb[0].mxu0
      %v773 = vadd.f32 0.0, %v772
      %v774 = vpop.f32.mrb[0].mxu0
      %v775 = vpop.f32.mrb[0].mxu0
      %v776 = vadd.f32 0.0, %v775
      %v777 = vpop.f32.mrb[0].mxu0
      %778 = vmatprep.mubr.bf16.mxu0 0
      %779 = vmatmul.mubr.bf16.gmra.mrb[0].mxu0 %v543
      %v780 = vpop.f32.mrb[0].mxu0
      %v781 = vadd.f32 0.0, %v780
      %v782 = vpop.f32.mrb[0].mxu0
      %v783 = vpop.f32.mrb[0].mxu0
      %v784 = vadd.f32 0.0, %v783
      %v785 = vpop.f32.mrb[0].mxu0
      %786 = vmatprep.mubr.bf16.mxu0 0
      %787 = vmatmul.mubr.bf16.gmra.mrb[0].mxu0 %v544
      %v788 = vpop.f32.mrb[0].mxu0
      %v789 = vadd.f32 0.0, %v788
      %v790 = vpop.f32.mrb[0].mxu0
      %v791 = vpop.f32.mrb[0].mxu0
      %v792 = vadd.f32 0.0, %v791
      %v793 = vpop.f32.mrb[0].mxu0
      %794 = vmatprep.mubr.bf16.mxu0 0
      %795 = vmatmul.mubr.bf16.gmra.mrb[0].mxu0 %v545
      %v796 = vpop.f32.mrb[0].mxu0
      %v797 = vadd.f32 0.0, %v796
      %v798 = vpop.f32.mrb[0].mxu0
      %v799 = vpop.f32.mrb[0].mxu0
      %v800 = vadd.f32 0.0, %v799
      %v801 = vpop.f32.mrb[0].mxu0
      %802 = vmatprep.mubr.bf16.mxu0 0
      %803 = vmatmul.mubr.bf16.gmra.mrb[0].mxu0 %v546
      %v804 = vpop.f32.mrb[0].mxu0
      %v805 = vadd.f32 0.0, %v804
      %v806 = vpop.f32.mrb[0].mxu0
      %v807 = vpop.f32.mrb[0].mxu0
      %v808 = vadd.f32 0.0, %v807
      %v809 = vpop.f32.mrb[0].mxu0
      %810 = vmatprep.mubr.bf16.mxu0 0
      %811 = vmatmul.mubr.bf16.gmra.mrb[0].mxu0 %v547
      %v812 = vpop.f32.mrb[0].mxu0
      %v813 = vadd.f32 0.0, %v812
      %v814 = vpop.f32.mrb[0].mxu0
      %v815 = vpop.f32.mrb[0].mxu0
      %v816 = vadd.f32 0.0, %v815
      %v817 = vpop.f32.mrb[0].mxu0
      %818 = vmatprep.mubr.bf16.mxu0 0
      %819 = vmatmul.mubr.bf16.gmra.mrb[0].mxu0 %v548
      %v820 = vpop.f32.mrb[0].mxu0
      %v821 = vadd.f32 0.0, %v820
      %v822 = vpop.f32.mrb[0].mxu0
      %v823 = vpop.f32.mrb[0].mxu0
      %v824 = vadd.f32 0.0, %v823
      %v825 = vpop.f32.mrb[0].mxu0
      %826 = vmatprep.mubr.bf16.mxu0 0
      %827 = vmatmul.mubr.bf16.gmra.mrb[0].mxu0 %v549
      %v828 = vpop.f32.mrb[0].mxu0
      %v829 = vadd.f32 0.0, %v828
      %v830 = vpop.f32.mrb[0].mxu0
      %v831 = vpop.f32.mrb[0].mxu0
      %v832 = vadd.f32 0.0, %v831
      %v833 = vpop.f32.mrb[0].mxu0
      %834 = vmatprep.mubr.bf16.mxu0 0
      %835 = vmatmul.mubr.bf16.gmra.mrb[0].mxu0 %v550
      %v836 = vpop.f32.mrb[0].mxu0
      %v837 = vadd.f32 0.0, %v836
      %v838 = vpop.f32.mrb[0].mxu0
      %v839 = vpop.f32.mrb[0].mxu0
      %v840 = vadd.f32 0.0, %v839
      %v841 = vpop.f32.mrb[0].mxu0
      %842 = vmatprep.mubr.bf16.mxu0 0
      %843 = vmatmul.mubr.bf16.gmra.mrb[0].mxu0 %v551
      %v844 = vpop.f32.mrb[0].mxu0
      %v845 = vadd.f32 0.0, %v844
      %v846 = vpop.f32.mrb[0].mxu0
      %v847 = vpop.f32.mrb[0].mxu0
      %v848 = vadd.f32 0.0, %v847
      %v849 = vpop.f32.mrb[0].mxu0
      %850 = vmatprep.mubr.bf16.mxu0 0
      %851 = vmatmul.mubr.bf16.gmra.mrb[0].mxu0 %v552
      %v852 = vpop.f32.mrb[0].mxu0
      %v853 = vadd.f32 0.0, %v852
      %v854 = vpop.f32.mrb[0].mxu0
      %v855 = vpop.f32.mrb[0].mxu0
      %v856 = vadd.f32 0.0, %v855
      %v857 = vpop.f32.mrb[0].mxu0
      %858 = vmatprep.mubr.bf16.mxu0 0
      %859 = vmatmul.mubr.bf16.gmra.mrb[0].mxu0 %v553
      %v860 = vpop.f32.mrb[0].mxu0
      %v861 = vadd.f32 0.0, %v860
      %v862 = vpop.f32.mrb[0].mxu0
      %v863 = vpop.f32.mrb[0].mxu0
      %v864 = vadd.f32 0.0, %v863
      %v865 = vpop.f32.mrb[0].mxu0
      %866 = vmatprep.mubr.bf16.mxu0 0
      %867 = vmatmul.mubr.bf16.gmra.mrb[0].mxu0 %v554
      %v868 = vpop.f32.mrb[0].mxu0
      %v869 = vadd.f32 0.0, %v868
      %v870 = vpop.f32.mrb[0].mxu0
      %v871 = vpop.f32.mrb[0].mxu0
      %v872 = vadd.f32 0.0, %v871
      %v873 = vpop.f32.mrb[0].mxu0
      %874 = vmatprep.mubr.bf16.mxu0 0
      %875 = vmatmul.mubr.bf16.gmra.mrb[0].mxu0 %v555
      %v876 = vpop.f32.mrb[0].mxu0
      %v877 = vadd.f32 0.0, %v876
      %v878 = vpop.f32.mrb[0].mxu0
      %v879 = vpop.f32.mrb[0].mxu0
      %v880 = vadd.f32 0.0, %v879
      %v881 = vpop.f32.mrb[0].mxu0
      %882 = vmatprep.mubr.bf16.mxu0 0
      %883 = vmatmul.mubr.bf16.gmra.mrb[0].mxu0 %v556
      %v884 = vpop.f32.mrb[0].mxu0
      %v885 = vadd.f32 0.0, %v884
      %v886 = vpop.f32.mrb[0].mxu0
      %v887 = vpop.f32.mrb[0].mxu0
      %v888 = vadd.f32 0.0, %v887
      %v889 = vpop.f32.mrb[0].mxu0
      %890 = vmatprep.mubr.bf16.mxu0 0
      %891 = vmatmul.mubr.bf16.gmra.mrb[0].mxu0 %v557
      %v892 = vpop.f32.mrb[0].mxu0
      %v893 = vadd.f32 0.0, %v892
      %v894 = vpop.f32.mrb[0].mxu0
      %v895 = vpop.f32.mrb[0].mxu0
      %v896 = vadd.f32 0.0, %v895
      %v897 = vpop.f32.mrb[0].mxu0
      %898 = vmatprep.mubr.bf16.mxu0 0
      %899 = vmatmul.mubr.bf16.gmra.mrb[0].mxu0 %v558
      %v900 = vpop.f32.mrb[0].mxu0
      %v901 = vadd.f32 0.0, %v900
      %v902 = vpop.f32.mrb[0].mxu0
      %v903 = vpop.f32.mrb[0].mxu0
      %v904 = vadd.f32 0.0, %v903
      %v905 = vpop.f32.mrb[0].mxu0
      %906 = vmatprep.mubr.bf16.mxu0 0
      %907 = vmatmul.mubr.bf16.gmra.mrb[0].mxu0 %v559
      %v908 = vpop.f32.mrb[0].mxu0
      %v909 = vadd.f32 0.0, %v908
      %v910 = vpop.f32.mrb[0].mxu0
      %v911 = vpop.f32.mrb[0].mxu0
      %v912 = vadd.f32 0.0, %v911
      %v913 = vpop.f32.mrb[0].mxu0
      %914 = vmatprep.mubr.bf16.mxu0 0
      %915 = vmatmul.mubr.bf16.gmra.mrb[0].mxu0 %v560
      %v916 = vpop.f32.mrb[0].mxu0
      %v917 = vadd.f32 0.0, %v916
      %v918 = vpop.f32.mrb[0].mxu0
      %v919 = vpop.f32.mrb[0].mxu0
      %v920 = vadd.f32 0.0, %v919
      %v921 = vpop.f32.mrb[0].mxu0
      %922 = vmatprep.mubr.bf16.mxu0 0
      %923 = vmatmul.mubr.bf16.gmra.mrb[0].mxu0 %v561
      %v924 = vpop.f32.mrb[0].mxu0
      %v925 = vadd.f32 0.0, %v924
      %v926 = vpop.f32.mrb[0].mxu0
      %v927 = vpop.f32.mrb[0].mxu0
      %v928 = vadd.f32 0.0, %v927
      %v929 = vpop.f32.mrb[0].mxu0
      %930 = vdwg.mxu0
      %v931 = vld [vmem:[%s301] sm:$0xf]
      %v932 = vld [vmem:[%s301 + $0x4] sm:$0xf]
      %v933 = vld [vmem:[%s301 + $0x8] sm:$0xf]
      %v934 = vld [vmem:[%s301 + $0xc] sm:$0xf]
      %v935 = vld [vmem:[%s301 + $0x10] sm:$0xf]
      %v936 = vld [vmem:[%s301 + $0x14] sm:$0xf]
      %v937 = vld [vmem:[%s301 + $0x18] sm:$0xf]
      %v938 = vld [vmem:[%s301 + $0x1c] sm:$0xf]
      %v939 = vld [vmem:[%s301 + $0x20] sm:$0xf]
      %v940 = vld [vmem:[%s301 + $0x24] sm:$0xf]
      %v941 = vld [vmem:[%s301 + $0x28] sm:$0xf]
      %v942 = vld [vmem:[%s301 + $0x2c] sm:$0xf]
      %v943 = vld [vmem:[%s301 + $0x30] sm:$0xf]
      %v944 = vld [vmem:[%s301 + $0x34] sm:$0xf]
      %v945 = vld [vmem:[%s301 + $0x38] sm:$0xf]
      %v946 = vld [vmem:[%s301 + $0x3c] sm:$0xf]
      %v947 = vld [vmem:[%s301 + $0x40] sm:$0xf]
      %v948 = vld [vmem:[%s301 + $0x44] sm:$0xf]
      %v949 = vld [vmem:[%s301 + $0x48] sm:$0xf]
      %v950 = vld [vmem:[%s301 + $0x4c] sm:$0xf]
      %v951 = vld [vmem:[%s301 + $0x50] sm:$0xf]
      %v952 = vld [vmem:[%s301 + $0x54] sm:$0xf]
      %v953 = vld [vmem:[%s301 + $0x58] sm:$0xf]
      %v954 = vld [vmem:[%s301 + $0x5c] sm:$0xf]
      %v955 = vld [vmem:[%s301 + $0x60] sm:$0xf]
      %v956 = vld [vmem:[%s301 + $0x64] sm:$0xf]
      %v957 = vld [vmem:[%s301 + $0x68] sm:$0xf]
      %v958 = vld [vmem:[%s301 + $0x6c] sm:$0xf]
      %v959 = vld [vmem:[%s301 + $0x70] sm:$0xf]
      %v960 = vld [vmem:[%s301 + $0x74] sm:$0xf]
      %v961 = vld [vmem:[%s301 + $0x78] sm:$0xf]
      %v962 = vld [vmem:[%s301 + $0x7c] sm:$0xf]
      %v963 = vld [vmem:[%s301 + $0x80] sm:$0xf]
      %v964 = vld [vmem:[%s301 + $0x84] sm:$0xf]
      %v965 = vld [vmem:[%s301 + $0x88] sm:$0xf]
      %v966 = vld [vmem:[%s301 + $0x8c] sm:$0xf]
      %v967 = vld [vmem:[%s301 + $0x90] sm:$0xf]
      %v968 = vld [vmem:[%s301 + $0x94] sm:$0xf]
      %v969 = vld [vmem:[%s301 + $0x98] sm:$0xf]
      %v970 = vld [vmem:[%s301 + $0x9c] sm:$0xf]
      %v971 = vld [vmem:[%s301 + $0xa0] sm:$0xf]
      %v972 = vld [vmem:[%s301 + $0xa4] sm:$0xf]
      %v973 = vld [vmem:[%s301 + $0xa8] sm:$0xf]
      %v974 = vld [vmem:[%s301 + $0xac] sm:$0xf]
      %v975 = vld [vmem:[%s301 + $0xb0] sm:$0xf]
      %v976 = vld [vmem:[%s301 + $0xb4] sm:$0xf]
      %v977 = vld [vmem:[%s301 + $0xb8] sm:$0xf]
      %v978 = vld [vmem:[%s301 + $0xbc] sm:$0xf]
      %v979 = vld [vmem:[%s301 + $0xc0] sm:$0xf]
      %v980 = vld [vmem:[%s301 + $0xc4] sm:$0xf]
      %v981 = vld [vmem:[%s301 + $0xc8] sm:$0xf]
      %v982 = vld [vmem:[%s301 + $0xcc] sm:$0xf]
      %v983 = vld [vmem:[%s301 + $0xd0] sm:$0xf]
      %v984 = vld [vmem:[%s301 + $0xd4] sm:$0xf]
      %v985 = vld [vmem:[%s301 + $0xd8] sm:$0xf]
      %v986 = vld [vmem:[%s301 + $0xdc] sm:$0xf]
      %v987 = vld [vmem:[%s301 + $0xe0] sm:$0xf]
      %v988 = vld [vmem:[%s301 + $0xe4] sm:$0xf]
      %v989 = vld [vmem:[%s301 + $0xe8] sm:$0xf]
      %v990 = vld [vmem:[%s301 + $0xec] sm:$0xf]
      %v991 = vld [vmem:[%s301 + $0xf0] sm:$0xf]
      %v992 = vld [vmem:[%s301 + $0xf4] sm:$0xf]
      %v993 = vld [vmem:[%s301 + $0xf8] sm:$0xf]
      %v994 = vld [vmem:[%s301 + $0xfc] sm:$0xf]
      %v1059 = vunpack.c.l.b16 %v931
      %v1060 = vunpack.c.l.b16 %v932
      %v1061 = vunpack.c.l.b16 %v933
      %v1062 = vunpack.c.l.b16 %v934
      %v1063 = vunpack.c.l.b16 %v935
      %v1064 = vunpack.c.l.b16 %v936
      %v1065 = vunpack.c.l.b16 %v937
      %v1066 = vunpack.c.l.b16 %v938
      %v1067 = vunpack.c.l.b16 %v939
      %v1068 = vunpack.c.l.b16 %v940
      %v1069 = vunpack.c.l.b16 %v941
      %v1070 = vunpack.c.l.b16 %v942
      %v1071 = vunpack.c.l.b16 %v943
      %v1072 = vunpack.c.l.b16 %v944
      %v1073 = vunpack.c.l.b16 %v945
      %v1074 = vunpack.c.l.b16 %v946
      %v1075 = vunpack.c.l.b16 %v947
      %v1076 = vunpack.c.l.b16 %v948
      %v1077 = vunpack.c.l.b16 %v949
      %v1078 = vunpack.c.l.b16 %v950
      %v1079 = vunpack.c.l.b16 %v951
      %v1080 = vunpack.c.l.b16 %v952
      %v1081 = vunpack.c.l.b16 %v953
      %v1082 = vunpack.c.l.b16 %v954
      %v1083 = vunpack.c.l.b16 %v955
      %v1084 = vunpack.c.l.b16 %v956
      %v1085 = vunpack.c.l.b16 %v957
      %v1086 = vunpack.c.l.b16 %v958
      %v1087 = vunpack.c.l.b16 %v959
      %v1088 = vunpack.c.l.b16 %v960
      %v1089 = vunpack.c.l.b16 %v961
      %v1090 = vunpack.c.l.b16 %v962
      %v1091 = vunpack.c.l.b16 %v963
      %v1092 = vunpack.c.l.b16 %v964
      %v1093 = vunpack.c.l.b16 %v965
      %v1094 = vunpack.c.l.b16 %v966
      %v1095 = vunpack.c.l.b16 %v967
      %v1096 = vunpack.c.l.b16 %v968
      %v1097 = vunpack.c.l.b16 %v969
      %v1098 = vunpack.c.l.b16 %v970
      %v1099 = vunpack.c.l.b16 %v971
      %v1100 = vunpack.c.l.b16 %v972
      %v1101 = vunpack.c.l.b16 %v973
      %v1102 = vunpack.c.l.b16 %v974
      %v1103 = vunpack.c.l.b16 %v975
      %v1104 = vunpack.c.l.b16 %v976
      %v1105 = vunpack.c.l.b16 %v977
      %v1106 = vunpack.c.l.b16 %v978
      %v1107 = vunpack.c.l.b16 %v979
      %v1108 = vunpack.c.l.b16 %v980
      %v1109 = vunpack.c.l.b16 %v981
      %v1110 = vunpack.c.l.b16 %v982
      %v1111 = vunpack.c.l.b16 %v983
      %v1112 = vunpack.c.l.b16 %v984
      %v1113 = vunpack.c.l.b16 %v985
      %v1114 = vunpack.c.l.b16 %v986
      %v1115 = vunpack.c.l.b16 %v987
      %v1116 = vunpack.c.l.b16 %v988
      %v1117 = vunpack.c.l.b16 %v989
      %v1118 = vunpack.c.l.b16 %v990
      %v1119 = vunpack.c.l.b16 %v991
      %v1120 = vunpack.c.l.b16 %v992
      %v1121 = vunpack.c.l.b16 %v993
      %v1122 = vunpack.c.l.b16 %v994
      %v1123 = vpack.c.b16 %v1060, %v1059
      %v1124 = vpack.c.b16 %v1062, %v1061
      %v1125 = vpack.c.b16 %v1064, %v1063
      %v1126 = vpack.c.b16 %v1066, %v1065
      %v1127 = vpack.c.b16 %v1068, %v1067
      %v1128 = vpack.c.b16 %v1070, %v1069
      %v1129 = vpack.c.b16 %v1072, %v1071
      %v1130 = vpack.c.b16 %v1074, %v1073
      %v1131 = vpack.c.b16 %v1076, %v1075
      %v1132 = vpack.c.b16 %v1078, %v1077
      %v1133 = vpack.c.b16 %v1080, %v1079
      %v1134 = vpack.c.b16 %v1082, %v1081
      %v1135 = vpack.c.b16 %v1084, %v1083
      %v1136 = vpack.c.b16 %v1086, %v1085
      %v1137 = vpack.c.b16 %v1088, %v1087
      %v1138 = vpack.c.b16 %v1090, %v1089
      %v1139 = vpack.c.b16 %v1092, %v1091
      %v1140 = vpack.c.b16 %v1094, %v1093
      %v1141 = vpack.c.b16 %v1096, %v1095
      %v1142 = vpack.c.b16 %v1098, %v1097
      %v1143 = vpack.c.b16 %v1100, %v1099
      %v1144 = vpack.c.b16 %v1102, %v1101
      %v1145 = vpack.c.b16 %v1104, %v1103
      %v1146 = vpack.c.b16 %v1106, %v1105
      %v1147 = vpack.c.b16 %v1108, %v1107
      %v1148 = vpack.c.b16 %v1110, %v1109
      %v1149 = vpack.c.b16 %v1112, %v1111
      %v1150 = vpack.c.b16 %v1114, %v1113
      %v1151 = vpack.c.b16 %v1116, %v1115
      %v1152 = vpack.c.b16 %v1118, %v1117
      %v1153 = vpack.c.b16 %v1120, %v1119
      %v1154 = vpack.c.b16 %v1122, %v1121
      %1187 = vmatprep.subr.bf16.mxu0 0
      %1188 = vmatpush1.bf16.msra.mxu0 %v626
      %1189 = vmatprep.subr.bf16.mxu0 0
      %1190 = vmatpush1.bf16.msra.mxu0 %v627
      %1191 = vmatprep.subr.bf16.mxu0 0
      %1192 = vmatpush1.bf16.msra.mxu0 %v628
      %1193 = vmatprep.subr.bf16.mxu0 0
      %1194 = vmatpush1.bf16.msra.mxu0 %v629
      %1195 = vmatprep.subr.bf16.mxu0 0
      %1196 = vmatpush1.bf16.msra.mxu0 %v630
      %1197 = vmatprep.subr.bf16.mxu0 0
      %1198 = vmatpush1.bf16.msra.mxu0 %v631
      %1199 = vmatprep.subr.bf16.mxu0 0
      %1200 = vmatpush1.bf16.msra.mxu0 %v632
      %1201 = vmatprep.subr.bf16.mxu0 0
      %1202 = vmatpush1.bf16.msra.mxu0 %v633
      %1203 = vmatprep.subr.bf16.mxu0 0
      %1204 = vmatpush1.bf16.msra.mxu0 0
      %1205 = vmatprep.subr.bf16.mxu0 0
      %1206 = vmatpush1.bf16.msra.mxu0 0
      %1207 = vmatprep.subr.bf16.mxu0 0
      %1208 = vmatpush1.bf16.msra.mxu0 0
      %1209 = vmatprep.subr.bf16.mxu0 0
      %1210 = vmatpush1.bf16.msra.mxu0 0
      %1211 = vmatprep.subr.bf16.mxu0 0
      %1212 = vmatpush1.bf16.msra.mxu0 0
      %1213 = vmatprep.subr.bf16.mxu0 0
      %1214 = vmatpush1.bf16.msra.mxu0 0
      %1215 = vmatprep.subr.bf16.mxu0 0
      %1216 = vmatpush1.bf16.msra.mxu0 0
      %1217 = vmatprep.subr.bf16.mxu0 0
      %1218 = vmatpush1.bf16.msra.mxu0 0
      %1219 = vmatprep.mubr.bf16.mxu0 0
      %1220 = vmatmul.mubr.bf16.gmra.mrb[0].mxu0 %v1123
      %v1221 = vpop.f32.mrb[0].mxu0
      %v1222 = vadd.f32 0.0, %v1221
      %v1223 = vpop.f32.mrb[0].mxu0
      %v1224 = vpop.f32.mrb[0].mxu0
      %v1225 = vadd.f32 0.0, %v1224
      %v1226 = vpop.f32.mrb[0].mxu0
      %1227 = vmatprep.mubr.bf16.mxu0 0
      %1228 = vmatmul.mubr.bf16.gmra.mrb[0].mxu0 %v1124
      %v1229 = vpop.f32.mrb[0].mxu0
      %v1230 = vadd.f32 0.0, %v1229
      %v1231 = vpop.f32.mrb[0].mxu0
      %v1232 = vpop.f32.mrb[0].mxu0
      %v1233 = vadd.f32 0.0, %v1232
      %v1234 = vpop.f32.mrb[0].mxu0
      %1235 = vmatprep.mubr.bf16.mxu0 0
      %1236 = vmatmul.mubr.bf16.gmra.mrb[0].mxu0 %v1125
      %v1237 = vpop.f32.mrb[0].mxu0
      %v1238 = vadd.f32 0.0, %v1237
      %v1239 = vpop.f32.mrb[0].mxu0
      %v1240 = vpop.f32.mrb[0].mxu0
      %v1241 = vadd.f32 0.0, %v1240
      %v1242 = vpop.f32.mrb[0].mxu0
      %1243 = vmatprep.mubr.bf16.mxu0 0
      %1244 = vmatmul.mubr.bf16.gmra.mrb[0].mxu0 %v1126
      %v1245 = vpop.f32.mrb[0].mxu0
      %v1246 = vadd.f32 0.0, %v1245
      %v1247 = vpop.f32.mrb[0].mxu0
      %v1248 = vpop.f32.mrb[0].mxu0
      %v1249 = vadd.f32 0.0, %v1248
      %v1250 = vpop.f32.mrb[0].mxu0
      %1251 = vmatprep.mubr.bf16.mxu0 0
      %1252 = vmatmul.mubr.bf16.gmra.mrb[0].mxu0 %v1127
      %v1253 = vpop.f32.mrb[0].mxu0
      %v1254 = vadd.f32 0.0, %v1253
      %v1255 = vpop.f32.mrb[0].mxu0
      %v1256 = vpop.f32.mrb[0].mxu0
      %v1257 = vadd.f32 0.0, %v1256
      %v1258 = vpop.f32.mrb[0].mxu0
      %1259 = vmatprep.mubr.bf16.mxu0 0
      %1260 = vmatmul.mubr.bf16.gmra.mrb[0].mxu0 %v1128
      %v1261 = vpop.f32.mrb[0].mxu0
      %v1262 = vadd.f32 0.0, %v1261
      %v1263 = vpop.f32.mrb[0].mxu0
      %v1264 = vpop.f32.mrb[0].mxu0
      %v1265 = vadd.f32 0.0, %v1264
      %v1266 = vpop.f32.mrb[0].mxu0
      %1267 = vmatprep.mubr.bf16.mxu0 0
      %1268 = vmatmul.mubr.bf16.gmra.mrb[0].mxu0 %v1129
      %v1269 = vpop.f32.mrb[0].mxu0
      %v1270 = vadd.f32 0.0, %v1269
      %v1271 = vpop.f32.mrb[0].mxu0
      %v1272 = vpop.f32.mrb[0].mxu0
      %v1273 = vadd.f32 0.0, %v1272
      %v1274 = vpop.f32.mrb[0].mxu0
      %1275 = vmatprep.mubr.bf16.mxu0 0
      %1276 = vmatmul.mubr.bf16.gmra.mrb[0].mxu0 %v1130
      %v1277 = vpop.f32.mrb[0].mxu0
      %v1278 = vadd.f32 0.0, %v1277
      %v1279 = vpop.f32.mrb[0].mxu0
      %v1280 = vpop.f32.mrb[0].mxu0
      %v1281 = vadd.f32 0.0, %v1280
      %v1282 = vpop.f32.mrb[0].mxu0
      %1283 = vmatprep.mubr.bf16.mxu0 0
      %1284 = vmatmul.mubr.bf16.gmra.mrb[0].mxu0 %v1131
      %v1285 = vpop.f32.mrb[0].mxu0
      %v1286 = vadd.f32 0.0, %v1285
      %v1287 = vpop.f32.mrb[0].mxu0
      %v1288 = vpop.f32.mrb[0].mxu0
      %v1289 = vadd.f32 0.0, %v1288
      %v1290 = vpop.f32.mrb[0].mxu0
      %1291 = vmatprep.mubr.bf16.mxu0 0
      %1292 = vmatmul.mubr.bf16.gmra.mrb[0].mxu0 %v1132
      %v1293 = vpop.f32.mrb[0].mxu0
      %v1294 = vadd.f32 0.0, %v1293
      %v1295 = vpop.f32.mrb[0].mxu0
      %v1296 = vpop.f32.mrb[0].mxu0
      %v1297 = vadd.f32 0.0, %v1296
      %v1298 = vpop.f32.mrb[0].mxu0
      %1299 = vmatprep.mubr.bf16.mxu0 0
      %1300 = vmatmul.mubr.bf16.gmra.mrb[0].mxu0 %v1133
      %v1301 = vpop.f32.mrb[0].mxu0
      %v1302 = vadd.f32 0.0, %v1301
      %v1303 = vpop.f32.mrb[0].mxu0
      %v1304 = vpop.f32.mrb[0].mxu0
      %v1305 = vadd.f32 0.0, %v1304
      %v1306 = vpop.f32.mrb[0].mxu0
      %1307 = vmatprep.mubr.bf16.mxu0 0
      %1308 = vmatmul.mubr.bf16.gmra.mrb[0].mxu0 %v1134
      %v1309 = vpop.f32.mrb[0].mxu0
      %v1310 = vadd.f32 0.0, %v1309
      %v1311 = vpop.f32.mrb[0].mxu0
      %v1312 = vpop.f32.mrb[0].mxu0
      %v1313 = vadd.f32 0.0, %v1312
      %v1314 = vpop.f32.mrb[0].mxu0
      %1315 = vmatprep.mubr.bf16.mxu0 0
      %1316 = vmatmul.mubr.bf16.gmra.mrb[0].mxu0 %v1135
      %v1317 = vpop.f32.mrb[0].mxu0
      %v1318 = vadd.f32 0.0, %v1317
      %v1319 = vpop.f32.mrb[0].mxu0
      %v1320 = vpop.f32.mrb[0].mxu0
      %v1321 = vadd.f32 0.0, %v1320
      %v1322 = vpop.f32.mrb[0].mxu0
      %1323 = vmatprep.mubr.bf16.mxu0 0
      %1324 = vmatmul.mubr.bf16.gmra.mrb[0].mxu0 %v1136
      %v1325 = vpop.f32.mrb[0].mxu0
      %v1326 = vadd.f32 0.0, %v1325
      %v1327 = vpop.f32.mrb[0].mxu0
      %v1328 = vpop.f32.mrb[0].mxu0
      %v1329 = vadd.f32 0.0, %v1328
      %v1330 = vpop.f32.mrb[0].mxu0
      %1331 = vmatprep.mubr.bf16.mxu0 0
      %1332 = vmatmul.mubr.bf16.gmra.mrb[0].mxu0 %v1137
      %v1333 = vpop.f32.mrb[0].mxu0
      %v1334 = vadd.f32 0.0, %v1333
      %v1335 = vpop.f32.mrb[0].mxu0
      %v1336 = vpop.f32.mrb[0].mxu0
      %v1337 = vadd.f32 0.0, %v1336
      %v1338 = vpop.f32.mrb[0].mxu0
      %1339 = vmatprep.mubr.bf16.mxu0 0
      %1340 = vmatmul.mubr.bf16.gmra.mrb[0].mxu0 %v1138
      %v1341 = vpop.f32.mrb[0].mxu0
      %v1342 = vadd.f32 0.0, %v1341
      %v1343 = vpop.f32.mrb[0].mxu0
      %v1344 = vpop.f32.mrb[0].mxu0
      %v1345 = vadd.f32 0.0, %v1344
      %v1346 = vpop.f32.mrb[0].mxu0
      %1347 = vmatprep.mubr.bf16.mxu0 0
      %1348 = vmatmul.mubr.bf16.gmra.mrb[0].mxu0 %v1139
      %v1349 = vpop.f32.mrb[0].mxu0
      %v1350 = vadd.f32 0.0, %v1349
      %v1351 = vpop.f32.mrb[0].mxu0
      %v1352 = vpop.f32.mrb[0].mxu0
      %v1353 = vadd.f32 0.0, %v1352
      %v1354 = vpop.f32.mrb[0].mxu0
      %1355 = vmatprep.mubr.bf16.mxu0 0
      %1356 = vmatmul.mubr.bf16.gmra.mrb[0].mxu0 %v1140
      %v1357 = vpop.f32.mrb[0].mxu0
      %v1358 = vadd.f32 0.0, %v1357
      %v1359 = vpop.f32.mrb[0].mxu0
      %v1360 = vpop.f32.mrb[0].mxu0
      %v1361 = vadd.f32 0.0, %v1360
      %v1362 = vpop.f32.mrb[0].mxu0
      %1363 = vmatprep.mubr.bf16.mxu0 0
      %1364 = vmatmul.mubr.bf16.gmra.mrb[0].mxu0 %v1141
      %v1365 = vpop.f32.mrb[0].mxu0
      %v1366 = vadd.f32 0.0, %v1365
      %v1367 = vpop.f32.mrb[0].mxu0
      %v1368 = vpop.f32.mrb[0].mxu0
      %v1369 = vadd.f32 0.0, %v1368
      %v1370 = vpop.f32.mrb[0].mxu0
      %1371 = vmatprep.mubr.bf16.mxu0 0
      %1372 = vmatmul.mubr.bf16.gmra.mrb[0].mxu0 %v1142
      %v1373 = vpop.f32.mrb[0].mxu0
      %v1374 = vadd.f32 0.0, %v1373
      %v1375 = vpop.f32.mrb[0].mxu0
      %v1376 = vpop.f32.mrb[0].mxu0
      %v1377 = vadd.f32 0.0, %v1376
      %v1378 = vpop.f32.mrb[0].mxu0
      %1379 = vmatprep.mubr.bf16.mxu0 0
      %1380 = vmatmul.mubr.bf16.gmra.mrb[0].mxu0 %v1143
      %v1381 = vpop.f32.mrb[0].mxu0
      %v1382 = vadd.f32 0.0, %v1381
      %v1383 = vpop.f32.mrb[0].mxu0
      %v1384 = vpop.f32.mrb[0].mxu0
      %v1385 = vadd.f32 0.0, %v1384
      %v1386 = vpop.f32.mrb[0].mxu0
      %1387 = vmatprep.mubr.bf16.mxu0 0
      %1388 = vmatmul.mubr.bf16.gmra.mrb[0].mxu0 %v1144
      %v1389 = vpop.f32.mrb[0].mxu0
      %v1390 = vadd.f32 0.0, %v1389
      %v1391 = vpop.f32.mrb[0].mxu0
      %v1392 = vpop.f32.mrb[0].mxu0
      %v1393 = vadd.f32 0.0, %v1392
      %v1394 = vpop.f32.mrb[0].mxu0
      %1395 = vmatprep.mubr.bf16.mxu0 0
      %1396 = vmatmul.mubr.bf16.gmra.mrb[0].mxu0 %v1145
      %v1397 = vpop.f32.mrb[0].mxu0
      %v1398 = vadd.f32 0.0, %v1397
      %v1399 = vpop.f32.mrb[0].mxu0
      %v1400 = vpop.f32.mrb[0].mxu0
      %v1401 = vadd.f32 0.0, %v1400
      %v1402 = vpop.f32.mrb[0].mxu0
      %1403 = vmatprep.mubr.bf16.mxu0 0
      %1404 = vmatmul.mubr.bf16.gmra.mrb[0].mxu0 %v1146
      %v1405 = vpop.f32.mrb[0].mxu0
      %v1406 = vadd.f32 0.0, %v1405
      %v1407 = vpop.f32.mrb[0].mxu0
      %v1408 = vpop.f32.mrb[0].mxu0
      %v1409 = vadd.f32 0.0, %v1408
      %v1410 = vpop.f32.mrb[0].mxu0
      %1411 = vmatprep.mubr.bf16.mxu0 0
      %1412 = vmatmul.mubr.bf16.gmra.mrb[0].mxu0 %v1147
      %v1413 = vpop.f32.mrb[0].mxu0
      %v1414 = vadd.f32 0.0, %v1413
      %v1415 = vpop.f32.mrb[0].mxu0
      %v1416 = vpop.f32.mrb[0].mxu0
      %v1417 = vadd.f32 0.0, %v1416
      %v1418 = vpop.f32.mrb[0].mxu0
      %1419 = vmatprep.mubr.bf16.mxu0 0
      %1420 = vmatmul.mubr.bf16.gmra.mrb[0].mxu0 %v1148
      %v1421 = vpop.f32.mrb[0].mxu0
      %v1422 = vadd.f32 0.0, %v1421
      %v1423 = vpop.f32.mrb[0].mxu0
      %v1424 = vpop.f32.mrb[0].mxu0
      %v1425 = vadd.f32 0.0, %v1424
      %v1426 = vpop.f32.mrb[0].mxu0
      %1427 = vmatprep.mubr.bf16.mxu0 0
      %1428 = vmatmul.mubr.bf16.gmra.mrb[0].mxu0 %v1149
      %v1429 = vpop.f32.mrb[0].mxu0
      %v1430 = vadd.f32 0.0, %v1429
      %v1431 = vpop.f32.mrb[0].mxu0
      %v1432 = vpop.f32.mrb[0].mxu0
      %v1433 = vadd.f32 0.0, %v1432
      %v1434 = vpop.f32.mrb[0].mxu0
      %1435 = vmatprep.mubr.bf16.mxu0 0
      %1436 = vmatmul.mubr.bf16.gmra.mrb[0].mxu0 %v1150
      %v1437 = vpop.f32.mrb[0].mxu0
      %v1438 = vadd.f32 0.0, %v1437
      %v1439 = vpop.f32.mrb[0].mxu0
      %v1440 = vpop.f32.mrb[0].mxu0
      %v1441 = vadd.f32 0.0, %v1440
      %v1442 = vpop.f32.mrb[0].mxu0
      %1443 = vmatprep.mubr.bf16.mxu0 0
      %1444 = vmatmul.mubr.bf16.gmra.mrb[0].mxu0 %v1151
      %v1445 = vpop.f32.mrb[0].mxu0
      %v1446 = vadd.f32 0.0, %v1445
      %v1447 = vpop.f32.mrb[0].mxu0
      %v1448 = vpop.f32.mrb[0].mxu0
      %v1449 = vadd.f32 0.0, %v1448
      %v1450 = vpop.f32.mrb[0].mxu0
      %1451 = vmatprep.mubr.bf16.mxu0 0
      %1452 = vmatmul.mubr.bf16.gmra.mrb[0].mxu0 %v1152
      %v1453 = vpop.f32.mrb[0].mxu0
      %v1454 = vadd.f32 0.0, %v1453
      %v1455 = vpop.f32.mrb[0].mxu0
      %v1456 = vpop.f32.mrb[0].mxu0
      %v1457 = vadd.f32 0.0, %v1456
      %v1458 = vpop.f32.mrb[0].mxu0
      %1459 = vmatprep.mubr.bf16.mxu0 0
      %1460 = vmatmul.mubr.bf16.gmra.mrb[0].mxu0 %v1153
      %v1461 = vpop.f32.mrb[0].mxu0
      %v1462 = vadd.f32 0.0, %v1461
      %v1463 = vpop.f32.mrb[0].mxu0
      %v1464 = vpop.f32.mrb[0].mxu0
      %v1465 = vadd.f32 0.0, %v1464
      %v1466 = vpop.f32.mrb[0].mxu0
      %1467 = vmatprep.mubr.bf16.mxu0 0
      %1468 = vmatmul.mubr.bf16.gmra.mrb[0].mxu0 %v1154
      %v1469 = vpop.f32.mrb[0].mxu0
      %v1470 = vadd.f32 0.0, %v1469
      %v1471 = vpop.f32.mrb[0].mxu0
      %v1472 = vpop.f32.mrb[0].mxu0
      %v1473 = vadd.f32 0.0, %v1472
      %v1474 = vpop.f32.mrb[0].mxu0
      %1475 = vdwg.mxu0
      %v1476 = vmax.f32 %v677, %v1222
      %v1477 = vmax.f32 %v680, %v1225
      %v1478 = vmax.f32 %v685, %v1230
      %v1479 = vmax.f32 %v688, %v1233
      %v1480 = vmax.f32 %v693, %v1238
      %v1481 = vmax.f32 %v696, %v1241
      %v1482 = vmax.f32 %v701, %v1246
      %v1483 = vmax.f32 %v704, %v1249
      %v1484 = vmax.f32 %v709, %v1254
      %v1485 = vmax.f32 %v712, %v1257
      %v1486 = vmax.f32 %v717, %v1262
      %v1487 = vmax.f32 %v720, %v1265
      %v1488 = vmax.f32 %v725, %v1270
      %v1489 = vmax.f32 %v728, %v1273
      %v1490 = vmax.f32 %v733, %v1278
      %v1491 = vmax.f32 %v736, %v1281
      %v1492 = vmax.f32 %v741, %v1286
      %v1493 = vmax.f32 %v744, %v1289
      %v1494 = vmax.f32 %v749, %v1294
      %v1495 = vmax.f32 %v752, %v1297
      %v1496 = vmax.f32 %v757, %v1302
      %v1497 = vmax.f32 %v760, %v1305
      %v1498 = vmax.f32 %v765, %v1310
      %v1499 = vmax.f32 %v768, %v1313
      %v1500 = vmax.f32 %v773, %v1318
      %v1501 = vmax.f32 %v776, %v1321
      %v1502 = vmax.f32 %v781, %v1326
      %v1503 = vmax.f32 %v784, %v1329
      %v1504 = vmax.f32 %v789, %v1334
      %v1505 = vmax.f32 %v792, %v1337
      %v1506 = vmax.f32 %v797, %v1342
      %v1507 = vmax.f32 %v800, %v1345
      %v1508 = vmax.f32 %v805, %v1350
      %v1509 = vmax.f32 %v808, %v1353
      %v1510 = vmax.f32 %v813, %v1358
      %v1511 = vmax.f32 %v816, %v1361
      %v1512 = vmax.f32 %v821, %v1366
      %v1513 = vmax.f32 %v824, %v1369
      %v1514 = vmax.f32 %v829, %v1374
      %v1515 = vmax.f32 %v832, %v1377
      %v1516 = vmax.f32 %v837, %v1382
      %v1517 = vmax.f32 %v840, %v1385
      %v1518 = vmax.f32 %v845, %v1390
      %v1519 = vmax.f32 %v848, %v1393
      %v1520 = vmax.f32 %v853, %v1398
      %v1521 = vmax.f32 %v856, %v1401
      %v1522 = vmax.f32 %v861, %v1406
      %v1523 = vmax.f32 %v864, %v1409
      %v1524 = vmax.f32 %v869, %v1414
      %v1525 = vmax.f32 %v872, %v1417
      %v1526 = vmax.f32 %v877, %v1422
      %v1527 = vmax.f32 %v880, %v1425
      %v1528 = vmax.f32 %v885, %v1430
      %v1529 = vmax.f32 %v888, %v1433
      %v1530 = vmax.f32 %v893, %v1438
      %v1531 = vmax.f32 %v896, %v1441
      %v1532 = vmax.f32 %v901, %v1446
      %v1533 = vmax.f32 %v904, %v1449
      %v1534 = vmax.f32 %v909, %v1454
      %v1535 = vmax.f32 %v912, %v1457
      %v1536 = vmax.f32 %v917, %v1462
      %v1537 = vmax.f32 %v920, %v1465
      %v1538 = vmax.f32 %v925, %v1470
      %v1539 = vmax.f32 %v928, %v1473
      %v1540 = vld [vmem:[%s307] sm:$0xf]
      %v1541 = vld [vmem:[%s307 + $0x4] sm:$0xf]
      %v1542 = vld [vmem:[%s307 + $0x8] sm:$0xf]
      %v1543 = vld [vmem:[%s307 + $0xc] sm:$0xf]
      %v1544 = vld [vmem:[%s307 + $0x10] sm:$0xf]
      %v1545 = vld [vmem:[%s307 + $0x14] sm:$0xf]
      %v1546 = vld [vmem:[%s307 + $0x18] sm:$0xf]
      %v1547 = vld [vmem:[%s307 + $0x1c] sm:$0xf]
      %v1548 = vld [vmem:[%s307 + $0x20] sm:$0xf]
      %v1549 = vld [vmem:[%s307 + $0x24] sm:$0xf]
      %v1550 = vld [vmem:[%s307 + $0x28] sm:$0xf]
      %v1551 = vld [vmem:[%s307 + $0x2c] sm:$0xf]
      %v1552 = vld [vmem:[%s307 + $0x30] sm:$0xf]
      %v1553 = vld [vmem:[%s307 + $0x34] sm:$0xf]
      %v1554 = vld [vmem:[%s307 + $0x38] sm:$0xf]
      %v1555 = vld [vmem:[%s307 + $0x3c] sm:$0xf]
      %v1556 = vld [vmem:[%s307 + $0x40] sm:$0xf]
      %v1557 = vld [vmem:[%s307 + $0x44] sm:$0xf]
      %v1558 = vld [vmem:[%s307 + $0x48] sm:$0xf]
      %v1559 = vld [vmem:[%s307 + $0x4c] sm:$0xf]
      %v1560 = vld [vmem:[%s307 + $0x50] sm:$0xf]
      %v1561 = vld [vmem:[%s307 + $0x54] sm:$0xf]
      %v1562 = vld [vmem:[%s307 + $0x58] sm:$0xf]
      %v1563 = vld [vmem:[%s307 + $0x5c] sm:$0xf]
      %v1564 = vld [vmem:[%s307 + $0x60] sm:$0xf]
      %v1565 = vld [vmem:[%s307 + $0x64] sm:$0xf]
      %v1566 = vld [vmem:[%s307 + $0x68] sm:$0xf]
      %v1567 = vld [vmem:[%s307 + $0x6c] sm:$0xf]
      %v1568 = vld [vmem:[%s307 + $0x70] sm:$0xf]
      %v1569 = vld [vmem:[%s307 + $0x74] sm:$0xf]
      %v1570 = vld [vmem:[%s307 + $0x78] sm:$0xf]
      %v1571 = vld [vmem:[%s307 + $0x7c] sm:$0xf]
      %v1572 = vld [vmem:[%s307 + $0x80] sm:$0xf]
      %v1573 = vld [vmem:[%s307 + $0x84] sm:$0xf]
      %v1574 = vld [vmem:[%s307 + $0x88] sm:$0xf]
      %v1575 = vld [vmem:[%s307 + $0x8c] sm:$0xf]
      %v1576 = vld [vmem:[%s307 + $0x90] sm:$0xf]
      %v1577 = vld [vmem:[%s307 + $0x94] sm:$0xf]
      %v1578 = vld [vmem:[%s307 + $0x98] sm:$0xf]
      %v1579 = vld [vmem:[%s307 + $0x9c] sm:$0xf]
      %v1580 = vld [vmem:[%s307 + $0xa0] sm:$0xf]
      %v1581 = vld [vmem:[%s307 + $0xa4] sm:$0xf]
      %v1582 = vld [vmem:[%s307 + $0xa8] sm:$0xf]
      %v1583 = vld [vmem:[%s307 + $0xac] sm:$0xf]
      %v1584 = vld [vmem:[%s307 + $0xb0] sm:$0xf]
      %v1585 = vld [vmem:[%s307 + $0xb4] sm:$0xf]
      %v1586 = vld [vmem:[%s307 + $0xb8] sm:$0xf]
      %v1587 = vld [vmem:[%s307 + $0xbc] sm:$0xf]
      %v1588 = vld [vmem:[%s307 + $0xc0] sm:$0xf]
      %v1589 = vld [vmem:[%s307 + $0xc4] sm:$0xf]
      %v1590 = vld [vmem:[%s307 + $0xc8] sm:$0xf]
      %v1591 = vld [vmem:[%s307 + $0xcc] sm:$0xf]
      %v1592 = vld [vmem:[%s307 + $0xd0] sm:$0xf]
      %v1593 = vld [vmem:[%s307 + $0xd4] sm:$0xf]
      %v1594 = vld [vmem:[%s307 + $0xd8] sm:$0xf]
      %v1595 = vld [vmem:[%s307 + $0xdc] sm:$0xf]
      %v1596 = vld [vmem:[%s307 + $0xe0] sm:$0xf]
      %v1597 = vld [vmem:[%s307 + $0xe4] sm:$0xf]
      %v1598 = vld [vmem:[%s307 + $0xe8] sm:$0xf]
      %v1599 = vld [vmem:[%s307 + $0xec] sm:$0xf]
      %v1600 = vld [vmem:[%s307 + $0xf0] sm:$0xf]
      %v1601 = vld [vmem:[%s307 + $0xf4] sm:$0xf]
      %v1602 = vld [vmem:[%s307 + $0xf8] sm:$0xf]
      %v1603 = vld [vmem:[%s307 + $0xfc] sm:$0xf]
      %v1668 = vunpack.c.l.b16 %v1540
      %v1669 = vunpack.c.l.b16 %v1541
      %v1670 = vunpack.c.l.b16 %v1542
      %v1671 = vunpack.c.l.b16 %v1543
      %v1672 = vunpack.c.l.b16 %v1544
      %v1673 = vunpack.c.l.b16 %v1545
      %v1674 = vunpack.c.l.b16 %v1546
      %v1675 = vunpack.c.l.b16 %v1547
      %v1676 = vunpack.c.l.b16 %v1548
      %v1677 = vunpack.c.l.b16 %v1549
      %v1678 = vunpack.c.l.b16 %v1550
      %v1679 = vunpack.c.l.b16 %v1551
      %v1680 = vunpack.c.l.b16 %v1552
      %v1681 = vunpack.c.l.b16 %v1553
      %v1682 = vunpack.c.l.b16 %v1554
      %v1683 = vunpack.c.l.b16 %v1555
      %v1684 = vunpack.c.l.b16 %v1556
      %v1685 = vunpack.c.l.b16 %v1557
      %v1686 = vunpack.c.l.b16 %v1558
      %v1687 = vunpack.c.l.b16 %v1559
      %v1688 = vunpack.c.l.b16 %v1560
      %v1689 = vunpack.c.l.b16 %v1561
      %v1690 = vunpack.c.l.b16 %v1562
      %v1691 = vunpack.c.l.b16 %v1563
      %v1692 = vunpack.c.l.b16 %v1564
      %v1693 = vunpack.c.l.b16 %v1565
      %v1694 = vunpack.c.l.b16 %v1566
      %v1695 = vunpack.c.l.b16 %v1567
      %v1696 = vunpack.c.l.b16 %v1568
      %v1697 = vunpack.c.l.b16 %v1569
      %v1698 = vunpack.c.l.b16 %v1570
      %v1699 = vunpack.c.l.b16 %v1571
      %v1700 = vunpack.c.l.b16 %v1572
      %v1701 = vunpack.c.l.b16 %v1573
      %v1702 = vunpack.c.l.b16 %v1574
      %v1703 = vunpack.c.l.b16 %v1575
      %v1704 = vunpack.c.l.b16 %v1576
      %v1705 = vunpack.c.l.b16 %v1577
      %v1706 = vunpack.c.l.b16 %v1578
      %v1707 = vunpack.c.l.b16 %v1579
      %v1708 = vunpack.c.l.b16 %v1580
      %v1709 = vunpack.c.l.b16 %v1581
      %v1710 = vunpack.c.l.b16 %v1582
      %v1711 = vunpack.c.l.b16 %v1583
      %v1712 = vunpack.c.l.b16 %v1584
      %v1713 = vunpack.c.l.b16 %v1585
      %v1714 = vunpack.c.l.b16 %v1586
      %v1715 = vunpack.c.l.b16 %v1587
      %v1716 = vunpack.c.l.b16 %v1588
      %v1717 = vunpack.c.l.b16 %v1589
      %v1718 = vunpack.c.l.b16 %v1590
      %v1719 = vunpack.c.l.b16 %v1591
      %v1720 = vunpack.c.l.b16 %v1592
      %v1721 = vunpack.c.l.b16 %v1593
      %v1722 = vunpack.c.l.b16 %v1594
      %v1723 = vunpack.c.l.b16 %v1595
      %v1724 = vunpack.c.l.b16 %v1596
      %v1725 = vunpack.c.l.b16 %v1597
      %v1726 = vunpack.c.l.b16 %v1598
      %v1727 = vunpack.c.l.b16 %v1599
      %v1728 = vunpack.c.l.b16 %v1600
      %v1729 = vunpack.c.l.b16 %v1601
      %v1730 = vunpack.c.l.b16 %v1602
      %v1731 = vunpack.c.l.b16 %v1603
      %v1732 = vpack.c.b16 %v1669, %v1668
      %v1733 = vpack.c.b16 %v1671, %v1670
      %v1734 = vpack.c.b16 %v1673, %v1672
      %v1735 = vpack.c.b16 %v1675, %v1674
      %v1736 = vpack.c.b16 %v1677, %v1676
      %v1737 = vpack.c.b16 %v1679, %v1678
      %v1738 = vpack.c.b16 %v1681, %v1680
      %v1739 = vpack.c.b16 %v1683, %v1682
      %v1740 = vpack.c.b16 %v1685, %v1684
      %v1741 = vpack.c.b16 %v1687, %v1686
      %v1742 = vpack.c.b16 %v1689, %v1688
      %v1743 = vpack.c.b16 %v1691, %v1690
      %v1744 = vpack.c.b16 %v1693, %v1692
      %v1745 = vpack.c.b16 %v1695, %v1694
      %v1746 = vpack.c.b16 %v1697, %v1696
      %v1747 = vpack.c.b16 %v1699, %v1698
      %v1748 = vpack.c.b16 %v1701, %v1700
      %v1749 = vpack.c.b16 %v1703, %v1702
      %v1750 = vpack.c.b16 %v1705, %v1704
      %v1751 = vpack.c.b16 %v1707, %v1706
      %v1752 = vpack.c.b16 %v1709, %v1708
      %v1753 = vpack.c.b16 %v1711, %v1710
      %v1754 = vpack.c.b16 %v1713, %v1712
      %v1755 = vpack.c.b16 %v1715, %v1714
      %v1756 = vpack.c.b16 %v1717, %v1716
      %v1757 = vpack.c.b16 %v1719, %v1718
      %v1758 = vpack.c.b16 %v1721, %v1720
      %v1759 = vpack.c.b16 %v1723, %v1722
      %v1760 = vpack.c.b16 %v1725, %v1724
      %v1761 = vpack.c.b16 %v1727, %v1726
      %v1762 = vpack.c.b16 %v1729, %v1728
      %v1763 = vpack.c.b16 %v1731, %v1730
      %1796 = vmatprep.subr.bf16.mxu0 0
      %1797 = vmatpush1.bf16.msra.mxu0 %v626
      %1798 = vmatprep.subr.bf16.mxu0 0
      %1799 = vmatpush1.bf16.msra.mxu0 %v627
      %1800 = vmatprep.subr.bf16.mxu0 0
      %1801 = vmatpush1.bf16.msra.mxu0 %v628
      %1802 = vmatprep.subr.bf16.mxu0 0
      %1803 = vmatpush1.bf16.msra.mxu0 %v629
      %1804 = vmatprep.subr.bf16.mxu0 0
      %1805 = vmatpush1.bf16.msra.mxu0 %v630
      %1806 = vmatprep.subr.bf16.mxu0 0
      %1807 = vmatpush1.bf16.msra.mxu0 %v631
      %1808 = vmatprep.subr.bf16.mxu0 0
      %1809 = vmatpush1.bf16.msra.mxu0 %v632
      %1810 = vmatprep.subr.bf16.mxu0 0
      %1811 = vmatpush1.bf16.msra.mxu0 %v633
      %1812 = vmatprep.subr.bf16.mxu0 0
      %1813 = vmatpush1.bf16.msra.mxu0 0
      %1814 = vmatprep.subr.bf16.mxu0 0
      %1815 = vmatpush1.bf16.msra.mxu0 0
      %1816 = vmatprep.subr.bf16.mxu0 0
      %1817 = vmatpush1.bf16.msra.mxu0 0
      %1818 = vmatprep.subr.bf16.mxu0 0
      %1819 = vmatpush1.bf16.msra.mxu0 0
      %1820 = vmatprep.subr.bf16.mxu0 0
      %1821 = vmatpush1.bf16.msra.mxu0 0
      %1822 = vmatprep.subr.bf16.mxu0 0
      %1823 = vmatpush1.bf16.msra.mxu0 0
      %1824 = vmatprep.subr.bf16.mxu0 0
      %1825 = vmatpush1.bf16.msra.mxu0 0
      %1826 = vmatprep.subr.bf16.mxu0 0
      %1827 = vmatpush1.bf16.msra.mxu0 0
      %1828 = vmatprep.mubr.bf16.mxu0 0
      %1829 = vmatmul.mubr.bf16.gmra.mrb[0].mxu0 %v1732
      %v1830 = vpop.f32.mrb[0].mxu0
      %v1831 = vadd.f32 0.0, %v1830
      %v1832 = vpop.f32.mrb[0].mxu0
      %v1833 = vpop.f32.mrb[0].mxu0
      %v1834 = vadd.f32 0.0, %v1833
      %v1835 = vpop.f32.mrb[0].mxu0
      %1836 = vmatprep.mubr.bf16.mxu0 0
      %1837 = vmatmul.mubr.bf16.gmra.mrb[0].mxu0 %v1733
      %v1838 = vpop.f32.mrb[0].mxu0
      %v1839 = vadd.f32 0.0, %v1838
      %v1840 = vpop.f32.mrb[0].mxu0
      %v1841 = vpop.f32.mrb[0].mxu0
      %v1842 = vadd.f32 0.0, %v1841
      %v1843 = vpop.f32.mrb[0].mxu0
      %1844 = vmatprep.mubr.bf16.mxu0 0
      %1845 = vmatmul.mubr.bf16.gmra.mrb[0].mxu0 %v1734
      %v1846 = vpop.f32.mrb[0].mxu0
      %v1847 = vadd.f32 0.0, %v1846
      %v1848 = vpop.f32.mrb[0].mxu0
      %v1849 = vpop.f32.mrb[0].mxu0
      %v1850 = vadd.f32 0.0, %v1849
      %v1851 = vpop.f32.mrb[0].mxu0
      %1852 = vmatprep.mubr.bf16.mxu0 0
      %1853 = vmatmul.mubr.bf16.gmra.mrb[0].mxu0 %v1735
      %v1854 = vpop.f32.mrb[0].mxu0
      %v1855 = vadd.f32 0.0, %v1854
      %v1856 = vpop.f32.mrb[0].mxu0
      %v1857 = vpop.f32.mrb[0].mxu0
      %v1858 = vadd.f32 0.0, %v1857
      %v1859 = vpop.f32.mrb[0].mxu0
      %1860 = vmatprep.mubr.bf16.mxu0 0
      %1861 = vmatmul.mubr.bf16.gmra.mrb[0].mxu0 %v1736
      %v1862 = vpop.f32.mrb[0].mxu0
      %v1863 = vadd.f32 0.0, %v1862
      %v1864 = vpop.f32.mrb[0].mxu0
      %v1865 = vpop.f32.mrb[0].mxu0
      %v1866 = vadd.f32 0.0, %v1865
      %v1867 = vpop.f32.mrb[0].mxu0
      %1868 = vmatprep.mubr.bf16.mxu0 0
      %1869 = vmatmul.mubr.bf16.gmra.mrb[0].mxu0 %v1737
      %v1870 = vpop.f32.mrb[0].mxu0
      %v1871 = vadd.f32 0.0, %v1870
      %v1872 = vpop.f32.mrb[0].mxu0
      %v1873 = vpop.f32.mrb[0].mxu0
      %v1874 = vadd.f32 0.0, %v1873
      %v1875 = vpop.f32.mrb[0].mxu0
      %1876 = vmatprep.mubr.bf16.mxu0 0
      %1877 = vmatmul.mubr.bf16.gmra.mrb[0].mxu0 %v1738
      %v1878 = vpop.f32.mrb[0].mxu0
      %v1879 = vadd.f32 0.0, %v1878
      %v1880 = vpop.f32.mrb[0].mxu0
      %v1881 = vpop.f32.mrb[0].mxu0
      %v1882 = vadd.f32 0.0, %v1881
      %v1883 = vpop.f32.mrb[0].mxu0
      %1884 = vmatprep.mubr.bf16.mxu0 0
      %1885 = vmatmul.mubr.bf16.gmra.mrb[0].mxu0 %v1739
      %v1886 = vpop.f32.mrb[0].mxu0
      %v1887 = vadd.f32 0.0, %v1886
      %v1888 = vpop.f32.mrb[0].mxu0
      %v1889 = vpop.f32.mrb[0].mxu0
      %v1890 = vadd.f32 0.0, %v1889
      %v1891 = vpop.f32.mrb[0].mxu0
      %1892 = vmatprep.mubr.bf16.mxu0 0
      %1893 = vmatmul.mubr.bf16.gmra.mrb[0].mxu0 %v1740
      %v1894 = vpop.f32.mrb[0].mxu0
      %v1895 = vadd.f32 0.0, %v1894
      %v1896 = vpop.f32.mrb[0].mxu0
      %v1897 = vpop.f32.mrb[0].mxu0
      %v1898 = vadd.f32 0.0, %v1897
      %v1899 = vpop.f32.mrb[0].mxu0
      %1900 = vmatprep.mubr.bf16.mxu0 0
      %1901 = vmatmul.mubr.bf16.gmra.mrb[0].mxu0 %v1741
      %v1902 = vpop.f32.mrb[0].mxu0
      %v1903 = vadd.f32 0.0, %v1902
      %v1904 = vpop.f32.mrb[0].mxu0
      %v1905 = vpop.f32.mrb[0].mxu0
      %v1906 = vadd.f32 0.0, %v1905
      %v1907 = vpop.f32.mrb[0].mxu0
      %1908 = vmatprep.mubr.bf16.mxu0 0
      %1909 = vmatmul.mubr.bf16.gmra.mrb[0].mxu0 %v1742
      %v1910 = vpop.f32.mrb[0].mxu0
      %v1911 = vadd.f32 0.0, %v1910
      %v1912 = vpop.f32.mrb[0].mxu0
      %v1913 = vpop.f32.mrb[0].mxu0
      %v1914 = vadd.f32 0.0, %v1913
      %v1915 = vpop.f32.mrb[0].mxu0
      %1916 = vmatprep.mubr.bf16.mxu0 0
      %1917 = vmatmul.mubr.bf16.gmra.mrb[0].mxu0 %v1743
      %v1918 = vpop.f32.mrb[0].mxu0
      %v1919 = vadd.f32 0.0, %v1918
      %v1920 = vpop.f32.mrb[0].mxu0
      %v1921 = vpop.f32.mrb[0].mxu0
      %v1922 = vadd.f32 0.0, %v1921
      %v1923 = vpop.f32.mrb[0].mxu0
      %1924 = vmatprep.mubr.bf16.mxu0 0
      %1925 = vmatmul.mubr.bf16.gmra.mrb[0].mxu0 %v1744
      %v1926 = vpop.f32.mrb[0].mxu0
      %v1927 = vadd.f32 0.0, %v1926
      %v1928 = vpop.f32.mrb[0].mxu0
      %v1929 = vpop.f32.mrb[0].mxu0
      %v1930 = vadd.f32 0.0, %v1929
      %v1931 = vpop.f32.mrb[0].mxu0
      %1932 = vmatprep.mubr.bf16.mxu0 0
      %1933 = vmatmul.mubr.bf16.gmra.mrb[0].mxu0 %v1745
      %v1934 = vpop.f32.mrb[0].mxu0
      %v1935 = vadd.f32 0.0, %v1934
      %v1936 = vpop.f32.mrb[0].mxu0
      %v1937 = vpop.f32.mrb[0].mxu0
      %v1938 = vadd.f32 0.0, %v1937
      %v1939 = vpop.f32.mrb[0].mxu0
      %1940 = vmatprep.mubr.bf16.mxu0 0
      %1941 = vmatmul.mubr.bf16.gmra.mrb[0].mxu0 %v1746
      %v1942 = vpop.f32.mrb[0].mxu0
      %v1943 = vadd.f32 0.0, %v1942
      %v1944 = vpop.f32.mrb[0].mxu0
      %v1945 = vpop.f32.mrb[0].mxu0
      %v1946 = vadd.f32 0.0, %v1945
      %v1947 = vpop.f32.mrb[0].mxu0
      %1948 = vmatprep.mubr.bf16.mxu0 0
      %1949 = vmatmul.mubr.bf16.gmra.mrb[0].mxu0 %v1747
      %v1950 = vpop.f32.mrb[0].mxu0
      %v1951 = vadd.f32 0.0, %v1950
      %v1952 = vpop.f32.mrb[0].mxu0
      %v1953 = vpop.f32.mrb[0].mxu0
      %v1954 = vadd.f32 0.0, %v1953
      %v1955 = vpop.f32.mrb[0].mxu0
      %1956 = vmatprep.mubr.bf16.mxu0 0
      %1957 = vmatmul.mubr.bf16.gmra.mrb[0].mxu0 %v1748
      %v1958 = vpop.f32.mrb[0].mxu0
      %v1959 = vadd.f32 0.0, %v1958
      %v1960 = vpop.f32.mrb[0].mxu0
      %v1961 = vpop.f32.mrb[0].mxu0
      %v1962 = vadd.f32 0.0, %v1961
      %v1963 = vpop.f32.mrb[0].mxu0
      %1964 = vmatprep.mubr.bf16.mxu0 0
      %1965 = vmatmul.mubr.bf16.gmra.mrb[0].mxu0 %v1749
      %v1966 = vpop.f32.mrb[0].mxu0
      %v1967 = vadd.f32 0.0, %v1966
      %v1968 = vpop.f32.mrb[0].mxu0
      %v1969 = vpop.f32.mrb[0].mxu0
      %v1970 = vadd.f32 0.0, %v1969
      %v1971 = vpop.f32.mrb[0].mxu0
      %1972 = vmatprep.mubr.bf16.mxu0 0
      %1973 = vmatmul.mubr.bf16.gmra.mrb[0].mxu0 %v1750
      %v1974 = vpop.f32.mrb[0].mxu0
      %v1975 = vadd.f32 0.0, %v1974
      %v1976 = vpop.f32.mrb[0].mxu0
      %v1977 = vpop.f32.mrb[0].mxu0
      %v1978 = vadd.f32 0.0, %v1977
      %v1979 = vpop.f32.mrb[0].mxu0
      %1980 = vmatprep.mubr.bf16.mxu0 0
      %1981 = vmatmul.mubr.bf16.gmra.mrb[0].mxu0 %v1751
      %v1982 = vpop.f32.mrb[0].mxu0
      %v1983 = vadd.f32 0.0, %v1982
      %v1984 = vpop.f32.mrb[0].mxu0
      %v1985 = vpop.f32.mrb[0].mxu0
      %v1986 = vadd.f32 0.0, %v1985
      %v1987 = vpop.f32.mrb[0].mxu0
      %1988 = vmatprep.mubr.bf16.mxu0 0
      %1989 = vmatmul.mubr.bf16.gmra.mrb[0].mxu0 %v1752
      %v1990 = vpop.f32.mrb[0].mxu0
      %v1991 = vadd.f32 0.0, %v1990
      %v1992 = vpop.f32.mrb[0].mxu0
      %v1993 = vpop.f32.mrb[0].mxu0
      %v1994 = vadd.f32 0.0, %v1993
      %v1995 = vpop.f32.mrb[0].mxu0
      %1996 = vmatprep.mubr.bf16.mxu0 0
      %1997 = vmatmul.mubr.bf16.gmra.mrb[0].mxu0 %v1753
      %v1998 = vpop.f32.mrb[0].mxu0
      %v1999 = vadd.f32 0.0, %v1998
      %v2000 = vpop.f32.mrb[0].mxu0
      %v2001 = vpop.f32.mrb[0].mxu0
      %v2002 = vadd.f32 0.0, %v2001
      %v2003 = vpop.f32.mrb[0].mxu0
      %2004 = vmatprep.mubr.bf16.mxu0 0
      %2005 = vmatmul.mubr.bf16.gmra.mrb[0].mxu0 %v1754
      %v2006 = vpop.f32.mrb[0].mxu0
      %v2007 = vadd.f32 0.0, %v2006
      %v2008 = vpop.f32.mrb[0].mxu0
      %v2009 = vpop.f32.mrb[0].mxu0
      %v2010 = vadd.f32 0.0, %v2009
      %v2011 = vpop.f32.mrb[0].mxu0
      %2012 = vmatprep.mubr.bf16.mxu0 0
      %2013 = vmatmul.mubr.bf16.gmra.mrb[0].mxu0 %v1755
      %v2014 = vpop.f32.mrb[0].mxu0
      %v2015 = vadd.f32 0.0, %v2014
      %v2016 = vpop.f32.mrb[0].mxu0
      %v2017 = vpop.f32.mrb[0].mxu0
      %v2018 = vadd.f32 0.0, %v2017
      %v2019 = vpop.f32.mrb[0].mxu0
      %2020 = vmatprep.mubr.bf16.mxu0 0
      %2021 = vmatmul.mubr.bf16.gmra.mrb[0].mxu0 %v1756
      %v2022 = vpop.f32.mrb[0].mxu0
      %v2023 = vadd.f32 0.0, %v2022
      %v2024 = vpop.f32.mrb[0].mxu0
      %v2025 = vpop.f32.mrb[0].mxu0
      %v2026 = vadd.f32 0.0, %v2025
      %v2027 = vpop.f32.mrb[0].mxu0
      %2028 = vmatprep.mubr.bf16.mxu0 0
      %2029 = vmatmul.mubr.bf16.gmra.mrb[0].mxu0 %v1757
      %v2030 = vpop.f32.mrb[0].mxu0
      %v2031 = vadd.f32 0.0, %v2030
      %v2032 = vpop.f32.mrb[0].mxu0
      %v2033 = vpop.f32.mrb[0].mxu0
      %v2034 = vadd.f32 0.0, %v2033
      %v2035 = vpop.f32.mrb[0].mxu0
      %2036 = vmatprep.mubr.bf16.mxu0 0
      %2037 = vmatmul.mubr.bf16.gmra.mrb[0].mxu0 %v1758
      %v2038 = vpop.f32.mrb[0].mxu0
      %v2039 = vadd.f32 0.0, %v2038
      %v2040 = vpop.f32.mrb[0].mxu0
      %v2041 = vpop.f32.mrb[0].mxu0
      %v2042 = vadd.f32 0.0, %v2041
      %v2043 = vpop.f32.mrb[0].mxu0
      %2044 = vmatprep.mubr.bf16.mxu0 0
      %2045 = vmatmul.mubr.bf16.gmra.mrb[0].mxu0 %v1759
      %v2046 = vpop.f32.mrb[0].mxu0
      %v2047 = vadd.f32 0.0, %v2046
      %v2048 = vpop.f32.mrb[0].mxu0
      %v2049 = vpop.f32.mrb[0].mxu0
      %v2050 = vadd.f32 0.0, %v2049
      %v2051 = vpop.f32.mrb[0].mxu0
      %2052 = vmatprep.mubr.bf16.mxu0 0
      %2053 = vmatmul.mubr.bf16.gmra.mrb[0].mxu0 %v1760
      %v2054 = vpop.f32.mrb[0].mxu0
      %v2055 = vadd.f32 0.0, %v2054
      %v2056 = vpop.f32.mrb[0].mxu0
      %v2057 = vpop.f32.mrb[0].mxu0
      %v2058 = vadd.f32 0.0, %v2057
      %v2059 = vpop.f32.mrb[0].mxu0
      %2060 = vmatprep.mubr.bf16.mxu0 0
      %2061 = vmatmul.mubr.bf16.gmra.mrb[0].mxu0 %v1761
      %v2062 = vpop.f32.mrb[0].mxu0
      %v2063 = vadd.f32 0.0, %v2062
      %v2064 = vpop.f32.mrb[0].mxu0
      %v2065 = vpop.f32.mrb[0].mxu0
      %v2066 = vadd.f32 0.0, %v2065
      %v2067 = vpop.f32.mrb[0].mxu0
      %2068 = vmatprep.mubr.bf16.mxu0 0
      %2069 = vmatmul.mubr.bf16.gmra.mrb[0].mxu0 %v1762
      %v2070 = vpop.f32.mrb[0].mxu0
      %v2071 = vadd.f32 0.0, %v2070
      %v2072 = vpop.f32.mrb[0].mxu0
      %v2073 = vpop.f32.mrb[0].mxu0
      %v2074 = vadd.f32 0.0, %v2073
      %v2075 = vpop.f32.mrb[0].mxu0
      %2076 = vmatprep.mubr.bf16.mxu0 0
      %2077 = vmatmul.mubr.bf16.gmra.mrb[0].mxu0 %v1763
      %v2078 = vpop.f32.mrb[0].mxu0
      %v2079 = vadd.f32 0.0, %v2078
      %v2080 = vpop.f32.mrb[0].mxu0
      %v2081 = vpop.f32.mrb[0].mxu0
      %v2082 = vadd.f32 0.0, %v2081
      %v2083 = vpop.f32.mrb[0].mxu0
      %2084 = vdwg.mxu0
      %v2085 = vld [vmem:[%s313] sm:$0xf]
      %v2086 = vld [vmem:[%s313 + $0x4] sm:$0xf]
      %v2087 = vld [vmem:[%s313 + $0x8] sm:$0xf]
      %v2088 = vld [vmem:[%s313 + $0xc] sm:$0xf]
      %v2089 = vld [vmem:[%s313 + $0x10] sm:$0xf]
      %v2090 = vld [vmem:[%s313 + $0x14] sm:$0xf]
      %v2091 = vld [vmem:[%s313 + $0x18] sm:$0xf]
      %v2092 = vld [vmem:[%s313 + $0x1c] sm:$0xf]
      %v2093 = vld [vmem:[%s313 + $0x20] sm:$0xf]
      %v2094 = vld [vmem:[%s313 + $0x24] sm:$0xf]
      %v2095 = vld [vmem:[%s313 + $0x28] sm:$0xf]
      %v2096 = vld [vmem:[%s313 + $0x2c] sm:$0xf]
      %v2097 = vld [vmem:[%s313 + $0x30] sm:$0xf]
      %v2098 = vld [vmem:[%s313 + $0x34] sm:$0xf]
      %v2099 = vld [vmem:[%s313 + $0x38] sm:$0xf]
      %v2100 = vld [vmem:[%s313 + $0x3c] sm:$0xf]
      %v2101 = vld [vmem:[%s313 + $0x40] sm:$0xf]
      %v2102 = vld [vmem:[%s313 + $0x44] sm:$0xf]
      %v2103 = vld [vmem:[%s313 + $0x48] sm:$0xf]
      %v2104 = vld [vmem:[%s313 + $0x4c] sm:$0xf]
      %v2105 = vld [vmem:[%s313 + $0x50] sm:$0xf]
      %v2106 = vld [vmem:[%s313 + $0x54] sm:$0xf]
      %v2107 = vld [vmem:[%s313 + $0x58] sm:$0xf]
      %v2108 = vld [vmem:[%s313 + $0x5c] sm:$0xf]
      %v2109 = vld [vmem:[%s313 + $0x60] sm:$0xf]
      %v2110 = vld [vmem:[%s313 + $0x64] sm:$0xf]
      %v2111 = vld [vmem:[%s313 + $0x68] sm:$0xf]
      %v2112 = vld [vmem:[%s313 + $0x6c] sm:$0xf]
      %v2113 = vld [vmem:[%s313 + $0x70] sm:$0xf]
      %v2114 = vld [vmem:[%s313 + $0x74] sm:$0xf]
      %v2115 = vld [vmem:[%s313 + $0x78] sm:$0xf]
      %v2116 = vld [vmem:[%s313 + $0x7c] sm:$0xf]
      %v2117 = vld [vmem:[%s313 + $0x80] sm:$0xf]
      %v2118 = vld [vmem:[%s313 + $0x84] sm:$0xf]
      %v2119 = vld [vmem:[%s313 + $0x88] sm:$0xf]
      %v2120 = vld [vmem:[%s313 + $0x8c] sm:$0xf]
      %v2121 = vld [vmem:[%s313 + $0x90] sm:$0xf]
      %v2122 = vld [vmem:[%s313 + $0x94] sm:$0xf]
      %v2123 = vld [vmem:[%s313 + $0x98] sm:$0xf]
      %v2124 = vld [vmem:[%s313 + $0x9c] sm:$0xf]
      %v2125 = vld [vmem:[%s313 + $0xa0] sm:$0xf]
      %v2126 = vld [vmem:[%s313 + $0xa4] sm:$0xf]
      %v2127 = vld [vmem:[%s313 + $0xa8] sm:$0xf]
      %v2128 = vld [vmem:[%s313 + $0xac] sm:$0xf]
      %v2129 = vld [vmem:[%s313 + $0xb0] sm:$0xf]
      %v2130 = vld [vmem:[%s313 + $0xb4] sm:$0xf]
      %v2131 = vld [vmem:[%s313 + $0xb8] sm:$0xf]
      %v2132 = vld [vmem:[%s313 + $0xbc] sm:$0xf]
      %v2133 = vld [vmem:[%s313 + $0xc0] sm:$0xf]
      %v2134 = vld [vmem:[%s313 + $0xc4] sm:$0xf]
      %v2135 = vld [vmem:[%s313 + $0xc8] sm:$0xf]
      %v2136 = vld [vmem:[%s313 + $0xcc] sm:$0xf]
      %v2137 = vld [vmem:[%s313 + $0xd0] sm:$0xf]
      %v2138 = vld [vmem:[%s313 + $0xd4] sm:$0xf]
      %v2139 = vld [vmem:[%s313 + $0xd8] sm:$0xf]
      %v2140 = vld [vmem:[%s313 + $0xdc] sm:$0xf]
      %v2141 = vld [vmem:[%s313 + $0xe0] sm:$0xf]
      %v2142 = vld [vmem:[%s313 + $0xe4] sm:$0xf]
      %v2143 = vld [vmem:[%s313 + $0xe8] sm:$0xf]
      %v2144 = vld [vmem:[%s313 + $0xec] sm:$0xf]
      %v2145 = vld [vmem:[%s313 + $0xf0] sm:$0xf]
      %v2146 = vld [vmem:[%s313 + $0xf4] sm:$0xf]
      %v2147 = vld [vmem:[%s313 + $0xf8] sm:$0xf]
      %v2148 = vld [vmem:[%s313 + $0xfc] sm:$0xf]
      %v2213 = vunpack.c.l.b16 %v2085
      %v2214 = vunpack.c.l.b16 %v2086
      %v2215 = vunpack.c.l.b16 %v2087
      %v2216 = vunpack.c.l.b16 %v2088
      %v2217 = vunpack.c.l.b16 %v2089
      %v2218 = vunpack.c.l.b16 %v2090
      %v2219 = vunpack.c.l.b16 %v2091
      %v2220 = vunpack.c.l.b16 %v2092
      %v2221 = vunpack.c.l.b16 %v2093
      %v2222 = vunpack.c.l.b16 %v2094
      %v2223 = vunpack.c.l.b16 %v2095
      %v2224 = vunpack.c.l.b16 %v2096
      %v2225 = vunpack.c.l.b16 %v2097
      %v2226 = vunpack.c.l.b16 %v2098
      %v2227 = vunpack.c.l.b16 %v2099
      %v2228 = vunpack.c.l.b16 %v2100
      %v2229 = vunpack.c.l.b16 %v2101
      %v2230 = vunpack.c.l.b16 %v2102
      %v2231 = vunpack.c.l.b16 %v2103
      %v2232 = vunpack.c.l.b16 %v2104
      %v2233 = vunpack.c.l.b16 %v2105
      %v2234 = vunpack.c.l.b16 %v2106
      %v2235 = vunpack.c.l.b16 %v2107
      %v2236 = vunpack.c.l.b16 %v2108
      %v2237 = vunpack.c.l.b16 %v2109
      %v2238 = vunpack.c.l.b16 %v2110
      %v2239 = vunpack.c.l.b16 %v2111
      %v2240 = vunpack.c.l.b16 %v2112
      %v2241 = vunpack.c.l.b16 %v2113
      %v2242 = vunpack.c.l.b16 %v2114
      %v2243 = vunpack.c.l.b16 %v2115
      %v2244 = vunpack.c.l.b16 %v2116
      %v2245 = vunpack.c.l.b16 %v2117
      %v2246 = vunpack.c.l.b16 %v2118
      %v2247 = vunpack.c.l.b16 %v2119
      %v2248 = vunpack.c.l.b16 %v2120
      %v2249 = vunpack.c.l.b16 %v2121
      %v2250 = vunpack.c.l.b16 %v2122
      %v2251 = vunpack.c.l.b16 %v2123
      %v2252 = vunpack.c.l.b16 %v2124
      %v2253 = vunpack.c.l.b16 %v2125
      %v2254 = vunpack.c.l.b16 %v2126
      %v2255 = vunpack.c.l.b16 %v2127
      %v2256 = vunpack.c.l.b16 %v2128
      %v2257 = vunpack.c.l.b16 %v2129
      %v2258 = vunpack.c.l.b16 %v2130
      %v2259 = vunpack.c.l.b16 %v2131
      %v2260 = vunpack.c.l.b16 %v2132
      %v2261 = vunpack.c.l.b16 %v2133
      %v2262 = vunpack.c.l.b16 %v2134
      %v2263 = vunpack.c.l.b16 %v2135
      %v2264 = vunpack.c.l.b16 %v2136
      %v2265 = vunpack.c.l.b16 %v2137
      %v2266 = vunpack.c.l.b16 %v2138
      %v2267 = vunpack.c.l.b16 %v2139
      %v2268 = vunpack.c.l.b16 %v2140
      %v2269 = vunpack.c.l.b16 %v2141
      %v2270 = vunpack.c.l.b16 %v2142
      %v2271 = vunpack.c.l.b16 %v2143
      %v2272 = vunpack.c.l.b16 %v2144
      %v2273 = vunpack.c.l.b16 %v2145
      %v2274 = vunpack.c.l.b16 %v2146
      %v2275 = vunpack.c.l.b16 %v2147
      %v2276 = vunpack.c.l.b16 %v2148
      %v2277 = vpack.c.b16 %v2214, %v2213
      %v2278 = vpack.c.b16 %v2216, %v2215
      %v2279 = vpack.c.b16 %v2218, %v2217
      %v2280 = vpack.c.b16 %v2220, %v2219
      %v2281 = vpack.c.b16 %v2222, %v2221
      %v2282 = vpack.c.b16 %v2224, %v2223
      %v2283 = vpack.c.b16 %v2226, %v2225
      %v2284 = vpack.c.b16 %v2228, %v2227
      %v2285 = vpack.c.b16 %v2230, %v2229
      %v2286 = vpack.c.b16 %v2232, %v2231
      %v2287 = vpack.c.b16 %v2234, %v2233
      %v2288 = vpack.c.b16 %v2236, %v2235
      %v2289 = vpack.c.b16 %v2238, %v2237
      %v2290 = vpack.c.b16 %v2240, %v2239
      %v2291 = vpack.c.b16 %v2242, %v2241
      %v2292 = vpack.c.b16 %v2244, %v2243
      %v2293 = vpack.c.b16 %v2246, %v2245
      %v2294 = vpack.c.b16 %v2248, %v2247
      %v2295 = vpack.c.b16 %v2250, %v2249
      %v2296 = vpack.c.b16 %v2252, %v2251
      %v2297 = vpack.c.b16 %v2254, %v2253
      %v2298 = vpack.c.b16 %v2256, %v2255
      %v2299 = vpack.c.b16 %v2258, %v2257
      %v2300 = vpack.c.b16 %v2260, %v2259
      %v2301 = vpack.c.b16 %v2262, %v2261
      %v2302 = vpack.c.b16 %v2264, %v2263
      %v2303 = vpack.c.b16 %v2266, %v2265
      %v2304 = vpack.c.b16 %v2268, %v2267
      %v2305 = vpack.c.b16 %v2270, %v2269
      %v2306 = vpack.c.b16 %v2272, %v2271
      %v2307 = vpack.c.b16 %v2274, %v2273
      %v2308 = vpack.c.b16 %v2276, %v2275
      %2341 = vmatprep.subr.bf16.mxu0 0
      %2342 = vmatpush1.bf16.msra.mxu0 %v626
      %2343 = vmatprep.subr.bf16.mxu0 0
      %2344 = vmatpush1.bf16.msra.mxu0 %v627
      %2345 = vmatprep.subr.bf16.mxu0 0
      %2346 = vmatpush1.bf16.msra.mxu0 %v628
      %2347 = vmatprep.subr.bf16.mxu0 0
      %2348 = vmatpush1.bf16.msra.mxu0 %v629
      %2349 = vmatprep.subr.bf16.mxu0 0
      %2350 = vmatpush1.bf16.msra.mxu0 %v630
      %2351 = vmatprep.subr.bf16.mxu0 0
      %2352 = vmatpush1.bf16.msra.mxu0 %v631
      %2353 = vmatprep.subr.bf16.mxu0 0
      %2354 = vmatpush1.bf16.msra.mxu0 %v632
      %2355 = vmatprep.subr.bf16.mxu0 0
      %2356 = vmatpush1.bf16.msra.mxu0 %v633
      %2357 = vmatprep.subr.bf16.mxu0 0
      %2358 = vmatpush1.bf16.msra.mxu0 0
      %2359 = vmatprep.subr.bf16.mxu0 0
      %2360 = vmatpush1.bf16.msra.mxu0 0
      %2361 = vmatprep.subr.bf16.mxu0 0
      %2362 = vmatpush1.bf16.msra.mxu0 0
      %2363 = vmatprep.subr.bf16.mxu0 0
      %2364 = vmatpush1.bf16.msra.mxu0 0
      %2365 = vmatprep.subr.bf16.mxu0 0
      %2366 = vmatpush1.bf16.msra.mxu0 0
      %2367 = vmatprep.subr.bf16.mxu0 0
      %2368 = vmatpush1.bf16.msra.mxu0 0
      %2369 = vmatprep.subr.bf16.mxu0 0
      %2370 = vmatpush1.bf16.msra.mxu0 0
      %2371 = vmatprep.subr.bf16.mxu0 0
      %2372 = vmatpush1.bf16.msra.mxu0 0
      %2373 = vmatprep.mubr.bf16.mxu0 0
      %2374 = vmatmul.mubr.bf16.gmra.mrb[0].mxu0 %v2277
      %v2375 = vpop.f32.mrb[0].mxu0
      %v2376 = vadd.f32 0.0, %v2375
      %v2377 = vpop.f32.mrb[0].mxu0
      %v2378 = vpop.f32.mrb[0].mxu0
      %v2379 = vadd.f32 0.0, %v2378
      %v2380 = vpop.f32.mrb[0].mxu0
      %2381 = vmatprep.mubr.bf16.mxu0 0
      %2382 = vmatmul.mubr.bf16.gmra.mrb[0].mxu0 %v2278
      %v2383 = vpop.f32.mrb[0].mxu0
      %v2384 = vadd.f32 0.0, %v2383
      %v2385 = vpop.f32.mrb[0].mxu0
      %v2386 = vpop.f32.mrb[0].mxu0
      %v2387 = vadd.f32 0.0, %v2386
      %v2388 = vpop.f32.mrb[0].mxu0
      %2389 = vmatprep.mubr.bf16.mxu0 0
      %2390 = vmatmul.mubr.bf16.gmra.mrb[0].mxu0 %v2279
      %v2391 = vpop.f32.mrb[0].mxu0
      %v2392 = vadd.f32 0.0, %v2391
      %v2393 = vpop.f32.mrb[0].mxu0
      %v2394 = vpop.f32.mrb[0].mxu0
      %v2395 = vadd.f32 0.0, %v2394
      %v2396 = vpop.f32.mrb[0].mxu0
      %2397 = vmatprep.mubr.bf16.mxu0 0
      %2398 = vmatmul.mubr.bf16.gmra.mrb[0].mxu0 %v2280
      %v2399 = vpop.f32.mrb[0].mxu0
      %v2400 = vadd.f32 0.0, %v2399
      %v2401 = vpop.f32.mrb[0].mxu0
      %v2402 = vpop.f32.mrb[0].mxu0
      %v2403 = vadd.f32 0.0, %v2402
      %v2404 = vpop.f32.mrb[0].mxu0
      %2405 = vmatprep.mubr.bf16.mxu0 0
      %2406 = vmatmul.mubr.bf16.gmra.mrb[0].mxu0 %v2281
      %v2407 = vpop.f32.mrb[0].mxu0
      %v2408 = vadd.f32 0.0, %v2407
      %v2409 = vpop.f32.mrb[0].mxu0
      %v2410 = vpop.f32.mrb[0].mxu0
      %v2411 = vadd.f32 0.0, %v2410
      %v2412 = vpop.f32.mrb[0].mxu0
      %2413 = vmatprep.mubr.bf16.mxu0 0
      %2414 = vmatmul.mubr.bf16.gmra.mrb[0].mxu0 %v2282
      %v2415 = vpop.f32.mrb[0].mxu0
      %v2416 = vadd.f32 0.0, %v2415
      %v2417 = vpop.f32.mrb[0].mxu0
      %v2418 = vpop.f32.mrb[0].mxu0
      %v2419 = vadd.f32 0.0, %v2418
      %v2420 = vpop.f32.mrb[0].mxu0
      %2421 = vmatprep.mubr.bf16.mxu0 0
      %2422 = vmatmul.mubr.bf16.gmra.mrb[0].mxu0 %v2283
      %v2423 = vpop.f32.mrb[0].mxu0
      %v2424 = vadd.f32 0.0, %v2423
      %v2425 = vpop.f32.mrb[0].mxu0
      %v2426 = vpop.f32.mrb[0].mxu0
      %v2427 = vadd.f32 0.0, %v2426
      %v2428 = vpop.f32.mrb[0].mxu0
      %2429 = vmatprep.mubr.bf16.mxu0 0
      %2430 = vmatmul.mubr.bf16.gmra.mrb[0].mxu0 %v2284
      %v2431 = vpop.f32.mrb[0].mxu0
      %v2432 = vadd.f32 0.0, %v2431
      %v2433 = vpop.f32.mrb[0].mxu0
      %v2434 = vpop.f32.mrb[0].mxu0
      %v2435 = vadd.f32 0.0, %v2434
      %v2436 = vpop.f32.mrb[0].mxu0
      %2437 = vmatprep.mubr.bf16.mxu0 0
      %2438 = vmatmul.mubr.bf16.gmra.mrb[0].mxu0 %v2285
      %v2439 = vpop.f32.mrb[0].mxu0
      %v2440 = vadd.f32 0.0, %v2439
      %v2441 = vpop.f32.mrb[0].mxu0
      %v2442 = vpop.f32.mrb[0].mxu0
      %v2443 = vadd.f32 0.0, %v2442
      %v2444 = vpop.f32.mrb[0].mxu0
      %2445 = vmatprep.mubr.bf16.mxu0 0
      %2446 = vmatmul.mubr.bf16.gmra.mrb[0].mxu0 %v2286
      %v2447 = vpop.f32.mrb[0].mxu0
      %v2448 = vadd.f32 0.0, %v2447
      %v2449 = vpop.f32.mrb[0].mxu0
      %v2450 = vpop.f32.mrb[0].mxu0
      %v2451 = vadd.f32 0.0, %v2450
      %v2452 = vpop.f32.mrb[0].mxu0
      %2453 = vmatprep.mubr.bf16.mxu0 0
      %2454 = vmatmul.mubr.bf16.gmra.mrb[0].mxu0 %v2287
      %v2455 = vpop.f32.mrb[0].mxu0
      %v2456 = vadd.f32 0.0, %v2455
      %v2457 = vpop.f32.mrb[0].mxu0
      %v2458 = vpop.f32.mrb[0].mxu0
      %v2459 = vadd.f32 0.0, %v2458
      %v2460 = vpop.f32.mrb[0].mxu0
      %2461 = vmatprep.mubr.bf16.mxu0 0
      %2462 = vmatmul.mubr.bf16.gmra.mrb[0].mxu0 %v2288
      %v2463 = vpop.f32.mrb[0].mxu0
      %v2464 = vadd.f32 0.0, %v2463
      %v2465 = vpop.f32.mrb[0].mxu0
      %v2466 = vpop.f32.mrb[0].mxu0
      %v2467 = vadd.f32 0.0, %v2466
      %v2468 = vpop.f32.mrb[0].mxu0
      %2469 = vmatprep.mubr.bf16.mxu0 0
      %2470 = vmatmul.mubr.bf16.gmra.mrb[0].mxu0 %v2289
      %v2471 = vpop.f32.mrb[0].mxu0
      %v2472 = vadd.f32 0.0, %v2471
      %v2473 = vpop.f32.mrb[0].mxu0
      %v2474 = vpop.f32.mrb[0].mxu0
      %v2475 = vadd.f32 0.0, %v2474
      %v2476 = vpop.f32.mrb[0].mxu0
      %2477 = vmatprep.mubr.bf16.mxu0 0
      %2478 = vmatmul.mubr.bf16.gmra.mrb[0].mxu0 %v2290
      %v2479 = vpop.f32.mrb[0].mxu0
      %v2480 = vadd.f32 0.0, %v2479
      %v2481 = vpop.f32.mrb[0].mxu0
      %v2482 = vpop.f32.mrb[0].mxu0
      %v2483 = vadd.f32 0.0, %v2482
      %v2484 = vpop.f32.mrb[0].mxu0
      %2485 = vmatprep.mubr.bf16.mxu0 0
      %2486 = vmatmul.mubr.bf16.gmra.mrb[0].mxu0 %v2291
      %v2487 = vpop.f32.mrb[0].mxu0
      %v2488 = vadd.f32 0.0, %v2487
      %v2489 = vpop.f32.mrb[0].mxu0
      %v2490 = vpop.f32.mrb[0].mxu0
      %v2491 = vadd.f32 0.0, %v2490
      %v2492 = vpop.f32.mrb[0].mxu0
      %2493 = vmatprep.mubr.bf16.mxu0 0
      %2494 = vmatmul.mubr.bf16.gmra.mrb[0].mxu0 %v2292
      %v2495 = vpop.f32.mrb[0].mxu0
      %v2496 = vadd.f32 0.0, %v2495
      %v2497 = vpop.f32.mrb[0].mxu0
      %v2498 = vpop.f32.mrb[0].mxu0
      %v2499 = vadd.f32 0.0, %v2498
      %v2500 = vpop.f32.mrb[0].mxu0
      %2501 = vmatprep.mubr.bf16.mxu0 0
      %2502 = vmatmul.mubr.bf16.gmra.mrb[0].mxu0 %v2293
      %v2503 = vpop.f32.mrb[0].mxu0
      %v2504 = vadd.f32 0.0, %v2503
      %v2505 = vpop.f32.mrb[0].mxu0
      %v2506 = vpop.f32.mrb[0].mxu0
      %v2507 = vadd.f32 0.0, %v2506
      %v2508 = vpop.f32.mrb[0].mxu0
      %2509 = vmatprep.mubr.bf16.mxu0 0
      %2510 = vmatmul.mubr.bf16.gmra.mrb[0].mxu0 %v2294
      %v2511 = vpop.f32.mrb[0].mxu0
      %v2512 = vadd.f32 0.0, %v2511
      %v2513 = vpop.f32.mrb[0].mxu0
      %v2514 = vpop.f32.mrb[0].mxu0
      %v2515 = vadd.f32 0.0, %v2514
      %v2516 = vpop.f32.mrb[0].mxu0
      %2517 = vmatprep.mubr.bf16.mxu0 0
      %2518 = vmatmul.mubr.bf16.gmra.mrb[0].mxu0 %v2295
      %v2519 = vpop.f32.mrb[0].mxu0
      %v2520 = vadd.f32 0.0, %v2519
      %v2521 = vpop.f32.mrb[0].mxu0
      %v2522 = vpop.f32.mrb[0].mxu0
      %v2523 = vadd.f32 0.0, %v2522
      %v2524 = vpop.f32.mrb[0].mxu0
      %2525 = vmatprep.mubr.bf16.mxu0 0
      %2526 = vmatmul.mubr.bf16.gmra.mrb[0].mxu0 %v2296
      %v2527 = vpop.f32.mrb[0].mxu0
      %v2528 = vadd.f32 0.0, %v2527
      %v2529 = vpop.f32.mrb[0].mxu0
      %v2530 = vpop.f32.mrb[0].mxu0
      %v2531 = vadd.f32 0.0, %v2530
      %v2532 = vpop.f32.mrb[0].mxu0
      %2533 = vmatprep.mubr.bf16.mxu0 0
      %2534 = vmatmul.mubr.bf16.gmra.mrb[0].mxu0 %v2297
      %v2535 = vpop.f32.mrb[0].mxu0
      %v2536 = vadd.f32 0.0, %v2535
      %v2537 = vpop.f32.mrb[0].mxu0
      %v2538 = vpop.f32.mrb[0].mxu0
      %v2539 = vadd.f32 0.0, %v2538
      %v2540 = vpop.f32.mrb[0].mxu0
      %2541 = vmatprep.mubr.bf16.mxu0 0
      %2542 = vmatmul.mubr.bf16.gmra.mrb[0].mxu0 %v2298
      %v2543 = vpop.f32.mrb[0].mxu0
      %v2544 = vadd.f32 0.0, %v2543
      %v2545 = vpop.f32.mrb[0].mxu0
      %v2546 = vpop.f32.mrb[0].mxu0
      %v2547 = vadd.f32 0.0, %v2546
      %v2548 = vpop.f32.mrb[0].mxu0
      %2549 = vmatprep.mubr.bf16.mxu0 0
      %2550 = vmatmul.mubr.bf16.gmra.mrb[0].mxu0 %v2299
      %v2551 = vpop.f32.mrb[0].mxu0
      %v2552 = vadd.f32 0.0, %v2551
      %v2553 = vpop.f32.mrb[0].mxu0
      %v2554 = vpop.f32.mrb[0].mxu0
      %v2555 = vadd.f32 0.0, %v2554
      %v2556 = vpop.f32.mrb[0].mxu0
      %2557 = vmatprep.mubr.bf16.mxu0 0
      %2558 = vmatmul.mubr.bf16.gmra.mrb[0].mxu0 %v2300
      %v2559 = vpop.f32.mrb[0].mxu0
      %v2560 = vadd.f32 0.0, %v2559
      %v2561 = vpop.f32.mrb[0].mxu0
      %v2562 = vpop.f32.mrb[0].mxu0
      %v2563 = vadd.f32 0.0, %v2562
      %v2564 = vpop.f32.mrb[0].mxu0
      %2565 = vmatprep.mubr.bf16.mxu0 0
      %2566 = vmatmul.mubr.bf16.gmra.mrb[0].mxu0 %v2301
      %v2567 = vpop.f32.mrb[0].mxu0
      %v2568 = vadd.f32 0.0, %v2567
      %v2569 = vpop.f32.mrb[0].mxu0
      %v2570 = vpop.f32.mrb[0].mxu0
      %v2571 = vadd.f32 0.0, %v2570
      %v2572 = vpop.f32.mrb[0].mxu0
      %2573 = vmatprep.mubr.bf16.mxu0 0
      %2574 = vmatmul.mubr.bf16.gmra.mrb[0].mxu0 %v2302
      %v2575 = vpop.f32.mrb[0].mxu0
      %v2576 = vadd.f32 0.0, %v2575
      %v2577 = vpop.f32.mrb[0].mxu0
      %v2578 = vpop.f32.mrb[0].mxu0
      %v2579 = vadd.f32 0.0, %v2578
      %v2580 = vpop.f32.mrb[0].mxu0
      %2581 = vmatprep.mubr.bf16.mxu0 0
      %2582 = vmatmul.mubr.bf16.gmra.mrb[0].mxu0 %v2303
      %v2583 = vpop.f32.mrb[0].mxu0
      %v2584 = vadd.f32 0.0, %v2583
      %v2585 = vpop.f32.mrb[0].mxu0
      %v2586 = vpop.f32.mrb[0].mxu0
      %v2587 = vadd.f32 0.0, %v2586
      %v2588 = vpop.f32.mrb[0].mxu0
      %2589 = vmatprep.mubr.bf16.mxu0 0
      %2590 = vmatmul.mubr.bf16.gmra.mrb[0].mxu0 %v2304
      %v2591 = vpop.f32.mrb[0].mxu0
      %v2592 = vadd.f32 0.0, %v2591
      %v2593 = vpop.f32.mrb[0].mxu0
      %v2594 = vpop.f32.mrb[0].mxu0
      %v2595 = vadd.f32 0.0, %v2594
      %v2596 = vpop.f32.mrb[0].mxu0
      %2597 = vmatprep.mubr.bf16.mxu0 0
      %2598 = vmatmul.mubr.bf16.gmra.mrb[0].mxu0 %v2305
      %v2599 = vpop.f32.mrb[0].mxu0
      %v2600 = vadd.f32 0.0, %v2599
      %v2601 = vpop.f32.mrb[0].mxu0
      %v2602 = vpop.f32.mrb[0].mxu0
      %v2603 = vadd.f32 0.0, %v2602
      %v2604 = vpop.f32.mrb[0].mxu0
      %2605 = vmatprep.mubr.bf16.mxu0 0
      %2606 = vmatmul.mubr.bf16.gmra.mrb[0].mxu0 %v2306
      %v2607 = vpop.f32.mrb[0].mxu0
      %v2608 = vadd.f32 0.0, %v2607
      %v2609 = vpop.f32.mrb[0].mxu0
      %v2610 = vpop.f32.mrb[0].mxu0
      %v2611 = vadd.f32 0.0, %v2610
      %v2612 = vpop.f32.mrb[0].mxu0
      %2613 = vmatprep.mubr.bf16.mxu0 0
      %2614 = vmatmul.mubr.bf16.gmra.mrb[0].mxu0 %v2307
      %v2615 = vpop.f32.mrb[0].mxu0
      %v2616 = vadd.f32 0.0, %v2615
      %v2617 = vpop.f32.mrb[0].mxu0
      %v2618 = vpop.f32.mrb[0].mxu0
      %v2619 = vadd.f32 0.0, %v2618
      %v2620 = vpop.f32.mrb[0].mxu0
      %2621 = vmatprep.mubr.bf16.mxu0 0
      %2622 = vmatmul.mubr.bf16.gmra.mrb[0].mxu0 %v2308
      %v2623 = vpop.f32.mrb[0].mxu0
      %v2624 = vadd.f32 0.0, %v2623
      %v2625 = vpop.f32.mrb[0].mxu0
      %v2626 = vpop.f32.mrb[0].mxu0
      %v2627 = vadd.f32 0.0, %v2626
      %v2628 = vpop.f32.mrb[0].mxu0
      %2629 = vdwg.mxu0
      %v2630 = vmax.f32 %v1831, %v2376
      %v2631 = vmax.f32 %v1834, %v2379
      %v2632 = vmax.f32 %v1839, %v2384
      %v2633 = vmax.f32 %v1842, %v2387
      %v2634 = vmax.f32 %v1847, %v2392
      %v2635 = vmax.f32 %v1850, %v2395
      %v2636 = vmax.f32 %v1855, %v2400
      %v2637 = vmax.f32 %v1858, %v2403
      %v2638 = vmax.f32 %v1863, %v2408
      %v2639 = vmax.f32 %v1866, %v2411
      %v2640 = vmax.f32 %v1871, %v2416
      %v2641 = vmax.f32 %v1874, %v2419
      %v2642 = vmax.f32 %v1879, %v2424
      %v2643 = vmax.f32 %v1882, %v2427
      %v2644 = vmax.f32 %v1887, %v2432
      %v2645 = vmax.f32 %v1890, %v2435
      %v2646 = vmax.f32 %v1895, %v2440
      %v2647 = vmax.f32 %v1898, %v2443
      %v2648 = vmax.f32 %v1903, %v2448
      %v2649 = vmax.f32 %v1906, %v2451
      %v2650 = vmax.f32 %v1911, %v2456
      %v2651 = vmax.f32 %v1914, %v2459
      %v2652 = vmax.f32 %v1919, %v2464
      %v2653 = vmax.f32 %v1922, %v2467
      %v2654 = vmax.f32 %v1927, %v2472
      %v2655 = vmax.f32 %v1930, %v2475
      %v2656 = vmax.f32 %v1935, %v2480
      %v2657 = vmax.f32 %v1938, %v2483
      %v2658 = vmax.f32 %v1943, %v2488
      %v2659 = vmax.f32 %v1946, %v2491
      %v2660 = vmax.f32 %v1951, %v2496
      %v2661 = vmax.f32 %v1954, %v2499
      %v2662 = vmax.f32 %v1959, %v2504
      %v2663 = vmax.f32 %v1962, %v2507
      %v2664 = vmax.f32 %v1967, %v2512
      %v2665 = vmax.f32 %v1970, %v2515
      %v2666 = vmax.f32 %v1975, %v2520
      %v2667 = vmax.f32 %v1978, %v2523
      %v2668 = vmax.f32 %v1983, %v2528
      %v2669 = vmax.f32 %v1986, %v2531
      %v2670 = vmax.f32 %v1991, %v2536
      %v2671 = vmax.f32 %v1994, %v2539
      %v2672 = vmax.f32 %v1999, %v2544
      %v2673 = vmax.f32 %v2002, %v2547
      %v2674 = vmax.f32 %v2007, %v2552
      %v2675 = vmax.f32 %v2010, %v2555
      %v2676 = vmax.f32 %v2015, %v2560
      %v2677 = vmax.f32 %v2018, %v2563
      %v2678 = vmax.f32 %v2023, %v2568
      %v2679 = vmax.f32 %v2026, %v2571
      %v2680 = vmax.f32 %v2031, %v2576
      %v2681 = vmax.f32 %v2034, %v2579
      %v2682 = vmax.f32 %v2039, %v2584
      %v2683 = vmax.f32 %v2042, %v2587
      %v2684 = vmax.f32 %v2047, %v2592
      %v2685 = vmax.f32 %v2050, %v2595
      %v2686 = vmax.f32 %v2055, %v2600
      %v2687 = vmax.f32 %v2058, %v2603
      %v2688 = vmax.f32 %v2063, %v2608
      %v2689 = vmax.f32 %v2066, %v2611
      %v2690 = vmax.f32 %v2071, %v2616
      %v2691 = vmax.f32 %v2074, %v2619
      %v2692 = vmax.f32 %v2079, %v2624
      %v2693 = vmax.f32 %v2082, %v2627
      %v2694 = vmax.f32 %v1476, %v2630
      %v2695 = vmax.f32 %v1477, %v2631
      %v2696 = vmax.f32 %v1478, %v2632
      %v2697 = vmax.f32 %v1479, %v2633
      %v2698 = vmax.f32 %v1480, %v2634
      %v2699 = vmax.f32 %v1481, %v2635
      %v2700 = vmax.f32 %v1482, %v2636
      %v2701 = vmax.f32 %v1483, %v2637
      %v2702 = vmax.f32 %v1484, %v2638
      %v2703 = vmax.f32 %v1485, %v2639
      %v2704 = vmax.f32 %v1486, %v2640
      %v2705 = vmax.f32 %v1487, %v2641
      %v2706 = vmax.f32 %v1488, %v2642
      %v2707 = vmax.f32 %v1489, %v2643
      %v2708 = vmax.f32 %v1490, %v2644
      %v2709 = vmax.f32 %v1491, %v2645
      %v2710 = vmax.f32 %v1492, %v2646
      %v2711 = vmax.f32 %v1493, %v2647
      %v2712 = vmax.f32 %v1494, %v2648
      %v2713 = vmax.f32 %v1495, %v2649
      %v2714 = vmax.f32 %v1496, %v2650
      %v2715 = vmax.f32 %v1497, %v2651
      %v2716 = vmax.f32 %v1498, %v2652
      %v2717 = vmax.f32 %v1499, %v2653
      %v2718 = vmax.f32 %v1500, %v2654
      %v2719 = vmax.f32 %v1501, %v2655
      %v2720 = vmax.f32 %v1502, %v2656
      %v2721 = vmax.f32 %v1503, %v2657
      %v2722 = vmax.f32 %v1504, %v2658
      %v2723 = vmax.f32 %v1505, %v2659
      %v2724 = vmax.f32 %v1506, %v2660
      %v2725 = vmax.f32 %v1507, %v2661
      %v2726 = vmax.f32 %v1508, %v2662
      %v2727 = vmax.f32 %v1509, %v2663
      %v2728 = vmax.f32 %v1510, %v2664
      %v2729 = vmax.f32 %v1511, %v2665
      %v2730 = vmax.f32 %v1512, %v2666
      %v2731 = vmax.f32 %v1513, %v2667
      %v2732 = vmax.f32 %v1514, %v2668
      %v2733 = vmax.f32 %v1515, %v2669
      %v2734 = vmax.f32 %v1516, %v2670
      %v2735 = vmax.f32 %v1517, %v2671
      %v2736 = vmax.f32 %v1518, %v2672
      %v2737 = vmax.f32 %v1519, %v2673
      %v2738 = vmax.f32 %v1520, %v2674
      %v2739 = vmax.f32 %v1521, %v2675
      %v2740 = vmax.f32 %v1522, %v2676
      %v2741 = vmax.f32 %v1523, %v2677
      %v2742 = vmax.f32 %v1524, %v2678
      %v2743 = vmax.f32 %v1525, %v2679
      %v2744 = vmax.f32 %v1526, %v2680
      %v2745 = vmax.f32 %v1527, %v2681
      %v2746 = vmax.f32 %v1528, %v2682
      %v2747 = vmax.f32 %v1529, %v2683
      %v2748 = vmax.f32 %v1530, %v2684
      %v2749 = vmax.f32 %v1531, %v2685
      %v2750 = vmax.f32 %v1532, %v2686
      %v2751 = vmax.f32 %v1533, %v2687
      %v2752 = vmax.f32 %v1534, %v2688
      %v2753 = vmax.f32 %v1535, %v2689
      %v2754 = vmax.f32 %v1536, %v2690
      %v2755 = vmax.f32 %v1537, %v2691
      %v2756 = vmax.f32 %v1538, %v2692
      %v2757 = vmax.f32 %v1539, %v2693
      %v2758 = vld [vmem:[%s5] sm:$0x1]
      %v2760 = vlaneseq
      %v2761 = vshrl.u32 %v2760, 7
      %v2762 = vsub.s32 0, %v2761
      %v2763 = vrot.slane %v2758, %v2762
      %v2765 = vadd.f32 %v2694, %v2763
      %v2766 = vadd.f32 %v2695, %v2763
      %v2767 = vadd.f32 %v2696, %v2763
      %v2768 = vadd.f32 %v2697, %v2763
      %v2769 = vadd.f32 %v2698, %v2763
      %v2770 = vadd.f32 %v2699, %v2763
      %v2771 = vadd.f32 %v2700, %v2763
      %v2772 = vadd.f32 %v2701, %v2763
      %v2773 = vadd.f32 %v2702, %v2763
      %v2774 = vadd.f32 %v2703, %v2763
      %v2775 = vadd.f32 %v2704, %v2763
      %v2776 = vadd.f32 %v2705, %v2763
      %v2777 = vadd.f32 %v2706, %v2763
      %v2778 = vadd.f32 %v2707, %v2763
      %v2779 = vadd.f32 %v2708, %v2763
      %v2780 = vadd.f32 %v2709, %v2763
      %v2781 = vadd.f32 %v2710, %v2763
      %v2782 = vadd.f32 %v2711, %v2763
      %v2783 = vadd.f32 %v2712, %v2763
      %v2784 = vadd.f32 %v2713, %v2763
      %v2785 = vadd.f32 %v2714, %v2763
      %v2786 = vadd.f32 %v2715, %v2763
      %v2787 = vadd.f32 %v2716, %v2763
      %v2788 = vadd.f32 %v2717, %v2763
      %v2789 = vadd.f32 %v2718, %v2763
      %v2790 = vadd.f32 %v2719, %v2763
      %v2791 = vadd.f32 %v2720, %v2763
      %v2792 = vadd.f32 %v2721, %v2763
      %v2793 = vadd.f32 %v2722, %v2763
      %v2794 = vadd.f32 %v2723, %v2763
      %v2795 = vadd.f32 %v2724, %v2763
      %v2796 = vadd.f32 %v2725, %v2763
      %v2797 = vadd.f32 %v2726, %v2763
      %v2798 = vadd.f32 %v2727, %v2763
      %v2799 = vadd.f32 %v2728, %v2763
      %v2800 = vadd.f32 %v2729, %v2763
      %v2801 = vadd.f32 %v2730, %v2763
      %v2802 = vadd.f32 %v2731, %v2763
      %v2803 = vadd.f32 %v2732, %v2763
      %v2804 = vadd.f32 %v2733, %v2763
      %v2805 = vadd.f32 %v2734, %v2763
      %v2806 = vadd.f32 %v2735, %v2763
      %v2807 = vadd.f32 %v2736, %v2763
      %v2808 = vadd.f32 %v2737, %v2763
      %v2809 = vadd.f32 %v2738, %v2763
      %v2810 = vadd.f32 %v2739, %v2763
      %v2811 = vadd.f32 %v2740, %v2763
      %v2812 = vadd.f32 %v2741, %v2763
      %v2813 = vadd.f32 %v2742, %v2763
      %v2814 = vadd.f32 %v2743, %v2763
      %v2815 = vadd.f32 %v2744, %v2763
      %v2816 = vadd.f32 %v2745, %v2763
      %v2817 = vadd.f32 %v2746, %v2763
      %v2818 = vadd.f32 %v2747, %v2763
      %v2819 = vadd.f32 %v2748, %v2763
      %v2820 = vadd.f32 %v2749, %v2763
      %v2821 = vadd.f32 %v2750, %v2763
      %v2822 = vadd.f32 %v2751, %v2763
      %v2823 = vadd.f32 %v2752, %v2763
      %v2824 = vadd.f32 %v2753, %v2763
      %v2825 = vadd.f32 %v2754, %v2763
      %v2826 = vadd.f32 %v2755, %v2763
      %v2827 = vadd.f32 %v2756, %v2763
      %v2828 = vadd.f32 %v2757, %v2763
      %v2829 = vmax.f32 %v2765, 0.0
      %v2830 = vmax.f32 %v2766, 0.0
      %v2831 = vmax.f32 %v2767, 0.0
      %v2832 = vmax.f32 %v2768, 0.0
      %v2833 = vmax.f32 %v2769, 0.0
      %v2834 = vmax.f32 %v2770, 0.0
      %v2835 = vmax.f32 %v2771, 0.0
      %v2836 = vmax.f32 %v2772, 0.0
      %v2837 = vmax.f32 %v2773, 0.0
      %v2838 = vmax.f32 %v2774, 0.0
      %v2839 = vmax.f32 %v2775, 0.0
      %v2840 = vmax.f32 %v2776, 0.0
      %v2841 = vmax.f32 %v2777, 0.0
      %v2842 = vmax.f32 %v2778, 0.0
      %v2843 = vmax.f32 %v2779, 0.0
      %v2844 = vmax.f32 %v2780, 0.0
      %v2845 = vmax.f32 %v2781, 0.0
      %v2846 = vmax.f32 %v2782, 0.0
      %v2847 = vmax.f32 %v2783, 0.0
      %v2848 = vmax.f32 %v2784, 0.0
      %v2849 = vmax.f32 %v2785, 0.0
      %v2850 = vmax.f32 %v2786, 0.0
      %v2851 = vmax.f32 %v2787, 0.0
      %v2852 = vmax.f32 %v2788, 0.0
      %v2853 = vmax.f32 %v2789, 0.0
      %v2854 = vmax.f32 %v2790, 0.0
      %v2855 = vmax.f32 %v2791, 0.0
      %v2856 = vmax.f32 %v2792, 0.0
      %v2857 = vmax.f32 %v2793, 0.0
      %v2858 = vmax.f32 %v2794, 0.0
      %v2859 = vmax.f32 %v2795, 0.0
      %v2860 = vmax.f32 %v2796, 0.0
      %v2861 = vmax.f32 %v2797, 0.0
      %v2862 = vmax.f32 %v2798, 0.0
      %v2863 = vmax.f32 %v2799, 0.0
      %v2864 = vmax.f32 %v2800, 0.0
      %v2865 = vmax.f32 %v2801, 0.0
      %v2866 = vmax.f32 %v2802, 0.0
      %v2867 = vmax.f32 %v2803, 0.0
      %v2868 = vmax.f32 %v2804, 0.0
      %v2869 = vmax.f32 %v2805, 0.0
      %v2870 = vmax.f32 %v2806, 0.0
      %v2871 = vmax.f32 %v2807, 0.0
      %v2872 = vmax.f32 %v2808, 0.0
      %v2873 = vmax.f32 %v2809, 0.0
      %v2874 = vmax.f32 %v2810, 0.0
      %v2875 = vmax.f32 %v2811, 0.0
      %v2876 = vmax.f32 %v2812, 0.0
      %v2877 = vmax.f32 %v2813, 0.0
      %v2878 = vmax.f32 %v2814, 0.0
      %v2879 = vmax.f32 %v2815, 0.0
      %v2880 = vmax.f32 %v2816, 0.0
      %v2881 = vmax.f32 %v2817, 0.0
      %v2882 = vmax.f32 %v2818, 0.0
      %v2883 = vmax.f32 %v2819, 0.0
      %v2884 = vmax.f32 %v2820, 0.0
      %v2885 = vmax.f32 %v2821, 0.0
      %v2886 = vmax.f32 %v2822, 0.0
      %v2887 = vmax.f32 %v2823, 0.0
      %v2888 = vmax.f32 %v2824, 0.0
      %v2889 = vmax.f32 %v2825, 0.0
      %v2890 = vmax.f32 %v2826, 0.0
      %v2891 = vmax.f32 %v2827, 0.0
      %v2892 = vmax.f32 %v2828, 0.0
      %vm2893 = vcmask 48128
      %2894 = vst.msk [vmem:[%s319] sm:$0xff] %vm2893, %v2829
      %2895 = vst.msk [vmem:[%s319 + $0x8] sm:$0xff] %vm2893, %v2830
      %2896 = vst.msk [vmem:[%s319 + $0x10] sm:$0xff] %vm2893, %v2831
      %2897 = vst.msk [vmem:[%s319 + $0x18] sm:$0xff] %vm2893, %v2832
      %2898 = vst.msk [vmem:[%s319 + $0x20] sm:$0xff] %vm2893, %v2833
      %2899 = vst.msk [vmem:[%s319 + $0x28] sm:$0xff] %vm2893, %v2834
      %2900 = vst.msk [vmem:[%s319 + $0x30] sm:$0xff] %vm2893, %v2835
      %2901 = vst.msk [vmem:[%s319 + $0x38] sm:$0xff] %vm2893, %v2836
      %2902 = vst.msk [vmem:[%s319 + $0x40] sm:$0xff] %vm2893, %v2837
      %2903 = vst.msk [vmem:[%s319 + $0x48] sm:$0xff] %vm2893, %v2838
      %2904 = vst.msk [vmem:[%s319 + $0x50] sm:$0xff] %vm2893, %v2839
      %2905 = vst.msk [vmem:[%s319 + $0x58] sm:$0xff] %vm2893, %v2840
      %2906 = vst.msk [vmem:[%s319 + $0x60] sm:$0xff] %vm2893, %v2841
      %2907 = vst.msk [vmem:[%s319 + $0x68] sm:$0xff] %vm2893, %v2842
      %2908 = vst.msk [vmem:[%s319 + $0x70] sm:$0xff] %vm2893, %v2843
      %2909 = vst.msk [vmem:[%s319 + $0x78] sm:$0xff] %vm2893, %v2844
      %2910 = vst.msk [vmem:[%s319 + $0x80] sm:$0xff] %vm2893, %v2845
      %2911 = vst.msk [vmem:[%s319 + $0x88] sm:$0xff] %vm2893, %v2846
      %2912 = vst.msk [vmem:[%s319 + $0x90] sm:$0xff] %vm2893, %v2847
      %2913 = vst.msk [vmem:[%s319 + $0x98] sm:$0xff] %vm2893, %v2848
      %2914 = vst.msk [vmem:[%s319 + $0xa0] sm:$0xff] %vm2893, %v2849
      %2915 = vst.msk [vmem:[%s319 + $0xa8] sm:$0xff] %vm2893, %v2850
      %2916 = vst.msk [vmem:[%s319 + $0xb0] sm:$0xff] %vm2893, %v2851
      %2917 = vst.msk [vmem:[%s319 + $0xb8] sm:$0xff] %vm2893, %v2852
      %2918 = vst.msk [vmem:[%s319 + $0xc0] sm:$0xff] %vm2893, %v2853
      %2919 = vst.msk [vmem:[%s319 + $0xc8] sm:$0xff] %vm2893, %v2854
      %2920 = vst.msk [vmem:[%s319 + $0xd0] sm:$0xff] %vm2893, %v2855
      %2921 = vst.msk [vmem:[%s319 + $0xd8] sm:$0xff] %vm2893, %v2856
      %2922 = vst.msk [vmem:[%s319 + $0xe0] sm:$0xff] %vm2893, %v2857
      %2923 = vst.msk [vmem:[%s319 + $0xe8] sm:$0xff] %vm2893, %v2858
      %2924 = vst.msk [vmem:[%s319 + $0xf0] sm:$0xff] %vm2893, %v2859
      %2925 = vst.msk [vmem:[%s319 + $0xf8] sm:$0xff] %vm2893, %v2860
      %2926 = vst.msk [vmem:[%s319 + $0x100] sm:$0xff] %vm2893, %v2861
      %2927 = vst.msk [vmem:[%s319 + $0x108] sm:$0xff] %vm2893, %v2862
      %2928 = vst.msk [vmem:[%s319 + $0x110] sm:$0xff] %vm2893, %v2863
      %2929 = vst.msk [vmem:[%s319 + $0x118] sm:$0xff] %vm2893, %v2864
      %2930 = vst.msk [vmem:[%s319 + $0x120] sm:$0xff] %vm2893, %v2865
      %2931 = vst.msk [vmem:[%s319 + $0x128] sm:$0xff] %vm2893, %v2866
      %2932 = vst.msk [vmem:[%s319 + $0x130] sm:$0xff] %vm2893, %v2867
      %2933 = vst.msk [vmem:[%s319 + $0x138] sm:$0xff] %vm2893, %v2868
      %2934 = vst.msk [vmem:[%s319 + $0x140] sm:$0xff] %vm2893, %v2869
      %2935 = vst.msk [vmem:[%s319 + $0x148] sm:$0xff] %vm2893, %v2870
      %2936 = vst.msk [vmem:[%s319 + $0x150] sm:$0xff] %vm2893, %v2871
      %2937 = vst.msk [vmem:[%s319 + $0x158] sm:$0xff] %vm2893, %v2872
      %2938 = vst.msk [vmem:[%s319 + $0x160] sm:$0xff] %vm2893, %v2873
      %2939 = vst.msk [vmem:[%s319 + $0x168] sm:$0xff] %vm2893, %v2874
      %2940 = vst.msk [vmem:[%s319 + $0x170] sm:$0xff] %vm2893, %v2875
      %2941 = vst.msk [vmem:[%s319 + $0x178] sm:$0xff] %vm2893, %v2876
      %2942 = vst.msk [vmem:[%s319 + $0x180] sm:$0xff] %vm2893, %v2877
      %2943 = vst.msk [vmem:[%s319 + $0x188] sm:$0xff] %vm2893, %v2878
      %2944 = vst.msk [vmem:[%s319 + $0x190] sm:$0xff] %vm2893, %v2879
      %2945 = vst.msk [vmem:[%s319 + $0x198] sm:$0xff] %vm2893, %v2880
      %2946 = vst.msk [vmem:[%s319 + $0x1a0] sm:$0xff] %vm2893, %v2881
      %2947 = vst.msk [vmem:[%s319 + $0x1a8] sm:$0xff] %vm2893, %v2882
      %2948 = vst.msk [vmem:[%s319 + $0x1b0] sm:$0xff] %vm2893, %v2883
      %2949 = vst.msk [vmem:[%s319 + $0x1b8] sm:$0xff] %vm2893, %v2884
      %2950 = vst.msk [vmem:[%s319 + $0x1c0] sm:$0xff] %vm2893, %v2885
      %2951 = vst.msk [vmem:[%s319 + $0x1c8] sm:$0xff] %vm2893, %v2886
      %2952 = vst.msk [vmem:[%s319 + $0x1d0] sm:$0xff] %vm2893, %v2887
      %2953 = vst.msk [vmem:[%s319 + $0x1d8] sm:$0xff] %vm2893, %v2888
      %2954 = vst.msk [vmem:[%s319 + $0x1e0] sm:$0xff] %vm2893, %v2889
      %2955 = vst.msk [vmem:[%s319 + $0x1e8] sm:$0xff] %vm2893, %v2890
      %2956 = vst.msk [vmem:[%s319 + $0x1f0] sm:$0xff] %vm2893, %v2891
      %2957 = vst.msk [vmem:[%s319 + $0x1f8] sm:$0xff] %vm2893, %v2892
      %s2958 = smul.u32 64, %s17
      %p2959 = scmp.lt.s32.totalorder %s2958, 191
      %s2960 = scalar_select %p2959, %s2958, 191
      %s2961 = smul.addr %s2960, 8
      %s2962 = scalar_lea.vmem %s6, %s2961
      // Predicated region
      $region45: #{net_forward.3} parent=43 // pred_check
        %p2963 = pneg %p181
      $region46: #{net_forward.3} parent=43 // pred_check_branch
        %2965 = sbr.rel (%p2963) target = $region48
      $region47: #{net_forward.3} parent=43 // pred_region
        %s2966 = smul.u32 64, %s17
      $region48: #{net_forward.3} parent=43 // pred_fallthru
        _
    $region44: #{net_forward.3} parent=5 // pred_fallthru
      _
    %p2967 = scmp.le.s32.totalorder 2, %s12
    // Predicated region
    $region49: #{net_forward.3} parent=5 // pred_check
      %p2968 = pneg %p2967
    $region50: #{net_forward.3} parent=5 // pred_check_branch
      %2970 = sbr.rel (%p2968) target = $region52
    $region51: #{net_forward.3} parent=5 // pred_region
      %s2971 = ssub.s32 %s12, 2
      // Predicated region
      $region53: #{net_forward.3} parent=51 // pred_check
        %p2972 = pneg %p187
      $region54: #{net_forward.3} parent=51 // pred_check_branch
        %2974 = sbr.rel (%p2972) target = $region56
      $region55: #{net_forward.3} parent=51 // pred_region
        %s2975 = smul.u32 64, %s18
        %p2976 = scmp.lt.s32.totalorder %s2975, 191
        %s2977 = scalar_select %p2976, %s2975, 191
        %s2978 = smul.addr %s2977, 8
        %s2979 = scalar_lea.vmem %s6, %s2978
      $region56: #{net_forward.3} parent=51 // pred_fallthru
        _
    $region52: #{net_forward.3} parent=5 // pred_fallthru
      _
  $region6: #{net_forward.3} parent=0 // loop_footer
    %s16 = sadd.s32 1, %s12
  $region7: #{net_forward.3} parent=0 // loop_footer_branch
    %11 = sbr.rel target = $region3
  $region8: #{net_forward.3} parent=0 // loop_exit
    _

// kernel: net_forward.4
$region0: #{net_forward.4}
  #allocation0 [shape = 'u32[]', space=smem, size = 0x4, offset = 0x4, fixed_abs, tag = 'smem constant byte address 0x4 - core index']
  #allocation1 [shape = 'u32[144,128]{1,0:T(1,128)}', space=vmem, size = 0x12000, scoped, tag = 'internal scratch']
  %s0 = inlined_call_operand.vmem [shape: bf16[256,150], index: 0, kind: input, shape index: {}]
  %s1 = inlined_call_operand.vmem [shape: bf16[256,150], index: 1, kind: input, shape index: {}]
  %s2 = inlined_call_operand.vmem [shape: bf16[256,150], index: 2, kind: input, shape index: {}]
  %s3 = inlined_call_operand.vmem [shape: bf16[256,150], index: 3, kind: input, shape index: {}]
  %s4 = inlined_call_operand.vmem [shape: bf16[150,12], index: 4, kind: input, shape index: {}]
  %s5 = inlined_call_operand.vmem [shape: f32[1,12], index: 5, kind: input, shape index: {}]
  %s6 = inlined_call_operand.vmem [shape: f32[256,12], index: 6, kind: output, shape index: {}]
  %s7 = sld [smem:[#allocation0]]
  $region57: #{net_forward.4} parent=0
    _
  %s9 = ssub.s32 1, %s7
  %s10 = scalar_select 0, %s9, %s7
  loop: start=0, step=1, limit=4
  $region2: #{net_forward.4} parent=0 // loop_pre_header
    _
  $region3: #{net_forward.4} parent=0 // loop_header
    %s12 = sphi 0, %s16
    %p13 = scmp.ge.s32.totalorder %s12, 4
    %s22 = sphi 0, %s24
    %s25 = sphi 0, %s22
    %s26 = sphi 0, %s25
    %s42 = sphi 0, %s26
    %s48 = sphi 0, %s50
    %s51 = sphi 0, %s48
    %s52 = sphi 0, %s51
    %s68 = sphi 0, %s52
    %s74 = sphi 0, %s76
    %s77 = sphi 0, %s74
    %s78 = sphi 0, %s77
    %s94 = sphi 0, %s78
    %s100 = sphi 0, %s102
    %s103 = sphi 0, %s100
    %s104 = sphi 0, %s103
    %s120 = sphi 0, %s104
    %s124 = sphi 0, %s124
    %s126 = sphi 0, %s124
    %s127 = sphi 0, %s126
    %s141 = sphi 0, %s127
    %s145 = sphi 0, %s145
    %s147 = sphi 0, %s145
    %s148 = sphi 0, %s147
    %s162 = sphi 0, %s148
    %s168 = sphi 0, %s170
    %s171 = sphi 0, %s168
    %s172 = sphi 0, %s171
    %s188 = sphi 0, %s172
  $region4: #{net_forward.4} parent=0 // loop_header_branch
    %15 = sbr.rel (%p13) target = $region8
  $region5: #{net_forward.4} parent=0 // loop_body
    %s17 = ssub.s32 %s12, 1
    %s18 = ssub.s32 %s12, 2
    %s19 = sadd.s32 %s12, 1
    %s20 = ssub.s32 %s12, %s19
    %p21 = scmp.eq.s32.totalorder %s20, 0
    %s23 = sadd.s32 %s22, 1
    %s24 = scalar_select %p21, %s22, %s23
    %p27 = pneg %p21
    %p28 = scmp.eq.s32.totalorder %s12, 1
    %p29 = por %p27, %p28
    %p30 = scmp.ne.s32.totalorder %s22, %s25
    %p31 = scmp.eq.s32.totalorder %s12, 0
    %p32 = por %p30, %p31
    %p33 = scmp.ne.s32.totalorder %s22, %s25
    %p34 = scmp.eq.s32.totalorder %s17, 1
    %p35 = por %p33, %p34
    %p36 = scmp.ne.s32.totalorder %s25, %s26
    %p37 = scmp.eq.s32.totalorder %s17, 0
    %p38 = por %p36, %p37
    %p39 = scmp.ne.s32.totalorder %s25, %s26
    %p40 = scmp.eq.s32.totalorder %s18, 1
    %p41 = por %p39, %p40
    %p43 = scmp.ne.s32.totalorder %s26, %s42
    %p44 = scmp.eq.s32.totalorder %s18, 0
    %p45 = por %p43, %p44
    %s46 = ssub.s32 %s12, %s19
    %p47 = scmp.eq.s32.totalorder %s46, 0
    %s49 = sadd.s32 %s48, 1
    %s50 = scalar_select %p47, %s48, %s49
    %p53 = pneg %p47
    %p54 = scmp.eq.s32.totalorder %s12, 1
    %p55 = por %p53, %p54
    %p56 = scmp.ne.s32.totalorder %s48, %s51
    %p57 = scmp.eq.s32.totalorder %s12, 0
    %p58 = por %p56, %p57
    %p59 = scmp.ne.s32.totalorder %s48, %s51
    %p60 = scmp.eq.s32.totalorder %s17, 1
    %p61 = por %p59, %p60
    %p62 = scmp.ne.s32.totalorder %s51, %s52
    %p63 = scmp.eq.s32.totalorder %s17, 0
    %p64 = por %p62, %p63
    %p65 = scmp.ne.s32.totalorder %s51, %s52
    %p66 = scmp.eq.s32.totalorder %s18, 1
    %p67 = por %p65, %p66
    %p69 = scmp.ne.s32.totalorder %s52, %s68
    %p70 = scmp.eq.s32.totalorder %s18, 0
    %p71 = por %p69, %p70
    %s72 = ssub.s32 %s12, %s19
    %p73 = scmp.eq.s32.totalorder %s72, 0
    %s75 = sadd.s32 %s74, 1
    %s76 = scalar_select %p73, %s74, %s75
    %p79 = pneg %p73
    %p80 = scmp.eq.s32.totalorder %s12, 1
    %p81 = por %p79, %p80
    %p82 = scmp.ne.s32.totalorder %s74, %s77
    %p83 = scmp.eq.s32.totalorder %s12, 0
    %p84 = por %p82, %p83
    %p85 = scmp.ne.s32.totalorder %s74, %s77
    %p86 = scmp.eq.s32.totalorder %s17, 1
    %p87 = por %p85, %p86
    %p88 = scmp.ne.s32.totalorder %s77, %s78
    %p89 = scmp.eq.s32.totalorder %s17, 0
    %p90 = por %p88, %p89
    %p91 = scmp.ne.s32.totalorder %s77, %s78
    %p92 = scmp.eq.s32.totalorder %s18, 1
    %p93 = por %p91, %p92
    %p95 = scmp.ne.s32.totalorder %s78, %s94
    %p96 = scmp.eq.s32.totalorder %s18, 0
    %p97 = por %p95, %p96
    %s98 = ssub.s32 %s12, %s19
    %p99 = scmp.eq.s32.totalorder %s98, 0
    %s101 = sadd.s32 %s100, 1
    %s102 = scalar_select %p99, %s100, %s101
    %p105 = pneg %p99
    %p106 = scmp.eq.s32.totalorder %s12, 1
    %p107 = por %p105, %p106
    %p108 = scmp.ne.s32.totalorder %s100, %s103
    %p109 = scmp.eq.s32.totalorder %s12, 0
    %p110 = por %p108, %p109
    %p111 = scmp.ne.s32.totalorder %s100, %s103
    %p112 = scmp.eq.s32.totalorder %s17, 1
    %p113 = por %p111, %p112
    %p114 = scmp.ne.s32.totalorder %s103, %s104
    %p115 = scmp.eq.s32.totalorder %s17, 0
    %p116 = por %p114, %p115
    %p117 = scmp.ne.s32.totalorder %s103, %s104
    %p118 = scmp.eq.s32.totalorder %s18, 1
    %p119 = por %p117, %p118
    %p121 = scmp.ne.s32.totalorder %s104, %s120
    %p122 = scmp.eq.s32.totalorder %s18, 0
    %p123 = por %p121, %p122
    %s125 = sadd.s32 %s124, 1
    %p128 = scmp.eq.s32.totalorder %s12, 1
    %p129 = scmp.ne.s32.totalorder %s124, %s126
    %p130 = scmp.eq.s32.totalorder %s12, 0
    %p131 = por %p129, %p130
    %p132 = scmp.ne.s32.totalorder %s124, %s126
    %p133 = scmp.eq.s32.totalorder %s17, 1
    %p134 = por %p132, %p133
    %p135 = scmp.ne.s32.totalorder %s126, %s127
    %p136 = scmp.eq.s32.totalorder %s17, 0
    %p137 = por %p135, %p136
    %p138 = scmp.ne.s32.totalorder %s126, %s127
    %p139 = scmp.eq.s32.totalorder %s18, 1
    %p140 = por %p138, %p139
    %p142 = scmp.ne.s32.totalorder %s127, %s141
    %p143 = scmp.eq.s32.totalorder %s18, 0
    %p144 = por %p142, %p143
    %s146 = sadd.s32 %s145, 1
    %p149 = scmp.eq.s32.totalorder %s12, 1
    %p150 = scmp.ne.s32.totalorder %s145, %s147
    %p151 = scmp.eq.s32.totalorder %s12, 0
    %p152 = por %p150, %p151
    %p153 = scmp.ne.s32.totalorder %s145, %s147
    %p154 = scmp.eq.s32.totalorder %s17, 1
    %p155 = por %p153, %p154
    %p156 = scmp.ne.s32.totalorder %s147, %s148
    %p157 = scmp.eq.s32.totalorder %s17, 0
    %p158 = por %p156, %p157
    %p159 = scmp.ne.s32.totalorder %s147, %s148
    %p160 = scmp.eq.s32.totalorder %s18, 1
    %p161 = por %p159, %p160
    %p163 = scmp.ne.s32.totalorder %s148, %s162
    %p164 = scmp.eq.s32.totalorder %s18, 0
    %p165 = por %p163, %p164
    %s166 = ssub.s32 %s12, %s19
    %p167 = scmp.eq.s32.totalorder %s166, 0
    %s169 = sadd.s32 %s168, 1
    %s170 = scalar_select %p167, %s168, %s169
    %p173 = pneg %p167
    %p174 = scmp.eq.s32.totalorder %s12, 1
    %p175 = por %p173, %p174
    %p176 = scmp.ne.s32.totalorder %s168, %s171
    %p177 = scmp.eq.s32.totalorder %s12, 0
    %p178 = por %p176, %p177
    %p179 = scmp.ne.s32.totalorder %s168, %s171
    %p180 = scmp.eq.s32.totalorder %s17, 1
    %p181 = por %p179, %p180
    %p182 = scmp.ne.s32.totalorder %s171, %s172
    %p183 = scmp.eq.s32.totalorder %s17, 0
    %p184 = por %p182, %p183
    %p185 = scmp.ne.s32.totalorder %s171, %s172
    %p186 = scmp.eq.s32.totalorder %s18, 1
    %p187 = por %p185, %p186
    %p189 = scmp.ne.s32.totalorder %s172, %s188
    %p190 = scmp.eq.s32.totalorder %s18, 0
    %p191 = por %p189, %p190
    %p192 = scmp.le.s32.totalorder 1, %s12
    %p193 = scmp.lt.s32.totalorder %s12, 3
    %p194 = pnand %p192, %p193
    %p195 = pneg %p194
    // Predicated region
    $region9: #{net_forward.4} parent=5 // pred_check
      _
    $region10: #{net_forward.4} parent=5 // pred_check_branch
      %197 = sbr.rel (%p194) target = $region12
    $region11: #{net_forward.4} parent=5 // pred_region
      %s198 = ssub.s32 %s12, 1
      // Predicated region
      $region13: #{net_forward.4} parent=11 // pred_check
        %p199 = pneg %p137
      $region14: #{net_forward.4} parent=11 // pred_check_branch
        %201 = sbr.rel (%p199) target = $region16
      $region15: #{net_forward.4} parent=11 // pred_region
        _
      $region16: #{net_forward.4} parent=11 // pred_fallthru
        _
      // Predicated region
      $region17: #{net_forward.4} parent=11 // pred_check
        %p202 = pneg %p158
      $region18: #{net_forward.4} parent=11 // pred_check_branch
        %204 = sbr.rel (%p202) target = $region20
      $region19: #{net_forward.4} parent=11 // pred_region
        _
      $region20: #{net_forward.4} parent=11 // pred_fallthru
        _
    $region12: #{net_forward.4} parent=5 // pred_fallthru
      _
    %p205 = scmp.lt.s32.totalorder %s12, 2
    // Predicated region
    $region21: #{net_forward.4} parent=5 // pred_check
      %p206 = pneg %p205
    $region22: #{net_forward.4} parent=5 // pred_check_branch
      %208 = sbr.rel (%p206) target = $region24
    $region23: #{net_forward.4} parent=5 // pred_region
      // Predicated region
      $region25: #{net_forward.4} parent=23 // pred_check
        %p209 = pneg %p32
      $region26: #{net_forward.4} parent=23 // pred_check_branch
        %211 = sbr.rel (%p209) target = $region28
      $region27: #{net_forward.4} parent=23 // pred_region
        %s212 = smul.u32 16, %s12
        %p213 = scmp.lt.s32.totalorder %s212, 31
        %s214 = scalar_select %p213, %s212, 31
        %s215 = smul.addr %s214, 2
        %s216 = smul.addr %s215, 4
        %s217 = scalar_lea.vmem %s0, %s216
        %s218 = smul.u32 16, %s12
      $region28: #{net_forward.4} parent=23 // pred_fallthru
        _
      // Predicated region
      $region29: #{net_forward.4} parent=23 // pred_check
        %p219 = pneg %p58
      $region30: #{net_forward.4} parent=23 // pred_check_branch
        %221 = sbr.rel (%p219) target = $region32
      $region31: #{net_forward.4} parent=23 // pred_region
        %s222 = smul.u32 16, %s12
        %p223 = scmp.lt.s32.totalorder %s222, 31
        %s224 = scalar_select %p223, %s222, 31
        %s225 = smul.addr %s224, 2
        %s226 = smul.addr %s225, 4
        %s227 = scalar_lea.vmem %s1, %s226
        %s228 = smul.u32 16, %s12
      $region32: #{net_forward.4} parent=23 // pred_fallthru
        _
      // Predicated region
      $region33: #{net_forward.4} parent=23 // pred_check
        %p229 = pneg %p84
      $region34: #{net_forward.4} parent=23 // pred_check_branch
        %231 = sbr.rel (%p229) target = $region36
      $region35: #{net_forward.4} parent=23 // pred_region
        %s232 = smul.u32 16, %s12
        %p233 = scmp.lt.s32.totalorder %s232, 31
        %s234 = scalar_select %p233, %s232, 31
        %s235 = smul.addr %s234, 2
        %s236 = smul.addr %s235, 4
        %s237 = scalar_lea.vmem %s2, %s236
        %s238 = smul.u32 16, %s12
      $region36: #{net_forward.4} parent=23 // pred_fallthru
        _
      // Predicated region
      $region37: #{net_forward.4} parent=23 // pred_check
        %p239 = pneg %p110
      $region38: #{net_forward.4} parent=23 // pred_check_branch
        %241 = sbr.rel (%p239) target = $region40
      $region39: #{net_forward.4} parent=23 // pred_region
        %s242 = smul.u32 16, %s12
        %p243 = scmp.lt.s32.totalorder %s242, 31
        %s244 = scalar_select %p243, %s242, 31
        %s245 = smul.addr %s244, 2
        %s246 = smul.addr %s245, 4
        %s247 = scalar_lea.vmem %s3, %s246
        %s248 = smul.u32 16, %s12
      $region40: #{net_forward.4} parent=23 // pred_fallthru
        _
    $region24: #{net_forward.4} parent=5 // pred_fallthru
      _
    %p249 = scmp.le.s32.totalorder 1, %s12
    %p250 = scmp.lt.s32.totalorder %s12, 3
    %p251 = pnand %p249, %p250
    %p252 = pneg %p251
    // Predicated region
    $region41: #{net_forward.4} parent=5 // pred_check
      _
    $region42: #{net_forward.4} parent=5 // pred_check_branch
      %254 = sbr.rel (%p251) target = $region44
    $region43: #{net_forward.4} parent=5 // pred_region
      %s255 = ssub.s32 %s12, 1
      %s256 = smul.u32 16, %s17
      %p257 = scmp.lt.s32.totalorder %s256, 31
      %s258 = scalar_select %p257, %s256, 31
      %s259 = smul.addr %s258, 2
      %s260 = smul.addr %s259, 4
      %s261 = scalar_lea.vmem %s0, %s260
      %p262 = pneg %p38
      %p263 = pneg %p35
      %s264 = smul.u32 16, %s17
      %p265 = scmp.lt.s32.totalorder %s264, 31
      %s266 = scalar_select %p265, %s264, 31
      %s267 = smul.addr %s266, 2
      %s268 = smul.addr %s267, 4
      %s269 = scalar_lea.vmem %s1, %s268
      %p270 = pneg %p64
      %p271 = pneg %p61
      %s272 = smul.u32 16, %s17
      %p273 = scmp.lt.s32.totalorder %s272, 31
      %s274 = scalar_select %p273, %s272, 31
      %s275 = smul.addr %s274, 2
      %s276 = smul.addr %s275, 4
      %s277 = scalar_lea.vmem %s2, %s276
      %p278 = pneg %p90
      %p279 = pneg %p87
      %s280 = smul.u32 16, %s17
      %p281 = scmp.lt.s32.totalorder %s280, 31
      %s282 = scalar_select %p281, %s280, 31
      %s283 = smul.addr %s282, 2
      %s284 = smul.addr %s283, 4
      %s285 = scalar_lea.vmem %s3, %s284
      %p286 = pneg %p116
      %p287 = pneg %p113
      %p288 = pneg %p137
      %p289 = pneg %p134
      %p290 = pneg %p158
      %p291 = pneg %p155
      %p292 = pneg %p184
      %p293 = pneg %p181
      %s294 = smul.u32 16, %s17
      %p295 = scmp.lt.s32.totalorder %s294, 31
      %s296 = scalar_select %p295, %s294, 31
      %s297 = smul.addr %s296, 8
      %s298 = scalar_lea.vmem %s6, %s297
      %s299 = smul.u32 16, %s17
      %p300 = scmp.lt.s32.totalorder %s299, 31
      %s301 = scalar_select %p300, %s299, 31
      %s302 = smul.addr %s301, 2
      %s303 = smul.addr %s302, 4
      %s304 = scalar_lea.vmem %s0, %s303
      %s305 = smul.u32 16, %s17
      %s306 = smul.u32 16, %s17
      %p307 = scmp.lt.s32.totalorder %s306, 31
      %s308 = scalar_select %p307, %s306, 31
      %s309 = smul.addr %s308, 2
      %s310 = smul.addr %s309, 4
      %s311 = scalar_lea.vmem %s1, %s310
      %s312 = smul.u32 16, %s17
      %s313 = smul.u32 16, %s17
      %p314 = scmp.lt.s32.totalorder %s313, 31
      %s315 = scalar_select %p314, %s313, 31
      %s316 = smul.addr %s315, 2
      %s317 = smul.addr %s316, 4
      %s318 = scalar_lea.vmem %s2, %s317
      %s319 = smul.u32 16, %s17
      %s320 = smul.u32 16, %s17
      %p321 = scmp.lt.s32.totalorder %s320, 31
      %s322 = scalar_select %p321, %s320, 31
      %s323 = smul.addr %s322, 2
      %s324 = smul.addr %s323, 4
      %s325 = scalar_lea.vmem %s3, %s324
      %s326 = smul.u32 16, %s17
      %s327 = smul.u32 16, %s17
      %p328 = scmp.lt.s32.totalorder %s327, 31
      %s329 = scalar_select %p328, %s327, 31
      %s330 = smul.addr %s329, 8
      %s331 = scalar_lea.vmem %s6, %s330
      %s332 = smul.u32 16, %s17
      %v334 = vld [vmem:[%s4] sm:$0xf]
      %v335 = vld [vmem:[%s4 + $0x4] sm:$0xf]
      %v336 = vld [vmem:[%s4 + $0x8] sm:$0xf]
      %v337 = vld [vmem:[%s4 + $0xc] sm:$0xf]
      %v338 = vld [vmem:[%s4 + $0x10] sm:$0xf]
      %v339 = vld [vmem:[%s4 + $0x14] sm:$0xf]
      %v340 = vld [vmem:[%s4 + $0x18] sm:$0xf]
      %v341 = vld [vmem:[%s4 + $0x1c] sm:$0xf]
      %v342 = vld [vmem:[%s4 + $0x20] sm:$0xf]
      %v343 = vld [vmem:[%s4 + $0x24] sm:$0xf]
      %v344 = vld [vmem:[%s4 + $0x28] sm:$0xf]
      %v345 = vld [vmem:[%s4 + $0x2c] sm:$0xf]
      %v346 = vld [vmem:[%s4 + $0x30] sm:$0xf]
      %v347 = vld [vmem:[%s4 + $0x34] sm:$0xf]
      %v348 = vld [vmem:[%s4 + $0x38] sm:$0xf]
      %v349 = vld [vmem:[%s4 + $0x3c] sm:$0xf]
      %v350 = vld [vmem:[%s4 + $0x40] sm:$0xf]
      %v351 = vld [vmem:[%s4 + $0x44] sm:$0xf]
      %v352 = vld [vmem:[%s4 + $0x48] sm:$0x7]
      %v353 = vld [vmem:[%s304] sm:$0xff]
      %v354 = vld [vmem:[%s304 + $0x8] sm:$0xff]
      %v355 = vld [vmem:[%s304 + $0x10] sm:$0xff]
      %v356 = vld [vmem:[%s304 + $0x18] sm:$0xff]
      %v357 = vld [vmem:[%s304 + $0x20] sm:$0xff]
      %v358 = vld [vmem:[%s304 + $0x28] sm:$0xff]
      %v359 = vld [vmem:[%s304 + $0x30] sm:$0xff]
      %v360 = vld [vmem:[%s304 + $0x38] sm:$0xff]
      %v361 = vld [vmem:[%s304 + $0x40] sm:$0xff]
      %v362 = vld [vmem:[%s304 + $0x48] sm:$0xff]
      %v363 = vld [vmem:[%s304 + $0x50] sm:$0xff]
      %v364 = vld [vmem:[%s304 + $0x58] sm:$0xff]
      %v365 = vld [vmem:[%s304 + $0x60] sm:$0xff]
      %v366 = vld [vmem:[%s304 + $0x68] sm:$0xff]
      %v367 = vld [vmem:[%s304 + $0x70] sm:$0xff]
      %v368 = vld [vmem:[%s304 + $0x78] sm:$0xff]
      %v385 = vunpack.c.l.b16 %v353
      %v386 = vunpack.c.h.b16 %v353
      %v387 = vunpack.c.l.b16 %v354
      %v388 = vunpack.c.h.b16 %v354
      %v389 = vunpack.c.l.b16 %v355
      %v390 = vunpack.c.h.b16 %v355
      %v391 = vunpack.c.l.b16 %v356
      %v392 = vunpack.c.h.b16 %v356
      %v393 = vunpack.c.l.b16 %v357
      %v394 = vunpack.c.h.b16 %v357
      %v395 = vunpack.c.l.b16 %v358
      %v396 = vunpack.c.h.b16 %v358
      %v397 = vunpack.c.l.b16 %v359
      %v398 = vunpack.c.h.b16 %v359
      %v399 = vunpack.c.l.b16 %v360
      %v400 = vunpack.c.h.b16 %v360
      %v401 = vunpack.c.l.b16 %v361
      %v402 = vunpack.c.h.b16 %v361
      %v403 = vunpack.c.l.b16 %v362
      %v404 = vunpack.c.h.b16 %v362
      %v405 = vunpack.c.l.b16 %v363
      %v406 = vunpack.c.h.b16 %v363
      %v407 = vunpack.c.l.b16 %v364
      %v408 = vunpack.c.h.b16 %v364
      %v409 = vunpack.c.l.b16 %v365
      %v410 = vunpack.c.h.b16 %v365
      %v411 = vunpack.c.l.b16 %v366
      %v412 = vunpack.c.h.b16 %v366
      %v413 = vunpack.c.l.b16 %v367
      %v414 = vunpack.c.h.b16 %v367
      %v415 = vunpack.c.l.b16 %v368
      %v416 = vunpack.c.h.b16 %v368
      %v417 = vpack.c.b16 %v387, %v385
      %v418 = vpack.c.b16 %v388, %v386
      %v419 = vpack.c.b16 %v391, %v389
      %v420 = vpack.c.b16 %v392, %v390
      %v421 = vpack.c.b16 %v395, %v393
      %v422 = vpack.c.b16 %v396, %v394
      %v423 = vpack.c.b16 %v399, %v397
      %v424 = vpack.c.b16 %v400, %v398
      %v425 = vpack.c.b16 %v403, %v401
      %v426 = vpack.c.b16 %v404, %v402
      %v427 = vpack.c.b16 %v407, %v405
      %v428 = vpack.c.b16 %v408, %v406
      %v429 = vpack.c.b16 %v411, %v409
      %v430 = vpack.c.b16 %v412, %v410
      %v431 = vpack.c.b16 %v415, %v413
      %v432 = vpack.c.b16 %v416, %v414
      %v460 = vunpack.c.l.b16 %v334
      %v461 = vunpack.c.l.b16 %v335
      %v462 = vunpack.c.l.b16 %v336
      %v463 = vunpack.c.l.b16 %v337
      %v464 = vunpack.c.l.b16 %v338
      %v465 = vunpack.c.l.b16 %v339
      %v466 = vunpack.c.l.b16 %v340
      %v467 = vunpack.c.l.b16 %v341
      %v468 = vunpack.c.l.b16 %v342
      %v469 = vunpack.c.l.b16 %v343
      %v470 = vunpack.c.l.b16 %v344
      %v471 = vunpack.c.l.b16 %v345
      %v472 = vunpack.c.l.b16 %v346
      %v473 = vunpack.c.l.b16 %v347
      %v474 = vunpack.c.l.b16 %v348
      %v475 = vunpack.c.l.b16 %v349
      %v476 = vunpack.c.l.b16 %v350
      %v477 = vunpack.c.l.b16 %v351
      %v478 = vunpack.c.l.b16 %v352
      %v479 = vpack.c.b16 %v461, %v460
      %v480 = vpack.c.b16 %v463, %v462
      %v481 = vpack.c.b16 %v465, %v464
      %v482 = vpack.c.b16 %v467, %v466
      %v483 = vpack.c.b16 %v469, %v468
      %v484 = vpack.c.b16 %v471, %v470
      %v485 = vpack.c.b16 %v473, %v472
      %v486 = vpack.c.b16 %v475, %v474
      %v487 = vpack.c.b16 %v477, %v476
      %v488 = vpack.c.b16 %v478, %v478
      %vm498 = vcmask 179200
      %v500 = vsel %vm498, %v418, 0
      %v503 = vsel %vm498, %v420, 0
      %v506 = vsel %vm498, %v422, 0
      %v509 = vsel %vm498, %v424, 0
      %v512 = vsel %vm498, %v426, 0
      %v515 = vsel %vm498, %v428, 0
      %v518 = vsel %vm498, %v430, 0
      %v521 = vsel %vm498, %v432, 0
      %vm523 = vcmask 1042432
      %v525 = vsel %vm523, %v488, 0
      %527 = vmatprep.subr.bf16.mxu0 0
      %528 = vmatpush1.bf16.msra.mxu0 %v479
      %529 = vmatprep.subr.bf16.mxu0 0
      %530 = vmatpush1.bf16.msra.mxu0 %v480
      %531 = vmatprep.subr.bf16.mxu0 0
      %532 = vmatpush1.bf16.msra.mxu0 %v481
      %533 = vmatprep.subr.bf16.mxu0 0
      %534 = vmatpush1.bf16.msra.mxu0 %v482
      %535 = vmatprep.subr.bf16.mxu0 0
      %536 = vmatpush1.bf16.msra.mxu0 %v483
      %537 = vmatprep.subr.bf16.mxu0 0
      %538 = vmatpush1.bf16.msra.mxu0 %v484
      %539 = vmatprep.subr.bf16.mxu0 0
      %540 = vmatpush1.bf16.msra.mxu0 %v485
      %541 = vmatprep.subr.bf16.mxu0 0
      %542 = vmatpush1.bf16.msra.mxu0 %v486
      %543 = vmatprep.subr.bf16.mxu0 0
      %544 = vmatpush1.bf16.msra.mxu0 %v487
      %545 = vmatprep.subr.bf16.mxu0 0
      %546 = vmatpush1.bf16.msra.mxu0 %v525
      %547 = vmatprep.subr.bf16.mxu0 0
      %548 = vmatpush1.bf16.msra.mxu0 0
      %549 = vmatprep.subr.bf16.mxu0 0
      %550 = vmatpush1.bf16.msra.mxu0 0
      %551 = vmatprep.subr.bf16.mxu0 0
      %552 = vmatpush1.bf16.msra.mxu0 0
      %553 = vmatprep.subr.bf16.mxu0 0
      %554 = vmatpush1.bf16.msra.mxu0 0
      %555 = vmatprep.subr.bf16.mxu0 0
      %556 = vmatpush1.bf16.msra.mxu0 0
      %557 = vmatprep.subr.bf16.mxu0 0
      %558 = vmatpush1.bf16.msra.mxu0 0
      %559 = vmatprep.mubr.bf16.mxu0 %v500
      %560 = vmatmul.mubr.bf16.gmra.mrb[0].mxu0 %v417
      %v561 = vpop.f32.mrb[0].mxu0
      %v562 = vadd.f32 0.0, %v561
      %v563 = vpop.f32.mrb[0].mxu0
      %v564 = vpop.f32.mrb[0].mxu0
      %v565 = vadd.f32 0.0, %v564
      %v566 = vpop.f32.mrb[0].mxu0
      %567 = vmatprep.mubr.bf16.mxu0 %v503
      %568 = vmatmul.mubr.bf16.gmra.mrb[0].mxu0 %v419
      %v569 = vpop.f32.mrb[0].mxu0
      %v570 = vadd.f32 0.0, %v569
      %v571 = vpop.f32.mrb[0].mxu0
      %v572 = vpop.f32.mrb[0].mxu0
      %v573 = vadd.f32 0.0, %v572
      %v574 = vpop.f32.mrb[0].mxu0
      %575 = vmatprep.mubr.bf16.mxu0 %v506
      %576 = vmatmul.mubr.bf16.gmra.mrb[0].mxu0 %v421
      %v577 = vpop.f32.mrb[0].mxu0
      %v578 = vadd.f32 0.0, %v577
      %v579 = vpop.f32.mrb[0].mxu0
      %v580 = vpop.f32.mrb[0].mxu0
      %v581 = vadd.f32 0.0, %v580
      %v582 = vpop.f32.mrb[0].mxu0
      %583 = vmatprep.mubr.bf16.mxu0 %v509
      %584 = vmatmul.mubr.bf16.gmra.mrb[0].mxu0 %v423
      %v585 = vpop.f32.mrb[0].mxu0
      %v586 = vadd.f32 0.0, %v585
      %v587 = vpop.f32.mrb[0].mxu0
      %v588 = vpop.f32.mrb[0].mxu0
      %v589 = vadd.f32 0.0, %v588
      %v590 = vpop.f32.mrb[0].mxu0
      %591 = vmatprep.mubr.bf16.mxu0 %v512
      %592 = vmatmul.mubr.bf16.gmra.mrb[0].mxu0 %v425
      %v593 = vpop.f32.mrb[0].mxu0
      %v594 = vadd.f32 0.0, %v593
      %v595 = vpop.f32.mrb[0].mxu0
      %v596 = vpop.f32.mrb[0].mxu0
      %v597 = vadd.f32 0.0, %v596
      %v598 = vpop.f32.mrb[0].mxu0
      %599 = vmatprep.mubr.bf16.mxu0 %v515
      %600 = vmatmul.mubr.bf16.gmra.mrb[0].mxu0 %v427
      %v601 = vpop.f32.mrb[0].mxu0
      %v602 = vadd.f32 0.0, %v601
      %v603 = vpop.f32.mrb[0].mxu0
      %v604 = vpop.f32.mrb[0].mxu0
      %v605 = vadd.f32 0.0, %v604
      %v606 = vpop.f32.mrb[0].mxu0
      %607 = vmatprep.mubr.bf16.mxu0 %v518
      %608 = vmatmul.mubr.bf16.gmra.mrb[0].mxu0 %v429
      %v609 = vpop.f32.mrb[0].mxu0
      %v610 = vadd.f32 0.0, %v609
      %v611 = vpop.f32.mrb[0].mxu0
      %v612 = vpop.f32.mrb[0].mxu0
      %v613 = vadd.f32 0.0, %v612
      %v614 = vpop.f32.mrb[0].mxu0
      %615 = vmatprep.mubr.bf16.mxu0 %v521
      %616 = vmatmul.mubr.bf16.gmra.mrb[0].mxu0 %v431
      %v617 = vpop.f32.mrb[0].mxu0
      %v618 = vadd.f32 0.0, %v617
      %v619 = vpop.f32.mrb[0].mxu0
      %v620 = vpop.f32.mrb[0].mxu0
      %v621 = vadd.f32 0.0, %v620
      %v622 = vpop.f32.mrb[0].mxu0
      %623 = vdwg.mxu0
      %v624 = vld [vmem:[%s311] sm:$0xff]
      %v625 = vld [vmem:[%s311 + $0x8] sm:$0xff]
      %v626 = vld [vmem:[%s311 + $0x10] sm:$0xff]
      %v627 = vld [vmem:[%s311 + $0x18] sm:$0xff]
      %v628 = vld [vmem:[%s311 + $0x20] sm:$0xff]
      %v629 = vld [vmem:[%s311 + $0x28] sm:$0xff]
      %v630 = vld [vmem:[%s311 + $0x30] sm:$0xff]
      %v631 = vld [vmem:[%s311 + $0x38] sm:$0xff]
      %v632 = vld [vmem:[%s311 + $0x40] sm:$0xff]
      %v633 = vld [vmem:[%s311 + $0x48] sm:$0xff]
      %v634 = vld [vmem:[%s311 + $0x50] sm:$0xff]
      %v635 = vld [vmem:[%s311 + $0x58] sm:$0xff]
      %v636 = vld [vmem:[%s311 + $0x60] sm:$0xff]
      %v637 = vld [vmem:[%s311 + $0x68] sm:$0xff]
      %v638 = vld [vmem:[%s311 + $0x70] sm:$0xff]
      %v639 = vld [vmem:[%s311 + $0x78] sm:$0xff]
      %v656 = vunpack.c.l.b16 %v624
      %v657 = vunpack.c.h.b16 %v624
      %v658 = vunpack.c.l.b16 %v625
      %v659 = vunpack.c.h.b16 %v625
      %v660 = vunpack.c.l.b16 %v626
      %v661 = vunpack.c.h.b16 %v626
      %v662 = vunpack.c.l.b16 %v627
      %v663 = vunpack.c.h.b16 %v627
      %v664 = vunpack.c.l.b16 %v628
      %v665 = vunpack.c.h.b16 %v628
      %v666 = vunpack.c.l.b16 %v629
      %v667 = vunpack.c.h.b16 %v629
      %v668 = vunpack.c.l.b16 %v630
      %v669 = vunpack.c.h.b16 %v630
      %v670 = vunpack.c.l.b16 %v631
      %v671 = vunpack.c.h.b16 %v631
      %v672 = vunpack.c.l.b16 %v632
      %v673 = vunpack.c.h.b16 %v632
      %v674 = vunpack.c.l.b16 %v633
      %v675 = vunpack.c.h.b16 %v633
      %v676 = vunpack.c.l.b16 %v634
      %v677 = vunpack.c.h.b16 %v634
      %v678 = vunpack.c.l.b16 %v635
      %v679 = vunpack.c.h.b16 %v635
      %v680 = vunpack.c.l.b16 %v636
      %v681 = vunpack.c.h.b16 %v636
      %v682 = vunpack.c.l.b16 %v637
      %v683 = vunpack.c.h.b16 %v637
      %v684 = vunpack.c.l.b16 %v638
      %v685 = vunpack.c.h.b16 %v638
      %v686 = vunpack.c.l.b16 %v639
      %v687 = vunpack.c.h.b16 %v639
      %v688 = vpack.c.b16 %v658, %v656
      %v689 = vpack.c.b16 %v659, %v657
      %v690 = vpack.c.b16 %v662, %v660
      %v691 = vpack.c.b16 %v663, %v661
      %v692 = vpack.c.b16 %v666, %v664
      %v693 = vpack.c.b16 %v667, %v665
      %v694 = vpack.c.b16 %v670, %v668
      %v695 = vpack.c.b16 %v671, %v669
      %v696 = vpack.c.b16 %v674, %v672
      %v697 = vpack.c.b16 %v675, %v673
      %v698 = vpack.c.b16 %v678, %v676
      %v699 = vpack.c.b16 %v679, %v677
      %v700 = vpack.c.b16 %v682, %v680
      %v701 = vpack.c.b16 %v683, %v681
      %v702 = vpack.c.b16 %v686, %v684
      %v703 = vpack.c.b16 %v687, %v685
      %v713 = vsel %vm498, %v689, 0
      %v716 = vsel %vm498, %v691, 0
      %v719 = vsel %vm498, %v693, 0
      %v722 = vsel %vm498, %v695, 0
      %v725 = vsel %vm498, %v697, 0
      %v728 = vsel %vm498, %v699, 0
      %v731 = vsel %vm498, %v701, 0
      %v734 = vsel %vm498, %v703, 0
      %736 = vmatprep.subr.bf16.mxu0 0
      %737 = vmatpush1.bf16.msra.mxu0 %v479
      %738 = vmatprep.subr.bf16.mxu0 0
      %739 = vmatpush1.bf16.msra.mxu0 %v480
      %740 = vmatprep.subr.bf16.mxu0 0
      %741 = vmatpush1.bf16.msra.mxu0 %v481
      %742 = vmatprep.subr.bf16.mxu0 0
      %743 = vmatpush1.bf16.msra.mxu0 %v482
      %744 = vmatprep.subr.bf16.mxu0 0
      %745 = vmatpush1.bf16.msra.mxu0 %v483
      %746 = vmatprep.subr.bf16.mxu0 0
      %747 = vmatpush1.bf16.msra.mxu0 %v484
      %748 = vmatprep.subr.bf16.mxu0 0
      %749 = vmatpush1.bf16.msra.mxu0 %v485
      %750 = vmatprep.subr.bf16.mxu0 0
      %751 = vmatpush1.bf16.msra.mxu0 %v486
      %752 = vmatprep.subr.bf16.mxu0 0
      %753 = vmatpush1.bf16.msra.mxu0 %v487
      %754 = vmatprep.subr.bf16.mxu0 0
      %755 = vmatpush1.bf16.msra.mxu0 %v525
      %756 = vmatprep.subr.bf16.mxu0 0
      %757 = vmatpush1.bf16.msra.mxu0 0
      %758 = vmatprep.subr.bf16.mxu0 0
      %759 = vmatpush1.bf16.msra.mxu0 0
      %760 = vmatprep.subr.bf16.mxu0 0
      %761 = vmatpush1.bf16.msra.mxu0 0
      %762 = vmatprep.subr.bf16.mxu0 0
      %763 = vmatpush1.bf16.msra.mxu0 0
      %764 = vmatprep.subr.bf16.mxu0 0
      %765 = vmatpush1.bf16.msra.mxu0 0
      %766 = vmatprep.subr.bf16.mxu0 0
      %767 = vmatpush1.bf16.msra.mxu0 0
      %768 = vmatprep.mubr.bf16.mxu0 %v713
      %769 = vmatmul.mubr.bf16.gmra.mrb[0].mxu0 %v688
      %v770 = vpop.f32.mrb[0].mxu0
      %v771 = vadd.f32 0.0, %v770
      %v772 = vpop.f32.mrb[0].mxu0
      %v773 = vpop.f32.mrb[0].mxu0
      %v774 = vadd.f32 0.0, %v773
      %v775 = vpop.f32.mrb[0].mxu0
      %776 = vmatprep.mubr.bf16.mxu0 %v716
      %777 = vmatmul.mubr.bf16.gmra.mrb[0].mxu0 %v690
      %v778 = vpop.f32.mrb[0].mxu0
      %v779 = vadd.f32 0.0, %v778
      %v780 = vpop.f32.mrb[0].mxu0
      %v781 = vpop.f32.mrb[0].mxu0
      %v782 = vadd.f32 0.0, %v781
      %v783 = vpop.f32.mrb[0].mxu0
      %784 = vmatprep.mubr.bf16.mxu0 %v719
      %785 = vmatmul.mubr.bf16.gmra.mrb[0].mxu0 %v692
      %v786 = vpop.f32.mrb[0].mxu0
      %v787 = vadd.f32 0.0, %v786
      %v788 = vpop.f32.mrb[0].mxu0
      %v789 = vpop.f32.mrb[0].mxu0
      %v790 = vadd.f32 0.0, %v789
      %v791 = vpop.f32.mrb[0].mxu0
      %792 = vmatprep.mubr.bf16.mxu0 %v722
      %793 = vmatmul.mubr.bf16.gmra.mrb[0].mxu0 %v694
      %v794 = vpop.f32.mrb[0].mxu0
      %v795 = vadd.f32 0.0, %v794
      %v796 = vpop.f32.mrb[0].mxu0
      %v797 = vpop.f32.mrb[0].mxu0
      %v798 = vadd.f32 0.0, %v797
      %v799 = vpop.f32.mrb[0].mxu0
      %800 = vmatprep.mubr.bf16.mxu0 %v725
      %801 = vmatmul.mubr.bf16.gmra.mrb[0].mxu0 %v696
      %v802 = vpop.f32.mrb[0].mxu0
      %v803 = vadd.f32 0.0, %v802
      %v804 = vpop.f32.mrb[0].mxu0
      %v805 = vpop.f32.mrb[0].mxu0
      %v806 = vadd.f32 0.0, %v805
      %v807 = vpop.f32.mrb[0].mxu0
      %808 = vmatprep.mubr.bf16.mxu0 %v728
      %809 = vmatmul.mubr.bf16.gmra.mrb[0].mxu0 %v698
      %v810 = vpop.f32.mrb[0].mxu0
      %v811 = vadd.f32 0.0, %v810
      %v812 = vpop.f32.mrb[0].mxu0
      %v813 = vpop.f32.mrb[0].mxu0
      %v814 = vadd.f32 0.0, %v813
      %v815 = vpop.f32.mrb[0].mxu0
      %816 = vmatprep.mubr.bf16.mxu0 %v731
      %817 = vmatmul.mubr.bf16.gmra.mrb[0].mxu0 %v700
      %v818 = vpop.f32.mrb[0].mxu0
      %v819 = vadd.f32 0.0, %v818
      %v820 = vpop.f32.mrb[0].mxu0
      %v821 = vpop.f32.mrb[0].mxu0
      %v822 = vadd.f32 0.0, %v821
      %v823 = vpop.f32.mrb[0].mxu0
      %824 = vmatprep.mubr.bf16.mxu0 %v734
      %825 = vmatmul.mubr.bf16.gmra.mrb[0].mxu0 %v702
      %v826 = vpop.f32.mrb[0].mxu0
      %v827 = vadd.f32 0.0, %v826
      %v828 = vpop.f32.mrb[0].mxu0
      %v829 = vpop.f32.mrb[0].mxu0
      %v830 = vadd.f32 0.0, %v829
      %v831 = vpop.f32.mrb[0].mxu0
      %832 = vdwg.mxu0
      %v833 = vmax.f32 %v562, %v771
      %v834 = vmax.f32 %v565, %v774
      %v835 = vmax.f32 %v570, %v779
      %v836 = vmax.f32 %v573, %v782
      %v837 = vmax.f32 %v578, %v787
      %v838 = vmax.f32 %v581, %v790
      %v839 = vmax.f32 %v586, %v795
      %v840 = vmax.f32 %v589, %v798
      %v841 = vmax.f32 %v594, %v803
      %v842 = vmax.f32 %v597, %v806
      %v843 = vmax.f32 %v602, %v811
      %v844 = vmax.f32 %v605, %v814
      %v845 = vmax.f32 %v610, %v819
      %v846 = vmax.f32 %v613, %v822
      %v847 = vmax.f32 %v618, %v827
      %v848 = vmax.f32 %v621, %v830
      %v849 = vld [vmem:[%s318] sm:$0xff]
      %v850 = vld [vmem:[%s318 + $0x8] sm:$0xff]
      %v851 = vld [vmem:[%s318 + $0x10] sm:$0xff]
      %v852 = vld [vmem:[%s318 + $0x18] sm:$0xff]
      %v853 = vld [vmem:[%s318 + $0x20] sm:$0xff]
      %v854 = vld [vmem:[%s318 + $0x28] sm:$0xff]
      %v855 = vld [vmem:[%s318 + $0x30] sm:$0xff]
      %v856 = vld [vmem:[%s318 + $0x38] sm:$0xff]
      %v857 = vld [vmem:[%s318 + $0x40] sm:$0xff]
      %v858 = vld [vmem:[%s318 + $0x48] sm:$0xff]
      %v859 = vld [vmem:[%s318 + $0x50] sm:$0xff]
      %v860 = vld [vmem:[%s318 + $0x58] sm:$0xff]
      %v861 = vld [vmem:[%s318 + $0x60] sm:$0xff]
      %v862 = vld [vmem:[%s318 + $0x68] sm:$0xff]
      %v863 = vld [vmem:[%s318 + $0x70] sm:$0xff]
      %v864 = vld [vmem:[%s318 + $0x78] sm:$0xff]
      %v881 = vunpack.c.l.b16 %v849
      %v882 = vunpack.c.h.b16 %v849
      %v883 = vunpack.c.l.b16 %v850
      %v884 = vunpack.c.h.b16 %v850
      %v885 = vunpack.c.l.b16 %v851
      %v886 = vunpack.c.h.b16 %v851
      %v887 = vunpack.c.l.b16 %v852
      %v888 = vunpack.c.h.b16 %v852
      %v889 = vunpack.c.l.b16 %v853
      %v890 = vunpack.c.h.b16 %v853
      %v891 = vunpack.c.l.b16 %v854
      %v892 = vunpack.c.h.b16 %v854
      %v893 = vunpack.c.l.b16 %v855
      %v894 = vunpack.c.h.b16 %v855
      %v895 = vunpack.c.l.b16 %v856
      %v896 = vunpack.c.h.b16 %v856
      %v897 = vunpack.c.l.b16 %v857
      %v898 = vunpack.c.h.b16 %v857
      %v899 = vunpack.c.l.b16 %v858
      %v900 = vunpack.c.h.b16 %v858
      %v901 = vunpack.c.l.b16 %v859
      %v902 = vunpack.c.h.b16 %v859
      %v903 = vunpack.c.l.b16 %v860
      %v904 = vunpack.c.h.b16 %v860
      %v905 = vunpack.c.l.b16 %v861
      %v906 = vunpack.c.h.b16 %v861
      %v907 = vunpack.c.l.b16 %v862
      %v908 = vunpack.c.h.b16 %v862
      %v909 = vunpack.c.l.b16 %v863
      %v910 = vunpack.c.h.b16 %v863
      %v911 = vunpack.c.l.b16 %v864
      %v912 = vunpack.c.h.b16 %v864
      %v913 = vpack.c.b16 %v883, %v881
      %v914 = vpack.c.b16 %v884, %v882
      %v915 = vpack.c.b16 %v887, %v885
      %v916 = vpack.c.b16 %v888, %v886
      %v917 = vpack.c.b16 %v891, %v889
      %v918 = vpack.c.b16 %v892, %v890
      %v919 = vpack.c.b16 %v895, %v893
      %v920 = vpack.c.b16 %v896, %v894
      %v921 = vpack.c.b16 %v899, %v897
      %v922 = vpack.c.b16 %v900, %v898
      %v923 = vpack.c.b16 %v903, %v901
      %v924 = vpack.c.b16 %v904, %v902
      %v925 = vpack.c.b16 %v907, %v905
      %v926 = vpack.c.b16 %v908, %v906
      %v927 = vpack.c.b16 %v911, %v909
      %v928 = vpack.c.b16 %v912, %v910
      %v938 = vsel %vm498, %v914, 0
      %v941 = vsel %vm498, %v916, 0
      %v944 = vsel %vm498, %v918, 0
      %v947 = vsel %vm498, %v920, 0
      %v950 = vsel %vm498, %v922, 0
      %v953 = vsel %vm498, %v924, 0
      %v956 = vsel %vm498, %v926, 0
      %v959 = vsel %vm498, %v928, 0
      %961 = vmatprep.subr.bf16.mxu0 0
      %962 = vmatpush1.bf16.msra.mxu0 %v479
      %963 = vmatprep.subr.bf16.mxu0 0
      %964 = vmatpush1.bf16.msra.mxu0 %v480
      %965 = vmatprep.subr.bf16.mxu0 0
      %966 = vmatpush1.bf16.msra.mxu0 %v481
      %967 = vmatprep.subr.bf16.mxu0 0
      %968 = vmatpush1.bf16.msra.mxu0 %v482
      %969 = vmatprep.subr.bf16.mxu0 0
      %970 = vmatpush1.bf16.msra.mxu0 %v483
      %971 = vmatprep.subr.bf16.mxu0 0
      %972 = vmatpush1.bf16.msra.mxu0 %v484
      %973 = vmatprep.subr.bf16.mxu0 0
      %974 = vmatpush1.bf16.msra.mxu0 %v485
      %975 = vmatprep.subr.bf16.mxu0 0
      %976 = vmatpush1.bf16.msra.mxu0 %v486
      %977 = vmatprep.subr.bf16.mxu0 0
      %978 = vmatpush1.bf16.msra.mxu0 %v487
      %979 = vmatprep.subr.bf16.mxu0 0
      %980 = vmatpush1.bf16.msra.mxu0 %v525
      %981 = vmatprep.subr.bf16.mxu0 0
      %982 = vmatpush1.bf16.msra.mxu0 0
      %983 = vmatprep.subr.bf16.mxu0 0
      %984 = vmatpush1.bf16.msra.mxu0 0
      %985 = vmatprep.subr.bf16.mxu0 0
      %986 = vmatpush1.bf16.msra.mxu0 0
      %987 = vmatprep.subr.bf16.mxu0 0
      %988 = vmatpush1.bf16.msra.mxu0 0
      %989 = vmatprep.subr.bf16.mxu0 0
      %990 = vmatpush1.bf16.msra.mxu0 0
      %991 = vmatprep.subr.bf16.mxu0 0
      %992 = vmatpush1.bf16.msra.mxu0 0
      %993 = vmatprep.mubr.bf16.mxu0 %v938
      %994 = vmatmul.mubr.bf16.gmra.mrb[0].mxu0 %v913
      %v995 = vpop.f32.mrb[0].mxu0
      %v996 = vadd.f32 0.0, %v995
      %v997 = vpop.f32.mrb[0].mxu0
      %v998 = vpop.f32.mrb[0].mxu0
      %v999 = vadd.f32 0.0, %v998
      %v1000 = vpop.f32.mrb[0].mxu0
      %1001 = vmatprep.mubr.bf16.mxu0 %v941
      %1002 = vmatmul.mubr.bf16.gmra.mrb[0].mxu0 %v915
      %v1003 = vpop.f32.mrb[0].mxu0
      %v1004 = vadd.f32 0.0, %v1003
      %v1005 = vpop.f32.mrb[0].mxu0
      %v1006 = vpop.f32.mrb[0].mxu0
      %v1007 = vadd.f32 0.0, %v1006
      %v1008 = vpop.f32.mrb[0].mxu0
      %1009 = vmatprep.mubr.bf16.mxu0 %v944
      %1010 = vmatmul.mubr.bf16.gmra.mrb[0].mxu0 %v917
      %v1011 = vpop.f32.mrb[0].mxu0
      %v1012 = vadd.f32 0.0, %v1011
      %v1013 = vpop.f32.mrb[0].mxu0
      %v1014 = vpop.f32.mrb[0].mxu0
      %v1015 = vadd.f32 0.0, %v1014
      %v1016 = vpop.f32.mrb[0].mxu0
      %1017 = vmatprep.mubr.bf16.mxu0 %v947
      %1018 = vmatmul.mubr.bf16.gmra.mrb[0].mxu0 %v919
      %v1019 = vpop.f32.mrb[0].mxu0
      %v1020 = vadd.f32 0.0, %v1019
      %v1021 = vpop.f32.mrb[0].mxu0
      %v1022 = vpop.f32.mrb[0].mxu0
      %v1023 = vadd.f32 0.0, %v1022
      %v1024 = vpop.f32.mrb[0].mxu0
      %1025 = vmatprep.mubr.bf16.mxu0 %v950
      %1026 = vmatmul.mubr.bf16.gmra.mrb[0].mxu0 %v921
      %v1027 = vpop.f32.mrb[0].mxu0
      %v1028 = vadd.f32 0.0, %v1027
      %v1029 = vpop.f32.mrb[0].mxu0
      %v1030 = vpop.f32.mrb[0].mxu0
      %v1031 = vadd.f32 0.0, %v1030
      %v1032 = vpop.f32.mrb[0].mxu0
      %1033 = vmatprep.mubr.bf16.mxu0 %v953
      %1034 = vmatmul.mubr.bf16.gmra.mrb[0].mxu0 %v923
      %v1035 = vpop.f32.mrb[0].mxu0
      %v1036 = vadd.f32 0.0, %v1035
      %v1037 = vpop.f32.mrb[0].mxu0
      %v1038 = vpop.f32.mrb[0].mxu0
      %v1039 = vadd.f32 0.0, %v1038
      %v1040 = vpop.f32.mrb[0].mxu0
      %1041 = vmatprep.mubr.bf16.mxu0 %v956
      %1042 = vmatmul.mubr.bf16.gmra.mrb[0].mxu0 %v925
      %v1043 = vpop.f32.mrb[0].mxu0
      %v1044 = vadd.f32 0.0, %v1043
      %v1045 = vpop.f32.mrb[0].mxu0
      %v1046 = vpop.f32.mrb[0].mxu0
      %v1047 = vadd.f32 0.0, %v1046
      %v1048 = vpop.f32.mrb[0].mxu0
      %1049 = vmatprep.mubr.bf16.mxu0 %v959
      %1050 = vmatmul.mubr.bf16.gmra.mrb[0].mxu0 %v927
      %v1051 = vpop.f32.mrb[0].mxu0
      %v1052 = vadd.f32 0.0, %v1051
      %v1053 = vpop.f32.mrb[0].mxu0
      %v1054 = vpop.f32.mrb[0].mxu0
      %v1055 = vadd.f32 0.0, %v1054
      %v1056 = vpop.f32.mrb[0].mxu0
      %1057 = vdwg.mxu0
      %v1058 = vld [vmem:[%s325] sm:$0xff]
      %v1059 = vld [vmem:[%s325 + $0x8] sm:$0xff]
      %v1060 = vld [vmem:[%s325 + $0x10] sm:$0xff]
      %v1061 = vld [vmem:[%s325 + $0x18] sm:$0xff]
      %v1062 = vld [vmem:[%s325 + $0x20] sm:$0xff]
      %v1063 = vld [vmem:[%s325 + $0x28] sm:$0xff]
      %v1064 = vld [vmem:[%s325 + $0x30] sm:$0xff]
      %v1065 = vld [vmem:[%s325 + $0x38] sm:$0xff]
      %v1066 = vld [vmem:[%s325 + $0x40] sm:$0xff]
      %v1067 = vld [vmem:[%s325 + $0x48] sm:$0xff]
      %v1068 = vld [vmem:[%s325 + $0x50] sm:$0xff]
      %v1069 = vld [vmem:[%s325 + $0x58] sm:$0xff]
      %v1070 = vld [vmem:[%s325 + $0x60] sm:$0xff]
      %v1071 = vld [vmem:[%s325 + $0x68] sm:$0xff]
      %v1072 = vld [vmem:[%s325 + $0x70] sm:$0xff]
      %v1073 = vld [vmem:[%s325 + $0x78] sm:$0xff]
      %v1090 = vunpack.c.l.b16 %v1058
      %v1091 = vunpack.c.h.b16 %v1058
      %v1092 = vunpack.c.l.b16 %v1059
      %v1093 = vunpack.c.h.b16 %v1059
      %v1094 = vunpack.c.l.b16 %v1060
      %v1095 = vunpack.c.h.b16 %v1060
      %v1096 = vunpack.c.l.b16 %v1061
      %v1097 = vunpack.c.h.b16 %v1061
      %v1098 = vunpack.c.l.b16 %v1062
      %v1099 = vunpack.c.h.b16 %v1062
      %v1100 = vunpack.c.l.b16 %v1063
      %v1101 = vunpack.c.h.b16 %v1063
      %v1102 = vunpack.c.l.b16 %v1064
      %v1103 = vunpack.c.h.b16 %v1064
      %v1104 = vunpack.c.l.b16 %v1065
      %v1105 = vunpack.c.h.b16 %v1065
      %v1106 = vunpack.c.l.b16 %v1066
      %v1107 = vunpack.c.h.b16 %v1066
      %v1108 = vunpack.c.l.b16 %v1067
      %v1109 = vunpack.c.h.b16 %v1067
      %v1110 = vunpack.c.l.b16 %v1068
      %v1111 = vunpack.c.h.b16 %v1068
      %v1112 = vunpack.c.l.b16 %v1069
      %v1113 = vunpack.c.h.b16 %v1069
      %v1114 = vunpack.c.l.b16 %v1070
      %v1115 = vunpack.c.h.b16 %v1070
      %v1116 = vunpack.c.l.b16 %v1071
      %v1117 = vunpack.c.h.b16 %v1071
      %v1118 = vunpack.c.l.b16 %v1072
      %v1119 = vunpack.c.h.b16 %v1072
      %v1120 = vunpack.c.l.b16 %v1073
      %v1121 = vunpack.c.h.b16 %v1073
      %v1122 = vpack.c.b16 %v1092, %v1090
      %v1123 = vpack.c.b16 %v1093, %v1091
      %v1124 = vpack.c.b16 %v1096, %v1094
      %v1125 = vpack.c.b16 %v1097, %v1095
      %v1126 = vpack.c.b16 %v1100, %v1098
      %v1127 = vpack.c.b16 %v1101, %v1099
      %v1128 = vpack.c.b16 %v1104, %v1102
      %v1129 = vpack.c.b16 %v1105, %v1103
      %v1130 = vpack.c.b16 %v1108, %v1106
      %v1131 = vpack.c.b16 %v1109, %v1107
      %v1132 = vpack.c.b16 %v1112, %v1110
      %v1133 = vpack.c.b16 %v1113, %v1111
      %v1134 = vpack.c.b16 %v1116, %v1114
      %v1135 = vpack.c.b16 %v1117, %v1115
      %v1136 = vpack.c.b16 %v1120, %v1118
      %v1137 = vpack.c.b16 %v1121, %v1119
      %v1147 = vsel %vm498, %v1123, 0
      %v1150 = vsel %vm498, %v1125, 0
      %v1153 = vsel %vm498, %v1127, 0
      %v1156 = vsel %vm498, %v1129, 0
      %v1159 = vsel %vm498, %v1131, 0
      %v1162 = vsel %vm498, %v1133, 0
      %v1165 = vsel %vm498, %v1135, 0
      %v1168 = vsel %vm498, %v1137, 0
      %1170 = vmatprep.subr.bf16.mxu0 0
      %1171 = vmatpush1.bf16.msra.mxu0 %v479
      %1172 = vmatprep.subr.bf16.mxu0 0
      %1173 = vmatpush1.bf16.msra.mxu0 %v480
      %1174 = vmatprep.subr.bf16.mxu0 0
      %1175 = vmatpush1.bf16.msra.mxu0 %v481
      %1176 = vmatprep.subr.bf16.mxu0 0
      %1177 = vmatpush1.bf16.msra.mxu0 %v482
      %1178 = vmatprep.subr.bf16.mxu0 0
      %1179 = vmatpush1.bf16.msra.mxu0 %v483
      %1180 = vmatprep.subr.bf16.mxu0 0
      %1181 = vmatpush1.bf16.msra.mxu0 %v484
      %1182 = vmatprep.subr.bf16.mxu0 0
      %1183 = vmatpush1.bf16.msra.mxu0 %v485
      %1184 = vmatprep.subr.bf16.mxu0 0
      %1185 = vmatpush1.bf16.msra.mxu0 %v486
      %1186 = vmatprep.subr.bf16.mxu0 0
      %1187 = vmatpush1.bf16.msra.mxu0 %v487
      %1188 = vmatprep.subr.bf16.mxu0 0
      %1189 = vmatpush1.bf16.msra.mxu0 %v525
      %1190 = vmatprep.subr.bf16.mxu0 0
      %1191 = vmatpush1.bf16.msra.mxu0 0
      %1192 = vmatprep.subr.bf16.mxu0 0
      %1193 = vmatpush1.bf16.msra.mxu0 0
      %1194 = vmatprep.subr.bf16.mxu0 0
      %1195 = vmatpush1.bf16.msra.mxu0 0
      %1196 = vmatprep.subr.bf16.mxu0 0
      %1197 = vmatpush1.bf16.msra.mxu0 0
      %1198 = vmatprep.subr.bf16.mxu0 0
      %1199 = vmatpush1.bf16.msra.mxu0 0
      %1200 = vmatprep.subr.bf16.mxu0 0
      %1201 = vmatpush1.bf16.msra.mxu0 0
      %1202 = vmatprep.mubr.bf16.mxu0 %v1147
      %1203 = vmatmul.mubr.bf16.gmra.mrb[0].mxu0 %v1122
      %v1204 = vpop.f32.mrb[0].mxu0
      %v1205 = vadd.f32 0.0, %v1204
      %v1206 = vpop.f32.mrb[0].mxu0
      %v1207 = vpop.f32.mrb[0].mxu0
      %v1208 = vadd.f32 0.0, %v1207
      %v1209 = vpop.f32.mrb[0].mxu0
      %1210 = vmatprep.mubr.bf16.mxu0 %v1150
      %1211 = vmatmul.mubr.bf16.gmra.mrb[0].mxu0 %v1124
      %v1212 = vpop.f32.mrb[0].mxu0
      %v1213 = vadd.f32 0.0, %v1212
      %v1214 = vpop.f32.mrb[0].mxu0
      %v1215 = vpop.f32.mrb[0].mxu0
      %v1216 = vadd.f32 0.0, %v1215
      %v1217 = vpop.f32.mrb[0].mxu0
      %1218 = vmatprep.mubr.bf16.mxu0 %v1153
      %1219 = vmatmul.mubr.bf16.gmra.mrb[0].mxu0 %v1126
      %v1220 = vpop.f32.mrb[0].mxu0
      %v1221 = vadd.f32 0.0, %v1220
      %v1222 = vpop.f32.mrb[0].mxu0
      %v1223 = vpop.f32.mrb[0].mxu0
      %v1224 = vadd.f32 0.0, %v1223
      %v1225 = vpop.f32.mrb[0].mxu0
      %1226 = vmatprep.mubr.bf16.mxu0 %v1156
      %1227 = vmatmul.mubr.bf16.gmra.mrb[0].mxu0 %v1128
      %v1228 = vpop.f32.mrb[0].mxu0
      %v1229 = vadd.f32 0.0, %v1228
      %v1230 = vpop.f32.mrb[0].mxu0
      %v1231 = vpop.f32.mrb[0].mxu0
      %v1232 = vadd.f32 0.0, %v1231
      %v1233 = vpop.f32.mrb[0].mxu0
      %1234 = vmatprep.mubr.bf16.mxu0 %v1159
      %1235 = vmatmul.mubr.bf16.gmra.mrb[0].mxu0 %v1130
      %v1236 = vpop.f32.mrb[0].mxu0
      %v1237 = vadd.f32 0.0, %v1236
      %v1238 = vpop.f32.mrb[0].mxu0
      %v1239 = vpop.f32.mrb[0].mxu0
      %v1240 = vadd.f32 0.0, %v1239
      %v1241 = vpop.f32.mrb[0].mxu0
      %1242 = vmatprep.mubr.bf16.mxu0 %v1162
      %1243 = vmatmul.mubr.bf16.gmra.mrb[0].mxu0 %v1132
      %v1244 = vpop.f32.mrb[0].mxu0
      %v1245 = vadd.f32 0.0, %v1244
      %v1246 = vpop.f32.mrb[0].mxu0
      %v1247 = vpop.f32.mrb[0].mxu0
      %v1248 = vadd.f32 0.0, %v1247
      %v1249 = vpop.f32.mrb[0].mxu0
      %1250 = vmatprep.mubr.bf16.mxu0 %v1165
      %1251 = vmatmul.mubr.bf16.gmra.mrb[0].mxu0 %v1134
      %v1252 = vpop.f32.mrb[0].mxu0
      %v1253 = vadd.f32 0.0, %v1252
      %v1254 = vpop.f32.mrb[0].mxu0
      %v1255 = vpop.f32.mrb[0].mxu0
      %v1256 = vadd.f32 0.0, %v1255
      %v1257 = vpop.f32.mrb[0].mxu0
      %1258 = vmatprep.mubr.bf16.mxu0 %v1168
      %1259 = vmatmul.mubr.bf16.gmra.mrb[0].mxu0 %v1136
      %v1260 = vpop.f32.mrb[0].mxu0
      %v1261 = vadd.f32 0.0, %v1260
      %v1262 = vpop.f32.mrb[0].mxu0
      %v1263 = vpop.f32.mrb[0].mxu0
      %v1264 = vadd.f32 0.0, %v1263
      %v1265 = vpop.f32.mrb[0].mxu0
      %1266 = vdwg.mxu0
      %v1267 = vmax.f32 %v996, %v1205
      %v1268 = vmax.f32 %v999, %v1208
      %v1269 = vmax.f32 %v1004, %v1213
      %v1270 = vmax.f32 %v1007, %v1216
      %v1271 = vmax.f32 %v1012, %v1221
      %v1272 = vmax.f32 %v1015, %v1224
      %v1273 = vmax.f32 %v1020, %v1229
      %v1274 = vmax.f32 %v1023, %v1232
      %v1275 = vmax.f32 %v1028, %v1237
      %v1276 = vmax.f32 %v1031, %v1240
      %v1277 = vmax.f32 %v1036, %v1245
      %v1278 = vmax.f32 %v1039, %v1248
      %v1279 = vmax.f32 %v1044, %v1253
      %v1280 = vmax.f32 %v1047, %v1256
      %v1281 = vmax.f32 %v1052, %v1261
      %v1282 = vmax.f32 %v1055, %v1264
      %v1283 = vmax.f32 %v833, %v1267
      %v1284 = vmax.f32 %v834, %v1268
      %v1285 = vmax.f32 %v835, %v1269
      %v1286 = vmax.f32 %v836, %v1270
      %v1287 = vmax.f32 %v837, %v1271
      %v1288 = vmax.f32 %v838, %v1272
      %v1289 = vmax.f32 %v839, %v1273
      %v1290 = vmax.f32 %v840, %v1274
      %v1291 = vmax.f32 %v841, %v1275
      %v1292 = vmax.f32 %v842, %v1276
      %v1293 = vmax.f32 %v843, %v1277
      %v1294 = vmax.f32 %v844, %v1278
      %v1295 = vmax.f32 %v845, %v1279
      %v1296 = vmax.f32 %v846, %v1280
      %v1297 = vmax.f32 %v847, %v1281
      %v1298 = vmax.f32 %v848, %v1282
      %v1299 = vld [vmem:[%s5] sm:$0x1]
      %v1301 = vlaneseq
      %v1302 = vshrl.u32 %v1301, 7
      %v1303 = vsub.s32 0, %v1302
      %v1304 = vrot.slane %v1299, %v1303
      %v1306 = vadd.f32 %v1283, %v1304
      %v1307 = vadd.f32 %v1284, %v1304
      %v1308 = vadd.f32 %v1285, %v1304
      %v1309 = vadd.f32 %v1286, %v1304
      %v1310 = vadd.f32 %v1287, %v1304
      %v1311 = vadd.f32 %v1288, %v1304
      %v1312 = vadd.f32 %v1289, %v1304
      %v1313 = vadd.f32 %v1290, %v1304
      %v1314 = vadd.f32 %v1291, %v1304
      %v1315 = vadd.f32 %v1292, %v1304
      %v1316 = vadd.f32 %v1293, %v1304
      %v1317 = vadd.f32 %v1294, %v1304
      %v1318 = vadd.f32 %v1295, %v1304
      %v1319 = vadd.f32 %v1296, %v1304
      %v1320 = vadd.f32 %v1297, %v1304
      %v1321 = vadd.f32 %v1298, %v1304
      %v1322 = vmax.f32 %v1306, 0.0
      %v1323 = vmax.f32 %v1307, 0.0
      %v1324 = vmax.f32 %v1308, 0.0
      %v1325 = vmax.f32 %v1309, 0.0
      %v1326 = vmax.f32 %v1310, 0.0
      %v1327 = vmax.f32 %v1311, 0.0
      %v1328 = vmax.f32 %v1312, 0.0
      %v1329 = vmax.f32 %v1313, 0.0
      %v1330 = vmax.f32 %v1314, 0.0
      %v1331 = vmax.f32 %v1315, 0.0
      %v1332 = vmax.f32 %v1316, 0.0
      %v1333 = vmax.f32 %v1317, 0.0
      %v1334 = vmax.f32 %v1318, 0.0
      %v1335 = vmax.f32 %v1319, 0.0
      %v1336 = vmax.f32 %v1320, 0.0
      %v1337 = vmax.f32 %v1321, 0.0
      %vm1338 = vcmask 97280
      %1339 = vst.msk [vmem:[%s331] sm:$0xff] %vm1338, %v1322
      %1340 = vst.msk [vmem:[%s331 + $0x8] sm:$0xff] %vm1338, %v1323
      %1341 = vst.msk [vmem:[%s331 + $0x10] sm:$0xff] %vm1338, %v1324
      %1342 = vst.msk [vmem:[%s331 + $0x18] sm:$0xff] %vm1338, %v1325
      %1343 = vst.msk [vmem:[%s331 + $0x20] sm:$0xff] %vm1338, %v1326
      %1344 = vst.msk [vmem:[%s331 + $0x28] sm:$0xff] %vm1338, %v1327
      %1345 = vst.msk [vmem:[%s331 + $0x30] sm:$0xff] %vm1338, %v1328
      %1346 = vst.msk [vmem:[%s331 + $0x38] sm:$0xff] %vm1338, %v1329
      %1347 = vst.msk [vmem:[%s331 + $0x40] sm:$0xff] %vm1338, %v1330
      %1348 = vst.msk [vmem:[%s331 + $0x48] sm:$0xff] %vm1338, %v1331
      %1349 = vst.msk [vmem:[%s331 + $0x50] sm:$0xff] %vm1338, %v1332
      %1350 = vst.msk [vmem:[%s331 + $0x58] sm:$0xff] %vm1338, %v1333
      %1351 = vst.msk [vmem:[%s331 + $0x60] sm:$0xff] %vm1338, %v1334
      %1352 = vst.msk [vmem:[%s331 + $0x68] sm:$0xff] %vm1338, %v1335
      %1353 = vst.msk [vmem:[%s331 + $0x70] sm:$0xff] %vm1338, %v1336
      %1354 = vst.msk [vmem:[%s331 + $0x78] sm:$0xff] %vm1338, %v1337
      %s1355 = smul.u32 16, %s17
      %p1356 = scmp.lt.s32.totalorder %s1355, 31
      %s1357 = scalar_select %p1356, %s1355, 31
      %s1358 = smul.addr %s1357, 8
      %s1359 = scalar_lea.vmem %s6, %s1358
      // Predicated region
      $region45: #{net_forward.4} parent=43 // pred_check
        %p1360 = pneg %p181
      $region46: #{net_forward.4} parent=43 // pred_check_branch
        %1362 = sbr.rel (%p1360) target = $region48
      $region47: #{net_forward.4} parent=43 // pred_region
        %s1363 = smul.u32 16, %s17
      $region48: #{net_forward.4} parent=43 // pred_fallthru
        _
    $region44: #{net_forward.4} parent=5 // pred_fallthru
      _
    %p1364 = scmp.le.s32.totalorder 2, %s12
    // Predicated region
    $region49: #{net_forward.4} parent=5 // pred_check
      %p1365 = pneg %p1364
    $region50: #{net_forward.4} parent=5 // pred_check_branch
      %1367 = sbr.rel (%p1365) target = $region52
    $region51: #{net_forward.4} parent=5 // pred_region
      %s1368 = ssub.s32 %s12, 2
      // Predicated region
      $region53: #{net_forward.4} parent=51 // pred_check
        %p1369 = pneg %p187
      $region54: #{net_forward.4} parent=51 // pred_check_branch
        %1371 = sbr.rel (%p1369) target = $region56
      $region55: #{net_forward.4} parent=51 // pred_region
        %s1372 = smul.u32 16, %s18
        %p1373 = scmp.lt.s32.totalorder %s1372, 31
        %s1374 = scalar_select %p1373, %s1372, 31
        %s1375 = smul.addr %s1374, 8
        %s1376 = scalar_lea.vmem %s6, %s1375
      $region56: #{net_forward.4} parent=51 // pred_fallthru
        _
    $region52: #{net_forward.4} parent=5 // pred_fallthru
      _
  $region6: #{net_forward.4} parent=0 // loop_footer
    %s16 = sadd.s32 1, %s12
  $region7: #{net_forward.4} parent=0 // loop_footer_branch
    %11 = sbr.rel target = $region3
  $region8: #{net_forward.4} parent=0 // loop_exit
    _

// kernel: net_forward.5
$region0: #{net_forward.5}
  #allocation0 [shape = 'u32[]', space=smem, size = 0x4, offset = 0x4, fixed_abs, tag = 'smem constant byte address 0x4 - core index']
  #allocation1 [shape = 'u32[144,128]{1,0:T(1,128)}', space=vmem, size = 0x12000, scoped, tag = 'internal scratch']
  %s0 = inlined_call_operand.vmem [shape: bf16[16,1536], index: 0, kind: input, shape index: {}]
  %s1 = inlined_call_operand.vmem [shape: bf16[1536,1536], index: 1, kind: input, shape index: {}]
  %s2 = inlined_call_operand.vmem [shape: f32[1,1536], index: 2, kind: input, shape index: {}]
  %s3 = inlined_call_operand.vmem [shape: bf16[1536,512], index: 3, kind: input, shape index: {}]
  %s4 = inlined_call_operand.vmem [shape: f32[2,16,512], index: 4, kind: output, shape index: {}]
  %s5 = sld [smem:[#allocation0]]
  $region72: #{net_forward.5} parent=0
    _
  %s7 = ssub.s32 1, %s5
  %s8 = scalar_select 0, %s7, %s5
  $region1: #{net_forward.5} parent=0
    #allocation2 [shape = 'u8[4718592]{0}', space=vmem, size = 0x480000, scoped, tag = 'input window, operand 1']
    loop: start=0, step=1, limit=4
    $region2: #{net_forward.5} parent=1 // loop_pre_header
      _
    $region3: #{net_forward.5} parent=1 // loop_header
      %s10 = sphi 0, %s14
      %p11 = scmp.ge.s32.totalorder %s10, 4
      %s18 = sphi 0, %s18
      %s20 = sphi 0, %s18
      %s21 = sphi 0, %s20
      %s35 = sphi 0, %s21
      %s41 = sphi 0, %s43
      %s44 = sphi 0, %s41
      %s45 = sphi 0, %s44
      %s61 = sphi 0, %s45
      %s67 = sphi 0, %s69
      %s70 = sphi 0, %s67
      %s71 = sphi 0, %s70
      %s87 = sphi 0, %s71
      %s93 = sphi 0, %s95
      %s96 = sphi 0, %s93
      %s97 = sphi 0, %s96
      %s113 = sphi 0, %s97
      %s119 = sphi 0, %s121
      %s122 = sphi 0, %s119
      %s123 = sphi 0, %s122
      %s139 = sphi 0, %s123
    $region4: #{net_forward.5} parent=1 // loop_header_branch
      %13 = sbr.rel (%p11) target = $region8
    $region5: #{net_forward.5} parent=1 // loop_body
      %s15 = ssub.s32 %s10, 1
      %s16 = ssub.s32 %s10, 2
      %s17 = sadd.s32 %s10, 1
      %s19 = sadd.s32 %s18, 1
      %p22 = scmp.eq.s32.totalorder %s10, 1
      %p23 = scmp.ne.s32.totalorder %s18, %s20
      %p24 = scmp.eq.s32.totalorder %s10, 0
      %p25 = por %p23, %p24
      %p26 = scmp.ne.s32.totalorder %s18, %s20
      %p27 = scmp.eq.s32.totalorder %s15, 1
      %p28 = por %p26, %p27
      %p29 = scmp.ne.s32.totalorder %s20, %s21
      %p30 = scmp.eq.s32.totalorder %s15, 0
      %p31 = por %p29, %p30
      %p32 = scmp.ne.s32.totalorder %s20, %s21
      %p33 = scmp.eq.s32.totalorder %s16, 1
      %p34 = por %p32, %p33
      %p36 = scmp.ne.s32.totalorder %s21, %s35
      %p37 = scmp.eq.s32.totalorder %s16, 0
      %p38 = por %p36, %p37
      %s39 = ssub.s32 %s10, %s17
      %p40 = scmp.eq.s32.totalorder %s39, 0
      %s42 = sadd.s32 %s41, 1
      %s43 = scalar_select %p40, %s41, %s42
      %p46 = pneg %p40
      %p47 = scmp.eq.s32.totalorder %s10, 1
      %p48 = por %p46, %p47
      %p49 = scmp.ne.s32.totalorder %s41, %s44
      %p50 = scmp.eq.s32.totalorder %s10, 0
      %p51 = por %p49, %p50
      %p52 = scmp.ne.s32.totalorder %s41, %s44
      %p53 = scmp.eq.s32.totalorder %s15, 1
      %p54 = por %p52, %p53
      %p55 = scmp.ne.s32.totalorder %s44, %s45
      %p56 = scmp.eq.s32.totalorder %s15, 0
      %p57 = por %p55, %p56
      %p58 = scmp.ne.s32.totalorder %s44, %s45
      %p59 = scmp.eq.s32.totalorder %s16, 1
      %p60 = por %p58, %p59
      %p62 = scmp.ne.s32.totalorder %s45, %s61
      %p63 = scmp.eq.s32.totalorder %s16, 0
      %p64 = por %p62, %p63
      %s65 = ssub.s32 %s10, %s17
      %p66 = scmp.eq.s32.totalorder %s65, 0
      %s68 = sadd.s32 %s67, 1
      %s69 = scalar_select %p66, %s67, %s68
      %p72 = pneg %p66
      %p73 = scmp.eq.s32.totalorder %s10, 1
      %p74 = por %p72, %p73
      %p75 = scmp.ne.s32.totalorder %s67, %s70
      %p76 = scmp.eq.s32.totalorder %s10, 0
      %p77 = por %p75, %p76
      %p78 = scmp.ne.s32.totalorder %s67, %s70
      %p79 = scmp.eq.s32.totalorder %s15, 1
      %p80 = por %p78, %p79
      %p81 = scmp.ne.s32.totalorder %s70, %s71
      %p82 = scmp.eq.s32.totalorder %s15, 0
      %p83 = por %p81, %p82
      %p84 = scmp.ne.s32.totalorder %s70, %s71
      %p85 = scmp.eq.s32.totalorder %s16, 1
      %p86 = por %p84, %p85
      %p88 = scmp.ne.s32.totalorder %s71, %s87
      %p89 = scmp.eq.s32.totalorder %s16, 0
      %p90 = por %p88, %p89
      %s91 = ssub.s32 %s10, %s17
      %p92 = scmp.eq.s32.totalorder %s91, 0
      %s94 = sadd.s32 %s93, 1
      %s95 = scalar_select %p92, %s93, %s94
      %p98 = pneg %p92
      %p99 = scmp.eq.s32.totalorder %s10, 1
      %p100 = por %p98, %p99
      %p101 = scmp.ne.s32.totalorder %s93, %s96
      %p102 = scmp.eq.s32.totalorder %s10, 0
      %p103 = por %p101, %p102
      %p104 = scmp.ne.s32.totalorder %s93, %s96
      %p105 = scmp.eq.s32.totalorder %s15, 1
      %p106 = por %p104, %p105
      %p107 = scmp.ne.s32.totalorder %s96, %s97
      %p108 = scmp.eq.s32.totalorder %s15, 0
      %p109 = por %p107, %p108
      %p110 = scmp.ne.s32.totalorder %s96, %s97
      %p111 = scmp.eq.s32.totalorder %s16, 1
      %p112 = por %p110, %p111
      %p114 = scmp.ne.s32.totalorder %s97, %s113
      %p115 = scmp.eq.s32.totalorder %s16, 0
      %p116 = por %p114, %p115
      %s117 = ssub.s32 %s10, %s17
      %p118 = scmp.eq.s32.totalorder %s117, 0
      %s120 = sadd.s32 %s119, 1
      %s121 = scalar_select %p118, %s119, %s120
      %p124 = pneg %p118
      %p125 = scmp.eq.s32.totalorder %s10, 1
      %p126 = por %p124, %p125
      %p127 = scmp.ne.s32.totalorder %s119, %s122
      %p128 = scmp.eq.s32.totalorder %s10, 0
      %p129 = por %p127, %p128
      %p130 = scmp.ne.s32.totalorder %s119, %s122
      %p131 = scmp.eq.s32.totalorder %s15, 1
      %p132 = por %p130, %p131
      %p133 = scmp.ne.s32.totalorder %s122, %s123
      %p134 = scmp.eq.s32.totalorder %s15, 0
      %p135 = por %p133, %p134
      %p136 = scmp.ne.s32.totalorder %s122, %s123
      %p137 = scmp.eq.s32.totalorder %s16, 1
      %p138 = por %p136, %p137
      %p140 = scmp.ne.s32.totalorder %s123, %s139
      %p141 = scmp.eq.s32.totalorder %s16, 0
      %p142 = por %p140, %p141
      %p143 = scmp.le.s32.totalorder 1, %s10
      %p144 = scmp.lt.s32.totalorder %s10, 3
      %p145 = pnand %p143, %p144
      %p146 = pneg %p145
      // Predicated region
      $region9: #{net_forward.5} parent=5 // pred_check
        _
      $region10: #{net_forward.5} parent=5 // pred_check_branch
        %148 = sbr.rel (%p145) target = $region12
      $region11: #{net_forward.5} parent=5 // pred_region
        %s149 = ssub.s32 %s10, 1
        // Predicated region
        $region13: #{net_forward.5} parent=11 // pred_check
          %p150 = pneg %p31
        $region14: #{net_forward.5} parent=11 // pred_check_branch
          %152 = sbr.rel (%p150) target = $region16
        $region15: #{net_forward.5} parent=11 // pred_region
          _
        $region16: #{net_forward.5} parent=11 // pred_fallthru
          _
      $region12: #{net_forward.5} parent=5 // pred_fallthru
        _
      %p153 = scmp.lt.s32.totalorder %s10, 2
      // Predicated region
      $region17: #{net_forward.5} parent=5 // pred_check
        %p154 = pneg %p153
      $region18: #{net_forward.5} parent=5 // pred_check_branch
        %156 = sbr.rel (%p154) target = $region20
      $region19: #{net_forward.5} parent=5 // pred_region
        // Predicated region
        $region21: #{net_forward.5} parent=19 // pred_check
          %p157 = pneg %p51
        $region22: #{net_forward.5} parent=19 // pred_check_branch
          %159 = sbr.rel (%p157) target = $region24
        $region23: #{net_forward.5} parent=19 // pred_region
          %s160 = sand.u32 %s41, 1
          %s161 = sand.u32 %s41, 1
          %s162 = smul.addr %s161, 4608
          %s163 = scalar_lea.vmem [#allocation2], %s162
          %s164 = smul.u32 6, %s10
          %s165 = smul.addr %s164, 4
          %s166 = scalar_lea.vmem %s1, %s165
          // Predicated region
          $region25: #{net_forward.5} parent=23 // pred_check
            _
          $region26: #{net_forward.5} parent=23 // pred_check_branch
            %168 = sbr.rel (0) target = $region28
          $region27: #{net_forward.5} parent=23 // pred_region
            // Predicated region
            $region29: #{net_forward.5} parent=27 // pred_check
              _
            $region30: #{net_forward.5} parent=27 // pred_check_branch
              %170 = sbr.rel (0) target = $region32
            $region31: #{net_forward.5} parent=27 // pred_region
              loop: start=0, step=1, limit=1
              $region33: #{net_forward.5} parent=31 // loop_pre_header
                _
              $region34: #{net_forward.5} parent=31 // loop_header
                %s172 = sphi 0, %s176
                %p173 = scmp.ge.s32.totalorder %s172, 1
                %s177 = sphi %s166, %s166
                %s178 = sphi %s163, %s163
              $region35: #{net_forward.5} parent=31 // loop_header_branch
                %175 = sbr.rel (%p173) target = $region39
              $region36: #{net_forward.5} parent=31 // loop_body
                %v179 = vld [vmem:[%s177] sm:$0xff]
                %180 = vst [vmem:[%s178] sm:$0xff] %v179
                %v181 = vld [vmem:[%s177 + $0x8] sm:$0xff]
                %182 = vst [vmem:[%s178 + $0x8] sm:$0xff] %v181
                %v183 = vld [vmem:[%s177 + $0x10] sm:$0xff]
                %184 = vst [vmem:[%s178 + $0x10] sm:$0xff] %v183
                %v185 = vld [vmem:[%s177 + $0x30] sm:$0xff]
                %186 = vst [vmem:[%s178 + $0x18] sm:$0xff] %v185
                %v187 = vld [vmem:[%s177 + $0x38] sm:$0xff]
                %188 = vst [vmem:[%s178 + $0x20] sm:$0xff] %v187
                %v189 = vld [vmem:[%s177 + $0x40] sm:$0xff]
                %190 = vst [vmem:[%s178 + $0x28] sm:$0xff] %v189
                %v191 = vld [vmem:[%s177 + $0x60] sm:$0xff]
                %192 = vst [vmem:[%s178 + $0x30] sm:$0xff] %v191
                %v193 = vld [vmem:[%s177 + $0x68] sm:$0xff]
                %194 = vst [vmem:[%s178 + $0x38] sm:$0xff] %v193
                %v195 = vld [vmem:[%s177 + $0x70] sm:$0xff]
                %196 = vst [vmem:[%s178 + $0x40] sm:$0xff] %v195
                %v197 = vld [vmem:[%s177 + $0x90] sm:$0xff]
                %198 = vst [vmem:[%s178 + $0x48] sm:$0xff] %v197
                %v199 = vld [vmem:[%s177 + $0x98] sm:$0xff]
                %200 = vst [vmem:[%s178 + $0x50] sm:$0xff] %v199
                %v201 = vld [vmem:[%s177 + $0xa0] sm:$0xff]
                %202 = vst [vmem:[%s178 + $0x58] sm:$0xff] %v201
                %v203 = vld [vmem:[%s177 + $0xc0] sm:$0xff]
                %204 = vst [vmem:[%s178 + $0x60] sm:$0xff] %v203
                %v205 = vld [vmem:[%s177 + $0xc8] sm:$0xff]
                %206 = vst [vmem:[%s178 + $0x68] sm:$0xff] %v205
                %v207 = vld [vmem:[%s177 + $0xd0] sm:$0xff]
                %208 = vst [vmem:[%s178 + $0x70] sm:$0xff] %v207
                %v209 = vld [vmem:[%s177 + $0xf0] sm:$0xff]
                %210 = vst [vmem:[%s178 + $0x78] sm:$0xff] %v209
                %v211 = vld [vmem:[%s177 + $0xf8] sm:$0xff]
                %212 = vst [vmem:[%s178 + $0x80] sm:$0xff] %v211
                %v213 = vld [vmem:[%s177 + $0x100] sm:$0xff]
                %214 = vst [vmem:[%s178 + $0x88] sm:$0xff] %v213
                %v215 = vld [vmem:[%s177 + $0x120] sm:$0xff]
                %216 = vst [vmem:[%s178 + $0x90] sm:$0xff] %v215
                %v217 = vld [vmem:[%s177 + $0x128] sm:$0xff]
                %218 = vst [vmem:[%s178 + $0x98] sm:$0xff] %v217
                %v219 = vld [vmem:[%s177 + $0x130] sm:$0xff]
                %220 = vst [vmem:[%s178 + $0xa0] sm:$0xff] %v219
                %v221 = vld [vmem:[%s177 + $0x150] sm:$0xff]
                %222 = vst [vmem:[%s178 + $0xa8] sm:$0xff] %v221
                %v223 = vld [vmem:[%s177 + $0x158] sm:$0xff]
                %224 = vst [vmem:[%s178 + $0xb0] sm:$0xff] %v223
                %v225 = vld [vmem:[%s177 + $0x160] sm:$0xff]
                %226 = vst [vmem:[%s178 + $0xb8] sm:$0xff] %v225
                %v227 = vld [vmem:[%s177 + $0x180] sm:$0xff]
                %228 = vst [vmem:[%s178 + $0xc0] sm:$0xff] %v227
                %v229 = vld [vmem:[%s177 + $0x188] sm:$0xff]
                %230 = vst [vmem:[%s178 + $0xc8] sm:$0xff] %v229
                %v231 = vld [vmem:[%s177 + $0x190] sm:$0xff]
                %232 = vst [vmem:[%s178 + $0xd0] sm:$0xff] %v231
                %v233 = vld [vmem:[%s177 + $0x1b0] sm:$0xff]
                %234 = vst [vmem:[%s178 + $0xd8] sm:$0xff] %v233
                %v235 = vld [vmem:[%s177 + $0x1b8] sm:$0xff]
                %236 = vst [vmem:[%s178 + $0xe0] sm:$0xff] %v235
                %v237 = vld [vmem:[%s177 + $0x1c0] sm:$0xff]
                %238 = vst [vmem:[%s178 + $0xe8] sm:$0xff] %v237
                %v239 = vld [vmem:[%s177 + $0x1e0] sm:$0xff]
                %240 = vst [vmem:[%s178 + $0xf0] sm:$0xff] %v239
                %v241 = vld [vmem:[%s177 + $0x1e8] sm:$0xff]
                %242 = vst [vmem:[%s178 + $0xf8] sm:$0xff] %v241
                %v243 = vld [vmem:[%s177 + $0x1f0] sm:$0xff]
                %244 = vst [vmem:[%s178 + $0x100] sm:$0xff] %v243
                %v245 = vld [vmem:[%s177 + $0x210] sm:$0xff]
                %246 = vst [vmem:[%s178 + $0x108] sm:$0xff] %v245
                %v247 = vld [vmem:[%s177 + $0x218] sm:$0xff]
                %248 = vst [vmem:[%s178 + $0x110] sm:$0xff] %v247
                %v249 = vld [vmem:[%s177 + $0x220] sm:$0xff]
                %250 = vst [vmem:[%s178 + $0x118] sm:$0xff] %v249
                %v251 = vld [vmem:[%s177 + $0x240] sm:$0xff]
                %252 = vst [vmem:[%s178 + $0x120] sm:$0xff] %v251
                %v253 = vld [vmem:[%s177 + $0x248] sm:$0xff]
                %254 = vst [vmem:[%s178 + $0x128] sm:$0xff] %v253
                %v255 = vld [vmem:[%s177 + $0x250] sm:$0xff]
                %256 = vst [vmem:[%s178 + $0x130] sm:$0xff] %v255
                %v257 = vld [vmem:[%s177 + $0x270] sm:$0xff]
                %258 = vst [vmem:[%s178 + $0x138] sm:$0xff] %v257
                %v259 = vld [vmem:[%s177 + $0x278] sm:$0xff]
                %260 = vst [vmem:[%s178 + $0x140] sm:$0xff] %v259
                %v261 = vld [vmem:[%s177 + $0x280] sm:$0xff]
                %262 = vst [vmem:[%s178 + $0x148] sm:$0xff] %v261
                %v263 = vld [vmem:[%s177 + $0x2a0] sm:$0xff]
                %264 = vst [vmem:[%s178 + $0x150] sm:$0xff] %v263
                %v265 = vld [vmem:[%s177 + $0x2a8] sm:$0xff]
                %266 = vst [vmem:[%s178 + $0x158] sm:$0xff] %v265
                %v267 = vld [vmem:[%s177 + $0x2b0] sm:$0xff]
                %268 = vst [vmem:[%s178 + $0x160] sm:$0xff] %v267
                %v269 = vld [vmem:[%s177 + $0x2d0] sm:$0xff]
                %270 = vst [vmem:[%s178 + $0x168] sm:$0xff] %v269
                %v271 = vld [vmem:[%s177 + $0x2d8] sm:$0xff]
                %272 = vst [vmem:[%s178 + $0x170] sm:$0xff] %v271
                %v273 = vld [vmem:[%s177 + $0x2e0] sm:$0xff]
                %274 = vst [vmem:[%s178 + $0x178] sm:$0xff] %v273
                %v275 = vld [vmem:[%s177 + $0x300] sm:$0xff]
                %276 = vst [vmem:[%s178 + $0x180] sm:$0xff] %v275
                %v277 = vld [vmem:[%s177 + $0x308] sm:$0xff]
                %278 = vst [vmem:[%s178 + $0x188] sm:$0xff] %v277
                %v279 = vld [vmem:[%s177 + $0x310] sm:$0xff]
                %280 = vst [vmem:[%s178 + $0x190] sm:$0xff] %v279
                %v281 = vld [vmem:[%s177 + $0x330] sm:$0xff]
                %282 = vst [vmem:[%s178 + $0x198] sm:$0xff] %v281
                %v283 = vld [vmem:[%s177 + $0x338] sm:$0xff]
                %284 = vst [vmem:[%s178 + $0x1a0] sm:$0xff] %v283
                %v285 = vld [vmem:[%s177 + $0x340] sm:$0xff]
                %286 = vst [vmem:[%s178 + $0x1a8] sm:$0xff] %v285
                %v287 = vld [vmem:[%s177 + $0x360] sm:$0xff]
                %288 = vst [vmem:[%s178 + $0x1b0] sm:$0xff] %v287
                %v289 = vld [vmem:[%s177 + $0x368] sm:$0xff]
                %290 = vst [vmem:[%s178 + $0x1b8] sm:$0xff] %v289
                %v291 = vld [vmem:[%s177 + $0x370] sm:$0xff]
                %292 = vst [vmem:[%s178 + $0x1c0] sm:$0xff] %v291
                %v293 = vld [vmem:[%s177 + $0x390] sm:$0xff]
                %294 = vst [vmem:[%s178 + $0x1c8] sm:$0xff] %v293
                %v295 = vld [vmem:[%s177 + $0x398] sm:$0xff]
                %296 = vst [vmem:[%s178 + $0x1d0] sm:$0xff] %v295
                %v297 = vld [vmem:[%s177 + $0x3a0] sm:$0xff]
                %298 = vst [vmem:[%s178 + $0x1d8] sm:$0xff] %v297
                %v299 = vld [vmem:[%s177 + $0x3c0] sm:$0xff]
                %300 = vst [vmem:[%s178 + $0x1e0] sm:$0xff] %v299
                %v301 = vld [vmem:[%s177 + $0x3c8] sm:$0xff]
                %302 = vst [vmem:[%s178 + $0x1e8] sm:$0xff] %v301
                %v303 = vld [vmem:[%s177 + $0x3d0] sm:$0xff]
                %304 = vst [vmem:[%s178 + $0x1f0] sm:$0xff] %v303
                %v305 = vld [vmem:[%s177 + $0x3f0] sm:$0xff]
                %306 = vst [vmem:[%s178 + $0x1f8] sm:$0xff] %v305
                %v307 = vld [vmem:[%s177 + $0x3f8] sm:$0xff]
                %308 = vst [vmem:[%s178 + $0x200] sm:$0xff] %v307
                %v309 = vld [vmem:[%s177 + $0x400] sm:$0xff]
                %310 = vst [vmem:[%s178 + $0x208] sm:$0xff] %v309
                %v311 = vld [vmem:[%s177 + $0x420] sm:$0xff]
                %312 = vst [vmem:[%s178 + $0x210] sm:$0xff] %v311
                %v313 = vld [vmem:[%s177 + $0x428] sm:$0xff]
                %314 = vst [vmem:[%s178 + $0x218] sm:$0xff] %v313
                %v315 = vld [vmem:[%s177 + $0x430] sm:$0xff]
                %316 = vst [vmem:[%s178 + $0x220] sm:$0xff] %v315
                %v317 = vld [vmem:[%s177 + $0x450] sm:$0xff]
                %318 = vst [vmem:[%s178 + $0x228] sm:$0xff] %v317
                %v319 = vld [vmem:[%s177 + $0x458] sm:$0xff]
                %320 = vst [vmem:[%s178 + $0x230] sm:$0xff] %v319
                %v321 = vld [vmem:[%s177 + $0x460] sm:$0xff]
                %322 = vst [vmem:[%s178 + $0x238] sm:$0xff] %v321
                %v323 = vld [vmem:[%s177 + $0x480] sm:$0xff]
                %324 = vst [vmem:[%s178 + $0x240] sm:$0xff] %v323
                %v325 = vld [vmem:[%s177 + $0x488] sm:$0xff]
                %326 = vst [vmem:[%s178 + $0x248] sm:$0xff] %v325
                %v327 = vld [vmem:[%s177 + $0x490] sm:$0xff]
                %328 = vst [vmem:[%s178 + $0x250] sm:$0xff] %v327
                %v329 = vld [vmem:[%s177 + $0x4b0] sm:$0xff]
                %330 = vst [vmem:[%s178 + $0x258] sm:$0xff] %v329
                %v331 = vld [vmem:[%s177 + $0x4b8] sm:$0xff]
                %332 = vst [vmem:[%s178 + $0x260] sm:$0xff] %v331
                %v333 = vld [vmem:[%s177 + $0x4c0] sm:$0xff]
                %334 = vst [vmem:[%s178 + $0x268] sm:$0xff] %v333
                %v335 = vld [vmem:[%s177 + $0x4e0] sm:$0xff]
                %336 = vst [vmem:[%s178 + $0x270] sm:$0xff] %v335
                %v337 = vld [vmem:[%s177 + $0x4e8] sm:$0xff]
                %338 = vst [vmem:[%s178 + $0x278] sm:$0xff] %v337
                %v339 = vld [vmem:[%s177 + $0x4f0] sm:$0xff]
                %340 = vst [vmem:[%s178 + $0x280] sm:$0xff] %v339
                %v341 = vld [vmem:[%s177 + $0x510] sm:$0xff]
                %342 = vst [vmem:[%s178 + $0x288] sm:$0xff] %v341
                %v343 = vld [vmem:[%s177 + $0x518] sm:$0xff]
                %344 = vst [vmem:[%s178 + $0x290] sm:$0xff] %v343
                %v345 = vld [vmem:[%s177 + $0x520] sm:$0xff]
                %346 = vst [vmem:[%s178 + $0x298] sm:$0xff] %v345
                %v347 = vld [vmem:[%s177 + $0x540] sm:$0xff]
                %348 = vst [vmem:[%s178 + $0x2a0] sm:$0xff] %v347
                %v349 = vld [vmem:[%s177 + $0x548] sm:$0xff]
                %350 = vst [vmem:[%s178 + $0x2a8] sm:$0xff] %v349
                %v351 = vld [vmem:[%s177 + $0x550] sm:$0xff]
                %352 = vst [vmem:[%s178 + $0x2b0] sm:$0xff] %v351
                %v353 = vld [vmem:[%s177 + $0x570] sm:$0xff]
                %354 = vst [vmem:[%s178 + $0x2b8] sm:$0xff] %v353
                %v355 = vld [vmem:[%s177 + $0x578] sm:$0xff]
                %356 = vst [vmem:[%s178 + $0x2c0] sm:$0xff] %v355
                %v357 = vld [vmem:[%s177 + $0x580] sm:$0xff]
                %358 = vst [vmem:[%s178 + $0x2c8] sm:$0xff] %v357
                %v359 = vld [vmem:[%s177 + $0x5a0] sm:$0xff]
                %360 = vst [vmem:[%s178 + $0x2d0] sm:$0xff] %v359
                %v361 = vld [vmem:[%s177 + $0x5a8] sm:$0xff]
                %362 = vst [vmem:[%s178 + $0x2d8] sm:$0xff] %v361
                %v363 = vld [vmem:[%s177 + $0x5b0] sm:$0xff]
                %364 = vst [vmem:[%s178 + $0x2e0] sm:$0xff] %v363
                %v365 = vld [vmem:[%s177 + $0x5d0] sm:$0xff]
                %366 = vst [vmem:[%s178 + $0x2e8] sm:$0xff] %v365
                %v367 = vld [vmem:[%s177 + $0x5d8] sm:$0xff]
                %368 = vst [vmem:[%s178 + $0x2f0] sm:$0xff] %v367
                %v369 = vld [vmem:[%s177 + $0x5e0] sm:$0xff]
                %370 = vst [vmem:[%s178 + $0x2f8] sm:$0xff] %v369
                %v371 = vld [vmem:[%s177 + $0x600] sm:$0xff]
                %372 = vst [vmem:[%s178 + $0x300] sm:$0xff] %v371
                %v373 = vld [vmem:[%s177 + $0x608] sm:$0xff]
                %374 = vst [vmem:[%s178 + $0x308] sm:$0xff] %v373
                %v375 = vld [vmem:[%s177 + $0x610] sm:$0xff]
                %376 = vst [vmem:[%s178 + $0x310] sm:$0xff] %v375
                %v377 = vld [vmem:[%s177 + $0x630] sm:$0xff]
                %378 = vst [vmem:[%s178 + $0x318] sm:$0xff] %v377
                %v379 = vld [vmem:[%s177 + $0x638] sm:$0xff]
                %380 = vst [vmem:[%s178 + $0x320] sm:$0xff] %v379
                %v381 = vld [vmem:[%s177 + $0x640] sm:$0xff]
                %382 = vst [vmem:[%s178 + $0x328] sm:$0xff] %v381
                %v383 = vld [vmem:[%s177 + $0x660] sm:$0xff]
                %384 = vst [vmem:[%s178 + $0x330] sm:$0xff] %v383
                %v385 = vld [vmem:[%s177 + $0x668] sm:$0xff]
                %386 = vst [vmem:[%s178 + $0x338] sm:$0xff] %v385
                %v387 = vld [vmem:[%s177 + $0x670] sm:$0xff]
                %388 = vst [vmem:[%s178 + $0x340] sm:$0xff] %v387
                %v389 = vld [vmem:[%s177 + $0x690] sm:$0xff]
                %390 = vst [vmem:[%s178 + $0x348] sm:$0xff] %v389
                %v391 = vld [vmem:[%s177 + $0x698] sm:$0xff]
                %392 = vst [vmem:[%s178 + $0x350] sm:$0xff] %v391
                %v393 = vld [vmem:[%s177 + $0x6a0] sm:$0xff]
                %394 = vst [vmem:[%s178 + $0x358] sm:$0xff] %v393
                %v395 = vld [vmem:[%s177 + $0x6c0] sm:$0xff]
                %396 = vst [vmem:[%s178 + $0x360] sm:$0xff] %v395
                %v397 = vld [vmem:[%s177 + $0x6c8] sm:$0xff]
                %398 = vst [vmem:[%s178 + $0x368] sm:$0xff] %v397
                %v399 = vld [vmem:[%s177 + $0x6d0] sm:$0xff]
                %400 = vst [vmem:[%s178 + $0x370] sm:$0xff] %v399
                %v401 = vld [vmem:[%s177 + $0x6f0] sm:$0xff]
                %402 = vst [vmem:[%s178 + $0x378] sm:$0xff] %v401
                %v403 = vld [vmem:[%s177 + $0x6f8] sm:$0xff]
                %404 = vst [vmem:[%s178 + $0x380] sm:$0xff] %v403
                %v405 = vld [vmem:[%s177 + $0x700] sm:$0xff]
                %406 = vst [vmem:[%s178 + $0x388] sm:$0xff] %v405
                %v407 = vld [vmem:[%s177 + $0x720] sm:$0xff]
                %408 = vst [vmem:[%s178 + $0x390] sm:$0xff] %v407
                %v409 = vld [vmem:[%s177 + $0x728] sm:$0xff]
                %410 = vst [vmem:[%s178 + $0x398] sm:$0xff] %v409
                %v411 = vld [vmem:[%s177 + $0x730] sm:$0xff]
                %412 = vst [vmem:[%s178 + $0x3a0] sm:$0xff] %v411
                %v413 = vld [vmem:[%s177 + $0x750] sm:$0xff]
                %414 = vst [vmem:[%s178 + $0x3a8] sm:$0xff] %v413
                %v415 = vld [vmem:[%s177 + $0x758] sm:$0xff]
                %416 = vst [vmem:[%s178 + $0x3b0] sm:$0xff] %v415
                %v417 = vld [vmem:[%s177 + $0x760] sm:$0xff]
                %418 = vst [vmem:[%s178 + $0x3b8] sm:$0xff] %v417
                %v419 = vld [vmem:[%s177 + $0x780] sm:$0xff]
                %420 = vst [vmem:[%s178 + $0x3c0] sm:$0xff] %v419
                %v421 = vld [vmem:[%s177 + $0x788] sm:$0xff]
                %422 = vst [vmem:[%s178 + $0x3c8] sm:$0xff] %v421
                %v423 = vld [vmem:[%s177 + $0x790] sm:$0xff]
                %424 = vst [vmem:[%s178 + $0x3d0] sm:$0xff] %v423
                %v425 = vld [vmem:[%s177 + $0x7b0] sm:$0xff]
                %426 = vst [vmem:[%s178 + $0x3d8] sm:$0xff] %v425
                %v427 = vld [vmem:[%s177 + $0x7b8] sm:$0xff]
                %428 = vst [vmem:[%s178 + $0x3e0] sm:$0xff] %v427
                %v429 = vld [vmem:[%s177 + $0x7c0] sm:$0xff]
                %430 = vst [vmem:[%s178 + $0x3e8] sm:$0xff] %v429
                %v431 = vld [vmem:[%s177 + $0x7e0] sm:$0xff]
                %432 = vst [vmem:[%s178 + $0x3f0] sm:$0xff] %v431
                %v433 = vld [vmem:[%s177 + $0x7e8] sm:$0xff]
                %434 = vst [vmem:[%s178 + $0x3f8] sm:$0xff] %v433
                %v435 = vld [vmem:[%s177 + $0x7f0] sm:$0xff]
                %436 = vst [vmem:[%s178 + $0x400] sm:$0xff] %v435
                %v437 = vld [vmem:[%s177 + $0x810] sm:$0xff]
                %438 = vst [vmem:[%s178 + $0x408] sm:$0xff] %v437
                %v439 = vld [vmem:[%s177 + $0x818] sm:$0xff]
                %440 = vst [vmem:[%s178 + $0x410] sm:$0xff] %v439
                %v441 = vld [vmem:[%s177 + $0x820] sm:$0xff]
                %442 = vst [vmem:[%s178 + $0x418] sm:$0xff] %v441
                %v443 = vld [vmem:[%s177 + $0x840] sm:$0xff]
                %444 = vst [vmem:[%s178 + $0x420] sm:$0xff] %v443
                %v445 = vld [vmem:[%s177 + $0x848] sm:$0xff]
                %446 = vst [vmem:[%s178 + $0x428] sm:$0xff] %v445
                %v447 = vld [vmem:[%s177 + $0x850] sm:$0xff]
                %448 = vst [vmem:[%s178 + $0x430] sm:$0xff] %v447
                %v449 = vld [vmem:[%s177 + $0x870] sm:$0xff]
                %450 = vst [vmem:[%s178 + $0x438] sm:$0xff] %v449
                %v451 = vld [vmem:[%s177 + $0x878] sm:$0xff]
                %452 = vst [vmem:[%s178 + $0x440] sm:$0xff] %v451
                %v453 = vld [vmem:[%s177 + $0x880] sm:$0xff]
                %454 = vst [vmem:[%s178 + $0x448] sm:$0xff] %v453
                %v455 = vld [vmem:[%s177 + $0x8a0] sm:$0xff]
                %456 = vst [vmem:[%s178 + $0x450] sm:$0xff] %v455
                %v457 = vld [vmem:[%s177 + $0x8a8] sm:$0xff]
                %458 = vst [vmem:[%s178 + $0x458] sm:$0xff] %v457
                %v459 = vld [vmem:[%s177 + $0x8b0] sm:$0xff]
                %460 = vst [vmem:[%s178 + $0x460] sm:$0xff] %v459
                %v461 = vld [vmem:[%s177 + $0x8d0] sm:$0xff]
                %462 = vst [vmem:[%s178 + $0x468] sm:$0xff] %v461
                %v463 = vld [vmem:[%s177 + $0x8d8] sm:$0xff]
                %464 = vst [vmem:[%s178 + $0x470] sm:$0xff] %v463
                %v465 = vld [vmem:[%s177 + $0x8e0] sm:$0xff]
                %466 = vst [vmem:[%s178 + $0x478] sm:$0xff] %v465
                %v467 = vld [vmem:[%s177 + $0x900] sm:$0xff]
                %468 = vst [vmem:[%s178 + $0x480] sm:$0xff] %v467
                %v469 = vld [vmem:[%s177 + $0x908] sm:$0xff]
                %470 = vst [vmem:[%s178 + $0x488] sm:$0xff] %v469
                %v471 = vld [vmem:[%s177 + $0x910] sm:$0xff]
                %472 = vst [vmem:[%s178 + $0x490] sm:$0xff] %v471
                %v473 = vld [vmem:[%s177 + $0x930] sm:$0xff]
                %474 = vst [vmem:[%s178 + $0x498] sm:$0xff] %v473
                %v475 = vld [vmem:[%s177 + $0x938] sm:$0xff]
                %476 = vst [vmem:[%s178 + $0x4a0] sm:$0xff] %v475
                %v477 = vld [vmem:[%s177 + $0x940] sm:$0xff]
                %478 = vst [vmem:[%s178 + $0x4a8] sm:$0xff] %v477
                %v479 = vld [vmem:[%s177 + $0x960] sm:$0xff]
                %480 = vst [vmem:[%s178 + $0x4b0] sm:$0xff] %v479
                %v481 = vld [vmem:[%s177 + $0x968] sm:$0xff]
                %482 = vst [vmem:[%s178 + $0x4b8] sm:$0xff] %v481
                %v483 = vld [vmem:[%s177 + $0x970] sm:$0xff]
                %484 = vst [vmem:[%s178 + $0x4c0] sm:$0xff] %v483
                %v485 = vld [vmem:[%s177 + $0x990] sm:$0xff]
                %486 = vst [vmem:[%s178 + $0x4c8] sm:$0xff] %v485
                %v487 = vld [vmem:[%s177 + $0x998] sm:$0xff]
                %488 = vst [vmem:[%s178 + $0x4d0] sm:$0xff] %v487
                %v489 = vld [vmem:[%s177 + $0x9a0] sm:$0xff]
                %490 = vst [vmem:[%s178 + $0x4d8] sm:$0xff] %v489
                %v491 = vld [vmem:[%s177 + $0x9c0] sm:$0xff]
                %492 = vst [vmem:[%s178 + $0x4e0] sm:$0xff] %v491
                %v493 = vld [vmem:[%s177 + $0x9c8] sm:$0xff]
                %494 = vst [vmem:[%s178 + $0x4e8] sm:$0xff] %v493
                %v495 = vld [vmem:[%s177 + $0x9d0] sm:$0xff]
                %496 = vst [vmem:[%s178 + $0x4f0] sm:$0xff] %v495
                %v497 = vld [vmem:[%s177 + $0x9f0] sm:$0xff]
                %498 = vst [vmem:[%s178 + $0x4f8] sm:$0xff] %v497
                %v499 = vld [vmem:[%s177 + $0x9f8] sm:$0xff]
                %500 = vst [vmem:[%s178 + $0x500] sm:$0xff] %v499
                %v501 = vld [vmem:[%s177 + $0xa00] sm:$0xff]
                %502 = vst [vmem:[%s178 + $0x508] sm:$0xff] %v501
                %v503 = vld [vmem:[%s177 + $0xa20] sm:$0xff]
                %504 = vst [vmem:[%s178 + $0x510] sm:$0xff] %v503
                %v505 = vld [vmem:[%s177 + $0xa28] sm:$0xff]
                %506 = vst [vmem:[%s178 + $0x518] sm:$0xff] %v505
                %v507 = vld [vmem:[%s177 + $0xa30] sm:$0xff]
                %508 = vst [vmem:[%s178 + $0x520] sm:$0xff] %v507
                %v509 = vld [vmem:[%s177 + $0xa50] sm:$0xff]
                %510 = vst [vmem:[%s178 + $0x528] sm:$0xff] %v509
                %v511 = vld [vmem:[%s177 + $0xa58] sm:$0xff]
                %512 = vst [vmem:[%s178 + $0x530] sm:$0xff] %v511
                %v513 = vld [vmem:[%s177 + $0xa60] sm:$0xff]
                %514 = vst [vmem:[%s178 + $0x538] sm:$0xff] %v513
                %v515 = vld [vmem:[%s177 + $0xa80] sm:$0xff]
                %516 = vst [vmem:[%s178 + $0x540] sm:$0xff] %v515
                %v517 = vld [vmem:[%s177 + $0xa88] sm:$0xff]
                %518 = vst [vmem:[%s178 + $0x548] sm:$0xff] %v517
                %v519 = vld [vmem:[%s177 + $0xa90] sm:$0xff]
                %520 = vst [vmem:[%s178 + $0x550] sm:$0xff] %v519
                %v521 = vld [vmem:[%s177 + $0xab0] sm:$0xff]
                %522 = vst [vmem:[%s178 + $0x558] sm:$0xff] %v521
                %v523 = vld [vmem:[%s177 + $0xab8] sm:$0xff]
                %524 = vst [vmem:[%s178 + $0x560] sm:$0xff] %v523
                %v525 = vld [vmem:[%s177 + $0xac0] sm:$0xff]
                %526 = vst [vmem:[%s178 + $0x568] sm:$0xff] %v525
                %v527 = vld [vmem:[%s177 + $0xae0] sm:$0xff]
                %528 = vst [vmem:[%s178 + $0x570] sm:$0xff] %v527
                %v529 = vld [vmem:[%s177 + $0xae8] sm:$0xff]
                %530 = vst [vmem:[%s178 + $0x578] sm:$0xff] %v529
                %v531 = vld [vmem:[%s177 + $0xaf0] sm:$0xff]
                %532 = vst [vmem:[%s178 + $0x580] sm:$0xff] %v531
                %v533 = vld [vmem:[%s177 + $0xb10] sm:$0xff]
                %534 = vst [vmem:[%s178 + $0x588] sm:$0xff] %v533
                %v535 = vld [vmem:[%s177 + $0xb18] sm:$0xff]
                %536 = vst [vmem:[%s178 + $0x590] sm:$0xff] %v535
                %v537 = vld [vmem:[%s177 + $0xb20] sm:$0xff]
                %538 = vst [vmem:[%s178 + $0x598] sm:$0xff] %v537
                %v539 = vld [vmem:[%s177 + $0xb40] sm:$0xff]
                %540 = vst [vmem:[%s178 + $0x5a0] sm:$0xff] %v539
                %v541 = vld [vmem:[%s177 + $0xb48] sm:$0xff]
                %542 = vst [vmem:[%s178 + $0x5a8] sm:$0xff] %v541
                %v543 = vld [vmem:[%s177 + $0xb50] sm:$0xff]
                %544 = vst [vmem:[%s178 + $0x5b0] sm:$0xff] %v543
                %v545 = vld [vmem:[%s177 + $0xb70] sm:$0xff]
                %546 = vst [vmem:[%s178 + $0x5b8] sm:$0xff] %v545
                %v547 = vld [vmem:[%s177 + $0xb78] sm:$0xff]
                %548 = vst [vmem:[%s178 + $0x5c0] sm:$0xff] %v547
                %v549 = vld [vmem:[%s177 + $0xb80] sm:$0xff]
                %550 = vst [vmem:[%s178 + $0x5c8] sm:$0xff] %v549
                %v551 = vld [vmem:[%s177 + $0xba0] sm:$0xff]
                %552 = vst [vmem:[%s178 + $0x5d0] sm:$0xff] %v551
                %v553 = vld [vmem:[%s177 + $0xba8] sm:$0xff]
                %554 = vst [vmem:[%s178 + $0x5d8] sm:$0xff] %v553
                %v555 = vld [vmem:[%s177 + $0xbb0] sm:$0xff]
                %556 = vst [vmem:[%s178 + $0x5e0] sm:$0xff] %v555
                %v557 = vld [vmem:[%s177 + $0xbd0] sm:$0xff]
                %558 = vst [vmem:[%s178 + $0x5e8] sm:$0xff] %v557
                %v559 = vld [vmem:[%s177 + $0xbd8] sm:$0xff]
                %560 = vst [vmem:[%s178 + $0x5f0] sm:$0xff] %v559
                %v561 = vld [vmem:[%s177 + $0xbe0] sm:$0xff]
                %562 = vst [vmem:[%s178 + $0x5f8] sm:$0xff] %v561
                %v563 = vld [vmem:[%s177 + $0xc00] sm:$0xff]
                %564 = vst [vmem:[%s178 + $0x600] sm:$0xff] %v563
                %v565 = vld [vmem:[%s177 + $0xc08] sm:$0xff]
                %566 = vst [vmem:[%s178 + $0x608] sm:$0xff] %v565
                %v567 = vld [vmem:[%s177 + $0xc10] sm:$0xff]
                %568 = vst [vmem:[%s178 + $0x610] sm:$0xff] %v567
                %v569 = vld [vmem:[%s177 + $0xc30] sm:$0xff]
                %570 = vst [vmem:[%s178 + $0x618] sm:$0xff] %v569
                %v571 = vld [vmem:[%s177 + $0xc38] sm:$0xff]
                %572 = vst [vmem:[%s178 + $0x620] sm:$0xff] %v571
                %v573 = vld [vmem:[%s177 + $0xc40] sm:$0xff]
                %574 = vst [vmem:[%s178 + $0x628] sm:$0xff] %v573
                %v575 = vld [vmem:[%s177 + $0xc60] sm:$0xff]
                %576 = vst [vmem:[%s178 + $0x630] sm:$0xff] %v575
                %v577 = vld [vmem:[%s177 + $0xc68] sm:$0xff]
                %578 = vst [vmem:[%s178 + $0x638] sm:$0xff] %v577
                %v579 = vld [vmem:[%s177 + $0xc70] sm:$0xff]
                %580 = vst [vmem:[%s178 + $0x640] sm:$0xff] %v579
                %v581 = vld [vmem:[%s177 + $0xc90] sm:$0xff]
                %582 = vst [vmem:[%s178 + $0x648] sm:$0xff] %v581
                %v583 = vld [vmem:[%s177 + $0xc98] sm:$0xff]
                %584 = vst [vmem:[%s178 + $0x650] sm:$0xff] %v583
                %v585 = vld [vmem:[%s177 + $0xca0] sm:$0xff]
                %586 = vst [vmem:[%s178 + $0x658] sm:$0xff] %v585
                %v587 = vld [vmem:[%s177 + $0xcc0] sm:$0xff]
                %588 = vst [vmem:[%s178 + $0x660] sm:$0xff] %v587
                %v589 = vld [vmem:[%s177 + $0xcc8] sm:$0xff]
                %590 = vst [vmem:[%s178 + $0x668] sm:$0xff] %v589
                %v591 = vld [vmem:[%s177 + $0xcd0] sm:$0xff]
                %592 = vst [vmem:[%s178 + $0x670] sm:$0xff] %v591
                %v593 = vld [vmem:[%s177 + $0xcf0] sm:$0xff]
                %594 = vst [vmem:[%s178 + $0x678] sm:$0xff] %v593
                %v595 = vld [vmem:[%s177 + $0xcf8] sm:$0xff]
                %596 = vst [vmem:[%s178 + $0x680] sm:$0xff] %v595
                %v597 = vld [vmem:[%s177 + $0xd00] sm:$0xff]
                %598 = vst [vmem:[%s178 + $0x688] sm:$0xff] %v597
                %v599 = vld [vmem:[%s177 + $0xd20] sm:$0xff]
                %600 = vst [vmem:[%s178 + $0x690] sm:$0xff] %v599
                %v601 = vld [vmem:[%s177 + $0xd28] sm:$0xff]
                %602 = vst [vmem:[%s178 + $0x698] sm:$0xff] %v601
                %v603 = vld [vmem:[%s177 + $0xd30] sm:$0xff]
                %604 = vst [vmem:[%s178 + $0x6a0] sm:$0xff] %v603
                %v605 = vld [vmem:[%s177 + $0xd50] sm:$0xff]
                %606 = vst [vmem:[%s178 + $0x6a8] sm:$0xff] %v605
                %v607 = vld [vmem:[%s177 + $0xd58] sm:$0xff]
                %608 = vst [vmem:[%s178 + $0x6b0] sm:$0xff] %v607
                %v609 = vld [vmem:[%s177 + $0xd60] sm:$0xff]
                %610 = vst [vmem:[%s178 + $0x6b8] sm:$0xff] %v609
                %v611 = vld [vmem:[%s177 + $0xd80] sm:$0xff]
                %612 = vst [vmem:[%s178 + $0x6c0] sm:$0xff] %v611
                %v613 = vld [vmem:[%s177 + $0xd88] sm:$0xff]
                %614 = vst [vmem:[%s178 + $0x6c8] sm:$0xff] %v613
                %v615 = vld [vmem:[%s177 + $0xd90] sm:$0xff]
                %616 = vst [vmem:[%s178 + $0x6d0] sm:$0xff] %v615
                %v617 = vld [vmem:[%s177 + $0xdb0] sm:$0xff]
                %618 = vst [vmem:[%s178 + $0x6d8] sm:$0xff] %v617
                %v619 = vld [vmem:[%s177 + $0xdb8] sm:$0xff]
                %620 = vst [vmem:[%s178 + $0x6e0] sm:$0xff] %v619
                %v621 = vld [vmem:[%s177 + $0xdc0] sm:$0xff]
                %622 = vst [vmem:[%s178 + $0x6e8] sm:$0xff] %v621
                %v623 = vld [vmem:[%s177 + $0xde0] sm:$0xff]
                %624 = vst [vmem:[%s178 + $0x6f0] sm:$0xff] %v623
                %v625 = vld [vmem:[%s177 + $0xde8] sm:$0xff]
                %626 = vst [vmem:[%s178 + $0x6f8] sm:$0xff] %v625
                %v627 = vld [vmem:[%s177 + $0xdf0] sm:$0xff]
                %628 = vst [vmem:[%s178 + $0x700] sm:$0xff] %v627
                %v629 = vld [vmem:[%s177 + $0xe10] sm:$0xff]
                %630 = vst [vmem:[%s178 + $0x708] sm:$0xff] %v629
                %v631 = vld [vmem:[%s177 + $0xe18] sm:$0xff]
                %632 = vst [vmem:[%s178 + $0x710] sm:$0xff] %v631
                %v633 = vld [vmem:[%s177 + $0xe20] sm:$0xff]
                %634 = vst [vmem:[%s178 + $0x718] sm:$0xff] %v633
                %v635 = vld [vmem:[%s177 + $0xe40] sm:$0xff]
                %636 = vst [vmem:[%s178 + $0x720] sm:$0xff] %v635
                %v637 = vld [vmem:[%s177 + $0xe48] sm:$0xff]
                %638 = vst [vmem:[%s178 + $0x728] sm:$0xff] %v637
                %v639 = vld [vmem:[%s177 + $0xe50] sm:$0xff]
                %640 = vst [vmem:[%s178 + $0x730] sm:$0xff] %v639
                %v641 = vld [vmem:[%s177 + $0xe70] sm:$0xff]
                %642 = vst [vmem:[%s178 + $0x738] sm:$0xff] %v641
                %v643 = vld [vmem:[%s177 + $0xe78] sm:$0xff]
                %644 = vst [vmem:[%s178 + $0x740] sm:$0xff] %v643
                %v645 = vld [vmem:[%s177 + $0xe80] sm:$0xff]
                %646 = vst [vmem:[%s178 + $0x748] sm:$0xff] %v645
                %v647 = vld [vmem:[%s177 + $0xea0] sm:$0xff]
                %648 = vst [vmem:[%s178 + $0x750] sm:$0xff] %v647
                %v649 = vld [vmem:[%s177 + $0xea8] sm:$0xff]
                %650 = vst [vmem:[%s178 + $0x758] sm:$0xff] %v649
                %v651 = vld [vmem:[%s177 + $0xeb0] sm:$0xff]
                %652 = vst [vmem:[%s178 + $0x760] sm:$0xff] %v651
                %v653 = vld [vmem:[%s177 + $0xed0] sm:$0xff]
                %654 = vst [vmem:[%s178 + $0x768] sm:$0xff] %v653
                %v655 = vld [vmem:[%s177 + $0xed8] sm:$0xff]
                %656 = vst [vmem:[%s178 + $0x770] sm:$0xff] %v655
                %v657 = vld [vmem:[%s177 + $0xee0] sm:$0xff]
                %658 = vst [vmem:[%s178 + $0x778] sm:$0xff] %v657
                %v659 = vld [vmem:[%s177 + $0xf00] sm:$0xff]
                %660 = vst [vmem:[%s178 + $0x780] sm:$0xff] %v659
                %v661 = vld [vmem:[%s177 + $0xf08] sm:$0xff]
                %662 = vst [vmem:[%s178 + $0x788] sm:$0xff] %v661
                %v663 = vld [vmem:[%s177 + $0xf10] sm:$0xff]
                %664 = vst [vmem:[%s178 + $0x790] sm:$0xff] %v663
                %v665 = vld [vmem:[%s177 + $0xf30] sm:$0xff]
                %666 = vst [vmem:[%s178 + $0x798] sm:$0xff] %v665
                %v667 = vld [vmem:[%s177 + $0xf38] sm:$0xff]
                %668 = vst [vmem:[%s178 + $0x7a0] sm:$0xff] %v667
                %v669 = vld [vmem:[%s177 + $0xf40] sm:$0xff]
                %670 = vst [vmem:[%s178 + $0x7a8] sm:$0xff] %v669
                %v671 = vld [vmem:[%s177 + $0xf60] sm:$0xff]
                %672 = vst [vmem:[%s178 + $0x7b0] sm:$0xff] %v671
                %v673 = vld [vmem:[%s177 + $0xf68] sm:$0xff]
                %674 = vst [vmem:[%s178 + $0x7b8] sm:$0xff] %v673
                %v675 = vld [vmem:[%s177 + $0xf70] sm:$0xff]
                %676 = vst [vmem:[%s178 + $0x7c0] sm:$0xff] %v675
                %v677 = vld [vmem:[%s177 + $0xf90] sm:$0xff]
                %678 = vst [vmem:[%s178 + $0x7c8] sm:$0xff] %v677
                %v679 = vld [vmem:[%s177 + $0xf98] sm:$0xff]
                %680 = vst [vmem:[%s178 + $0x7d0] sm:$0xff] %v679
                %v681 = vld [vmem:[%s177 + $0xfa0] sm:$0xff]
                %682 = vst [vmem:[%s178 + $0x7d8] sm:$0xff] %v681
                %v683 = vld [vmem:[%s177 + $0xfc0] sm:$0xff]
                %684 = vst [vmem:[%s178 + $0x7e0] sm:$0xff] %v683
                %v685 = vld [vmem:[%s177 + $0xfc8] sm:$0xff]
                %686 = vst [vmem:[%s178 + $0x7e8] sm:$0xff] %v685
                %v687 = vld [vmem:[%s177 + $0xfd0] sm:$0xff]
                %688 = vst [vmem:[%s178 + $0x7f0] sm:$0xff] %v687
                %v689 = vld [vmem:[%s177 + $0xff0] sm:$0xff]
                %690 = vst [vmem:[%s178 + $0x7f8] sm:$0xff] %v689
                %v691 = vld [vmem:[%s177 + $0xff8] sm:$0xff]
                %692 = vst [vmem:[%s178 + $0x800] sm:$0xff] %v691
                %v693 = vld [vmem:[%s177 + $0x1000] sm:$0xff]
                %694 = vst [vmem:[%s178 + $0x808] sm:$0xff] %v693
                %v695 = vld [vmem:[%s177 + $0x1020] sm:$0xff]
                %696 = vst [vmem:[%s178 + $0x810] sm:$0xff] %v695
                %v697 = vld [vmem:[%s177 + $0x1028] sm:$0xff]
                %698 = vst [vmem:[%s178 + $0x818] sm:$0xff] %v697
                %v699 = vld [vmem:[%s177 + $0x1030] sm:$0xff]
                %700 = vst [vmem:[%s178 + $0x820] sm:$0xff] %v699
                %v701 = vld [vmem:[%s177 + $0x1050] sm:$0xff]
                %702 = vst [vmem:[%s178 + $0x828] sm:$0xff] %v701
                %v703 = vld [vmem:[%s177 + $0x1058] sm:$0xff]
                %704 = vst [vmem:[%s178 + $0x830] sm:$0xff] %v703
                %v705 = vld [vmem:[%s177 + $0x1060] sm:$0xff]
                %706 = vst [vmem:[%s178 + $0x838] sm:$0xff] %v705
                %v707 = vld [vmem:[%s177 + $0x1080] sm:$0xff]
                %708 = vst [vmem:[%s178 + $0x840] sm:$0xff] %v707
                %v709 = vld [vmem:[%s177 + $0x1088] sm:$0xff]
                %710 = vst [vmem:[%s178 + $0x848] sm:$0xff] %v709
                %v711 = vld [vmem:[%s177 + $0x1090] sm:$0xff]
                %712 = vst [vmem:[%s178 + $0x850] sm:$0xff] %v711
                %v713 = vld [vmem:[%s177 + $0x10b0] sm:$0xff]
                %714 = vst [vmem:[%s178 + $0x858] sm:$0xff] %v713
                %v715 = vld [vmem:[%s177 + $0x10b8] sm:$0xff]
                %716 = vst [vmem:[%s178 + $0x860] sm:$0xff] %v715
                %v717 = vld [vmem:[%s177 + $0x10c0] sm:$0xff]
                %718 = vst [vmem:[%s178 + $0x868] sm:$0xff] %v717
                %v719 = vld [vmem:[%s177 + $0x10e0] sm:$0xff]
                %720 = vst [vmem:[%s178 + $0x870] sm:$0xff] %v719
                %v721 = vld [vmem:[%s177 + $0x10e8] sm:$0xff]
                %722 = vst [vmem:[%s178 + $0x878] sm:$0xff] %v721
                %v723 = vld [vmem:[%s177 + $0x10f0] sm:$0xff]
                %724 = vst [vmem:[%s178 + $0x880] sm:$0xff] %v723
                %v725 = vld [vmem:[%s177 + $0x1110] sm:$0xff]
                %726 = vst [vmem:[%s178 + $0x888] sm:$0xff] %v725
                %v727 = vld [vmem:[%s177 + $0x1118] sm:$0xff]
                %728 = vst [vmem:[%s178 + $0x890] sm:$0xff] %v727
                %v729 = vld [vmem:[%s177 + $0x1120] sm:$0xff]
                %730 = vst [vmem:[%s178 + $0x898] sm:$0xff] %v729
                %v731 = vld [vmem:[%s177 + $0x1140] sm:$0xff]
                %732 = vst [vmem:[%s178 + $0x8a0] sm:$0xff] %v731
                %v733 = vld [vmem:[%s177 + $0x1148] sm:$0xff]
                %734 = vst [vmem:[%s178 + $0x8a8] sm:$0xff] %v733
                %v735 = vld [vmem:[%s177 + $0x1150] sm:$0xff]
                %736 = vst [vmem:[%s178 + $0x8b0] sm:$0xff] %v735
                %v737 = vld [vmem:[%s177 + $0x1170] sm:$0xff]
                %738 = vst [vmem:[%s178 + $0x8b8] sm:$0xff] %v737
                %v739 = vld [vmem:[%s177 + $0x1178] sm:$0xff]
                %740 = vst [vmem:[%s178 + $0x8c0] sm:$0xff] %v739
                %v741 = vld [vmem:[%s177 + $0x1180] sm:$0xff]
                %742 = vst [vmem:[%s178 + $0x8c8] sm:$0xff] %v741
                %v743 = vld [vmem:[%s177 + $0x11a0] sm:$0xff]
                %744 = vst [vmem:[%s178 + $0x8d0] sm:$0xff] %v743
                %v745 = vld [vmem:[%s177 + $0x11a8] sm:$0xff]
                %746 = vst [vmem:[%s178 + $0x8d8] sm:$0xff] %v745
                %v747 = vld [vmem:[%s177 + $0x11b0] sm:$0xff]
                %748 = vst [vmem:[%s178 + $0x8e0] sm:$0xff] %v747
                %v749 = vld [vmem:[%s177 + $0x11d0] sm:$0xff]
                %750 = vst [vmem:[%s178 + $0x8e8] sm:$0xff] %v749
                %v751 = vld [vmem:[%s177 + $0x11d8] sm:$0xff]
                %752 = vst [vmem:[%s178 + $0x8f0] sm:$0xff] %v751
                %v753 = vld [vmem:[%s177 + $0x11e0] sm:$0xff]
                %754 = vst [vmem:[%s178 + $0x8f8] sm:$0xff] %v753
                %v755 = vld [vmem:[%s177 + $0x1200] sm:$0xff]
                %756 = vst [vmem:[%s178 + $0x900] sm:$0xff] %v755
                %v757 = vld [vmem:[%s177 + $0x1208] sm:$0xff]
                %758 = vst [vmem:[%s178 + $0x908] sm:$0xff] %v757
                %v759 = vld [vmem:[%s177 + $0x1210] sm:$0xff]
                %760 = vst [vmem:[%s178 + $0x910] sm:$0xff] %v759
                %v761 = vld [vmem:[%s177 + $0x1230] sm:$0xff]
                %762 = vst [vmem:[%s178 + $0x918] sm:$0xff] %v761
                %v763 = vld [vmem:[%s177 + $0x1238] sm:$0xff]
                %764 = vst [vmem:[%s178 + $0x920] sm:$0xff] %v763
                %v765 = vld [vmem:[%s177 + $0x1240] sm:$0xff]
                %766 = vst [vmem:[%s178 + $0x928] sm:$0xff] %v765
                %v767 = vld [vmem:[%s177 + $0x1260] sm:$0xff]
                %768 = vst [vmem:[%s178 + $0x930] sm:$0xff] %v767
                %v769 = vld [vmem:[%s177 + $0x1268] sm:$0xff]
                %770 = vst [vmem:[%s178 + $0x938] sm:$0xff] %v769
                %v771 = vld [vmem:[%s177 + $0x1270] sm:$0xff]
                %772 = vst [vmem:[%s178 + $0x940] sm:$0xff] %v771
                %v773 = vld [vmem:[%s177 + $0x1290] sm:$0xff]
                %774 = vst [vmem:[%s178 + $0x948] sm:$0xff] %v773
                %v775 = vld [vmem:[%s177 + $0x1298] sm:$0xff]
                %776 = vst [vmem:[%s178 + $0x950] sm:$0xff] %v775
                %v777 = vld [vmem:[%s177 + $0x12a0] sm:$0xff]
                %778 = vst [vmem:[%s178 + $0x958] sm:$0xff] %v777
                %v779 = vld [vmem:[%s177 + $0x12c0] sm:$0xff]
                %780 = vst [vmem:[%s178 + $0x960] sm:$0xff] %v779
                %v781 = vld [vmem:[%s177 + $0x12c8] sm:$0xff]
                %782 = vst [vmem:[%s178 + $0x968] sm:$0xff] %v781
                %v783 = vld [vmem:[%s177 + $0x12d0] sm:$0xff]
                %784 = vst [vmem:[%s178 + $0x970] sm:$0xff] %v783
                %v785 = vld [vmem:[%s177 + $0x12f0] sm:$0xff]
                %786 = vst [vmem:[%s178 + $0x978] sm:$0xff] %v785
                %v787 = vld [vmem:[%s177 + $0x12f8] sm:$0xff]
                %788 = vst [vmem:[%s178 + $0x980] sm:$0xff] %v787
                %v789 = vld [vmem:[%s177 + $0x1300] sm:$0xff]
                %790 = vst [vmem:[%s178 + $0x988] sm:$0xff] %v789
                %v791 = vld [vmem:[%s177 + $0x1320] sm:$0xff]
                %792 = vst [vmem:[%s178 + $0x990] sm:$0xff] %v791
                %v793 = vld [vmem:[%s177 + $0x1328] sm:$0xff]
                %794 = vst [vmem:[%s178 + $0x998] sm:$0xff] %v793
                %v795 = vld [vmem:[%s177 + $0x1330] sm:$0xff]
                %796 = vst [vmem:[%s178 + $0x9a0] sm:$0xff] %v795
                %v797 = vld [vmem:[%s177 + $0x1350] sm:$0xff]
                %798 = vst [vmem:[%s178 + $0x9a8] sm:$0xff] %v797
                %v799 = vld [vmem:[%s177 + $0x1358] sm:$0xff]
                %800 = vst [vmem:[%s178 + $0x9b0] sm:$0xff] %v799
                %v801 = vld [vmem:[%s177 + $0x1360] sm:$0xff]
                %802 = vst [vmem:[%s178 + $0x9b8] sm:$0xff] %v801
                %v803 = vld [vmem:[%s177 + $0x1380] sm:$0xff]
                %804 = vst [vmem:[%s178 + $0x9c0] sm:$0xff] %v803
                %v805 = vld [vmem:[%s177 + $0x1388] sm:$0xff]
                %806 = vst [vmem:[%s178 + $0x9c8] sm:$0xff] %v805
                %v807 = vld [vmem:[%s177 + $0x1390] sm:$0xff]
                %808 = vst [vmem:[%s178 + $0x9d0] sm:$0xff] %v807
                %v809 = vld [vmem:[%s177 + $0x13b0] sm:$0xff]
                %810 = vst [vmem:[%s178 + $0x9d8] sm:$0xff] %v809
                %v811 = vld [vmem:[%s177 + $0x13b8] sm:$0xff]
                %812 = vst [vmem:[%s178 + $0x9e0] sm:$0xff] %v811
                %v813 = vld [vmem:[%s177 + $0x13c0] sm:$0xff]
                %814 = vst [vmem:[%s178 + $0x9e8] sm:$0xff] %v813
                %v815 = vld [vmem:[%s177 + $0x13e0] sm:$0xff]
                %816 = vst [vmem:[%s178 + $0x9f0] sm:$0xff] %v815
                %v817 = vld [vmem:[%s177 + $0x13e8] sm:$0xff]
                %818 = vst [vmem:[%s178 + $0x9f8] sm:$0xff] %v817
                %v819 = vld [vmem:[%s177 + $0x13f0] sm:$0xff]
                %820 = vst [vmem:[%s178 + $0xa00] sm:$0xff] %v819
                %v821 = vld [vmem:[%s177 + $0x1410] sm:$0xff]
                %822 = vst [vmem:[%s178 + $0xa08] sm:$0xff] %v821
                %v823 = vld [vmem:[%s177 + $0x1418] sm:$0xff]
                %824 = vst [vmem:[%s178 + $0xa10] sm:$0xff] %v823
                %v825 = vld [vmem:[%s177 + $0x1420] sm:$0xff]
                %826 = vst [vmem:[%s178 + $0xa18] sm:$0xff] %v825
                %v827 = vld [vmem:[%s177 + $0x1440] sm:$0xff]
                %828 = vst [vmem:[%s178 + $0xa20] sm:$0xff] %v827
                %v829 = vld [vmem:[%s177 + $0x1448] sm:$0xff]
                %830 = vst [vmem:[%s178 + $0xa28] sm:$0xff] %v829
                %v831 = vld [vmem:[%s177 + $0x1450] sm:$0xff]
                %832 = vst [vmem:[%s178 + $0xa30] sm:$0xff] %v831
                %v833 = vld [vmem:[%s177 + $0x1470] sm:$0xff]
                %834 = vst [vmem:[%s178 + $0xa38] sm:$0xff] %v833
                %v835 = vld [vmem:[%s177 + $0x1478] sm:$0xff]
                %836 = vst [vmem:[%s178 + $0xa40] sm:$0xff] %v835
                %v837 = vld [vmem:[%s177 + $0x1480] sm:$0xff]
                %838 = vst [vmem:[%s178 + $0xa48] sm:$0xff] %v837
                %v839 = vld [vmem:[%s177 + $0x14a0] sm:$0xff]
                %840 = vst [vmem:[%s178 + $0xa50] sm:$0xff] %v839
                %v841 = vld [vmem:[%s177 + $0x14a8] sm:$0xff]
                %842 = vst [vmem:[%s178 + $0xa58] sm:$0xff] %v841
                %v843 = vld [vmem:[%s177 + $0x14b0] sm:$0xff]
                %844 = vst [vmem:[%s178 + $0xa60] sm:$0xff] %v843
                %v845 = vld [vmem:[%s177 + $0x14d0] sm:$0xff]
                %846 = vst [vmem:[%s178 + $0xa68] sm:$0xff] %v845
                %v847 = vld [vmem:[%s177 + $0x14d8] sm:$0xff]
                %848 = vst [vmem:[%s178 + $0xa70] sm:$0xff] %v847
                %v849 = vld [vmem:[%s177 + $0x14e0] sm:$0xff]
                %850 = vst [vmem:[%s178 + $0xa78] sm:$0xff] %v849
                %v851 = vld [vmem:[%s177 + $0x1500] sm:$0xff]
                %852 = vst [vmem:[%s178 + $0xa80] sm:$0xff] %v851
                %v853 = vld [vmem:[%s177 + $0x1508] sm:$0xff]
                %854 = vst [vmem:[%s178 + $0xa88] sm:$0xff] %v853
                %v855 = vld [vmem:[%s177 + $0x1510] sm:$0xff]
                %856 = vst [vmem:[%s178 + $0xa90] sm:$0xff] %v855
                %v857 = vld [vmem:[%s177 + $0x1530] sm:$0xff]
                %858 = vst [vmem:[%s178 + $0xa98] sm:$0xff] %v857
                %v859 = vld [vmem:[%s177 + $0x1538] sm:$0xff]
                %860 = vst [vmem:[%s178 + $0xaa0] sm:$0xff] %v859
                %v861 = vld [vmem:[%s177 + $0x1540] sm:$0xff]
                %862 = vst [vmem:[%s178 + $0xaa8] sm:$0xff] %v861
                %v863 = vld [vmem:[%s177 + $0x1560] sm:$0xff]
                %864 = vst [vmem:[%s178 + $0xab0] sm:$0xff] %v863
                %v865 = vld [vmem:[%s177 + $0x1568] sm:$0xff]
                %866 = vst [vmem:[%s178 + $0xab8] sm:$0xff] %v865
                %v867 = vld [vmem:[%s177 + $0x1570] sm:$0xff]
                %868 = vst [vmem:[%s178 + $0xac0] sm:$0xff] %v867
                %v869 = vld [vmem:[%s177 + $0x1590] sm:$0xff]
                %870 = vst [vmem:[%s178 + $0xac8] sm:$0xff] %v869
                %v871 = vld [vmem:[%s177 + $0x1598] sm:$0xff]
                %872 = vst [vmem:[%s178 + $0xad0] sm:$0xff] %v871
                %v873 = vld [vmem:[%s177 + $0x15a0] sm:$0xff]
                %874 = vst [vmem:[%s178 + $0xad8] sm:$0xff] %v873
                %v875 = vld [vmem:[%s177 + $0x15c0] sm:$0xff]
                %876 = vst [vmem:[%s178 + $0xae0] sm:$0xff] %v875
                %v877 = vld [vmem:[%s177 + $0x15c8] sm:$0xff]
                %878 = vst [vmem:[%s178 + $0xae8] sm:$0xff] %v877
                %v879 = vld [vmem:[%s177 + $0x15d0] sm:$0xff]
                %880 = vst [vmem:[%s178 + $0xaf0] sm:$0xff] %v879
                %v881 = vld [vmem:[%s177 + $0x15f0] sm:$0xff]
                %882 = vst [vmem:[%s178 + $0xaf8] sm:$0xff] %v881
                %v883 = vld [vmem:[%s177 + $0x15f8] sm:$0xff]
                %884 = vst [vmem:[%s178 + $0xb00] sm:$0xff] %v883
                %v885 = vld [vmem:[%s177 + $0x1600] sm:$0xff]
                %886 = vst [vmem:[%s178 + $0xb08] sm:$0xff] %v885
                %v887 = vld [vmem:[%s177 + $0x1620] sm:$0xff]
                %888 = vst [vmem:[%s178 + $0xb10] sm:$0xff] %v887
                %v889 = vld [vmem:[%s177 + $0x1628] sm:$0xff]
                %890 = vst [vmem:[%s178 + $0xb18] sm:$0xff] %v889
                %v891 = vld [vmem:[%s177 + $0x1630] sm:$0xff]
                %892 = vst [vmem:[%s178 + $0xb20] sm:$0xff] %v891
                %v893 = vld [vmem:[%s177 + $0x1650] sm:$0xff]
                %894 = vst [vmem:[%s178 + $0xb28] sm:$0xff] %v893
                %v895 = vld [vmem:[%s177 + $0x1658] sm:$0xff]
                %896 = vst [vmem:[%s178 + $0xb30] sm:$0xff] %v895
                %v897 = vld [vmem:[%s177 + $0x1660] sm:$0xff]
                %898 = vst [vmem:[%s178 + $0xb38] sm:$0xff] %v897
                %v899 = vld [vmem:[%s177 + $0x1680] sm:$0xff]
                %900 = vst [vmem:[%s178 + $0xb40] sm:$0xff] %v899
                %v901 = vld [vmem:[%s177 + $0x1688] sm:$0xff]
                %902 = vst [vmem:[%s178 + $0xb48] sm:$0xff] %v901
                %v903 = vld [vmem:[%s177 + $0x1690] sm:$0xff]
                %904 = vst [vmem:[%s178 + $0xb50] sm:$0xff] %v903
                %v905 = vld [vmem:[%s177 + $0x16b0] sm:$0xff]
                %906 = vst [vmem:[%s178 + $0xb58] sm:$0xff] %v905
                %v907 = vld [vmem:[%s177 + $0x16b8] sm:$0xff]
                %908 = vst [vmem:[%s178 + $0xb60] sm:$0xff] %v907
                %v909 = vld [vmem:[%s177 + $0x16c0] sm:$0xff]
                %910 = vst [vmem:[%s178 + $0xb68] sm:$0xff] %v909
                %v911 = vld [vmem:[%s177 + $0x16e0] sm:$0xff]
                %912 = vst [vmem:[%s178 + $0xb70] sm:$0xff] %v911
                %v913 = vld [vmem:[%s177 + $0x16e8] sm:$0xff]
                %914 = vst [vmem:[%s178 + $0xb78] sm:$0xff] %v913
                %v915 = vld [vmem:[%s177 + $0x16f0] sm:$0xff]
                %916 = vst [vmem:[%s178 + $0xb80] sm:$0xff] %v915
                %v917 = vld [vmem:[%s177 + $0x1710] sm:$0xff]
                %918 = vst [vmem:[%s178 + $0xb88] sm:$0xff] %v917
                %v919 = vld [vmem:[%s177 + $0x1718] sm:$0xff]
                %920 = vst [vmem:[%s178 + $0xb90] sm:$0xff] %v919
                %v921 = vld [vmem:[%s177 + $0x1720] sm:$0xff]
                %922 = vst [vmem:[%s178 + $0xb98] sm:$0xff] %v921
                %v923 = vld [vmem:[%s177 + $0x1740] sm:$0xff]
                %924 = vst [vmem:[%s178 + $0xba0] sm:$0xff] %v923
                %v925 = vld [vmem:[%s177 + $0x1748] sm:$0xff]
                %926 = vst [vmem:[%s178 + $0xba8] sm:$0xff] %v925
                %v927 = vld [vmem:[%s177 + $0x1750] sm:$0xff]
                %928 = vst [vmem:[%s178 + $0xbb0] sm:$0xff] %v927
                %v929 = vld [vmem:[%s177 + $0x1770] sm:$0xff]
                %930 = vst [vmem:[%s178 + $0xbb8] sm:$0xff] %v929
                %v931 = vld [vmem:[%s177 + $0x1778] sm:$0xff]
                %932 = vst [vmem:[%s178 + $0xbc0] sm:$0xff] %v931
                %v933 = vld [vmem:[%s177 + $0x1780] sm:$0xff]
                %934 = vst [vmem:[%s178 + $0xbc8] sm:$0xff] %v933
                %v935 = vld [vmem:[%s177 + $0x17a0] sm:$0xff]
                %936 = vst [vmem:[%s178 + $0xbd0] sm:$0xff] %v935
                %v937 = vld [vmem:[%s177 + $0x17a8] sm:$0xff]
                %938 = vst [vmem:[%s178 + $0xbd8] sm:$0xff] %v937
                %v939 = vld [vmem:[%s177 + $0x17b0] sm:$0xff]
                %940 = vst [vmem:[%s178 + $0xbe0] sm:$0xff] %v939
                %v941 = vld [vmem:[%s177 + $0x17d0] sm:$0xff]
                %942 = vst [vmem:[%s178 + $0xbe8] sm:$0xff] %v941
                %v943 = vld [vmem:[%s177 + $0x17d8] sm:$0xff]
                %944 = vst [vmem:[%s178 + $0xbf0] sm:$0xff] %v943
                %v945 = vld [vmem:[%s177 + $0x17e0] sm:$0xff]
                %946 = vst [vmem:[%s178 + $0xbf8] sm:$0xff] %v945
                %v947 = vld [vmem:[%s177 + $0x1800] sm:$0xff]
                %948 = vst [vmem:[%s178 + $0xc00] sm:$0xff] %v947
                %v949 = vld [vmem:[%s177 + $0x1808] sm:$0xff]
                %950 = vst [vmem:[%s178 + $0xc08] sm:$0xff] %v949
                %v951 = vld [vmem:[%s177 + $0x1810] sm:$0xff]
                %952 = vst [vmem:[%s178 + $0xc10] sm:$0xff] %v951
                %v953 = vld [vmem:[%s177 + $0x1830] sm:$0xff]
                %954 = vst [vmem:[%s178 + $0xc18] sm:$0xff] %v953
                %v955 = vld [vmem:[%s177 + $0x1838] sm:$0xff]
                %956 = vst [vmem:[%s178 + $0xc20] sm:$0xff] %v955
                %v957 = vld [vmem:[%s177 + $0x1840] sm:$0xff]
                %958 = vst [vmem:[%s178 + $0xc28] sm:$0xff] %v957
                %v959 = vld [vmem:[%s177 + $0x1860] sm:$0xff]
                %960 = vst [vmem:[%s178 + $0xc30] sm:$0xff] %v959
                %v961 = vld [vmem:[%s177 + $0x1868] sm:$0xff]
                %962 = vst [vmem:[%s178 + $0xc38] sm:$0xff] %v961
                %v963 = vld [vmem:[%s177 + $0x1870] sm:$0xff]
                %964 = vst [vmem:[%s178 + $0xc40] sm:$0xff] %v963
                %v965 = vld [vmem:[%s177 + $0x1890] sm:$0xff]
                %966 = vst [vmem:[%s178 + $0xc48] sm:$0xff] %v965
                %v967 = vld [vmem:[%s177 + $0x1898] sm:$0xff]
                %968 = vst [vmem:[%s178 + $0xc50] sm:$0xff] %v967
                %v969 = vld [vmem:[%s177 + $0x18a0] sm:$0xff]
                %970 = vst [vmem:[%s178 + $0xc58] sm:$0xff] %v969
                %v971 = vld [vmem:[%s177 + $0x18c0] sm:$0xff]
                %972 = vst [vmem:[%s178 + $0xc60] sm:$0xff] %v971
                %v973 = vld [vmem:[%s177 + $0x18c8] sm:$0xff]
                %974 = vst [vmem:[%s178 + $0xc68] sm:$0xff] %v973
                %v975 = vld [vmem:[%s177 + $0x18d0] sm:$0xff]
                %976 = vst [vmem:[%s178 + $0xc70] sm:$0xff] %v975
                %v977 = vld [vmem:[%s177 + $0x18f0] sm:$0xff]
                %978 = vst [vmem:[%s178 + $0xc78] sm:$0xff] %v977
                %v979 = vld [vmem:[%s177 + $0x18f8] sm:$0xff]
                %980 = vst [vmem:[%s178 + $0xc80] sm:$0xff] %v979
                %v981 = vld [vmem:[%s177 + $0x1900] sm:$0xff]
                %982 = vst [vmem:[%s178 + $0xc88] sm:$0xff] %v981
                %v983 = vld [vmem:[%s177 + $0x1920] sm:$0xff]
                %984 = vst [vmem:[%s178 + $0xc90] sm:$0xff] %v983
                %v985 = vld [vmem:[%s177 + $0x1928] sm:$0xff]
                %986 = vst [vmem:[%s178 + $0xc98] sm:$0xff] %v985
                %v987 = vld [vmem:[%s177 + $0x1930] sm:$0xff]
                %988 = vst [vmem:[%s178 + $0xca0] sm:$0xff] %v987
                %v989 = vld [vmem:[%s177 + $0x1950] sm:$0xff]
                %990 = vst [vmem:[%s178 + $0xca8] sm:$0xff] %v989
                %v991 = vld [vmem:[%s177 + $0x1958] sm:$0xff]
                %992 = vst [vmem:[%s178 + $0xcb0] sm:$0xff] %v991
                %v993 = vld [vmem:[%s177 + $0x1960] sm:$0xff]
                %994 = vst [vmem:[%s178 + $0xcb8] sm:$0xff] %v993
                %v995 = vld [vmem:[%s177 + $0x1980] sm:$0xff]
                %996 = vst [vmem:[%s178 + $0xcc0] sm:$0xff] %v995
                %v997 = vld [vmem:[%s177 + $0x1988] sm:$0xff]
                %998 = vst [vmem:[%s178 + $0xcc8] sm:$0xff] %v997
                %v999 = vld [vmem:[%s177 + $0x1990] sm:$0xff]
                %1000 = vst [vmem:[%s178 + $0xcd0] sm:$0xff] %v999
                %v1001 = vld [vmem:[%s177 + $0x19b0] sm:$0xff]
                %1002 = vst [vmem:[%s178 + $0xcd8] sm:$0xff] %v1001
                %v1003 = vld [vmem:[%s177 + $0x19b8] sm:$0xff]
                %1004 = vst [vmem:[%s178 + $0xce0] sm:$0xff] %v1003
                %v1005 = vld [vmem:[%s177 + $0x19c0] sm:$0xff]
                %1006 = vst [vmem:[%s178 + $0xce8] sm:$0xff] %v1005
                %v1007 = vld [vmem:[%s177 + $0x19e0] sm:$0xff]
                %1008 = vst [vmem:[%s178 + $0xcf0] sm:$0xff] %v1007
                %v1009 = vld [vmem:[%s177 + $0x19e8] sm:$0xff]
                %1010 = vst [vmem:[%s178 + $0xcf8] sm:$0xff] %v1009
                %v1011 = vld [vmem:[%s177 + $0x19f0] sm:$0xff]
                %1012 = vst [vmem:[%s178 + $0xd00] sm:$0xff] %v1011
                %v1013 = vld [vmem:[%s177 + $0x1a10] sm:$0xff]
                %1014 = vst [vmem:[%s178 + $0xd08] sm:$0xff] %v1013
                %v1015 = vld [vmem:[%s177 + $0x1a18] sm:$0xff]
                %1016 = vst [vmem:[%s178 + $0xd10] sm:$0xff] %v1015
                %v1017 = vld [vmem:[%s177 + $0x1a20] sm:$0xff]
                %1018 = vst [vmem:[%s178 + $0xd18] sm:$0xff] %v1017
                %v1019 = vld [vmem:[%s177 + $0x1a40] sm:$0xff]
                %1020 = vst [vmem:[%s178 + $0xd20] sm:$0xff] %v1019
                %v1021 = vld [vmem:[%s177 + $0x1a48] sm:$0xff]
                %1022 = vst [vmem:[%s178 + $0xd28] sm:$0xff] %v1021
                %v1023 = vld [vmem:[%s177 + $0x1a50] sm:$0xff]
                %1024 = vst [vmem:[%s178 + $0xd30] sm:$0xff] %v1023
                %v1025 = vld [vmem:[%s177 + $0x1a70] sm:$0xff]
                %1026 = vst [vmem:[%s178 + $0xd38] sm:$0xff] %v1025
                %v1027 = vld [vmem:[%s177 + $0x1a78] sm:$0xff]
                %1028 = vst [vmem:[%s178 + $0xd40] sm:$0xff] %v1027
                %v1029 = vld [vmem:[%s177 + $0x1a80] sm:$0xff]
                %1030 = vst [vmem:[%s178 + $0xd48] sm:$0xff] %v1029
                %v1031 = vld [vmem:[%s177 + $0x1aa0] sm:$0xff]
                %1032 = vst [vmem:[%s178 + $0xd50] sm:$0xff] %v1031
                %v1033 = vld [vmem:[%s177 + $0x1aa8] sm:$0xff]
                %1034 = vst [vmem:[%s178 + $0xd58] sm:$0xff] %v1033
                %v1035 = vld [vmem:[%s177 + $0x1ab0] sm:$0xff]
                %1036 = vst [vmem:[%s178 + $0xd60] sm:$0xff] %v1035
                %v1037 = vld [vmem:[%s177 + $0x1ad0] sm:$0xff]
                %1038 = vst [vmem:[%s178 + $0xd68] sm:$0xff] %v1037
                %v1039 = vld [vmem:[%s177 + $0x1ad8] sm:$0xff]
                %1040 = vst [vmem:[%s178 + $0xd70] sm:$0xff] %v1039
                %v1041 = vld [vmem:[%s177 + $0x1ae0] sm:$0xff]
                %1042 = vst [vmem:[%s178 + $0xd78] sm:$0xff] %v1041
                %v1043 = vld [vmem:[%s177 + $0x1b00] sm:$0xff]
                %1044 = vst [vmem:[%s178 + $0xd80] sm:$0xff] %v1043
                %v1045 = vld [vmem:[%s177 + $0x1b08] sm:$0xff]
                %1046 = vst [vmem:[%s178 + $0xd88] sm:$0xff] %v1045
                %v1047 = vld [vmem:[%s177 + $0x1b10] sm:$0xff]
                %1048 = vst [vmem:[%s178 + $0xd90] sm:$0xff] %v1047
                %v1049 = vld [vmem:[%s177 + $0x1b30] sm:$0xff]
                %1050 = vst [vmem:[%s178 + $0xd98] sm:$0xff] %v1049
                %v1051 = vld [vmem:[%s177 + $0x1b38] sm:$0xff]
                %1052 = vst [vmem:[%s178 + $0xda0] sm:$0xff] %v1051
                %v1053 = vld [vmem:[%s177 + $0x1b40] sm:$0xff]
                %1054 = vst [vmem:[%s178 + $0xda8] sm:$0xff] %v1053
                %v1055 = vld [vmem:[%s177 + $0x1b60] sm:$0xff]
                %1056 = vst [vmem:[%s178 + $0xdb0] sm:$0xff] %v1055
                %v1057 = vld [vmem:[%s177 + $0x1b68] sm:$0xff]
                %1058 = vst [vmem:[%s178 + $0xdb8] sm:$0xff] %v1057
                %v1059 = vld [vmem:[%s177 + $0x1b70] sm:$0xff]
                %1060 = vst [vmem:[%s178 + $0xdc0] sm:$0xff] %v1059
                %v1061 = vld [vmem:[%s177 + $0x1b90] sm:$0xff]
                %1062 = vst [vmem:[%s178 + $0xdc8] sm:$0xff] %v1061
                %v1063 = vld [vmem:[%s177 + $0x1b98] sm:$0xff]
                %1064 = vst [vmem:[%s178 + $0xdd0] sm:$0xff] %v1063
                %v1065 = vld [vmem:[%s177 + $0x1ba0] sm:$0xff]
                %1066 = vst [vmem:[%s178 + $0xdd8] sm:$0xff] %v1065
                %v1067 = vld [vmem:[%s177 + $0x1bc0] sm:$0xff]
                %1068 = vst [vmem:[%s178 + $0xde0] sm:$0xff] %v1067
                %v1069 = vld [vmem:[%s177 + $0x1bc8] sm:$0xff]
                %1070 = vst [vmem:[%s178 + $0xde8] sm:$0xff] %v1069
                %v1071 = vld [vmem:[%s177 + $0x1bd0] sm:$0xff]
                %1072 = vst [vmem:[%s178 + $0xdf0] sm:$0xff] %v1071
                %v1073 = vld [vmem:[%s177 + $0x1bf0] sm:$0xff]
                %1074 = vst [vmem:[%s178 + $0xdf8] sm:$0xff] %v1073
                %v1075 = vld [vmem:[%s177 + $0x1bf8] sm:$0xff]
                %1076 = vst [vmem:[%s178 + $0xe00] sm:$0xff] %v1075
                %v1077 = vld [vmem:[%s177 + $0x1c00] sm:$0xff]
                %1078 = vst [vmem:[%s178 + $0xe08] sm:$0xff] %v1077
                %v1079 = vld [vmem:[%s177 + $0x1c20] sm:$0xff]
                %1080 = vst [vmem:[%s178 + $0xe10] sm:$0xff] %v1079
                %v1081 = vld [vmem:[%s177 + $0x1c28] sm:$0xff]
                %1082 = vst [vmem:[%s178 + $0xe18] sm:$0xff] %v1081
                %v1083 = vld [vmem:[%s177 + $0x1c30] sm:$0xff]
                %1084 = vst [vmem:[%s178 + $0xe20] sm:$0xff] %v1083
                %v1085 = vld [vmem:[%s177 + $0x1c50] sm:$0xff]
                %1086 = vst [vmem:[%s178 + $0xe28] sm:$0xff] %v1085
                %v1087 = vld [vmem:[%s177 + $0x1c58] sm:$0xff]
                %1088 = vst [vmem:[%s178 + $0xe30] sm:$0xff] %v1087
                %v1089 = vld [vmem:[%s177 + $0x1c60] sm:$0xff]
                %1090 = vst [vmem:[%s178 + $0xe38] sm:$0xff] %v1089
                %v1091 = vld [vmem:[%s177 + $0x1c80] sm:$0xff]
                %1092 = vst [vmem:[%s178 + $0xe40] sm:$0xff] %v1091
                %v1093 = vld [vmem:[%s177 + $0x1c88] sm:$0xff]
                %1094 = vst [vmem:[%s178 + $0xe48] sm:$0xff] %v1093
                %v1095 = vld [vmem:[%s177 + $0x1c90] sm:$0xff]
                %1096 = vst [vmem:[%s178 + $0xe50] sm:$0xff] %v1095
                %v1097 = vld [vmem:[%s177 + $0x1cb0] sm:$0xff]
                %1098 = vst [vmem:[%s178 + $0xe58] sm:$0xff] %v1097
                %v1099 = vld [vmem:[%s177 + $0x1cb8] sm:$0xff]
                %1100 = vst [vmem:[%s178 + $0xe60] sm:$0xff] %v1099
                %v1101 = vld [vmem:[%s177 + $0x1cc0] sm:$0xff]
                %1102 = vst [vmem:[%s178 + $0xe68] sm:$0xff] %v1101
                %v1103 = vld [vmem:[%s177 + $0x1ce0] sm:$0xff]
                %1104 = vst [vmem:[%s178 + $0xe70] sm:$0xff] %v1103
                %v1105 = vld [vmem:[%s177 + $0x1ce8] sm:$0xff]
                %1106 = vst [vmem:[%s178 + $0xe78] sm:$0xff] %v1105
                %v1107 = vld [vmem:[%s177 + $0x1cf0] sm:$0xff]
                %1108 = vst [vmem:[%s178 + $0xe80] sm:$0xff] %v1107
                %v1109 = vld [vmem:[%s177 + $0x1d10] sm:$0xff]
                %1110 = vst [vmem:[%s178 + $0xe88] sm:$0xff] %v1109
                %v1111 = vld [vmem:[%s177 + $0x1d18] sm:$0xff]
                %1112 = vst [vmem:[%s178 + $0xe90] sm:$0xff] %v1111
                %v1113 = vld [vmem:[%s177 + $0x1d20] sm:$0xff]
                %1114 = vst [vmem:[%s178 + $0xe98] sm:$0xff] %v1113
                %v1115 = vld [vmem:[%s177 + $0x1d40] sm:$0xff]
                %1116 = vst [vmem:[%s178 + $0xea0] sm:$0xff] %v1115
                %v1117 = vld [vmem:[%s177 + $0x1d48] sm:$0xff]
                %1118 = vst [vmem:[%s178 + $0xea8] sm:$0xff] %v1117
                %v1119 = vld [vmem:[%s177 + $0x1d50] sm:$0xff]
                %1120 = vst [vmem:[%s178 + $0xeb0] sm:$0xff] %v1119
                %v1121 = vld [vmem:[%s177 + $0x1d70] sm:$0xff]
                %1122 = vst [vmem:[%s178 + $0xeb8] sm:$0xff] %v1121
                %v1123 = vld [vmem:[%s177 + $0x1d78] sm:$0xff]
                %1124 = vst [vmem:[%s178 + $0xec0] sm:$0xff] %v1123
                %v1125 = vld [vmem:[%s177 + $0x1d80] sm:$0xff]
                %1126 = vst [vmem:[%s178 + $0xec8] sm:$0xff] %v1125
                %v1127 = vld [vmem:[%s177 + $0x1da0] sm:$0xff]
                %1128 = vst [vmem:[%s178 + $0xed0] sm:$0xff] %v1127
                %v1129 = vld [vmem:[%s177 + $0x1da8] sm:$0xff]
                %1130 = vst [vmem:[%s178 + $0xed8] sm:$0xff] %v1129
                %v1131 = vld [vmem:[%s177 + $0x1db0] sm:$0xff]
                %1132 = vst [vmem:[%s178 + $0xee0] sm:$0xff] %v1131
                %v1133 = vld [vmem:[%s177 + $0x1dd0] sm:$0xff]
                %1134 = vst [vmem:[%s178 + $0xee8] sm:$0xff] %v1133
                %v1135 = vld [vmem:[%s177 + $0x1dd8] sm:$0xff]
                %1136 = vst [vmem:[%s178 + $0xef0] sm:$0xff] %v1135
                %v1137 = vld [vmem:[%s177 + $0x1de0] sm:$0xff]
                %1138 = vst [vmem:[%s178 + $0xef8] sm:$0xff] %v1137
                %v1139 = vld [vmem:[%s177 + $0x1e00] sm:$0xff]
                %1140 = vst [vmem:[%s178 + $0xf00] sm:$0xff] %v1139
                %v1141 = vld [vmem:[%s177 + $0x1e08] sm:$0xff]
                %1142 = vst [vmem:[%s178 + $0xf08] sm:$0xff] %v1141
                %v1143 = vld [vmem:[%s177 + $0x1e10] sm:$0xff]
                %1144 = vst [vmem:[%s178 + $0xf10] sm:$0xff] %v1143
                %v1145 = vld [vmem:[%s177 + $0x1e30] sm:$0xff]
                %1146 = vst [vmem:[%s178 + $0xf18] sm:$0xff] %v1145
                %v1147 = vld [vmem:[%s177 + $0x1e38] sm:$0xff]
                %1148 = vst [vmem:[%s178 + $0xf20] sm:$0xff] %v1147
                %v1149 = vld [vmem:[%s177 + $0x1e40] sm:$0xff]
                %1150 = vst [vmem:[%s178 + $0xf28] sm:$0xff] %v1149
                %v1151 = vld [vmem:[%s177 + $0x1e60] sm:$0xff]
                %1152 = vst [vmem:[%s178 + $0xf30] sm:$0xff] %v1151
                %v1153 = vld [vmem:[%s177 + $0x1e68] sm:$0xff]
                %1154 = vst [vmem:[%s178 + $0xf38] sm:$0xff] %v1153
                %v1155 = vld [vmem:[%s177 + $0x1e70] sm:$0xff]
                %1156 = vst [vmem:[%s178 + $0xf40] sm:$0xff] %v1155
                %v1157 = vld [vmem:[%s177 + $0x1e90] sm:$0xff]
                %1158 = vst [vmem:[%s178 + $0xf48] sm:$0xff] %v1157
                %v1159 = vld [vmem:[%s177 + $0x1e98] sm:$0xff]
                %1160 = vst [vmem:[%s178 + $0xf50] sm:$0xff] %v1159
                %v1161 = vld [vmem:[%s177 + $0x1ea0] sm:$0xff]
                %1162 = vst [vmem:[%s178 + $0xf58] sm:$0xff] %v1161
                %v1163 = vld [vmem:[%s177 + $0x1ec0] sm:$0xff]
                %1164 = vst [vmem:[%s178 + $0xf60] sm:$0xff] %v1163
                %v1165 = vld [vmem:[%s177 + $0x1ec8] sm:$0xff]
                %1166 = vst [vmem:[%s178 + $0xf68] sm:$0xff] %v1165
                %v1167 = vld [vmem:[%s177 + $0x1ed0] sm:$0xff]
                %1168 = vst [vmem:[%s178 + $0xf70] sm:$0xff] %v1167
                %v1169 = vld [vmem:[%s177 + $0x1ef0] sm:$0xff]
                %1170 = vst [vmem:[%s178 + $0xf78] sm:$0xff] %v1169
                %v1171 = vld [vmem:[%s177 + $0x1ef8] sm:$0xff]
                %1172 = vst [vmem:[%s178 + $0xf80] sm:$0xff] %v1171
                %v1173 = vld [vmem:[%s177 + $0x1f00] sm:$0xff]
                %1174 = vst [vmem:[%s178 + $0xf88] sm:$0xff] %v1173
                %v1175 = vld [vmem:[%s177 + $0x1f20] sm:$0xff]
                %1176 = vst [vmem:[%s178 + $0xf90] sm:$0xff] %v1175
                %v1177 = vld [vmem:[%s177 + $0x1f28] sm:$0xff]
                %1178 = vst [vmem:[%s178 + $0xf98] sm:$0xff] %v1177
                %v1179 = vld [vmem:[%s177 + $0x1f30] sm:$0xff]
                %1180 = vst [vmem:[%s178 + $0xfa0] sm:$0xff] %v1179
                %v1181 = vld [vmem:[%s177 + $0x1f50] sm:$0xff]
                %1182 = vst [vmem:[%s178 + $0xfa8] sm:$0xff] %v1181
                %v1183 = vld [vmem:[%s177 + $0x1f58] sm:$0xff]
                %1184 = vst [vmem:[%s178 + $0xfb0] sm:$0xff] %v1183
                %v1185 = vld [vmem:[%s177 + $0x1f60] sm:$0xff]
                %1186 = vst [vmem:[%s178 + $0xfb8] sm:$0xff] %v1185
                %v1187 = vld [vmem:[%s177 + $0x1f80] sm:$0xff]
                %1188 = vst [vmem:[%s178 + $0xfc0] sm:$0xff] %v1187
                %v1189 = vld [vmem:[%s177 + $0x1f88] sm:$0xff]
                %1190 = vst [vmem:[%s178 + $0xfc8] sm:$0xff] %v1189
                %v1191 = vld [vmem:[%s177 + $0x1f90] sm:$0xff]
                %1192 = vst [vmem:[%s178 + $0xfd0] sm:$0xff] %v1191
                %v1193 = vld [vmem:[%s177 + $0x1fb0] sm:$0xff]
                %1194 = vst [vmem:[%s178 + $0xfd8] sm:$0xff] %v1193
                %v1195 = vld [vmem:[%s177 + $0x1fb8] sm:$0xff]
                %1196 = vst [vmem:[%s178 + $0xfe0] sm:$0xff] %v1195
                %v1197 = vld [vmem:[%s177 + $0x1fc0] sm:$0xff]
                %1198 = vst [vmem:[%s178 + $0xfe8] sm:$0xff] %v1197
                %v1199 = vld [vmem:[%s177 + $0x1fe0] sm:$0xff]
                %1200 = vst [vmem:[%s178 + $0xff0] sm:$0xff] %v1199
                %v1201 = vld [vmem:[%s177 + $0x1fe8] sm:$0xff]
                %1202 = vst [vmem:[%s178 + $0xff8] sm:$0xff] %v1201
                %v1203 = vld [vmem:[%s177 + $0x1ff0] sm:$0xff]
                %1204 = vst [vmem:[%s178 + $0x1000] sm:$0xff] %v1203
                %v1205 = vld [vmem:[%s177 + $0x2010] sm:$0xff]
                %1206 = vst [vmem:[%s178 + $0x1008] sm:$0xff] %v1205
                %v1207 = vld [vmem:[%s177 + $0x2018] sm:$0xff]
                %1208 = vst [vmem:[%s178 + $0x1010] sm:$0xff] %v1207
                %v1209 = vld [vmem:[%s177 + $0x2020] sm:$0xff]
                %1210 = vst [vmem:[%s178 + $0x1018] sm:$0xff] %v1209
                %v1211 = vld [vmem:[%s177 + $0x2040] sm:$0xff]
                %1212 = vst [vmem:[%s178 + $0x1020] sm:$0xff] %v1211
                %v1213 = vld [vmem:[%s177 + $0x2048] sm:$0xff]
                %1214 = vst [vmem:[%s178 + $0x1028] sm:$0xff] %v1213
                %v1215 = vld [vmem:[%s177 + $0x2050] sm:$0xff]
                %1216 = vst [vmem:[%s178 + $0x1030] sm:$0xff] %v1215
                %v1217 = vld [vmem:[%s177 + $0x2070] sm:$0xff]
                %1218 = vst [vmem:[%s178 + $0x1038] sm:$0xff] %v1217
                %v1219 = vld [vmem:[%s177 + $0x2078] sm:$0xff]
                %1220 = vst [vmem:[%s178 + $0x1040] sm:$0xff] %v1219
                %v1221 = vld [vmem:[%s177 + $0x2080] sm:$0xff]
                %1222 = vst [vmem:[%s178 + $0x1048] sm:$0xff] %v1221
                %v1223 = vld [vmem:[%s177 + $0x20a0] sm:$0xff]
                %1224 = vst [vmem:[%s178 + $0x1050] sm:$0xff] %v1223
                %v1225 = vld [vmem:[%s177 + $0x20a8] sm:$0xff]
                %1226 = vst [vmem:[%s178 + $0x1058] sm:$0xff] %v1225
                %v1227 = vld [vmem:[%s177 + $0x20b0] sm:$0xff]
                %1228 = vst [vmem:[%s178 + $0x1060] sm:$0xff] %v1227
                %v1229 = vld [vmem:[%s177 + $0x20d0] sm:$0xff]
                %1230 = vst [vmem:[%s178 + $0x1068] sm:$0xff] %v1229
                %v1231 = vld [vmem:[%s177 + $0x20d8] sm:$0xff]
                %1232 = vst [vmem:[%s178 + $0x1070] sm:$0xff] %v1231
                %v1233 = vld [vmem:[%s177 + $0x20e0] sm:$0xff]
                %1234 = vst [vmem:[%s178 + $0x1078] sm:$0xff] %v1233
                %v1235 = vld [vmem:[%s177 + $0x2100] sm:$0xff]
                %1236 = vst [vmem:[%s178 + $0x1080] sm:$0xff] %v1235
                %v1237 = vld [vmem:[%s177 + $0x2108] sm:$0xff]
                %1238 = vst [vmem:[%s178 + $0x1088] sm:$0xff] %v1237
                %v1239 = vld [vmem:[%s177 + $0x2110] sm:$0xff]
                %1240 = vst [vmem:[%s178 + $0x1090] sm:$0xff] %v1239
                %v1241 = vld [vmem:[%s177 + $0x2130] sm:$0xff]
                %1242 = vst [vmem:[%s178 + $0x1098] sm:$0xff] %v1241
                %v1243 = vld [vmem:[%s177 + $0x2138] sm:$0xff]
                %1244 = vst [vmem:[%s178 + $0x10a0] sm:$0xff] %v1243
                %v1245 = vld [vmem:[%s177 + $0x2140] sm:$0xff]
                %1246 = vst [vmem:[%s178 + $0x10a8] sm:$0xff] %v1245
                %v1247 = vld [vmem:[%s177 + $0x2160] sm:$0xff]
                %1248 = vst [vmem:[%s178 + $0x10b0] sm:$0xff] %v1247
                %v1249 = vld [vmem:[%s177 + $0x2168] sm:$0xff]
                %1250 = vst [vmem:[%s178 + $0x10b8] sm:$0xff] %v1249
                %v1251 = vld [vmem:[%s177 + $0x2170] sm:$0xff]
                %1252 = vst [vmem:[%s178 + $0x10c0] sm:$0xff] %v1251
                %v1253 = vld [vmem:[%s177 + $0x2190] sm:$0xff]
                %1254 = vst [vmem:[%s178 + $0x10c8] sm:$0xff] %v1253
                %v1255 = vld [vmem:[%s177 + $0x2198] sm:$0xff]
                %1256 = vst [vmem:[%s178 + $0x10d0] sm:$0xff] %v1255
                %v1257 = vld [vmem:[%s177 + $0x21a0] sm:$0xff]
                %1258 = vst [vmem:[%s178 + $0x10d8] sm:$0xff] %v1257
                %v1259 = vld [vmem:[%s177 + $0x21c0] sm:$0xff]
                %1260 = vst [vmem:[%s178 + $0x10e0] sm:$0xff] %v1259
                %v1261 = vld [vmem:[%s177 + $0x21c8] sm:$0xff]
                %1262 = vst [vmem:[%s178 + $0x10e8] sm:$0xff] %v1261
                %v1263 = vld [vmem:[%s177 + $0x21d0] sm:$0xff]
                %1264 = vst [vmem:[%s178 + $0x10f0] sm:$0xff] %v1263
                %v1265 = vld [vmem:[%s177 + $0x21f0] sm:$0xff]
                %1266 = vst [vmem:[%s178 + $0x10f8] sm:$0xff] %v1265
                %v1267 = vld [vmem:[%s177 + $0x21f8] sm:$0xff]
                %1268 = vst [vmem:[%s178 + $0x1100] sm:$0xff] %v1267
                %v1269 = vld [vmem:[%s177 + $0x2200] sm:$0xff]
                %1270 = vst [vmem:[%s178 + $0x1108] sm:$0xff] %v1269
                %v1271 = vld [vmem:[%s177 + $0x2220] sm:$0xff]
                %1272 = vst [vmem:[%s178 + $0x1110] sm:$0xff] %v1271
                %v1273 = vld [vmem:[%s177 + $0x2228] sm:$0xff]
                %1274 = vst [vmem:[%s178 + $0x1118] sm:$0xff] %v1273
                %v1275 = vld [vmem:[%s177 + $0x2230] sm:$0xff]
                %1276 = vst [vmem:[%s178 + $0x1120] sm:$0xff] %v1275
                %v1277 = vld [vmem:[%s177 + $0x2250] sm:$0xff]
                %1278 = vst [vmem:[%s178 + $0x1128] sm:$0xff] %v1277
                %v1279 = vld [vmem:[%s177 + $0x2258] sm:$0xff]
                %1280 = vst [vmem:[%s178 + $0x1130] sm:$0xff] %v1279
                %v1281 = vld [vmem:[%s177 + $0x2260] sm:$0xff]
                %1282 = vst [vmem:[%s178 + $0x1138] sm:$0xff] %v1281
                %v1283 = vld [vmem:[%s177 + $0x2280] sm:$0xff]
                %1284 = vst [vmem:[%s178 + $0x1140] sm:$0xff] %v1283
                %v1285 = vld [vmem:[%s177 + $0x2288] sm:$0xff]
                %1286 = vst [vmem:[%s178 + $0x1148] sm:$0xff] %v1285
                %v1287 = vld [vmem:[%s177 + $0x2290] sm:$0xff]
                %1288 = vst [vmem:[%s178 + $0x1150] sm:$0xff] %v1287
                %v1289 = vld [vmem:[%s177 + $0x22b0] sm:$0xff]
                %1290 = vst [vmem:[%s178 + $0x1158] sm:$0xff] %v1289
                %v1291 = vld [vmem:[%s177 + $0x22b8] sm:$0xff]
                %1292 = vst [vmem:[%s178 + $0x1160] sm:$0xff] %v1291
                %v1293 = vld [vmem:[%s177 + $0x22c0] sm:$0xff]
                %1294 = vst [vmem:[%s178 + $0x1168] sm:$0xff] %v1293
                %v1295 = vld [vmem:[%s177 + $0x22e0] sm:$0xff]
                %1296 = vst [vmem:[%s178 + $0x1170] sm:$0xff] %v1295
                %v1297 = vld [vmem:[%s177 + $0x22e8] sm:$0xff]
                %1298 = vst [vmem:[%s178 + $0x1178] sm:$0xff] %v1297
                %v1299 = vld [vmem:[%s177 + $0x22f0] sm:$0xff]
                %1300 = vst [vmem:[%s178 + $0x1180] sm:$0xff] %v1299
                %v1301 = vld [vmem:[%s177 + $0x2310] sm:$0xff]
                %1302 = vst [vmem:[%s178 + $0x1188] sm:$0xff] %v1301
                %v1303 = vld [vmem:[%s177 + $0x2318] sm:$0xff]
                %1304 = vst [vmem:[%s178 + $0x1190] sm:$0xff] %v1303
                %v1305 = vld [vmem:[%s177 + $0x2320] sm:$0xff]
                %1306 = vst [vmem:[%s178 + $0x1198] sm:$0xff] %v1305
                %v1307 = vld [vmem:[%s177 + $0x2340] sm:$0xff]
                %1308 = vst [vmem:[%s178 + $0x11a0] sm:$0xff] %v1307
                %v1309 = vld [vmem:[%s177 + $0x2348] sm:$0xff]
                %1310 = vst [vmem:[%s178 + $0x11a8] sm:$0xff] %v1309
                %v1311 = vld [vmem:[%s177 + $0x2350] sm:$0xff]
                %1312 = vst [vmem:[%s178 + $0x11b0] sm:$0xff] %v1311
                %v1313 = vld [vmem:[%s177 + $0x2370] sm:$0xff]
                %1314 = vst [vmem:[%s178 + $0x11b8] sm:$0xff] %v1313
                %v1315 = vld [vmem:[%s177 + $0x2378] sm:$0xff]
                %1316 = vst [vmem:[%s178 + $0x11c0] sm:$0xff] %v1315
                %v1317 = vld [vmem:[%s177 + $0x2380] sm:$0xff]
                %1318 = vst [vmem:[%s178 + $0x11c8] sm:$0xff] %v1317
                %v1319 = vld [vmem:[%s177 + $0x23a0] sm:$0xff]
                %1320 = vst [vmem:[%s178 + $0x11d0] sm:$0xff] %v1319
                %v1321 = vld [vmem:[%s177 + $0x23a8] sm:$0xff]
                %1322 = vst [vmem:[%s178 + $0x11d8] sm:$0xff] %v1321
                %v1323 = vld [vmem:[%s177 + $0x23b0] sm:$0xff]
                %1324 = vst [vmem:[%s178 + $0x11e0] sm:$0xff] %v1323
                %v1325 = vld [vmem:[%s177 + $0x23d0] sm:$0xff]
                %1326 = vst [vmem:[%s178 + $0x11e8] sm:$0xff] %v1325
                %v1327 = vld [vmem:[%s177 + $0x23d8] sm:$0xff]
                %1328 = vst [vmem:[%s178 + $0x11f0] sm:$0xff] %v1327
                %v1329 = vld [vmem:[%s177 + $0x23e0] sm:$0xff]
                %1330 = vst [vmem:[%s178 + $0x11f8] sm:$0xff] %v1329
              $region37: #{net_forward.5} parent=31 // loop_footer
                %s176 = sadd.s32 1, %s172
              $region38: #{net_forward.5} parent=31 // loop_footer_branch
                %171 = sbr.rel target = $region34
              $region39: #{net_forward.5} parent=31 // loop_exit
                _
            $region32: #{net_forward.5} parent=27 // pred_fallthru
              _
            // Predicated region
            $region40: #{net_forward.5} parent=27 // pred_check
              _
            $region41: #{net_forward.5} parent=27 // pred_check_branch
              %1332 = sbr.rel target = $region43
            $region42: #{net_forward.5} parent=27 // pred_region
              _
            $region43: #{net_forward.5} parent=27 // pred_fallthru
              _
          $region28: #{net_forward.5} parent=23 // pred_fallthru
            _
          %1333 = vnop
        $region24: #{net_forward.5} parent=19 // pred_fallthru
          _
        // Predicated region
        $region44: #{net_forward.5} parent=19 // pred_check
          %p1334 = pneg %p77
        $region45: #{net_forward.5} parent=19 // pred_check_branch
          %1336 = sbr.rel (%p1334) target = $region47
        $region46: #{net_forward.5} parent=19 // pred_region
          %s1337 = smul.u32 6, %s10
          %p1338 = scmp.lt.s32.totalorder %s1337, 11
          %s1339 = scalar_select %p1338, %s1337, 11
          %s1340 = scalar_lea.vmem %s2, %s1339
          %s1341 = smul.u32 6, %s10
        $region47: #{net_forward.5} parent=19 // pred_fallthru
          _
        // Predicated region
        $region48: #{net_forward.5} parent=19 // pred_check
          %p1342 = pneg %p103
        $region49: #{net_forward.5} parent=19 // pred_check_branch
          %1344 = sbr.rel (%p1342) target = $region51
        $region50: #{net_forward.5} parent=19 // pred_region
          %s1345 = smul.u32 96, %s10
          %p1346 = scmp.lt.s32.totalorder %s1345, 191
          %s1347 = scalar_select %p1346, %s1345, 191
          %s1348 = smul.addr %s1347, 4
          %s1349 = smul.addr %s1348, 4
          %s1350 = scalar_lea.vmem %s3, %s1349
          %s1351 = smul.u32 96, %s10
        $region51: #{net_forward.5} parent=19 // pred_fallthru
          _
      $region20: #{net_forward.5} parent=5 // pred_fallthru
        _
      %p1352 = scmp.le.s32.totalorder 1, %s10
      %p1353 = scmp.lt.s32.totalorder %s10, 3
      %p1354 = pnand %p1352, %p1353
      %p1355 = pneg %p1354
      // Predicated region
      $region52: #{net_forward.5} parent=5 // pred_check
        _
      $region53: #{net_forward.5} parent=5 // pred_check_branch
        %1357 = sbr.rel (%p1354) target = $region55
      $region54: #{net_forward.5} parent=5 // pred_region
        %s1358 = ssub.s32 %s10, 1
        %s1359 = sand.u32 %s44, 1
        %s1360 = sand.u32 %s44, 1
        %s1361 = smul.addr %s1360, 4608
        %s1362 = scalar_lea.vmem [#allocation2], %s1361
        // Predicated region
        $region56: #{net_forward.5} parent=54 // pred_check
          %p1363 = pneg %p57
        $region57: #{net_forward.5} parent=54 // pred_check_branch
          %1365 = sbr.rel (%p1363) target = $region59
        $region58: #{net_forward.5} parent=54 // pred_region
          _
        $region59: #{net_forward.5} parent=54 // pred_fallthru
          _
        %p1366 = pneg %p31
        %p1367 = pneg %p28
        %s1368 = sand.u32 %s44, 1
        %s1369 = sand.u32 %s44, 1
        %s1370 = smul.addr %s1369, 4608
        %s1371 = scalar_lea.vmem [#allocation2], %s1370
        %p1372 = pneg %p57
        %p1373 = pneg %p54
        %s1374 = smul.u32 6, %s15
        %p1375 = scmp.lt.s32.totalorder %s1374, 11
        %s1376 = scalar_select %p1375, %s1374, 11
        %s1377 = scalar_lea.vmem %s2, %s1376
        %p1378 = pneg %p83
        %p1379 = pneg %p80
        %s1380 = smul.u32 96, %s15
        %p1381 = scmp.lt.s32.totalorder %s1380, 191
        %s1382 = scalar_select %p1381, %s1380, 191
        %s1383 = smul.addr %s1382, 4
        %s1384 = smul.addr %s1383, 4
        %s1385 = scalar_lea.vmem %s3, %s1384
        %p1386 = pneg %p109
        %p1387 = pneg %p106
        %p1388 = pneg %p135
        %p1389 = pneg %p132
        %p1390 = scmp.lt.s32.totalorder %s15, 1
        %s1391 = scalar_select %p1390, %s15, 1
        %s1392 = smul.addr %s1391, 8
        %s1393 = smul.addr %s1392, 8
        %s1394 = scalar_lea.vmem %s4, %s1393
        %s1395 = smul.u32 6, %s15
        %s1396 = smul.u32 6, %s15
        %p1397 = scmp.lt.s32.totalorder %s1396, 11
        %s1398 = scalar_select %p1397, %s1396, 11
        %s1399 = scalar_lea.vmem %s2, %s1398
        %s1400 = smul.u32 6, %s15
        %s1401 = smul.u32 96, %s15
        %p1402 = scmp.lt.s32.totalorder %s1401, 191
        %s1403 = scalar_select %p1402, %s1401, 191
        %s1404 = smul.addr %s1403, 4
        %s1405 = smul.addr %s1404, 4
        %s1406 = scalar_lea.vmem %s3, %s1405
        %s1407 = smul.u32 96, %s15
        %p1408 = scmp.lt.s32.totalorder %s15, 1
        %s1409 = scalar_select %p1408, %s15, 1
        %s1410 = smul.addr %s1409, 8
        %s1411 = smul.addr %s1410, 8
        %s1412 = scalar_lea.vmem %s4, %s1411
        %v1413 = vld [vmem:[%s0] sm:$0xff]
        %v1414 = vld [vmem:[%s0 + $0x8] sm:$0xff]
        %v1415 = vld [vmem:[%s0 + $0x10] sm:$0xff]
        %v1416 = vld [vmem:[%s0 + $0x18] sm:$0xff]
        %v1417 = vld [vmem:[%s0 + $0x20] sm:$0xff]
        %v1418 = vld [vmem:[%s0 + $0x28] sm:$0xff]
        %v1419 = vld [vmem:[%s0 + $0x30] sm:$0xff]
        %v1420 = vld [vmem:[%s0 + $0x38] sm:$0xff]
        %v1421 = vld [vmem:[%s0 + $0x40] sm:$0xff]
        %v1422 = vld [vmem:[%s0 + $0x48] sm:$0xff]
        %v1423 = vld [vmem:[%s0 + $0x50] sm:$0xff]
        %v1424 = vld [vmem:[%s0 + $0x58] sm:$0xff]
        %v1425 = vld [vmem:[%s1362] sm:$0xff]
        %v1426 = vld [vmem:[%s1362 + $0x8] sm:$0xff]
        %v1427 = vld [vmem:[%s1362 + $0x10] sm:$0xff]
        %v1428 = vld [vmem:[%s1362 + $0x18] sm:$0xff]
        %v1429 = vld [vmem:[%s1362 + $0x20] sm:$0xff]
        %v1430 = vld [vmem:[%s1362 + $0x28] sm:$0xff]
        %v1431 = vld [vmem:[%s1362 + $0x30] sm:$0xff]
        %v1432 = vld [vmem:[%s1362 + $0x38] sm:$0xff]
        %v1433 = vld [vmem:[%s1362 + $0x40] sm:$0xff]
        %v1434 = vld [vmem:[%s1362 + $0x48] sm:$0xff]
        %v1435 = vld [vmem:[%s1362 + $0x50] sm:$0xff]
        %v1436 = vld [vmem:[%s1362 + $0x58] sm:$0xff]
        %v1437 = vld [vmem:[%s1362 + $0x60] sm:$0xff]
        %v1438 = vld [vmem:[%s1362 + $0x68] sm:$0xff]
        %v1439 = vld [vmem:[%s1362 + $0x70] sm:$0xff]
        %v1440 = vld [vmem:[%s1362 + $0x78] sm:$0xff]
        %v1441 = vld [vmem:[%s1362 + $0x80] sm:$0xff]
        %v1442 = vld [vmem:[%s1362 + $0x88] sm:$0xff]
        %v1443 = vld [vmem:[%s1362 + $0x90] sm:$0xff]
        %v1444 = vld [vmem:[%s1362 + $0x98] sm:$0xff]
        %v1445 = vld [vmem:[%s1362 + $0xa0] sm:$0xff]
        %v1446 = vld [vmem:[%s1362 + $0xa8] sm:$0xff]
        %v1447 = vld [vmem:[%s1362 + $0xb0] sm:$0xff]
        %v1448 = vld [vmem:[%s1362 + $0xb8] sm:$0xff]
        %v1449 = vld [vmem:[%s1362 + $0xc0] sm:$0xff]
        %v1450 = vld [vmem:[%s1362 + $0xc8] sm:$0xff]
        %v1451 = vld [vmem:[%s1362 + $0xd0] sm:$0xff]
        %v1452 = vld [vmem:[%s1362 + $0xd8] sm:$0xff]
        %v1453 = vld [vmem:[%s1362 + $0xe0] sm:$0xff]
        %v1454 = vld [vmem:[%s1362 + $0xe8] sm:$0xff]
        %v1455 = vld [vmem:[%s1362 + $0xf0] sm:$0xff]
        %v1456 = vld [vmem:[%s1362 + $0xf8] sm:$0xff]
        %v1457 = vld [vmem:[%s1362 + $0x100] sm:$0xff]
        %v1458 = vld [vmem:[%s1362 + $0x108] sm:$0xff]
        %v1459 = vld [vmem:[%s1362 + $0x110] sm:$0xff]
        %v1460 = vld [vmem:[%s1362 + $0x118] sm:$0xff]
        %v1461 = vld [vmem:[%s1362 + $0x120] sm:$0xff]
        %v1462 = vld [vmem:[%s1362 + $0x128] sm:$0xff]
        %v1463 = vld [vmem:[%s1362 + $0x130] sm:$0xff]
        %v1464 = vld [vmem:[%s1362 + $0x138] sm:$0xff]
        %v1465 = vld [vmem:[%s1362 + $0x140] sm:$0xff]
        %v1466 = vld [vmem:[%s1362 + $0x148] sm:$0xff]
        %v1467 = vld [vmem:[%s1362 + $0x150] sm:$0xff]
        %v1468 = vld [vmem:[%s1362 + $0x158] sm:$0xff]
        %v1469 = vld [vmem:[%s1362 + $0x160] sm:$0xff]
        %v1470 = vld [vmem:[%s1362 + $0x168] sm:$0xff]
        %v1471 = vld [vmem:[%s1362 + $0x170] sm:$0xff]
        %v1472 = vld [vmem:[%s1362 + $0x178] sm:$0xff]
        %v1473 = vld [vmem:[%s1362 + $0x180] sm:$0xff]
        %v1474 = vld [vmem:[%s1362 + $0x188] sm:$0xff]
        %v1475 = vld [vmem:[%s1362 + $0x190] sm:$0xff]
        %v1476 = vld [vmem:[%s1362 + $0x198] sm:$0xff]
        %v1477 = vld [vmem:[%s1362 + $0x1a0] sm:$0xff]
        %v1478 = vld [vmem:[%s1362 + $0x1a8] sm:$0xff]
        %v1479 = vld [vmem:[%s1362 + $0x1b0] sm:$0xff]
        %v1480 = vld [vmem:[%s1362 + $0x1b8] sm:$0xff]
        %v1481 = vld [vmem:[%s1362 + $0x1c0] sm:$0xff]
        %v1482 = vld [vmem:[%s1362 + $0x1c8] sm:$0xff]
        %v1483 = vld [vmem:[%s1362 + $0x1d0] sm:$0xff]
        %v1484 = vld [vmem:[%s1362 + $0x1d8] sm:$0xff]
        %v1485 = vld [vmem:[%s1362 + $0x1e0] sm:$0xff]
        %v1486 = vld [vmem:[%s1362 + $0x1e8] sm:$0xff]
        %v1487 = vld [vmem:[%s1362 + $0x1f0] sm:$0xff]
        %v1488 = vld [vmem:[%s1362 + $0x1f8] sm:$0xff]
        %v1489 = vld [vmem:[%s1362 + $0x200] sm:$0xff]
        %v1490 = vld [vmem:[%s1362 + $0x208] sm:$0xff]
        %v1491 = vld [vmem:[%s1362 + $0x210] sm:$0xff]
        %v1492 = vld [vmem:[%s1362 + $0x218] sm:$0xff]
        %v1493 = vld [vmem:[%s1362 + $0x220] sm:$0xff]
        %v1494 = vld [vmem:[%s1362 + $0x228] sm:$0xff]
        %v1495 = vld [vmem:[%s1362 + $0x230] sm:$0xff]
        %v1496 = vld [vmem:[%s1362 + $0x238] sm:$0xff]
        %v1497 = vld [vmem:[%s1362 + $0x240] sm:$0xff]
        %v1498 = vld [vmem:[%s1362 + $0x248] sm:$0xff]
        %v1499 = vld [vmem:[%s1362 + $0x250] sm:$0xff]
        %v1500 = vld [vmem:[%s1362 + $0x258] sm:$0xff]
        %v1501 = vld [vmem:[%s1362 + $0x260] sm:$0xff]
        %v1502 = vld [vmem:[%s1362 + $0x268] sm:$0xff]
        %v1503 = vld [vmem:[%s1362 + $0x270] sm:$0xff]
        %v1504 = vld [vmem:[%s1362 + $0x278] sm:$0xff]
        %v1505 = vld [vmem:[%s1362 + $0x280] sm:$0xff]
        %v1506 = vld [vmem:[%s1362 + $0x288] sm:$0xff]
        %v1507 = vld [vmem:[%s1362 + $0x290] sm:$0xff]
        %v1508 = vld [vmem:[%s1362 + $0x298] sm:$0xff]
        %v1509 = vld [vmem:[%s1362 + $0x2a0] sm:$0xff]
        %v1510 = vld [vmem:[%s1362 + $0x2a8] sm:$0xff]
        %v1511 = vld [vmem:[%s1362 + $0x2b0] sm:$0xff]
        %v1512 = vld [vmem:[%s1362 + $0x2b8] sm:$0xff]
        %v1513 = vld [vmem:[%s1362 + $0x2c0] sm:$0xff]
        %v1514 = vld [vmem:[%s1362 + $0x2c8] sm:$0xff]
        %v1515 = vld [vmem:[%s1362 + $0x2d0] sm:$0xff]
        %v1516 = vld [vmem:[%s1362 + $0x2d8] sm:$0xff]
        %v1517 = vld [vmem:[%s1362 + $0x2e0] sm:$0xff]
        %v1518 = vld [vmem:[%s1362 + $0x2e8] sm:$0xff]
        %v1519 = vld [vmem:[%s1362 + $0x2f0] sm:$0xff]
        %v1520 = vld [vmem:[%s1362 + $0x2f8] sm:$0xff]
        %v1521 = vld [vmem:[%s1362 + $0x300] sm:$0xff]
        %v1522 = vld [vmem:[%s1362 + $0x308] sm:$0xff]
        %v1523 = vld [vmem:[%s1362 + $0x310] sm:$0xff]
        %v1524 = vld [vmem:[%s1362 + $0x318] sm:$0xff]
        %v1525 = vld [vmem:[%s1362 + $0x320] sm:$0xff]
        %v1526 = vld [vmem:[%s1362 + $0x328] sm:$0xff]
        %v1527 = vld [vmem:[%s1362 + $0x330] sm:$0xff]
        %v1528 = vld [vmem:[%s1362 + $0x338] sm:$0xff]
        %v1529 = vld [vmem:[%s1362 + $0x340] sm:$0xff]
        %v1530 = vld [vmem:[%s1362 + $0x348] sm:$0xff]
        %v1531 = vld [vmem:[%s1362 + $0x350] sm:$0xff]
        %v1532 = vld [vmem:[%s1362 + $0x358] sm:$0xff]
        %v1533 = vld [vmem:[%s1362 + $0x360] sm:$0xff]
        %v1534 = vld [vmem:[%s1362 + $0x368] sm:$0xff]
        %v1535 = vld [vmem:[%s1362 + $0x370] sm:$0xff]
        %v1536 = vld [vmem:[%s1362 + $0x378] sm:$0xff]
        %v1537 = vld [vmem:[%s1362 + $0x380] sm:$0xff]
        %v1538 = vld [vmem:[%s1362 + $0x388] sm:$0xff]
        %v1539 = vld [vmem:[%s1362 + $0x390] sm:$0xff]
        %v1540 = vld [vmem:[%s1362 + $0x398] sm:$0xff]
        %v1541 = vld [vmem:[%s1362 + $0x3a0] sm:$0xff]
        %v1542 = vld [vmem:[%s1362 + $0x3a8] sm:$0xff]
        %v1543 = vld [vmem:[%s1362 + $0x3b0] sm:$0xff]
        %v1544 = vld [vmem:[%s1362 + $0x3b8] sm:$0xff]
        %v1545 = vld [vmem:[%s1362 + $0x3c0] sm:$0xff]
        %v1546 = vld [vmem:[%s1362 + $0x3c8] sm:$0xff]
        %v1547 = vld [vmem:[%s1362 + $0x3d0] sm:$0xff]
        %v1548 = vld [vmem:[%s1362 + $0x3d8] sm:$0xff]
        %v1549 = vld [vmem:[%s1362 + $0x3e0] sm:$0xff]
        %v1550 = vld [vmem:[%s1362 + $0x3e8] sm:$0xff]
        %v1551 = vld [vmem:[%s1362 + $0x3f0] sm:$0xff]
        %v1552 = vld [vmem:[%s1362 + $0x3f8] sm:$0xff]
        %v1553 = vld [vmem:[%s1362 + $0x400] sm:$0xff]
        %v1554 = vld [vmem:[%s1362 + $0x408] sm:$0xff]
        %v1555 = vld [vmem:[%s1362 + $0x410] sm:$0xff]
        %v1556 = vld [vmem:[%s1362 + $0x418] sm:$0xff]
        %v1557 = vld [vmem:[%s1362 + $0x420] sm:$0xff]
        %v1558 = vld [vmem:[%s1362 + $0x428] sm:$0xff]
        %v1559 = vld [vmem:[%s1362 + $0x430] sm:$0xff]
        %v1560 = vld [vmem:[%s1362 + $0x438] sm:$0xff]
        %v1561 = vld [vmem:[%s1362 + $0x440] sm:$0xff]
        %v1562 = vld [vmem:[%s1362 + $0x448] sm:$0xff]
        %v1563 = vld [vmem:[%s1362 + $0x450] sm:$0xff]
        %v1564 = vld [vmem:[%s1362 + $0x458] sm:$0xff]
        %v1565 = vld [vmem:[%s1362 + $0x460] sm:$0xff]
        %v1566 = vld [vmem:[%s1362 + $0x468] sm:$0xff]
        %v1567 = vld [vmem:[%s1362 + $0x470] sm:$0xff]
        %v1568 = vld [vmem:[%s1362 + $0x478] sm:$0xff]
        %v1569 = vld [vmem:[%s1362 + $0x480] sm:$0xff]
        %v1570 = vld [vmem:[%s1362 + $0x488] sm:$0xff]
        %v1571 = vld [vmem:[%s1362 + $0x490] sm:$0xff]
        %v1572 = vld [vmem:[%s1362 + $0x498] sm:$0xff]
        %v1573 = vld [vmem:[%s1362 + $0x4a0] sm:$0xff]
        %v1574 = vld [vmem:[%s1362 + $0x4a8] sm:$0xff]
        %v1575 = vld [vmem:[%s1362 + $0x4b0] sm:$0xff]
        %v1576 = vld [vmem:[%s1362 + $0x4b8] sm:$0xff]
        %v1577 = vld [vmem:[%s1362 + $0x4c0] sm:$0xff]
        %v1578 = vld [vmem:[%s1362 + $0x4c8] sm:$0xff]
        %v1579 = vld [vmem:[%s1362 + $0x4d0] sm:$0xff]
        %v1580 = vld [vmem:[%s1362 + $0x4d8] sm:$0xff]
        %v1581 = vld [vmem:[%s1362 + $0x4e0] sm:$0xff]
        %v1582 = vld [vmem:[%s1362 + $0x4e8] sm:$0xff]
        %v1583 = vld [vmem:[%s1362 + $0x4f0] sm:$0xff]
        %v1584 = vld [vmem:[%s1362 + $0x4f8] sm:$0xff]
        %v1585 = vld [vmem:[%s1362 + $0x500] sm:$0xff]
        %v1586 = vld [vmem:[%s1362 + $0x508] sm:$0xff]
        %v1587 = vld [vmem:[%s1362 + $0x510] sm:$0xff]
        %v1588 = vld [vmem:[%s1362 + $0x518] sm:$0xff]
        %v1589 = vld [vmem:[%s1362 + $0x520] sm:$0xff]
        %v1590 = vld [vmem:[%s1362 + $0x528] sm:$0xff]
        %v1591 = vld [vmem:[%s1362 + $0x530] sm:$0xff]
        %v1592 = vld [vmem:[%s1362 + $0x538] sm:$0xff]
        %v1593 = vld [vmem:[%s1362 + $0x540] sm:$0xff]
        %v1594 = vld [vmem:[%s1362 + $0x548] sm:$0xff]
        %v1595 = vld [vmem:[%s1362 + $0x550] sm:$0xff]
        %v1596 = vld [vmem:[%s1362 + $0x558] sm:$0xff]
        %v1597 = vld [vmem:[%s1362 + $0x560] sm:$0xff]
        %v1598 = vld [vmem:[%s1362 + $0x568] sm:$0xff]
        %v1599 = vld [vmem:[%s1362 + $0x570] sm:$0xff]
        %v1600 = vld [vmem:[%s1362 + $0x578] sm:$0xff]
        %v1601 = vld [vmem:[%s1362 + $0x580] sm:$0xff]
        %v1602 = vld [vmem:[%s1362 + $0x588] sm:$0xff]
        %v1603 = vld [vmem:[%s1362 + $0x590] sm:$0xff]
        %v1604 = vld [vmem:[%s1362 + $0x598] sm:$0xff]
        %v1605 = vld [vmem:[%s1362 + $0x5a0] sm:$0xff]
        %v1606 = vld [vmem:[%s1362 + $0x5a8] sm:$0xff]
        %v1607 = vld [vmem:[%s1362 + $0x5b0] sm:$0xff]
        %v1608 = vld [vmem:[%s1362 + $0x5b8] sm:$0xff]
        %v1609 = vld [vmem:[%s1362 + $0x5c0] sm:$0xff]
        %v1610 = vld [vmem:[%s1362 + $0x5c8] sm:$0xff]
        %v1611 = vld [vmem:[%s1362 + $0x5d0] sm:$0xff]
        %v1612 = vld [vmem:[%s1362 + $0x5d8] sm:$0xff]
        %v1613 = vld [vmem:[%s1362 + $0x5e0] sm:$0xff]
        %v1614 = vld [vmem:[%s1362 + $0x5e8] sm:$0xff]
        %v1615 = vld [vmem:[%s1362 + $0x5f0] sm:$0xff]
        %v1616 = vld [vmem:[%s1362 + $0x5f8] sm:$0xff]
        %v1617 = vld [vmem:[%s1362 + $0x600] sm:$0xff]
        %v1618 = vld [vmem:[%s1362 + $0x608] sm:$0xff]
        %v1619 = vld [vmem:[%s1362 + $0x610] sm:$0xff]
        %v1620 = vld [vmem:[%s1362 + $0x618] sm:$0xff]
        %v1621 = vld [vmem:[%s1362 + $0x620] sm:$0xff]
        %v1622 = vld [vmem:[%s1362 + $0x628] sm:$0xff]
        %v1623 = vld [vmem:[%s1362 + $0x630] sm:$0xff]
        %v1624 = vld [vmem:[%s1362 + $0x638] sm:$0xff]
        %v1625 = vld [vmem:[%s1362 + $0x640] sm:$0xff]
        %v1626 = vld [vmem:[%s1362 + $0x648] sm:$0xff]
        %v1627 = vld [vmem:[%s1362 + $0x650] sm:$0xff]
        %v1628 = vld [vmem:[%s1362 + $0x658] sm:$0xff]
        %v1629 = vld [vmem:[%s1362 + $0x660] sm:$0xff]
        %v1630 = vld [vmem:[%s1362 + $0x668] sm:$0xff]
        %v1631 = vld [vmem:[%s1362 + $0x670] sm:$0xff]
        %v1632 = vld [vmem:[%s1362 + $0x678] sm:$0xff]
        %v1633 = vld [vmem:[%s1362 + $0x680] sm:$0xff]
        %v1634 = vld [vmem:[%s1362 + $0x688] sm:$0xff]
        %v1635 = vld [vmem:[%s1362 + $0x690] sm:$0xff]
        %v1636 = vld [vmem:[%s1362 + $0x698] sm:$0xff]
        %v1637 = vld [vmem:[%s1362 + $0x6a0] sm:$0xff]
        %v1638 = vld [vmem:[%s1362 + $0x6a8] sm:$0xff]
        %v1639 = vld [vmem:[%s1362 + $0x6b0] sm:$0xff]
        %v1640 = vld [vmem:[%s1362 + $0x6b8] sm:$0xff]
        %v1641 = vld [vmem:[%s1362 + $0x6c0] sm:$0xff]
        %v1642 = vld [vmem:[%s1362 + $0x6c8] sm:$0xff]
        %v1643 = vld [vmem:[%s1362 + $0x6d0] sm:$0xff]
        %v1644 = vld [vmem:[%s1362 + $0x6d8] sm:$0xff]
        %v1645 = vld [vmem:[%s1362 + $0x6e0] sm:$0xff]
        %v1646 = vld [vmem:[%s1362 + $0x6e8] sm:$0xff]
        %v1647 = vld [vmem:[%s1362 + $0x6f0] sm:$0xff]
        %v1648 = vld [vmem:[%s1362 + $0x6f8] sm:$0xff]
        %v1649 = vld [vmem:[%s1362 + $0x700] sm:$0xff]
        %v1650 = vld [vmem:[%s1362 + $0x708] sm:$0xff]
        %v1651 = vld [vmem:[%s1362 + $0x710] sm:$0xff]
        %v1652 = vld [vmem:[%s1362 + $0x718] sm:$0xff]
        %v1653 = vld [vmem:[%s1362 + $0x720] sm:$0xff]
        %v1654 = vld [vmem:[%s1362 + $0x728] sm:$0xff]
        %v1655 = vld [vmem:[%s1362 + $0x730] sm:$0xff]
        %v1656 = vld [vmem:[%s1362 + $0x738] sm:$0xff]
        %v1657 = vld [vmem:[%s1362 + $0x740] sm:$0xff]
        %v1658 = vld [vmem:[%s1362 + $0x748] sm:$0xff]
        %v1659 = vld [vmem:[%s1362 + $0x750] sm:$0xff]
        %v1660 = vld [vmem:[%s1362 + $0x758] sm:$0xff]
        %v1661 = vld [vmem:[%s1362 + $0x760] sm:$0xff]
        %v1662 = vld [vmem:[%s1362 + $0x768] sm:$0xff]
        %v1663 = vld [vmem:[%s1362 + $0x770] sm:$0xff]
        %v1664 = vld [vmem:[%s1362 + $0x778] sm:$0xff]
        %v1665 = vld [vmem:[%s1362 + $0x780] sm:$0xff]
        %v1666 = vld [vmem:[%s1362 + $0x788] sm:$0xff]
        %v1667 = vld [vmem:[%s1362 + $0x790] sm:$0xff]
        %v1668 = vld [vmem:[%s1362 + $0x798] sm:$0xff]
        %v1669 = vld [vmem:[%s1362 + $0x7a0] sm:$0xff]
        %v1670 = vld [vmem:[%s1362 + $0x7a8] sm:$0xff]
        %v1671 = vld [vmem:[%s1362 + $0x7b0] sm:$0xff]
        %v1672 = vld [vmem:[%s1362 + $0x7b8] sm:$0xff]
        %v1673 = vld [vmem:[%s1362 + $0x7c0] sm:$0xff]
        %v1674 = vld [vmem:[%s1362 + $0x7c8] sm:$0xff]
        %v1675 = vld [vmem:[%s1362 + $0x7d0] sm:$0xff]
        %v1676 = vld [vmem:[%s1362 + $0x7d8] sm:$0xff]
        %v1677 = vld [vmem:[%s1362 + $0x7e0] sm:$0xff]
        %v1678 = vld [vmem:[%s1362 + $0x7e8] sm:$0xff]
        %v1679 = vld [vmem:[%s1362 + $0x7f0] sm:$0xff]
        %v1680 = vld [vmem:[%s1362 + $0x7f8] sm:$0xff]
        %v1681 = vld [vmem:[%s1362 + $0x800] sm:$0xff]
        %v1682 = vld [vmem:[%s1362 + $0x808] sm:$0xff]
        %v1683 = vld [vmem:[%s1362 + $0x810] sm:$0xff]
        %v1684 = vld [vmem:[%s1362 + $0x818] sm:$0xff]
        %v1685 = vld [vmem:[%s1362 + $0x820] sm:$0xff]
        %v1686 = vld [vmem:[%s1362 + $0x828] sm:$0xff]
        %v1687 = vld [vmem:[%s1362 + $0x830] sm:$0xff]
        %v1688 = vld [vmem:[%s1362 + $0x838] sm:$0xff]
        %v1689 = vld [vmem:[%s1362 + $0x840] sm:$0xff]
        %v1690 = vld [vmem:[%s1362 + $0x848] sm:$0xff]
        %v1691 = vld [vmem:[%s1362 + $0x850] sm:$0xff]
        %v1692 = vld [vmem:[%s1362 + $0x858] sm:$0xff]
        %v1693 = vld [vmem:[%s1362 + $0x860] sm:$0xff]
        %v1694 = vld [vmem:[%s1362 + $0x868] sm:$0xff]
        %v1695 = vld [vmem:[%s1362 + $0x870] sm:$0xff]
        %v1696 = vld [vmem:[%s1362 + $0x878] sm:$0xff]
        %v1697 = vld [vmem:[%s1362 + $0x880] sm:$0xff]
        %v1698 = vld [vmem:[%s1362 + $0x888] sm:$0xff]
        %v1699 = vld [vmem:[%s1362 + $0x890] sm:$0xff]
        %v1700 = vld [vmem:[%s1362 + $0x898] sm:$0xff]
        %v1701 = vld [vmem:[%s1362 + $0x8a0] sm:$0xff]
        %v1702 = vld [vmem:[%s1362 + $0x8a8] sm:$0xff]
        %v1703 = vld [vmem:[%s1362 + $0x8b0] sm:$0xff]
        %v1704 = vld [vmem:[%s1362 + $0x8b8] sm:$0xff]
        %v1705 = vld [vmem:[%s1362 + $0x8c0] sm:$0xff]
        %v1706 = vld [vmem:[%s1362 + $0x8c8] sm:$0xff]
        %v1707 = vld [vmem:[%s1362 + $0x8d0] sm:$0xff]
        %v1708 = vld [vmem:[%s1362 + $0x8d8] sm:$0xff]
        %v1709 = vld [vmem:[%s1362 + $0x8e0] sm:$0xff]
        %v1710 = vld [vmem:[%s1362 + $0x8e8] sm:$0xff]
        %v1711 = vld [vmem:[%s1362 + $0x8f0] sm:$0xff]
        %v1712 = vld [vmem:[%s1362 + $0x8f8] sm:$0xff]
        %v1713 = vld [vmem:[%s1362 + $0x900] sm:$0xff]
        %v1714 = vld [vmem:[%s1362 + $0x908] sm:$0xff]
        %v1715 = vld [vmem:[%s1362 + $0x910] sm:$0xff]
        %v1716 = vld [vmem:[%s1362 + $0x918] sm:$0xff]
        %v1717 = vld [vmem:[%s1362 + $0x920] sm:$0xff]
        %v1718 = vld [vmem:[%s1362 + $0x928] sm:$0xff]
        %v1719 = vld [vmem:[%s1362 + $0x930] sm:$0xff]
        %v1720 = vld [vmem:[%s1362 + $0x938] sm:$0xff]
        %v1721 = vld [vmem:[%s1362 + $0x940] sm:$0xff]
        %v1722 = vld [vmem:[%s1362 + $0x948] sm:$0xff]
        %v1723 = vld [vmem:[%s1362 + $0x950] sm:$0xff]
        %v1724 = vld [vmem:[%s1362 + $0x958] sm:$0xff]
        %v1725 = vld [vmem:[%s1362 + $0x960] sm:$0xff]
        %v1726 = vld [vmem:[%s1362 + $0x968] sm:$0xff]
        %v1727 = vld [vmem:[%s1362 + $0x970] sm:$0xff]
        %v1728 = vld [vmem:[%s1362 + $0x978] sm:$0xff]
        %v1729 = vld [vmem:[%s1362 + $0x980] sm:$0xff]
        %v1730 = vld [vmem:[%s1362 + $0x988] sm:$0xff]
        %v1731 = vld [vmem:[%s1362 + $0x990] sm:$0xff]
        %v1732 = vld [vmem:[%s1362 + $0x998] sm:$0xff]
        %v1733 = vld [vmem:[%s1362 + $0x9a0] sm:$0xff]
        %v1734 = vld [vmem:[%s1362 + $0x9a8] sm:$0xff]
        %v1735 = vld [vmem:[%s1362 + $0x9b0] sm:$0xff]
        %v1736 = vld [vmem:[%s1362 + $0x9b8] sm:$0xff]
        %v1737 = vld [vmem:[%s1362 + $0x9c0] sm:$0xff]
        %v1738 = vld [vmem:[%s1362 + $0x9c8] sm:$0xff]
        %v1739 = vld [vmem:[%s1362 + $0x9d0] sm:$0xff]
        %v1740 = vld [vmem:[%s1362 + $0x9d8] sm:$0xff]
        %v1741 = vld [vmem:[%s1362 + $0x9e0] sm:$0xff]
        %v1742 = vld [vmem:[%s1362 + $0x9e8] sm:$0xff]
        %v1743 = vld [vmem:[%s1362 + $0x9f0] sm:$0xff]
        %v1744 = vld [vmem:[%s1362 + $0x9f8] sm:$0xff]
        %v1745 = vld [vmem:[%s1362 + $0xa00] sm:$0xff]
        %v1746 = vld [vmem:[%s1362 + $0xa08] sm:$0xff]
        %v1747 = vld [vmem:[%s1362 + $0xa10] sm:$0xff]
        %v1748 = vld [vmem:[%s1362 + $0xa18] sm:$0xff]
        %v1749 = vld [vmem:[%s1362 + $0xa20] sm:$0xff]
        %v1750 = vld [vmem:[%s1362 + $0xa28] sm:$0xff]
        %v1751 = vld [vmem:[%s1362 + $0xa30] sm:$0xff]
        %v1752 = vld [vmem:[%s1362 + $0xa38] sm:$0xff]
        %v1753 = vld [vmem:[%s1362 + $0xa40] sm:$0xff]
        %v1754 = vld [vmem:[%s1362 + $0xa48] sm:$0xff]
        %v1755 = vld [vmem:[%s1362 + $0xa50] sm:$0xff]
        %v1756 = vld [vmem:[%s1362 + $0xa58] sm:$0xff]
        %v1757 = vld [vmem:[%s1362 + $0xa60] sm:$0xff]
        %v1758 = vld [vmem:[%s1362 + $0xa68] sm:$0xff]
        %v1759 = vld [vmem:[%s1362 + $0xa70] sm:$0xff]
        %v1760 = vld [vmem:[%s1362 + $0xa78] sm:$0xff]
        %v1761 = vld [vmem:[%s1362 + $0xa80] sm:$0xff]
        %v1762 = vld [vmem:[%s1362 + $0xa88] sm:$0xff]
        %v1763 = vld [vmem:[%s1362 + $0xa90] sm:$0xff]
        %v1764 = vld [vmem:[%s1362 + $0xa98] sm:$0xff]
        %v1765 = vld [vmem:[%s1362 + $0xaa0] sm:$0xff]
        %v1766 = vld [vmem:[%s1362 + $0xaa8] sm:$0xff]
        %v1767 = vld [vmem:[%s1362 + $0xab0] sm:$0xff]
        %v1768 = vld [vmem:[%s1362 + $0xab8] sm:$0xff]
        %v1769 = vld [vmem:[%s1362 + $0xac0] sm:$0xff]
        %v1770 = vld [vmem:[%s1362 + $0xac8] sm:$0xff]
        %v1771 = vld [vmem:[%s1362 + $0xad0] sm:$0xff]
        %v1772 = vld [vmem:[%s1362 + $0xad8] sm:$0xff]
        %v1773 = vld [vmem:[%s1362 + $0xae0] sm:$0xff]
        %v1774 = vld [vmem:[%s1362 + $0xae8] sm:$0xff]
        %v1775 = vld [vmem:[%s1362 + $0xaf0] sm:$0xff]
        %v1776 = vld [vmem:[%s1362 + $0xaf8] sm:$0xff]
        %v1777 = vld [vmem:[%s1362 + $0xb00] sm:$0xff]
        %v1778 = vld [vmem:[%s1362 + $0xb08] sm:$0xff]
        %v1779 = vld [vmem:[%s1362 + $0xb10] sm:$0xff]
        %v1780 = vld [vmem:[%s1362 + $0xb18] sm:$0xff]
        %v1781 = vld [vmem:[%s1362 + $0xb20] sm:$0xff]
        %v1782 = vld [vmem:[%s1362 + $0xb28] sm:$0xff]
        %v1783 = vld [vmem:[%s1362 + $0xb30] sm:$0xff]
        %v1784 = vld [vmem:[%s1362 + $0xb38] sm:$0xff]
        %v1785 = vld [vmem:[%s1362 + $0xb40] sm:$0xff]
        %v1786 = vld [vmem:[%s1362 + $0xb48] sm:$0xff]
        %v1787 = vld [vmem:[%s1362 + $0xb50] sm:$0xff]
        %v1788 = vld [vmem:[%s1362 + $0xb58] sm:$0xff]
        %v1789 = vld [vmem:[%s1362 + $0xb60] sm:$0xff]
        %v1790 = vld [vmem:[%s1362 + $0xb68] sm:$0xff]
        %v1791 = vld [vmem:[%s1362 + $0xb70] sm:$0xff]
        %v1792 = vld [vmem:[%s1362 + $0xb78] sm:$0xff]
        %v1793 = vld [vmem:[%s1362 + $0xb80] sm:$0xff]
        %v1794 = vld [vmem:[%s1362 + $0xb88] sm:$0xff]
        %v1795 = vld [vmem:[%s1362 + $0xb90] sm:$0xff]
        %v1796 = vld [vmem:[%s1362 + $0xb98] sm:$0xff]
        %v1797 = vld [vmem:[%s1362 + $0xba0] sm:$0xff]
        %v1798 = vld [vmem:[%s1362 + $0xba8] sm:$0xff]
        %v1799 = vld [vmem:[%s1362 + $0xbb0] sm:$0xff]
        %v1800 = vld [vmem:[%s1362 + $0xbb8] sm:$0xff]
        %v1801 = vld [vmem:[%s1362 + $0xbc0] sm:$0xff]
        %v1802 = vld [vmem:[%s1362 + $0xbc8] sm:$0xff]
        %v1803 = vld [vmem:[%s1362 + $0xbd0] sm:$0xff]
        %v1804 = vld [vmem:[%s1362 + $0xbd8] sm:$0xff]
        %v1805 = vld [vmem:[%s1362 + $0xbe0] sm:$0xff]
        %v1806 = vld [vmem:[%s1362 + $0xbe8] sm:$0xff]
        %v1807 = vld [vmem:[%s1362 + $0xbf0] sm:$0xff]
        %v1808 = vld [vmem:[%s1362 + $0xbf8] sm:$0xff]
        %v1809 = vld [vmem:[%s1362 + $0xc00] sm:$0xff]
        %v1810 = vld [vmem:[%s1362 + $0xc08] sm:$0xff]
        %v1811 = vld [vmem:[%s1362 + $0xc10] sm:$0xff]
        %v1812 = vld [vmem:[%s1362 + $0xc18] sm:$0xff]
        %v1813 = vld [vmem:[%s1362 + $0xc20] sm:$0xff]
        %v1814 = vld [vmem:[%s1362 + $0xc28] sm:$0xff]
        %v1815 = vld [vmem:[%s1362 + $0xc30] sm:$0xff]
        %v1816 = vld [vmem:[%s1362 + $0xc38] sm:$0xff]
        %v1817 = vld [vmem:[%s1362 + $0xc40] sm:$0xff]
        %v1818 = vld [vmem:[%s1362 + $0xc48] sm:$0xff]
        %v1819 = vld [vmem:[%s1362 + $0xc50] sm:$0xff]
        %v1820 = vld [vmem:[%s1362 + $0xc58] sm:$0xff]
        %v1821 = vld [vmem:[%s1362 + $0xc60] sm:$0xff]
        %v1822 = vld [vmem:[%s1362 + $0xc68] sm:$0xff]
        %v1823 = vld [vmem:[%s1362 + $0xc70] sm:$0xff]
        %v1824 = vld [vmem:[%s1362 + $0xc78] sm:$0xff]
        %v1825 = vld [vmem:[%s1362 + $0xc80] sm:$0xff]
        %v1826 = vld [vmem:[%s1362 + $0xc88] sm:$0xff]
        %v1827 = vld [vmem:[%s1362 + $0xc90] sm:$0xff]
        %v1828 = vld [vmem:[%s1362 + $0xc98] sm:$0xff]
        %v1829 = vld [vmem:[%s1362 + $0xca0] sm:$0xff]
        %v1830 = vld [vmem:[%s1362 + $0xca8] sm:$0xff]
        %v1831 = vld [vmem:[%s1362 + $0xcb0] sm:$0xff]
        %v1832 = vld [vmem:[%s1362 + $0xcb8] sm:$0xff]
        %v1833 = vld [vmem:[%s1362 + $0xcc0] sm:$0xff]
        %v1834 = vld [vmem:[%s1362 + $0xcc8] sm:$0xff]
        %v1835 = vld [vmem:[%s1362 + $0xcd0] sm:$0xff]
        %v1836 = vld [vmem:[%s1362 + $0xcd8] sm:$0xff]
        %v1837 = vld [vmem:[%s1362 + $0xce0] sm:$0xff]
        %v1838 = vld [vmem:[%s1362 + $0xce8] sm:$0xff]
        %v1839 = vld [vmem:[%s1362 + $0xcf0] sm:$0xff]
        %v1840 = vld [vmem:[%s1362 + $0xcf8] sm:$0xff]
        %v1841 = vld [vmem:[%s1362 + $0xd00] sm:$0xff]
        %v1842 = vld [vmem:[%s1362 + $0xd08] sm:$0xff]
        %v1843 = vld [vmem:[%s1362 + $0xd10] sm:$0xff]
        %v1844 = vld [vmem:[%s1362 + $0xd18] sm:$0xff]
        %v1845 = vld [vmem:[%s1362 + $0xd20] sm:$0xff]
        %v1846 = vld [vmem:[%s1362 + $0xd28] sm:$0xff]
        %v1847 = vld [vmem:[%s1362 + $0xd30] sm:$0xff]
        %v1848 = vld [vmem:[%s1362 + $0xd38] sm:$0xff]
        %v1849 = vld [vmem:[%s1362 + $0xd40] sm:$0xff]
        %v1850 = vld [vmem:[%s1362 + $0xd48] sm:$0xff]
        %v1851 = vld [vmem:[%s1362 + $0xd50] sm:$0xff]
        %v1852 = vld [vmem:[%s1362 + $0xd58] sm:$0xff]
        %v1853 = vld [vmem:[%s1362 + $0xd60] sm:$0xff]
        %v1854 = vld [vmem:[%s1362 + $0xd68] sm:$0xff]
        %v1855 = vld [vmem:[%s1362 + $0xd70] sm:$0xff]
        %v1856 = vld [vmem:[%s1362 + $0xd78] sm:$0xff]
        %v1857 = vld [vmem:[%s1362 + $0xd80] sm:$0xff]
        %v1858 = vld [vmem:[%s1362 + $0xd88] sm:$0xff]
        %v1859 = vld [vmem:[%s1362 + $0xd90] sm:$0xff]
        %v1860 = vld [vmem:[%s1362 + $0xd98] sm:$0xff]
        %v1861 = vld [vmem:[%s1362 + $0xda0] sm:$0xff]
        %v1862 = vld [vmem:[%s1362 + $0xda8] sm:$0xff]
        %v1863 = vld [vmem:[%s1362 + $0xdb0] sm:$0xff]
        %v1864 = vld [vmem:[%s1362 + $0xdb8] sm:$0xff]
        %v1865 = vld [vmem:[%s1362 + $0xdc0] sm:$0xff]
        %v1866 = vld [vmem:[%s1362 + $0xdc8] sm:$0xff]
        %v1867 = vld [vmem:[%s1362 + $0xdd0] sm:$0xff]
        %v1868 = vld [vmem:[%s1362 + $0xdd8] sm:$0xff]
        %v1869 = vld [vmem:[%s1362 + $0xde0] sm:$0xff]
        %v1870 = vld [vmem:[%s1362 + $0xde8] sm:$0xff]
        %v1871 = vld [vmem:[%s1362 + $0xdf0] sm:$0xff]
        %v1872 = vld [vmem:[%s1362 + $0xdf8] sm:$0xff]
        %v1873 = vld [vmem:[%s1362 + $0xe00] sm:$0xff]
        %v1874 = vld [vmem:[%s1362 + $0xe08] sm:$0xff]
        %v1875 = vld [vmem:[%s1362 + $0xe10] sm:$0xff]
        %v1876 = vld [vmem:[%s1362 + $0xe18] sm:$0xff]
        %v1877 = vld [vmem:[%s1362 + $0xe20] sm:$0xff]
        %v1878 = vld [vmem:[%s1362 + $0xe28] sm:$0xff]
        %v1879 = vld [vmem:[%s1362 + $0xe30] sm:$0xff]
        %v1880 = vld [vmem:[%s1362 + $0xe38] sm:$0xff]
        %v1881 = vld [vmem:[%s1362 + $0xe40] sm:$0xff]
        %v1882 = vld [vmem:[%s1362 + $0xe48] sm:$0xff]
        %v1883 = vld [vmem:[%s1362 + $0xe50] sm:$0xff]
        %v1884 = vld [vmem:[%s1362 + $0xe58] sm:$0xff]
        %v1885 = vld [vmem:[%s1362 + $0xe60] sm:$0xff]
        %v1886 = vld [vmem:[%s1362 + $0xe68] sm:$0xff]
        %v1887 = vld [vmem:[%s1362 + $0xe70] sm:$0xff]
        %v1888 = vld [vmem:[%s1362 + $0xe78] sm:$0xff]
        %v1889 = vld [vmem:[%s1362 + $0xe80] sm:$0xff]
        %v1890 = vld [vmem:[%s1362 + $0xe88] sm:$0xff]
        %v1891 = vld [vmem:[%s1362 + $0xe90] sm:$0xff]
        %v1892 = vld [vmem:[%s1362 + $0xe98] sm:$0xff]
        %v1893 = vld [vmem:[%s1362 + $0xea0] sm:$0xff]
        %v1894 = vld [vmem:[%s1362 + $0xea8] sm:$0xff]
        %v1895 = vld [vmem:[%s1362 + $0xeb0] sm:$0xff]
        %v1896 = vld [vmem:[%s1362 + $0xeb8] sm:$0xff]
        %v1897 = vld [vmem:[%s1362 + $0xec0] sm:$0xff]
        %v1898 = vld [vmem:[%s1362 + $0xec8] sm:$0xff]
        %v1899 = vld [vmem:[%s1362 + $0xed0] sm:$0xff]
        %v1900 = vld [vmem:[%s1362 + $0xed8] sm:$0xff]
        %v1901 = vld [vmem:[%s1362 + $0xee0] sm:$0xff]
        %v1902 = vld [vmem:[%s1362 + $0xee8] sm:$0xff]
        %v1903 = vld [vmem:[%s1362 + $0xef0] sm:$0xff]
        %v1904 = vld [vmem:[%s1362 + $0xef8] sm:$0xff]
        %v1905 = vld [vmem:[%s1362 + $0xf00] sm:$0xff]
        %v1906 = vld [vmem:[%s1362 + $0xf08] sm:$0xff]
        %v1907 = vld [vmem:[%s1362 + $0xf10] sm:$0xff]
        %v1908 = vld [vmem:[%s1362 + $0xf18] sm:$0xff]
        %v1909 = vld [vmem:[%s1362 + $0xf20] sm:$0xff]
        %v1910 = vld [vmem:[%s1362 + $0xf28] sm:$0xff]
        %v1911 = vld [vmem:[%s1362 + $0xf30] sm:$0xff]
        %v1912 = vld [vmem:[%s1362 + $0xf38] sm:$0xff]
        %v1913 = vld [vmem:[%s1362 + $0xf40] sm:$0xff]
        %v1914 = vld [vmem:[%s1362 + $0xf48] sm:$0xff]
        %v1915 = vld [vmem:[%s1362 + $0xf50] sm:$0xff]
        %v1916 = vld [vmem:[%s1362 + $0xf58] sm:$0xff]
        %v1917 = vld [vmem:[%s1362 + $0xf60] sm:$0xff]
        %v1918 = vld [vmem:[%s1362 + $0xf68] sm:$0xff]
        %v1919 = vld [vmem:[%s1362 + $0xf70] sm:$0xff]
        %v1920 = vld [vmem:[%s1362 + $0xf78] sm:$0xff]
        %v1921 = vld [vmem:[%s1362 + $0xf80] sm:$0xff]
        %v1922 = vld [vmem:[%s1362 + $0xf88] sm:$0xff]
        %v1923 = vld [vmem:[%s1362 + $0xf90] sm:$0xff]
        %v1924 = vld [vmem:[%s1362 + $0xf98] sm:$0xff]
        %v1925 = vld [vmem:[%s1362 + $0xfa0] sm:$0xff]
        %v1926 = vld [vmem:[%s1362 + $0xfa8] sm:$0xff]
        %v1927 = vld [vmem:[%s1362 + $0xfb0] sm:$0xff]
        %v1928 = vld [vmem:[%s1362 + $0xfb8] sm:$0xff]
        %v1929 = vld [vmem:[%s1362 + $0xfc0] sm:$0xff]
        %v1930 = vld [vmem:[%s1362 + $0xfc8] sm:$0xff]
        %v1931 = vld [vmem:[%s1362 + $0xfd0] sm:$0xff]
        %v1932 = vld [vmem:[%s1362 + $0xfd8] sm:$0xff]
        %v1933 = vld [vmem:[%s1362 + $0xfe0] sm:$0xff]
        %v1934 = vld [vmem:[%s1362 + $0xfe8] sm:$0xff]
        %v1935 = vld [vmem:[%s1362 + $0xff0] sm:$0xff]
        %v1936 = vld [vmem:[%s1362 + $0xff8] sm:$0xff]
        %v1937 = vld [vmem:[%s1362 + $0x1000] sm:$0xff]
        %v1938 = vld [vmem:[%s1362 + $0x1008] sm:$0xff]
        %v1939 = vld [vmem:[%s1362 + $0x1010] sm:$0xff]
        %v1940 = vld [vmem:[%s1362 + $0x1018] sm:$0xff]
        %v1941 = vld [vmem:[%s1362 + $0x1020] sm:$0xff]
        %v1942 = vld [vmem:[%s1362 + $0x1028] sm:$0xff]
        %v1943 = vld [vmem:[%s1362 + $0x1030] sm:$0xff]
        %v1944 = vld [vmem:[%s1362 + $0x1038] sm:$0xff]
        %v1945 = vld [vmem:[%s1362 + $0x1040] sm:$0xff]
        %v1946 = vld [vmem:[%s1362 + $0x1048] sm:$0xff]
        %v1947 = vld [vmem:[%s1362 + $0x1050] sm:$0xff]
        %v1948 = vld [vmem:[%s1362 + $0x1058] sm:$0xff]
        %v1949 = vld [vmem:[%s1362 + $0x1060] sm:$0xff]
        %v1950 = vld [vmem:[%s1362 + $0x1068] sm:$0xff]
        %v1951 = vld [vmem:[%s1362 + $0x1070] sm:$0xff]
        %v1952 = vld [vmem:[%s1362 + $0x1078] sm:$0xff]
        %v1953 = vld [vmem:[%s1362 + $0x1080] sm:$0xff]
        %v1954 = vld [vmem:[%s1362 + $0x1088] sm:$0xff]
        %v1955 = vld [vmem:[%s1362 + $0x1090] sm:$0xff]
        %v1956 = vld [vmem:[%s1362 + $0x1098] sm:$0xff]
        %v1957 = vld [vmem:[%s1362 + $0x10a0] sm:$0xff]
        %v1958 = vld [vmem:[%s1362 + $0x10a8] sm:$0xff]
        %v1959 = vld [vmem:[%s1362 + $0x10b0] sm:$0xff]
        %v1960 = vld [vmem:[%s1362 + $0x10b8] sm:$0xff]
        %v1961 = vld [vmem:[%s1362 + $0x10c0] sm:$0xff]
        %v1962 = vld [vmem:[%s1362 + $0x10c8] sm:$0xff]
        %v1963 = vld [vmem:[%s1362 + $0x10d0] sm:$0xff]
        %v1964 = vld [vmem:[%s1362 + $0x10d8] sm:$0xff]
        %v1965 = vld [vmem:[%s1362 + $0x10e0] sm:$0xff]
        %v1966 = vld [vmem:[%s1362 + $0x10e8] sm:$0xff]
        %v1967 = vld [vmem:[%s1362 + $0x10f0] sm:$0xff]
        %v1968 = vld [vmem:[%s1362 + $0x10f8] sm:$0xff]
        %v1969 = vld [vmem:[%s1362 + $0x1100] sm:$0xff]
        %v1970 = vld [vmem:[%s1362 + $0x1108] sm:$0xff]
        %v1971 = vld [vmem:[%s1362 + $0x1110] sm:$0xff]
        %v1972 = vld [vmem:[%s1362 + $0x1118] sm:$0xff]
        %v1973 = vld [vmem:[%s1362 + $0x1120] sm:$0xff]
        %v1974 = vld [vmem:[%s1362 + $0x1128] sm:$0xff]
        %v1975 = vld [vmem:[%s1362 + $0x1130] sm:$0xff]
        %v1976 = vld [vmem:[%s1362 + $0x1138] sm:$0xff]
        %v1977 = vld [vmem:[%s1362 + $0x1140] sm:$0xff]
        %v1978 = vld [vmem:[%s1362 + $0x1148] sm:$0xff]
        %v1979 = vld [vmem:[%s1362 + $0x1150] sm:$0xff]
        %v1980 = vld [vmem:[%s1362 + $0x1158] sm:$0xff]
        %v1981 = vld [vmem:[%s1362 + $0x1160] sm:$0xff]
        %v1982 = vld [vmem:[%s1362 + $0x1168] sm:$0xff]
        %v1983 = vld [vmem:[%s1362 + $0x1170] sm:$0xff]
        %v1984 = vld [vmem:[%s1362 + $0x1178] sm:$0xff]
        %v1985 = vld [vmem:[%s1362 + $0x1180] sm:$0xff]
        %v1986 = vld [vmem:[%s1362 + $0x1188] sm:$0xff]
        %v1987 = vld [vmem:[%s1362 + $0x1190] sm:$0xff]
        %v1988 = vld [vmem:[%s1362 + $0x1198] sm:$0xff]
        %v1989 = vld [vmem:[%s1362 + $0x11a0] sm:$0xff]
        %v1990 = vld [vmem:[%s1362 + $0x11a8] sm:$0xff]
        %v1991 = vld [vmem:[%s1362 + $0x11b0] sm:$0xff]
        %v1992 = vld [vmem:[%s1362 + $0x11b8] sm:$0xff]
        %v1993 = vld [vmem:[%s1362 + $0x11c0] sm:$0xff]
        %v1994 = vld [vmem:[%s1362 + $0x11c8] sm:$0xff]
        %v1995 = vld [vmem:[%s1362 + $0x11d0] sm:$0xff]
        %v1996 = vld [vmem:[%s1362 + $0x11d8] sm:$0xff]
        %v1997 = vld [vmem:[%s1362 + $0x11e0] sm:$0xff]
        %v1998 = vld [vmem:[%s1362 + $0x11e8] sm:$0xff]
        %v1999 = vld [vmem:[%s1362 + $0x11f0] sm:$0xff]
        %v2000 = vld [vmem:[%s1362 + $0x11f8] sm:$0xff]
        %v2001 = vld [vmem:[%s1399] sm:$0x3f]
        %v2003 = vlaneseq
        %v2004 = vshrl.u32 %v2003, 7
        %v2005 = vsub.s32 0, %v2004
        %v2006 = vrot.slane %v2001, %v2005
        %v2007 = vlaneseq
        %v2008 = vshrl.u32 %v2007, 7
        %v2009 = vsub.s32 1, %v2008
        %v2010 = vrot.slane %v2001, %v2009
        %v2011 = vlaneseq
        %v2012 = vshrl.u32 %v2011, 7
        %v2013 = vsub.s32 2, %v2012
        %v2014 = vrot.slane %v2001, %v2013
        %v2015 = vlaneseq
        %v2016 = vshrl.u32 %v2015, 7
        %v2017 = vsub.s32 3, %v2016
        %v2018 = vrot.slane %v2001, %v2017
        %v2019 = vlaneseq
        %v2020 = vshrl.u32 %v2019, 7
        %v2021 = vsub.s32 4, %v2020
        %v2022 = vrot.slane %v2001, %v2021
        %v2023 = vlaneseq
        %v2024 = vshrl.u32 %v2023, 7
        %v2025 = vsub.s32 5, %v2024
        %v2026 = vrot.slane %v2001, %v2025
        %v2045 = vunpack.c.l.b16 %v1413
        %v2046 = vunpack.c.h.b16 %v1413
        %v2047 = vunpack.c.l.b16 %v1414
        %v2048 = vunpack.c.h.b16 %v1414
        %v2049 = vunpack.c.l.b16 %v1415
        %v2050 = vunpack.c.h.b16 %v1415
        %v2051 = vunpack.c.l.b16 %v1416
        %v2052 = vunpack.c.h.b16 %v1416
        %v2053 = vunpack.c.l.b16 %v1417
        %v2054 = vunpack.c.h.b16 %v1417
        %v2055 = vunpack.c.l.b16 %v1418
        %v2056 = vunpack.c.h.b16 %v1418
        %v2057 = vunpack.c.l.b16 %v1419
        %v2058 = vunpack.c.h.b16 %v1419
        %v2059 = vunpack.c.l.b16 %v1420
        %v2060 = vunpack.c.h.b16 %v1420
        %v2061 = vunpack.c.l.b16 %v1421
        %v2062 = vunpack.c.h.b16 %v1421
        %v2063 = vunpack.c.l.b16 %v1422
        %v2064 = vunpack.c.h.b16 %v1422
        %v2065 = vunpack.c.l.b16 %v1423
        %v2066 = vunpack.c.h.b16 %v1423
        %v2067 = vunpack.c.l.b16 %v1424
        %v2068 = vunpack.c.h.b16 %v1424
        %v2069 = vpack.c.b16 %v2057, %v2045
        %v2070 = vpack.c.b16 %v2058, %v2046
        %v2071 = vpack.c.b16 %v2059, %v2047
        %v2072 = vpack.c.b16 %v2060, %v2048
        %v2073 = vpack.c.b16 %v2061, %v2049
        %v2074 = vpack.c.b16 %v2062, %v2050
        %v2075 = vpack.c.b16 %v2063, %v2051
        %v2076 = vpack.c.b16 %v2064, %v2052
        %v2077 = vpack.c.b16 %v2065, %v2053
        %v2078 = vpack.c.b16 %v2066, %v2054
        %v2079 = vpack.c.b16 %v2067, %v2055
        %v2080 = vpack.c.b16 %v2068, %v2056
        %v2669 = vunpack.c.l.b16 %v1425
        %v2670 = vunpack.c.h.b16 %v1425
        %v2671 = vunpack.c.l.b16 %v1426
        %v2672 = vunpack.c.h.b16 %v1426
        %v2673 = vunpack.c.l.b16 %v1427
        %v2674 = vunpack.c.h.b16 %v1427
        %v2675 = vunpack.c.l.b16 %v1428
        %v2676 = vunpack.c.h.b16 %v1428
        %v2677 = vunpack.c.l.b16 %v1429
        %v2678 = vunpack.c.h.b16 %v1429
        %v2679 = vunpack.c.l.b16 %v1430
        %v2680 = vunpack.c.h.b16 %v1430
        %v2681 = vunpack.c.l.b16 %v1431
        %v2682 = vunpack.c.h.b16 %v1431
        %v2683 = vunpack.c.l.b16 %v1432
        %v2684 = vunpack.c.h.b16 %v1432
        %v2685 = vunpack.c.l.b16 %v1433
        %v2686 = vunpack.c.h.b16 %v1433
        %v2687 = vunpack.c.l.b16 %v1434
        %v2688 = vunpack.c.h.b16 %v1434
        %v2689 = vunpack.c.l.b16 %v1435
        %v2690 = vunpack.c.h.b16 %v1435
        %v2691 = vunpack.c.l.b16 %v1436
        %v2692 = vunpack.c.h.b16 %v1436
        %v2693 = vunpack.c.l.b16 %v1437
        %v2694 = vunpack.c.h.b16 %v1437
        %v2695 = vunpack.c.l.b16 %v1438
        %v2696 = vunpack.c.h.b16 %v1438
        %v2697 = vunpack.c.l.b16 %v1439
        %v2698 = vunpack.c.h.b16 %v1439
        %v2699 = vunpack.c.l.b16 %v1440
        %v2700 = vunpack.c.h.b16 %v1440
        %v2701 = vunpack.c.l.b16 %v1441
        %v2702 = vunpack.c.h.b16 %v1441
        %v2703 = vunpack.c.l.b16 %v1442
        %v2704 = vunpack.c.h.b16 %v1442
        %v2705 = vunpack.c.l.b16 %v1443
        %v2706 = vunpack.c.h.b16 %v1443
        %v2707 = vunpack.c.l.b16 %v1444
        %v2708 = vunpack.c.h.b16 %v1444
        %v2709 = vunpack.c.l.b16 %v1445
        %v2710 = vunpack.c.h.b16 %v1445
        %v2711 = vunpack.c.l.b16 %v1446
        %v2712 = vunpack.c.h.b16 %v1446
        %v2713 = vunpack.c.l.b16 %v1447
        %v2714 = vunpack.c.h.b16 %v1447
        %v2715 = vunpack.c.l.b16 %v1448
        %v2716 = vunpack.c.h.b16 %v1448
        %v2717 = vunpack.c.l.b16 %v1449
        %v2718 = vunpack.c.h.b16 %v1449
        %v2719 = vunpack.c.l.b16 %v1450
        %v2720 = vunpack.c.h.b16 %v1450
        %v2721 = vunpack.c.l.b16 %v1451
        %v2722 = vunpack.c.h.b16 %v1451
        %v2723 = vunpack.c.l.b16 %v1452
        %v2724 = vunpack.c.h.b16 %v1452
        %v2725 = vunpack.c.l.b16 %v1453
        %v2726 = vunpack.c.h.b16 %v1453
        %v2727 = vunpack.c.l.b16 %v1454
        %v2728 = vunpack.c.h.b16 %v1454
        %v2729 = vunpack.c.l.b16 %v1455
        %v2730 = vunpack.c.h.b16 %v1455
        %v2731 = vunpack.c.l.b16 %v1456
        %v2732 = vunpack.c.h.b16 %v1456
        %v2733 = vunpack.c.l.b16 %v1457
        %v2734 = vunpack.c.h.b16 %v1457
        %v2735 = vunpack.c.l.b16 %v1458
        %v2736 = vunpack.c.h.b16 %v1458
        %v2737 = vunpack.c.l.b16 %v1459
        %v2738 = vunpack.c.h.b16 %v1459
        %v2739 = vunpack.c.l.b16 %v1460
        %v2740 = vunpack.c.h.b16 %v1460
        %v2741 = vunpack.c.l.b16 %v1461
        %v2742 = vunpack.c.h.b16 %v1461
        %v2743 = vunpack.c.l.b16 %v1462
        %v2744 = vunpack.c.h.b16 %v1462
        %v2745 = vunpack.c.l.b16 %v1463
        %v2746 = vunpack.c.h.b16 %v1463
        %v2747 = vunpack.c.l.b16 %v1464
        %v2748 = vunpack.c.h.b16 %v1464
        %v2749 = vunpack.c.l.b16 %v1465
        %v2750 = vunpack.c.h.b16 %v1465
        %v2751 = vunpack.c.l.b16 %v1466
        %v2752 = vunpack.c.h.b16 %v1466
        %v2753 = vunpack.c.l.b16 %v1467
        %v2754 = vunpack.c.h.b16 %v1467
        %v2755 = vunpack.c.l.b16 %v1468
        %v2756 = vunpack.c.h.b16 %v1468
        %v2757 = vunpack.c.l.b16 %v1469
        %v2758 = vunpack.c.h.b16 %v1469
        %v2759 = vunpack.c.l.b16 %v1470
        %v2760 = vunpack.c.h.b16 %v1470
        %v2761 = vunpack.c.l.b16 %v1471
        %v2762 = vunpack.c.h.b16 %v1471
        %v2763 = vunpack.c.l.b16 %v1472
        %v2764 = vunpack.c.h.b16 %v1472
        %v2765 = vunpack.c.l.b16 %v1473
        %v2766 = vunpack.c.h.b16 %v1473
        %v2767 = vunpack.c.l.b16 %v1474
        %v2768 = vunpack.c.h.b16 %v1474
        %v2769 = vunpack.c.l.b16 %v1475
        %v2770 = vunpack.c.h.b16 %v1475
        %v2771 = vunpack.c.l.b16 %v1476
        %v2772 = vunpack.c.h.b16 %v1476
        %v2773 = vunpack.c.l.b16 %v1477
        %v2774 = vunpack.c.h.b16 %v1477
        %v2775 = vunpack.c.l.b16 %v1478
        %v2776 = vunpack.c.h.b16 %v1478
        %v2777 = vunpack.c.l.b16 %v1479
        %v2778 = vunpack.c.h.b16 %v1479
        %v2779 = vunpack.c.l.b16 %v1480
        %v2780 = vunpack.c.h.b16 %v1480
        %v2781 = vunpack.c.l.b16 %v1481
        %v2782 = vunpack.c.h.b16 %v1481
        %v2783 = vunpack.c.l.b16 %v1482
        %v2784 = vunpack.c.h.b16 %v1482
        %v2785 = vunpack.c.l.b16 %v1483
        %v2786 = vunpack.c.h.b16 %v1483
        %v2787 = vunpack.c.l.b16 %v1484
        %v2788 = vunpack.c.h.b16 %v1484
        %v2789 = vunpack.c.l.b16 %v1485
        %v2790 = vunpack.c.h.b16 %v1485
        %v2791 = vunpack.c.l.b16 %v1486
        %v2792 = vunpack.c.h.b16 %v1486
        %v2793 = vunpack.c.l.b16 %v1487
        %v2794 = vunpack.c.h.b16 %v1487
        %v2795 = vunpack.c.l.b16 %v1488
        %v2796 = vunpack.c.h.b16 %v1488
        %v2797 = vunpack.c.l.b16 %v1489
        %v2798 = vunpack.c.h.b16 %v1489
        %v2799 = vunpack.c.l.b16 %v1490
        %v2800 = vunpack.c.h.b16 %v1490
        %v2801 = vunpack.c.l.b16 %v1491
        %v2802 = vunpack.c.h.b16 %v1491
        %v2803 = vunpack.c.l.b16 %v1492
        %v2804 = vunpack.c.h.b16 %v1492
        %v2805 = vunpack.c.l.b16 %v1493
        %v2806 = vunpack.c.h.b16 %v1493
        %v2807 = vunpack.c.l.b16 %v1494
        %v2808 = vunpack.c.h.b16 %v1494
        %v2809 = vunpack.c.l.b16 %v1495
        %v2810 = vunpack.c.h.b16 %v1495
        %v2811 = vunpack.c.l.b16 %v1496
        %v2812 = vunpack.c.h.b16 %v1496
        %v2813 = vunpack.c.l.b16 %v1497
        %v2814 = vunpack.c.h.b16 %v1497
        %v2815 = vunpack.c.l.b16 %v1498
        %v2816 = vunpack.c.h.b16 %v1498
        %v2817 = vunpack.c.l.b16 %v1499
        %v2818 = vunpack.c.h.b16 %v1499
        %v2819 = vunpack.c.l.b16 %v1500
        %v2820 = vunpack.c.h.b16 %v1500
        %v2821 = vunpack.c.l.b16 %v1501
        %v2822 = vunpack.c.h.b16 %v1501
        %v2823 = vunpack.c.l.b16 %v1502
        %v2824 = vunpack.c.h.b16 %v1502
        %v2825 = vunpack.c.l.b16 %v1503
        %v2826 = vunpack.c.h.b16 %v1503
        %v2827 = vunpack.c.l.b16 %v1504
        %v2828 = vunpack.c.h.b16 %v1504
        %v2829 = vunpack.c.l.b16 %v1505
        %v2830 = vunpack.c.h.b16 %v1505
        %v2831 = vunpack.c.l.b16 %v1506
        %v2832 = vunpack.c.h.b16 %v1506
        %v2833 = vunpack.c.l.b16 %v1507
        %v2834 = vunpack.c.h.b16 %v1507
        %v2835 = vunpack.c.l.b16 %v1508
        %v2836 = vunpack.c.h.b16 %v1508
        %v2837 = vunpack.c.l.b16 %v1509
        %v2838 = vunpack.c.h.b16 %v1509
        %v2839 = vunpack.c.l.b16 %v1510
        %v2840 = vunpack.c.h.b16 %v1510
        %v2841 = vunpack.c.l.b16 %v1511
        %v2842 = vunpack.c.h.b16 %v1511
        %v2843 = vunpack.c.l.b16 %v1512
        %v2844 = vunpack.c.h.b16 %v1512
        %v2845 = vunpack.c.l.b16 %v1513
        %v2846 = vunpack.c.h.b16 %v1513
        %v2847 = vunpack.c.l.b16 %v1514
        %v2848 = vunpack.c.h.b16 %v1514
        %v2849 = vunpack.c.l.b16 %v1515
        %v2850 = vunpack.c.h.b16 %v1515
        %v2851 = vunpack.c.l.b16 %v1516
        %v2852 = vunpack.c.h.b16 %v1516
        %v2853 = vunpack.c.l.b16 %v1517
        %v2854 = vunpack.c.h.b16 %v1517
        %v2855 = vunpack.c.l.b16 %v1518
        %v2856 = vunpack.c.h.b16 %v1518
        %v2857 = vunpack.c.l.b16 %v1519
        %v2858 = vunpack.c.h.b16 %v1519
        %v2859 = vunpack.c.l.b16 %v1520
        %v2860 = vunpack.c.h.b16 %v1520
        %v2861 = vunpack.c.l.b16 %v1521
        %v2862 = vunpack.c.h.b16 %v1521
        %v2863 = vunpack.c.l.b16 %v1522
        %v2864 = vunpack.c.h.b16 %v1522
        %v2865 = vunpack.c.l.b16 %v1523
        %v2866 = vunpack.c.h.b16 %v1523
        %v2867 = vunpack.c.l.b16 %v1524
        %v2868 = vunpack.c.h.b16 %v1524
        %v2869 = vunpack.c.l.b16 %v1525
        %v2870 = vunpack.c.h.b16 %v1525
        %v2871 = vunpack.c.l.b16 %v1526
        %v2872 = vunpack.c.h.b16 %v1526
        %v2873 = vunpack.c.l.b16 %v1527
        %v2874 = vunpack.c.h.b16 %v1527
        %v2875 = vunpack.c.l.b16 %v1528
        %v2876 = vunpack.c.h.b16 %v1528
        %v2877 = vunpack.c.l.b16 %v1529
        %v2878 = vunpack.c.h.b16 %v1529
        %v2879 = vunpack.c.l.b16 %v1530
        %v2880 = vunpack.c.h.b16 %v1530
        %v2881 = vunpack.c.l.b16 %v1531
        %v2882 = vunpack.c.h.b16 %v1531
        %v2883 = vunpack.c.l.b16 %v1532
        %v2884 = vunpack.c.h.b16 %v1532
        %v2885 = vunpack.c.l.b16 %v1533
        %v2886 = vunpack.c.h.b16 %v1533
        %v2887 = vunpack.c.l.b16 %v1534
        %v2888 = vunpack.c.h.b16 %v1534
        %v2889 = vunpack.c.l.b16 %v1535
        %v2890 = vunpack.c.h.b16 %v1535
        %v2891 = vunpack.c.l.b16 %v1536
        %v2892 = vunpack.c.h.b16 %v1536
        %v2893 = vunpack.c.l.b16 %v1537
        %v2894 = vunpack.c.h.b16 %v1537
        %v2895 = vunpack.c.l.b16 %v1538
        %v2896 = vunpack.c.h.b16 %v1538
        %v2897 = vunpack.c.l.b16 %v1539
        %v2898 = vunpack.c.h.b16 %v1539
        %v2899 = vunpack.c.l.b16 %v1540
        %v2900 = vunpack.c.h.b16 %v1540
        %v2901 = vunpack.c.l.b16 %v1541
        %v2902 = vunpack.c.h.b16 %v1541
        %v2903 = vunpack.c.l.b16 %v1542
        %v2904 = vunpack.c.h.b16 %v1542
        %v2905 = vunpack.c.l.b16 %v1543
        %v2906 = vunpack.c.h.b16 %v1543
        %v2907 = vunpack.c.l.b16 %v1544
        %v2908 = vunpack.c.h.b16 %v1544
        %v2909 = vunpack.c.l.b16 %v1545
        %v2910 = vunpack.c.h.b16 %v1545
        %v2911 = vunpack.c.l.b16 %v1546
        %v2912 = vunpack.c.h.b16 %v1546
        %v2913 = vunpack.c.l.b16 %v1547
        %v2914 = vunpack.c.h.b16 %v1547
        %v2915 = vunpack.c.l.b16 %v1548
        %v2916 = vunpack.c.h.b16 %v1548
        %v2917 = vunpack.c.l.b16 %v1549
        %v2918 = vunpack.c.h.b16 %v1549
        %v2919 = vunpack.c.l.b16 %v1550
        %v2920 = vunpack.c.h.b16 %v1550
        %v2921 = vunpack.c.l.b16 %v1551
        %v2922 = vunpack.c.h.b16 %v1551
        %v2923 = vunpack.c.l.b16 %v1552
        %v2924 = vunpack.c.h.b16 %v1552
        %v2925 = vunpack.c.l.b16 %v1553
        %v2926 = vunpack.c.h.b16 %v1553
        %v2927 = vunpack.c.l.b16 %v1554
        %v2928 = vunpack.c.h.b16 %v1554
        %v2929 = vunpack.c.l.b16 %v1555
        %v2930 = vunpack.c.h.b16 %v1555
        %v2931 = vunpack.c.l.b16 %v1556
        %v2932 = vunpack.c.h.b16 %v1556
        %v2933 = vunpack.c.l.b16 %v1557
        %v2934 = vunpack.c.h.b16 %v1557
        %v2935 = vunpack.c.l.b16 %v1558
        %v2936 = vunpack.c.h.b16 %v1558
        %v2937 = vunpack.c.l.b16 %v1559
        %v2938 = vunpack.c.h.b16 %v1559
        %v2939 = vunpack.c.l.b16 %v1560
        %v2940 = vunpack.c.h.b16 %v1560
        %v2941 = vunpack.c.l.b16 %v1561
        %v2942 = vunpack.c.h.b16 %v1561
        %v2943 = vunpack.c.l.b16 %v1562
        %v2944 = vunpack.c.h.b16 %v1562
        %v2945 = vunpack.c.l.b16 %v1563
        %v2946 = vunpack.c.h.b16 %v1563
        %v2947 = vunpack.c.l.b16 %v1564
        %v2948 = vunpack.c.h.b16 %v1564
        %v2949 = vunpack.c.l.b16 %v1565
        %v2950 = vunpack.c.h.b16 %v1565
        %v2951 = vunpack.c.l.b16 %v1566
        %v2952 = vunpack.c.h.b16 %v1566
        %v2953 = vunpack.c.l.b16 %v1567
        %v2954 = vunpack.c.h.b16 %v1567
        %v2955 = vunpack.c.l.b16 %v1568
        %v2956 = vunpack.c.h.b16 %v1568
        %v2957 = vunpack.c.l.b16 %v1569
        %v2958 = vunpack.c.h.b16 %v1569
        %v2959 = vunpack.c.l.b16 %v1570
        %v2960 = vunpack.c.h.b16 %v1570
        %v2961 = vunpack.c.l.b16 %v1571
        %v2962 = vunpack.c.h.b16 %v1571
        %v2963 = vunpack.c.l.b16 %v1572
        %v2964 = vunpack.c.h.b16 %v1572
        %v2965 = vunpack.c.l.b16 %v1573
        %v2966 = vunpack.c.h.b16 %v1573
        %v2967 = vunpack.c.l.b16 %v1574
        %v2968 = vunpack.c.h.b16 %v1574
        %v2969 = vunpack.c.l.b16 %v1575
        %v2970 = vunpack.c.h.b16 %v1575
        %v2971 = vunpack.c.l.b16 %v1576
        %v2972 = vunpack.c.h.b16 %v1576
        %v2973 = vunpack.c.l.b16 %v1577
        %v2974 = vunpack.c.h.b16 %v1577
        %v2975 = vunpack.c.l.b16 %v1578
        %v2976 = vunpack.c.h.b16 %v1578
        %v2977 = vunpack.c.l.b16 %v1579
        %v2978 = vunpack.c.h.b16 %v1579
        %v2979 = vunpack.c.l.b16 %v1580
        %v2980 = vunpack.c.h.b16 %v1580
        %v2981 = vunpack.c.l.b16 %v1581
        %v2982 = vunpack.c.h.b16 %v1581
        %v2983 = vunpack.c.l.b16 %v1582
        %v2984 = vunpack.c.h.b16 %v1582
        %v2985 = vunpack.c.l.b16 %v1583
        %v2986 = vunpack.c.h.b16 %v1583
        %v2987 = vunpack.c.l.b16 %v1584
        %v2988 = vunpack.c.h.b16 %v1584
        %v2989 = vunpack.c.l.b16 %v1585
        %v2990 = vunpack.c.h.b16 %v1585
        %v2991 = vunpack.c.l.b16 %v1586
        %v2992 = vunpack.c.h.b16 %v1586
        %v2993 = vunpack.c.l.b16 %v1587
        %v2994 = vunpack.c.h.b16 %v1587
        %v2995 = vunpack.c.l.b16 %v1588
        %v2996 = vunpack.c.h.b16 %v1588
        %v2997 = vunpack.c.l.b16 %v1589
        %v2998 = vunpack.c.h.b16 %v1589
        %v2999 = vunpack.c.l.b16 %v1590
        %v3000 = vunpack.c.h.b16 %v1590
        %v3001 = vunpack.c.l.b16 %v1591
        %v3002 = vunpack.c.h.b16 %v1591
        %v3003 = vunpack.c.l.b16 %v1592
        %v3004 = vunpack.c.h.b16 %v1592
        %v3005 = vunpack.c.l.b16 %v1593
        %v3006 = vunpack.c.h.b16 %v1593
        %v3007 = vunpack.c.l.b16 %v1594
        %v3008 = vunpack.c.h.b16 %v1594
        %v3009 = vunpack.c.l.b16 %v1595
        %v3010 = vunpack.c.h.b16 %v1595
        %v3011 = vunpack.c.l.b16 %v1596
        %v3012 = vunpack.c.h.b16 %v1596
        %v3013 = vunpack.c.l.b16 %v1597
        %v3014 = vunpack.c.h.b16 %v1597
        %v3015 = vunpack.c.l.b16 %v1598
        %v3016 = vunpack.c.h.b16 %v1598
        %v3017 = vunpack.c.l.b16 %v1599
        %v3018 = vunpack.c.h.b16 %v1599
        %v3019 = vunpack.c.l.b16 %v1600
        %v3020 = vunpack.c.h.b16 %v1600
        %v3021 = vunpack.c.l.b16 %v1601
        %v3022 = vunpack.c.h.b16 %v1601
        %v3023 = vunpack.c.l.b16 %v1602
        %v3024 = vunpack.c.h.b16 %v1602
        %v3025 = vunpack.c.l.b16 %v1603
        %v3026 = vunpack.c.h.b16 %v1603
        %v3027 = vunpack.c.l.b16 %v1604
        %v3028 = vunpack.c.h.b16 %v1604
        %v3029 = vunpack.c.l.b16 %v1605
        %v3030 = vunpack.c.h.b16 %v1605
        %v3031 = vunpack.c.l.b16 %v1606
        %v3032 = vunpack.c.h.b16 %v1606
        %v3033 = vunpack.c.l.b16 %v1607
        %v3034 = vunpack.c.h.b16 %v1607
        %v3035 = vunpack.c.l.b16 %v1608
        %v3036 = vunpack.c.h.b16 %v1608
        %v3037 = vunpack.c.l.b16 %v1609
        %v3038 = vunpack.c.h.b16 %v1609
        %v3039 = vunpack.c.l.b16 %v1610
        %v3040 = vunpack.c.h.b16 %v1610
        %v3041 = vunpack.c.l.b16 %v1611
        %v3042 = vunpack.c.h.b16 %v1611
        %v3043 = vunpack.c.l.b16 %v1612
        %v3044 = vunpack.c.h.b16 %v1612
        %v3045 = vunpack.c.l.b16 %v1613
        %v3046 = vunpack.c.h.b16 %v1613
        %v3047 = vunpack.c.l.b16 %v1614
        %v3048 = vunpack.c.h.b16 %v1614
        %v3049 = vunpack.c.l.b16 %v1615
        %v3050 = vunpack.c.h.b16 %v1615
        %v3051 = vunpack.c.l.b16 %v1616
        %v3052 = vunpack.c.h.b16 %v1616
        %v3053 = vunpack.c.l.b16 %v1617
        %v3054 = vunpack.c.h.b16 %v1617
        %v3055 = vunpack.c.l.b16 %v1618
        %v3056 = vunpack.c.h.b16 %v1618
        %v3057 = vunpack.c.l.b16 %v1619
        %v3058 = vunpack.c.h.b16 %v1619
        %v3059 = vunpack.c.l.b16 %v1620
        %v3060 = vunpack.c.h.b16 %v1620
        %v3061 = vunpack.c.l.b16 %v1621
        %v3062 = vunpack.c.h.b16 %v1621
        %v3063 = vunpack.c.l.b16 %v1622
        %v3064 = vunpack.c.h.b16 %v1622
        %v3065 = vunpack.c.l.b16 %v1623
        %v3066 = vunpack.c.h.b16 %v1623
        %v3067 = vunpack.c.l.b16 %v1624
        %v3068 = vunpack.c.h.b16 %v1624
        %v3069 = vunpack.c.l.b16 %v1625
        %v3070 = vunpack.c.h.b16 %v1625
        %v3071 = vunpack.c.l.b16 %v1626
        %v3072 = vunpack.c.h.b16 %v1626
        %v3073 = vunpack.c.l.b16 %v1627
        %v3074 = vunpack.c.h.b16 %v1627
        %v3075 = vunpack.c.l.b16 %v1628
        %v3076 = vunpack.c.h.b16 %v1628
        %v3077 = vunpack.c.l.b16 %v1629
        %v3078 = vunpack.c.h.b16 %v1629
        %v3079 = vunpack.c.l.b16 %v1630
        %v3080 = vunpack.c.h.b16 %v1630
        %v3081 = vunpack.c.l.b16 %v1631
        %v3082 = vunpack.c.h.b16 %v1631
        %v3083 = vunpack.c.l.b16 %v1632
        %v3084 = vunpack.c.h.b16 %v1632
        %v3085 = vunpack.c.l.b16 %v1633
        %v3086 = vunpack.c.h.b16 %v1633
        %v3087 = vunpack.c.l.b16 %v1634
        %v3088 = vunpack.c.h.b16 %v1634
        %v3089 = vunpack.c.l.b16 %v1635
        %v3090 = vunpack.c.h.b16 %v1635
        %v3091 = vunpack.c.l.b16 %v1636
        %v3092 = vunpack.c.h.b16 %v1636
        %v3093 = vunpack.c.l.b16 %v1637
        %v3094 = vunpack.c.h.b16 %v1637
        %v3095 = vunpack.c.l.b16 %v1638
        %v3096 = vunpack.c.h.b16 %v1638
        %v3097 = vunpack.c.l.b16 %v1639
        %v3098 = vunpack.c.h.b16 %v1639
        %v3099 = vunpack.c.l.b16 %v1640
        %v3100 = vunpack.c.h.b16 %v1640
        %v3101 = vunpack.c.l.b16 %v1641
        %v3102 = vunpack.c.h.b16 %v1641
        %v3103 = vunpack.c.l.b16 %v1642
        %v3104 = vunpack.c.h.b16 %v1642
        %v3105 = vunpack.c.l.b16 %v1643
        %v3106 = vunpack.c.h.b16 %v1643
        %v3107 = vunpack.c.l.b16 %v1644
        %v3108 = vunpack.c.h.b16 %v1644
        %v3109 = vunpack.c.l.b16 %v1645
        %v3110 = vunpack.c.h.b16 %v1645
        %v3111 = vunpack.c.l.b16 %v1646
        %v3112 = vunpack.c.h.b16 %v1646
        %v3113 = vunpack.c.l.b16 %v1647
        %v3114 = vunpack.c.h.b16 %v1647
        %v3115 = vunpack.c.l.b16 %v1648
        %v3116 = vunpack.c.h.b16 %v1648
        %v3117 = vunpack.c.l.b16 %v1649
        %v3118 = vunpack.c.h.b16 %v1649
        %v3119 = vunpack.c.l.b16 %v1650
        %v3120 = vunpack.c.h.b16 %v1650
        %v3121 = vunpack.c.l.b16 %v1651
        %v3122 = vunpack.c.h.b16 %v1651
        %v3123 = vunpack.c.l.b16 %v1652
        %v3124 = vunpack.c.h.b16 %v1652
        %v3125 = vunpack.c.l.b16 %v1653
        %v3126 = vunpack.c.h.b16 %v1653
        %v3127 = vunpack.c.l.b16 %v1654
        %v3128 = vunpack.c.h.b16 %v1654
        %v3129 = vunpack.c.l.b16 %v1655
        %v3130 = vunpack.c.h.b16 %v1655
        %v3131 = vunpack.c.l.b16 %v1656
        %v3132 = vunpack.c.h.b16 %v1656
        %v3133 = vunpack.c.l.b16 %v1657
        %v3134 = vunpack.c.h.b16 %v1657
        %v3135 = vunpack.c.l.b16 %v1658
        %v3136 = vunpack.c.h.b16 %v1658
        %v3137 = vunpack.c.l.b16 %v1659
        %v3138 = vunpack.c.h.b16 %v1659
        %v3139 = vunpack.c.l.b16 %v1660
        %v3140 = vunpack.c.h.b16 %v1660
        %v3141 = vunpack.c.l.b16 %v1661
        %v3142 = vunpack.c.h.b16 %v1661
        %v3143 = vunpack.c.l.b16 %v1662
        %v3144 = vunpack.c.h.b16 %v1662
        %v3145 = vunpack.c.l.b16 %v1663
        %v3146 = vunpack.c.h.b16 %v1663
        %v3147 = vunpack.c.l.b16 %v1664
        %v3148 = vunpack.c.h.b16 %v1664
        %v3149 = vunpack.c.l.b16 %v1665
        %v3150 = vunpack.c.h.b16 %v1665
        %v3151 = vunpack.c.l.b16 %v1666
        %v3152 = vunpack.c.h.b16 %v1666
        %v3153 = vunpack.c.l.b16 %v1667
        %v3154 = vunpack.c.h.b16 %v1667
        %v3155 = vunpack.c.l.b16 %v1668
        %v3156 = vunpack.c.h.b16 %v1668
        %v3157 = vunpack.c.l.b16 %v1669
        %v3158 = vunpack.c.h.b16 %v1669
        %v3159 = vunpack.c.l.b16 %v1670
        %v3160 = vunpack.c.h.b16 %v1670
        %v3161 = vunpack.c.l.b16 %v1671
        %v3162 = vunpack.c.h.b16 %v1671
        %v3163 = vunpack.c.l.b16 %v1672
        %v3164 = vunpack.c.h.b16 %v1672
        %v3165 = vunpack.c.l.b16 %v1673
        %v3166 = vunpack.c.h.b16 %v1673
        %v3167 = vunpack.c.l.b16 %v1674
        %v3168 = vunpack.c.h.b16 %v1674
        %v3169 = vunpack.c.l.b16 %v1675
        %v3170 = vunpack.c.h.b16 %v1675
        %v3171 = vunpack.c.l.b16 %v1676
        %v3172 = vunpack.c.h.b16 %v1676
        %v3173 = vunpack.c.l.b16 %v1677
        %v3174 = vunpack.c.h.b16 %v1677
        %v3175 = vunpack.c.l.b16 %v1678
        %v3176 = vunpack.c.h.b16 %v1678
        %v3177 = vunpack.c.l.b16 %v1679
        %v3178 = vunpack.c.h.b16 %v1679
        %v3179 = vunpack.c.l.b16 %v1680
        %v3180 = vunpack.c.h.b16 %v1680
        %v3181 = vunpack.c.l.b16 %v1681
        %v3182 = vunpack.c.h.b16 %v1681
        %v3183 = vunpack.c.l.b16 %v1682
        %v3184 = vunpack.c.h.b16 %v1682
        %v3185 = vunpack.c.l.b16 %v1683
        %v3186 = vunpack.c.h.b16 %v1683
        %v3187 = vunpack.c.l.b16 %v1684
        %v3188 = vunpack.c.h.b16 %v1684
        %v3189 = vunpack.c.l.b16 %v1685
        %v3190 = vunpack.c.h.b16 %v1685
        %v3191 = vunpack.c.l.b16 %v1686
        %v3192 = vunpack.c.h.b16 %v1686
        %v3193 = vunpack.c.l.b16 %v1687
        %v3194 = vunpack.c.h.b16 %v1687
        %v3195 = vunpack.c.l.b16 %v1688
        %v3196 = vunpack.c.h.b16 %v1688
        %v3197 = vunpack.c.l.b16 %v1689
        %v3198 = vunpack.c.h.b16 %v1689
        %v3199 = vunpack.c.l.b16 %v1690
        %v3200 = vunpack.c.h.b16 %v1690
        %v3201 = vunpack.c.l.b16 %v1691
        %v3202 = vunpack.c.h.b16 %v1691
        %v3203 = vunpack.c.l.b16 %v1692
        %v3204 = vunpack.c.h.b16 %v1692
        %v3205 = vunpack.c.l.b16 %v1693
        %v3206 = vunpack.c.h.b16 %v1693
        %v3207 = vunpack.c.l.b16 %v1694
        %v3208 = vunpack.c.h.b16 %v1694
        %v3209 = vunpack.c.l.b16 %v1695
        %v3210 = vunpack.c.h.b16 %v1695
        %v3211 = vunpack.c.l.b16 %v1696
        %v3212 = vunpack.c.h.b16 %v1696
        %v3213 = vunpack.c.l.b16 %v1697
        %v3214 = vunpack.c.h.b16 %v1697
        %v3215 = vunpack.c.l.b16 %v1698
        %v3216 = vunpack.c.h.b16 %v1698
        %v3217 = vunpack.c.l.b16 %v1699
        %v3218 = vunpack.c.h.b16 %v1699
        %v3219 = vunpack.c.l.b16 %v1700
        %v3220 = vunpack.c.h.b16 %v1700
        %v3221 = vunpack.c.l.b16 %v1701
        %v3222 = vunpack.c.h.b16 %v1701
        %v3223 = vunpack.c.l.b16 %v1702
        %v3224 = vunpack.c.h.b16 %v1702
        %v3225 = vunpack.c.l.b16 %v1703
        %v3226 = vunpack.c.h.b16 %v1703
        %v3227 = vunpack.c.l.b16 %v1704
        %v3228 = vunpack.c.h.b16 %v1704
        %v3229 = vunpack.c.l.b16 %v1705
        %v3230 = vunpack.c.h.b16 %v1705
        %v3231 = vunpack.c.l.b16 %v1706
        %v3232 = vunpack.c.h.b16 %v1706
        %v3233 = vunpack.c.l.b16 %v1707
        %v3234 = vunpack.c.h.b16 %v1707
        %v3235 = vunpack.c.l.b16 %v1708
        %v3236 = vunpack.c.h.b16 %v1708
        %v3237 = vunpack.c.l.b16 %v1709
        %v3238 = vunpack.c.h.b16 %v1709
        %v3239 = vunpack.c.l.b16 %v1710
        %v3240 = vunpack.c.h.b16 %v1710
        %v3241 = vunpack.c.l.b16 %v1711
        %v3242 = vunpack.c.h.b16 %v1711
        %v3243 = vunpack.c.l.b16 %v1712
        %v3244 = vunpack.c.h.b16 %v1712
        %v3245 = vunpack.c.l.b16 %v1713
        %v3246 = vunpack.c.h.b16 %v1713
        %v3247 = vunpack.c.l.b16 %v1714
        %v3248 = vunpack.c.h.b16 %v1714
        %v3249 = vunpack.c.l.b16 %v1715
        %v3250 = vunpack.c.h.b16 %v1715
        %v3251 = vunpack.c.l.b16 %v1716
        %v3252 = vunpack.c.h.b16 %v1716
        %v3253 = vunpack.c.l.b16 %v1717
        %v3254 = vunpack.c.h.b16 %v1717
        %v3255 = vunpack.c.l.b16 %v1718
        %v3256 = vunpack.c.h.b16 %v1718
        %v3257 = vunpack.c.l.b16 %v1719
        %v3258 = vunpack.c.h.b16 %v1719
        %v3259 = vunpack.c.l.b16 %v1720
        %v3260 = vunpack.c.h.b16 %v1720
        %v3261 = vunpack.c.l.b16 %v1721
        %v3262 = vunpack.c.h.b16 %v1721
        %v3263 = vunpack.c.l.b16 %v1722
        %v3264 = vunpack.c.h.b16 %v1722
        %v3265 = vunpack.c.l.b16 %v1723
        %v3266 = vunpack.c.h.b16 %v1723
        %v3267 = vunpack.c.l.b16 %v1724
        %v3268 = vunpack.c.h.b16 %v1724
        %v3269 = vunpack.c.l.b16 %v1725
        %v3270 = vunpack.c.h.b16 %v1725
        %v3271 = vunpack.c.l.b16 %v1726
        %v3272 = vunpack.c.h.b16 %v1726
        %v3273 = vunpack.c.l.b16 %v1727
        %v3274 = vunpack.c.h.b16 %v1727
        %v3275 = vunpack.c.l.b16 %v1728
        %v3276 = vunpack.c.h.b16 %v1728
        %v3277 = vunpack.c.l.b16 %v1729
        %v3278 = vunpack.c.h.b16 %v1729
        %v3279 = vunpack.c.l.b16 %v1730
        %v3280 = vunpack.c.h.b16 %v1730
        %v3281 = vunpack.c.l.b16 %v1731
        %v3282 = vunpack.c.h.b16 %v1731
        %v3283 = vunpack.c.l.b16 %v1732
        %v3284 = vunpack.c.h.b16 %v1732
        %v3285 = vunpack.c.l.b16 %v1733
        %v3286 = vunpack.c.h.b16 %v1733
        %v3287 = vunpack.c.l.b16 %v1734
        %v3288 = vunpack.c.h.b16 %v1734
        %v3289 = vunpack.c.l.b16 %v1735
        %v3290 = vunpack.c.h.b16 %v1735
        %v3291 = vunpack.c.l.b16 %v1736
        %v3292 = vunpack.c.h.b16 %v1736
        %v3293 = vunpack.c.l.b16 %v1737
        %v3294 = vunpack.c.h.b16 %v1737
        %v3295 = vunpack.c.l.b16 %v1738
        %v3296 = vunpack.c.h.b16 %v1738
        %v3297 = vunpack.c.l.b16 %v1739
        %v3298 = vunpack.c.h.b16 %v1739
        %v3299 = vunpack.c.l.b16 %v1740
        %v3300 = vunpack.c.h.b16 %v1740
        %v3301 = vunpack.c.l.b16 %v1741
        %v3302 = vunpack.c.h.b16 %v1741
        %v3303 = vunpack.c.l.b16 %v1742
        %v3304 = vunpack.c.h.b16 %v1742
        %v3305 = vunpack.c.l.b16 %v1743
        %v3306 = vunpack.c.h.b16 %v1743
        %v3307 = vunpack.c.l.b16 %v1744
        %v3308 = vunpack.c.h.b16 %v1744
        %v3309 = vunpack.c.l.b16 %v1745
        %v3310 = vunpack.c.h.b16 %v1745
        %v3311 = vunpack.c.l.b16 %v1746
        %v3312 = vunpack.c.h.b16 %v1746
        %v3313 = vunpack.c.l.b16 %v1747
        %v3314 = vunpack.c.h.b16 %v1747
        %v3315 = vunpack.c.l.b16 %v1748
        %v3316 = vunpack.c.h.b16 %v1748
        %v3317 = vunpack.c.l.b16 %v1749
        %v3318 = vunpack.c.h.b16 %v1749
        %v3319 = vunpack.c.l.b16 %v1750
        %v3320 = vunpack.c.h.b16 %v1750
        %v3321 = vunpack.c.l.b16 %v1751
        %v3322 = vunpack.c.h.b16 %v1751
        %v3323 = vunpack.c.l.b16 %v1752
        %v3324 = vunpack.c.h.b16 %v1752
        %v3325 = vunpack.c.l.b16 %v1753
        %v3326 = vunpack.c.h.b16 %v1753
        %v3327 = vunpack.c.l.b16 %v1754
        %v3328 = vunpack.c.h.b16 %v1754
        %v3329 = vunpack.c.l.b16 %v1755
        %v3330 = vunpack.c.h.b16 %v1755
        %v3331 = vunpack.c.l.b16 %v1756
        %v3332 = vunpack.c.h.b16 %v1756
        %v3333 = vunpack.c.l.b16 %v1757
        %v3334 = vunpack.c.h.b16 %v1757
        %v3335 = vunpack.c.l.b16 %v1758
        %v3336 = vunpack.c.h.b16 %v1758
        %v3337 = vunpack.c.l.b16 %v1759
        %v3338 = vunpack.c.h.b16 %v1759
        %v3339 = vunpack.c.l.b16 %v1760
        %v3340 = vunpack.c.h.b16 %v1760
        %v3341 = vunpack.c.l.b16 %v1761
        %v3342 = vunpack.c.h.b16 %v1761
        %v3343 = vunpack.c.l.b16 %v1762
        %v3344 = vunpack.c.h.b16 %v1762
        %v3345 = vunpack.c.l.b16 %v1763
        %v3346 = vunpack.c.h.b16 %v1763
        %v3347 = vunpack.c.l.b16 %v1764
        %v3348 = vunpack.c.h.b16 %v1764
        %v3349 = vunpack.c.l.b16 %v1765
        %v3350 = vunpack.c.h.b16 %v1765
        %v3351 = vunpack.c.l.b16 %v1766
        %v3352 = vunpack.c.h.b16 %v1766
        %v3353 = vunpack.c.l.b16 %v1767
        %v3354 = vunpack.c.h.b16 %v1767
        %v3355 = vunpack.c.l.b16 %v1768
        %v3356 = vunpack.c.h.b16 %v1768
        %v3357 = vunpack.c.l.b16 %v1769
        %v3358 = vunpack.c.h.b16 %v1769
        %v3359 = vunpack.c.l.b16 %v1770
        %v3360 = vunpack.c.h.b16 %v1770
        %v3361 = vunpack.c.l.b16 %v1771
        %v3362 = vunpack.c.h.b16 %v1771
        %v3363 = vunpack.c.l.b16 %v1772
        %v3364 = vunpack.c.h.b16 %v1772
        %v3365 = vunpack.c.l.b16 %v1773
        %v3366 = vunpack.c.h.b16 %v1773
        %v3367 = vunpack.c.l.b16 %v1774
        %v3368 = vunpack.c.h.b16 %v1774
        %v3369 = vunpack.c.l.b16 %v1775
        %v3370 = vunpack.c.h.b16 %v1775
        %v3371 = vunpack.c.l.b16 %v1776
        %v3372 = vunpack.c.h.b16 %v1776
        %v3373 = vunpack.c.l.b16 %v1777
        %v3374 = vunpack.c.h.b16 %v1777
        %v3375 = vunpack.c.l.b16 %v1778
        %v3376 = vunpack.c.h.b16 %v1778
        %v3377 = vunpack.c.l.b16 %v1779
        %v3378 = vunpack.c.h.b16 %v1779
        %v3379 = vunpack.c.l.b16 %v1780
        %v3380 = vunpack.c.h.b16 %v1780
        %v3381 = vunpack.c.l.b16 %v1781
        %v3382 = vunpack.c.h.b16 %v1781
        %v3383 = vunpack.c.l.b16 %v1782
        %v3384 = vunpack.c.h.b16 %v1782
        %v3385 = vunpack.c.l.b16 %v1783
        %v3386 = vunpack.c.h.b16 %v1783
        %v3387 = vunpack.c.l.b16 %v1784
        %v3388 = vunpack.c.h.b16 %v1784
        %v3389 = vunpack.c.l.b16 %v1785
        %v3390 = vunpack.c.h.b16 %v1785
        %v3391 = vunpack.c.l.b16 %v1786
        %v3392 = vunpack.c.h.b16 %v1786
        %v3393 = vunpack.c.l.b16 %v1787
        %v3394 = vunpack.c.h.b16 %v1787
        %v3395 = vunpack.c.l.b16 %v1788
        %v3396 = vunpack.c.h.b16 %v1788
        %v3397 = vunpack.c.l.b16 %v1789
        %v3398 = vunpack.c.h.b16 %v1789
        %v3399 = vunpack.c.l.b16 %v1790
        %v3400 = vunpack.c.h.b16 %v1790
        %v3401 = vunpack.c.l.b16 %v1791
        %v3402 = vunpack.c.h.b16 %v1791
        %v3403 = vunpack.c.l.b16 %v1792
        %v3404 = vunpack.c.h.b16 %v1792
        %v3405 = vunpack.c.l.b16 %v1793
        %v3406 = vunpack.c.h.b16 %v1793
        %v3407 = vunpack.c.l.b16 %v1794
        %v3408 = vunpack.c.h.b16 %v1794
        %v3409 = vunpack.c.l.b16 %v1795
        %v3410 = vunpack.c.h.b16 %v1795
        %v3411 = vunpack.c.l.b16 %v1796
        %v3412 = vunpack.c.h.b16 %v1796
        %v3413 = vunpack.c.l.b16 %v1797
        %v3414 = vunpack.c.h.b16 %v1797
        %v3415 = vunpack.c.l.b16 %v1798
        %v3416 = vunpack.c.h.b16 %v1798
        %v3417 = vunpack.c.l.b16 %v1799
        %v3418 = vunpack.c.h.b16 %v1799
        %v3419 = vunpack.c.l.b16 %v1800
        %v3420 = vunpack.c.h.b16 %v1800
        %v3421 = vunpack.c.l.b16 %v1801
        %v3422 = vunpack.c.h.b16 %v1801
        %v3423 = vunpack.c.l.b16 %v1802
        %v3424 = vunpack.c.h.b16 %v1802
        %v3425 = vunpack.c.l.b16 %v1803
        %v3426 = vunpack.c.h.b16 %v1803
        %v3427 = vunpack.c.l.b16 %v1804
        %v3428 = vunpack.c.h.b16 %v1804
        %v3429 = vunpack.c.l.b16 %v1805
        %v3430 = vunpack.c.h.b16 %v1805
        %v3431 = vunpack.c.l.b16 %v1806
        %v3432 = vunpack.c.h.b16 %v1806
        %v3433 = vunpack.c.l.b16 %v1807
        %v3434 = vunpack.c.h.b16 %v1807
        %v3435 = vunpack.c.l.b16 %v1808
        %v3436 = vunpack.c.h.b16 %v1808
        %v3437 = vunpack.c.l.b16 %v1809
        %v3438 = vunpack.c.h.b16 %v1809
        %v3439 = vunpack.c.l.b16 %v1810
        %v3440 = vunpack.c.h.b16 %v1810
        %v3441 = vunpack.c.l.b16 %v1811
        %v3442 = vunpack.c.h.b16 %v1811
        %v3443 = vunpack.c.l.b16 %v1812
        %v3444 = vunpack.c.h.b16 %v1812
        %v3445 = vunpack.c.l.b16 %v1813
        %v3446 = vunpack.c.h.b16 %v1813
        %v3447 = vunpack.c.l.b16 %v1814
        %v3448 = vunpack.c.h.b16 %v1814
        %v3449 = vunpack.c.l.b16 %v1815
        %v3450 = vunpack.c.h.b16 %v1815
        %v3451 = vunpack.c.l.b16 %v1816
        %v3452 = vunpack.c.h.b16 %v1816
        %v3453 = vunpack.c.l.b16 %v1817
        %v3454 = vunpack.c.h.b16 %v1817
        %v3455 = vunpack.c.l.b16 %v1818
        %v3456 = vunpack.c.h.b16 %v1818
        %v3457 = vunpack.c.l.b16 %v1819
        %v3458 = vunpack.c.h.b16 %v1819
        %v3459 = vunpack.c.l.b16 %v1820
        %v3460 = vunpack.c.h.b16 %v1820
        %v3461 = vunpack.c.l.b16 %v1821
        %v3462 = vunpack.c.h.b16 %v1821
        %v3463 = vunpack.c.l.b16 %v1822
        %v3464 = vunpack.c.h.b16 %v1822
        %v3465 = vunpack.c.l.b16 %v1823
        %v3466 = vunpack.c.h.b16 %v1823
        %v3467 = vunpack.c.l.b16 %v1824
        %v3468 = vunpack.c.h.b16 %v1824
        %v3469 = vunpack.c.l.b16 %v1825
        %v3470 = vunpack.c.h.b16 %v1825
        %v3471 = vunpack.c.l.b16 %v1826
        %v3472 = vunpack.c.h.b16 %v1826
        %v3473 = vunpack.c.l.b16 %v1827
        %v3474 = vunpack.c.h.b16 %v1827
        %v3475 = vunpack.c.l.b16 %v1828
        %v3476 = vunpack.c.h.b16 %v1828
        %v3477 = vunpack.c.l.b16 %v1829
        %v3478 = vunpack.c.h.b16 %v1829
        %v3479 = vunpack.c.l.b16 %v1830
        %v3480 = vunpack.c.h.b16 %v1830
        %v3481 = vunpack.c.l.b16 %v1831
        %v3482 = vunpack.c.h.b16 %v1831
        %v3483 = vunpack.c.l.b16 %v1832
        %v3484 = vunpack.c.h.b16 %v1832
        %v3485 = vunpack.c.l.b16 %v1833
        %v3486 = vunpack.c.h.b16 %v1833
        %v3487 = vunpack.c.l.b16 %v1834
        %v3488 = vunpack.c.h.b16 %v1834
        %v3489 = vunpack.c.l.b16 %v1835
        %v3490 = vunpack.c.h.b16 %v1835
        %v3491 = vunpack.c.l.b16 %v1836
        %v3492 = vunpack.c.h.b16 %v1836
        %v3493 = vunpack.c.l.b16 %v1837
        %v3494 = vunpack.c.h.b16 %v1837
        %v3495 = vunpack.c.l.b16 %v1838
        %v3496 = vunpack.c.h.b16 %v1838
        %v3497 = vunpack.c.l.b16 %v1839
        %v3498 = vunpack.c.h.b16 %v1839
        %v3499 = vunpack.c.l.b16 %v1840
        %v3500 = vunpack.c.h.b16 %v1840
        %v3501 = vunpack.c.l.b16 %v1841
        %v3502 = vunpack.c.h.b16 %v1841
        %v3503 = vunpack.c.l.b16 %v1842
        %v3504 = vunpack.c.h.b16 %v1842
        %v3505 = vunpack.c.l.b16 %v1843
        %v3506 = vunpack.c.h.b16 %v1843
        %v3507 = vunpack.c.l.b16 %v1844
        %v3508 = vunpack.c.h.b16 %v1844
        %v3509 = vunpack.c.l.b16 %v1845
        %v3510 = vunpack.c.h.b16 %v1845
        %v3511 = vunpack.c.l.b16 %v1846
        %v3512 = vunpack.c.h.b16 %v1846
        %v3513 = vunpack.c.l.b16 %v1847
        %v3514 = vunpack.c.h.b16 %v1847
        %v3515 = vunpack.c.l.b16 %v1848
        %v3516 = vunpack.c.h.b16 %v1848
        %v3517 = vunpack.c.l.b16 %v1849
        %v3518 = vunpack.c.h.b16 %v1849
        %v3519 = vunpack.c.l.b16 %v1850
        %v3520 = vunpack.c.h.b16 %v1850
        %v3521 = vunpack.c.l.b16 %v1851
        %v3522 = vunpack.c.h.b16 %v1851
        %v3523 = vunpack.c.l.b16 %v1852
        %v3524 = vunpack.c.h.b16 %v1852
        %v3525 = vunpack.c.l.b16 %v1853
        %v3526 = vunpack.c.h.b16 %v1853
        %v3527 = vunpack.c.l.b16 %v1854
        %v3528 = vunpack.c.h.b16 %v1854
        %v3529 = vunpack.c.l.b16 %v1855
        %v3530 = vunpack.c.h.b16 %v1855
        %v3531 = vunpack.c.l.b16 %v1856
        %v3532 = vunpack.c.h.b16 %v1856
        %v3533 = vunpack.c.l.b16 %v1857
        %v3534 = vunpack.c.h.b16 %v1857
        %v3535 = vunpack.c.l.b16 %v1858
        %v3536 = vunpack.c.h.b16 %v1858
        %v3537 = vunpack.c.l.b16 %v1859
        %v3538 = vunpack.c.h.b16 %v1859
        %v3539 = vunpack.c.l.b16 %v1860
        %v3540 = vunpack.c.h.b16 %v1860
        %v3541 = vunpack.c.l.b16 %v1861
        %v3542 = vunpack.c.h.b16 %v1861
        %v3543 = vunpack.c.l.b16 %v1862
        %v3544 = vunpack.c.h.b16 %v1862
        %v3545 = vunpack.c.l.b16 %v1863
        %v3546 = vunpack.c.h.b16 %v1863
        %v3547 = vunpack.c.l.b16 %v1864
        %v3548 = vunpack.c.h.b16 %v1864
        %v3549 = vunpack.c.l.b16 %v1865
        %v3550 = vunpack.c.h.b16 %v1865
        %v3551 = vunpack.c.l.b16 %v1866
        %v3552 = vunpack.c.h.b16 %v1866
        %v3553 = vunpack.c.l.b16 %v1867
        %v3554 = vunpack.c.h.b16 %v1867
        %v3555 = vunpack.c.l.b16 %v1868
        %v3556 = vunpack.c.h.b16 %v1868
        %v3557 = vunpack.c.l.b16 %v1869
        %v3558 = vunpack.c.h.b16 %v1869
        %v3559 = vunpack.c.l.b16 %v1870
        %v3560 = vunpack.c.h.b16 %v1870
        %v3561 = vunpack.c.l.b16 %v1871
        %v3562 = vunpack.c.h.b16 %v1871
        %v3563 = vunpack.c.l.b16 %v1872
        %v3564 = vunpack.c.h.b16 %v1872
        %v3565 = vunpack.c.l.b16 %v1873
        %v3566 = vunpack.c.h.b16 %v1873
        %v3567 = vunpack.c.l.b16 %v1874
        %v3568 = vunpack.c.h.b16 %v1874
        %v3569 = vunpack.c.l.b16 %v1875
        %v3570 = vunpack.c.h.b16 %v1875
        %v3571 = vunpack.c.l.b16 %v1876
        %v3572 = vunpack.c.h.b16 %v1876
        %v3573 = vunpack.c.l.b16 %v1877
        %v3574 = vunpack.c.h.b16 %v1877
        %v3575 = vunpack.c.l.b16 %v1878
        %v3576 = vunpack.c.h.b16 %v1878
        %v3577 = vunpack.c.l.b16 %v1879
        %v3578 = vunpack.c.h.b16 %v1879
        %v3579 = vunpack.c.l.b16 %v1880
        %v3580 = vunpack.c.h.b16 %v1880
        %v3581 = vunpack.c.l.b16 %v1881
        %v3582 = vunpack.c.h.b16 %v1881
        %v3583 = vunpack.c.l.b16 %v1882
        %v3584 = vunpack.c.h.b16 %v1882
        %v3585 = vunpack.c.l.b16 %v1883
        %v3586 = vunpack.c.h.b16 %v1883
        %v3587 = vunpack.c.l.b16 %v1884
        %v3588 = vunpack.c.h.b16 %v1884
        %v3589 = vunpack.c.l.b16 %v1885
        %v3590 = vunpack.c.h.b16 %v1885
        %v3591 = vunpack.c.l.b16 %v1886
        %v3592 = vunpack.c.h.b16 %v1886
        %v3593 = vunpack.c.l.b16 %v1887
        %v3594 = vunpack.c.h.b16 %v1887
        %v3595 = vunpack.c.l.b16 %v1888
        %v3596 = vunpack.c.h.b16 %v1888
        %v3597 = vunpack.c.l.b16 %v1889
        %v3598 = vunpack.c.h.b16 %v1889
        %v3599 = vunpack.c.l.b16 %v1890
        %v3600 = vunpack.c.h.b16 %v1890
        %v3601 = vunpack.c.l.b16 %v1891
        %v3602 = vunpack.c.h.b16 %v1891
        %v3603 = vunpack.c.l.b16 %v1892
        %v3604 = vunpack.c.h.b16 %v1892
        %v3605 = vunpack.c.l.b16 %v1893
        %v3606 = vunpack.c.h.b16 %v1893
        %v3607 = vunpack.c.l.b16 %v1894
        %v3608 = vunpack.c.h.b16 %v1894
        %v3609 = vunpack.c.l.b16 %v1895
        %v3610 = vunpack.c.h.b16 %v1895
        %v3611 = vunpack.c.l.b16 %v1896
        %v3612 = vunpack.c.h.b16 %v1896
        %v3613 = vunpack.c.l.b16 %v1897
        %v3614 = vunpack.c.h.b16 %v1897
        %v3615 = vunpack.c.l.b16 %v1898
        %v3616 = vunpack.c.h.b16 %v1898
        %v3617 = vunpack.c.l.b16 %v1899
        %v3618 = vunpack.c.h.b16 %v1899
        %v3619 = vunpack.c.l.b16 %v1900
        %v3620 = vunpack.c.h.b16 %v1900
        %v3621 = vunpack.c.l.b16 %v1901
        %v3622 = vunpack.c.h.b16 %v1901
        %v3623 = vunpack.c.l.b16 %v1902
        %v3624 = vunpack.c.h.b16 %v1902
        %v3625 = vunpack.c.l.b16 %v1903
        %v3626 = vunpack.c.h.b16 %v1903
        %v3627 = vunpack.c.l.b16 %v1904
        %v3628 = vunpack.c.h.b16 %v1904
        %v3629 = vunpack.c.l.b16 %v1905
        %v3630 = vunpack.c.h.b16 %v1905
        %v3631 = vunpack.c.l.b16 %v1906
        %v3632 = vunpack.c.h.b16 %v1906
        %v3633 = vunpack.c.l.b16 %v1907
        %v3634 = vunpack.c.h.b16 %v1907
        %v3635 = vunpack.c.l.b16 %v1908
        %v3636 = vunpack.c.h.b16 %v1908
        %v3637 = vunpack.c.l.b16 %v1909
        %v3638 = vunpack.c.h.b16 %v1909
        %v3639 = vunpack.c.l.b16 %v1910
        %v3640 = vunpack.c.h.b16 %v1910
        %v3641 = vunpack.c.l.b16 %v1911
        %v3642 = vunpack.c.h.b16 %v1911
        %v3643 = vunpack.c.l.b16 %v1912
        %v3644 = vunpack.c.h.b16 %v1912
        %v3645 = vunpack.c.l.b16 %v1913
        %v3646 = vunpack.c.h.b16 %v1913
        %v3647 = vunpack.c.l.b16 %v1914
        %v3648 = vunpack.c.h.b16 %v1914
        %v3649 = vunpack.c.l.b16 %v1915
        %v3650 = vunpack.c.h.b16 %v1915
        %v3651 = vunpack.c.l.b16 %v1916
        %v3652 = vunpack.c.h.b16 %v1916
        %v3653 = vunpack.c.l.b16 %v1917
        %v3654 = vunpack.c.h.b16 %v1917
        %v3655 = vunpack.c.l.b16 %v1918
        %v3656 = vunpack.c.h.b16 %v1918
        %v3657 = vunpack.c.l.b16 %v1919
        %v3658 = vunpack.c.h.b16 %v1919
        %v3659 = vunpack.c.l.b16 %v1920
        %v3660 = vunpack.c.h.b16 %v1920
        %v3661 = vunpack.c.l.b16 %v1921
        %v3662 = vunpack.c.h.b16 %v1921
        %v3663 = vunpack.c.l.b16 %v1922
        %v3664 = vunpack.c.h.b16 %v1922
        %v3665 = vunpack.c.l.b16 %v1923
        %v3666 = vunpack.c.h.b16 %v1923
        %v3667 = vunpack.c.l.b16 %v1924
        %v3668 = vunpack.c.h.b16 %v1924
        %v3669 = vunpack.c.l.b16 %v1925
        %v3670 = vunpack.c.h.b16 %v1925
        %v3671 = vunpack.c.l.b16 %v1926
        %v3672 = vunpack.c.h.b16 %v1926
        %v3673 = vunpack.c.l.b16 %v1927
        %v3674 = vunpack.c.h.b16 %v1927
        %v3675 = vunpack.c.l.b16 %v1928
        %v3676 = vunpack.c.h.b16 %v1928
        %v3677 = vunpack.c.l.b16 %v1929
        %v3678 = vunpack.c.h.b16 %v1929
        %v3679 = vunpack.c.l.b16 %v1930
        %v3680 = vunpack.c.h.b16 %v1930
        %v3681 = vunpack.c.l.b16 %v1931
        %v3682 = vunpack.c.h.b16 %v1931
        %v3683 = vunpack.c.l.b16 %v1932
        %v3684 = vunpack.c.h.b16 %v1932
        %v3685 = vunpack.c.l.b16 %v1933
        %v3686 = vunpack.c.h.b16 %v1933
        %v3687 = vunpack.c.l.b16 %v1934
        %v3688 = vunpack.c.h.b16 %v1934
        %v3689 = vunpack.c.l.b16 %v1935
        %v3690 = vunpack.c.h.b16 %v1935
        %v3691 = vunpack.c.l.b16 %v1936
        %v3692 = vunpack.c.h.b16 %v1936
        %v3693 = vunpack.c.l.b16 %v1937
        %v3694 = vunpack.c.h.b16 %v1937
        %v3695 = vunpack.c.l.b16 %v1938
        %v3696 = vunpack.c.h.b16 %v1938
        %v3697 = vunpack.c.l.b16 %v1939
        %v3698 = vunpack.c.h.b16 %v1939
        %v3699 = vunpack.c.l.b16 %v1940
        %v3700 = vunpack.c.h.b16 %v1940
        %v3701 = vunpack.c.l.b16 %v1941
        %v3702 = vunpack.c.h.b16 %v1941
        %v3703 = vunpack.c.l.b16 %v1942
        %v3704 = vunpack.c.h.b16 %v1942
        %v3705 = vunpack.c.l.b16 %v1943
        %v3706 = vunpack.c.h.b16 %v1943
        %v3707 = vunpack.c.l.b16 %v1944
        %v3708 = vunpack.c.h.b16 %v1944
        %v3709 = vunpack.c.l.b16 %v1945
        %v3710 = vunpack.c.h.b16 %v1945
        %v3711 = vunpack.c.l.b16 %v1946
        %v3712 = vunpack.c.h.b16 %v1946
        %v3713 = vunpack.c.l.b16 %v1947
        %v3714 = vunpack.c.h.b16 %v1947
        %v3715 = vunpack.c.l.b16 %v1948
        %v3716 = vunpack.c.h.b16 %v1948
        %v3717 = vunpack.c.l.b16 %v1949
        %v3718 = vunpack.c.h.b16 %v1949
        %v3719 = vunpack.c.l.b16 %v1950
        %v3720 = vunpack.c.h.b16 %v1950
        %v3721 = vunpack.c.l.b16 %v1951
        %v3722 = vunpack.c.h.b16 %v1951
        %v3723 = vunpack.c.l.b16 %v1952
        %v3724 = vunpack.c.h.b16 %v1952
        %v3725 = vunpack.c.l.b16 %v1953
        %v3726 = vunpack.c.h.b16 %v1953
        %v3727 = vunpack.c.l.b16 %v1954
        %v3728 = vunpack.c.h.b16 %v1954
        %v3729 = vunpack.c.l.b16 %v1955
        %v3730 = vunpack.c.h.b16 %v1955
        %v3731 = vunpack.c.l.b16 %v1956
        %v3732 = vunpack.c.h.b16 %v1956
        %v3733 = vunpack.c.l.b16 %v1957
        %v3734 = vunpack.c.h.b16 %v1957
        %v3735 = vunpack.c.l.b16 %v1958
        %v3736 = vunpack.c.h.b16 %v1958
        %v3737 = vunpack.c.l.b16 %v1959
        %v3738 = vunpack.c.h.b16 %v1959
        %v3739 = vunpack.c.l.b16 %v1960
        %v3740 = vunpack.c.h.b16 %v1960
        %v3741 = vunpack.c.l.b16 %v1961
        %v3742 = vunpack.c.h.b16 %v1961
        %v3743 = vunpack.c.l.b16 %v1962
        %v3744 = vunpack.c.h.b16 %v1962
        %v3745 = vunpack.c.l.b16 %v1963
        %v3746 = vunpack.c.h.b16 %v1963
        %v3747 = vunpack.c.l.b16 %v1964
        %v3748 = vunpack.c.h.b16 %v1964
        %v3749 = vunpack.c.l.b16 %v1965
        %v3750 = vunpack.c.h.b16 %v1965
        %v3751 = vunpack.c.l.b16 %v1966
        %v3752 = vunpack.c.h.b16 %v1966
        %v3753 = vunpack.c.l.b16 %v1967
        %v3754 = vunpack.c.h.b16 %v1967
        %v3755 = vunpack.c.l.b16 %v1968
        %v3756 = vunpack.c.h.b16 %v1968
        %v3757 = vunpack.c.l.b16 %v1969
        %v3758 = vunpack.c.h.b16 %v1969
        %v3759 = vunpack.c.l.b16 %v1970
        %v3760 = vunpack.c.h.b16 %v1970
        %v3761 = vunpack.c.l.b16 %v1971
        %v3762 = vunpack.c.h.b16 %v1971
        %v3763 = vunpack.c.l.b16 %v1972
        %v3764 = vunpack.c.h.b16 %v1972
        %v3765 = vunpack.c.l.b16 %v1973
        %v3766 = vunpack.c.h.b16 %v1973
        %v3767 = vunpack.c.l.b16 %v1974
        %v3768 = vunpack.c.h.b16 %v1974
        %v3769 = vunpack.c.l.b16 %v1975
        %v3770 = vunpack.c.h.b16 %v1975
        %v3771 = vunpack.c.l.b16 %v1976
        %v3772 = vunpack.c.h.b16 %v1976
        %v3773 = vunpack.c.l.b16 %v1977
        %v3774 = vunpack.c.h.b16 %v1977
        %v3775 = vunpack.c.l.b16 %v1978
        %v3776 = vunpack.c.h.b16 %v1978
        %v3777 = vunpack.c.l.b16 %v1979
        %v3778 = vunpack.c.h.b16 %v1979
        %v3779 = vunpack.c.l.b16 %v1980
        %v3780 = vunpack.c.h.b16 %v1980
        %v3781 = vunpack.c.l.b16 %v1981
        %v3782 = vunpack.c.h.b16 %v1981
        %v3783 = vunpack.c.l.b16 %v1982
        %v3784 = vunpack.c.h.b16 %v1982
        %v3785 = vunpack.c.l.b16 %v1983
        %v3786 = vunpack.c.h.b16 %v1983
        %v3787 = vunpack.c.l.b16 %v1984
        %v3788 = vunpack.c.h.b16 %v1984
        %v3789 = vunpack.c.l.b16 %v1985
        %v3790 = vunpack.c.h.b16 %v1985
        %v3791 = vunpack.c.l.b16 %v1986
        %v3792 = vunpack.c.h.b16 %v1986
        %v3793 = vunpack.c.l.b16 %v1987
        %v3794 = vunpack.c.h.b16 %v1987
        %v3795 = vunpack.c.l.b16 %v1988
        %v3796 = vunpack.c.h.b16 %v1988
        %v3797 = vunpack.c.l.b16 %v1989
        %v3798 = vunpack.c.h.b16 %v1989
        %v3799 = vunpack.c.l.b16 %v1990
        %v3800 = vunpack.c.h.b16 %v1990
        %v3801 = vunpack.c.l.b16 %v1991
        %v3802 = vunpack.c.h.b16 %v1991
        %v3803 = vunpack.c.l.b16 %v1992
        %v3804 = vunpack.c.h.b16 %v1992
        %v3805 = vunpack.c.l.b16 %v1993
        %v3806 = vunpack.c.h.b16 %v1993
        %v3807 = vunpack.c.l.b16 %v1994
        %v3808 = vunpack.c.h.b16 %v1994
        %v3809 = vunpack.c.l.b16 %v1995
        %v3810 = vunpack.c.h.b16 %v1995
        %v3811 = vunpack.c.l.b16 %v1996
        %v3812 = vunpack.c.h.b16 %v1996
        %v3813 = vunpack.c.l.b16 %v1997
        %v3814 = vunpack.c.h.b16 %v1997
        %v3815 = vunpack.c.l.b16 %v1998
        %v3816 = vunpack.c.h.b16 %v1998
        %v3817 = vunpack.c.l.b16 %v1999
        %v3818 = vunpack.c.h.b16 %v1999
        %v3819 = vunpack.c.l.b16 %v2000
        %v3820 = vunpack.c.h.b16 %v2000
        %v3821 = vpack.c.b16 %v2675, %v2669
        %v3822 = vpack.c.b16 %v2676, %v2670
        %v3823 = vpack.c.b16 %v2677, %v2671
        %v3824 = vpack.c.b16 %v2678, %v2672
        %v3825 = vpack.c.b16 %v2679, %v2673
        %v3826 = vpack.c.b16 %v2680, %v2674
        %v3827 = vpack.c.b16 %v2687, %v2681
        %v3828 = vpack.c.b16 %v2688, %v2682
        %v3829 = vpack.c.b16 %v2689, %v2683
        %v3830 = vpack.c.b16 %v2690, %v2684
        %v3831 = vpack.c.b16 %v2691, %v2685
        %v3832 = vpack.c.b16 %v2692, %v2686
        %v3833 = vpack.c.b16 %v2699, %v2693
        %v3834 = vpack.c.b16 %v2700, %v2694
        %v3835 = vpack.c.b16 %v2701, %v2695
        %v3836 = vpack.c.b16 %v2702, %v2696
        %v3837 = vpack.c.b16 %v2703, %v2697
        %v3838 = vpack.c.b16 %v2704, %v2698
        %v3839 = vpack.c.b16 %v2711, %v2705
        %v3840 = vpack.c.b16 %v2712, %v2706
        %v3841 = vpack.c.b16 %v2713, %v2707
        %v3842 = vpack.c.b16 %v2714, %v2708
        %v3843 = vpack.c.b16 %v2715, %v2709
        %v3844 = vpack.c.b16 %v2716, %v2710
        %v3845 = vpack.c.b16 %v2723, %v2717
        %v3846 = vpack.c.b16 %v2724, %v2718
        %v3847 = vpack.c.b16 %v2725, %v2719
        %v3848 = vpack.c.b16 %v2726, %v2720
        %v3849 = vpack.c.b16 %v2727, %v2721
        %v3850 = vpack.c.b16 %v2728, %v2722
        %v3851 = vpack.c.b16 %v2735, %v2729
        %v3852 = vpack.c.b16 %v2736, %v2730
        %v3853 = vpack.c.b16 %v2737, %v2731
        %v3854 = vpack.c.b16 %v2738, %v2732
        %v3855 = vpack.c.b16 %v2739, %v2733
        %v3856 = vpack.c.b16 %v2740, %v2734
        %v3857 = vpack.c.b16 %v2747, %v2741
        %v3858 = vpack.c.b16 %v2748, %v2742
        %v3859 = vpack.c.b16 %v2749, %v2743
        %v3860 = vpack.c.b16 %v2750, %v2744
        %v3861 = vpack.c.b16 %v2751, %v2745
        %v3862 = vpack.c.b16 %v2752, %v2746
        %v3863 = vpack.c.b16 %v2759, %v2753
        %v3864 = vpack.c.b16 %v2760, %v2754
        %v3865 = vpack.c.b16 %v2761, %v2755
        %v3866 = vpack.c.b16 %v2762, %v2756
        %v3867 = vpack.c.b16 %v2763, %v2757
        %v3868 = vpack.c.b16 %v2764, %v2758
        %v3869 = vpack.c.b16 %v2771, %v2765
        %v3870 = vpack.c.b16 %v2772, %v2766
        %v3871 = vpack.c.b16 %v2773, %v2767
        %v3872 = vpack.c.b16 %v2774, %v2768
        %v3873 = vpack.c.b16 %v2775, %v2769
        %v3874 = vpack.c.b16 %v2776, %v2770
        %v3875 = vpack.c.b16 %v2783, %v2777
        %v3876 = vpack.c.b16 %v2784, %v2778
        %v3877 = vpack.c.b16 %v2785, %v2779
        %v3878 = vpack.c.b16 %v2786, %v2780
        %v3879 = vpack.c.b16 %v2787, %v2781
        %v3880 = vpack.c.b16 %v2788, %v2782
        %v3881 = vpack.c.b16 %v2795, %v2789
        %v3882 = vpack.c.b16 %v2796, %v2790
        %v3883 = vpack.c.b16 %v2797, %v2791
        %v3884 = vpack.c.b16 %v2798, %v2792
        %v3885 = vpack.c.b16 %v2799, %v2793
        %v3886 = vpack.c.b16 %v2800, %v2794
        %v3887 = vpack.c.b16 %v2807, %v2801
        %v3888 = vpack.c.b16 %v2808, %v2802
        %v3889 = vpack.c.b16 %v2809, %v2803
        %v3890 = vpack.c.b16 %v2810, %v2804
        %v3891 = vpack.c.b16 %v2811, %v2805
        %v3892 = vpack.c.b16 %v2812, %v2806
        %v3893 = vpack.c.b16 %v2819, %v2813
        %v3894 = vpack.c.b16 %v2820, %v2814
        %v3895 = vpack.c.b16 %v2821, %v2815
        %v3896 = vpack.c.b16 %v2822, %v2816
        %v3897 = vpack.c.b16 %v2823, %v2817
        %v3898 = vpack.c.b16 %v2824, %v2818
        %v3899 = vpack.c.b16 %v2831, %v2825
        %v3900 = vpack.c.b16 %v2832, %v2826
        %v3901 = vpack.c.b16 %v2833, %v2827
        %v3902 = vpack.c.b16 %v2834, %v2828
        %v3903 = vpack.c.b16 %v2835, %v2829
        %v3904 = vpack.c.b16 %v2836, %v2830
        %v3905 = vpack.c.b16 %v2843, %v2837
        %v3906 = vpack.c.b16 %v2844, %v2838
        %v3907 = vpack.c.b16 %v2845, %v2839
        %v3908 = vpack.c.b16 %v2846, %v2840
        %v3909 = vpack.c.b16 %v2847, %v2841
        %v3910 = vpack.c.b16 %v2848, %v2842
        %v3911 = vpack.c.b16 %v2855, %v2849
        %v3912 = vpack.c.b16 %v2856, %v2850
        %v3913 = vpack.c.b16 %v2857, %v2851
        %v3914 = vpack.c.b16 %v2858, %v2852
        %v3915 = vpack.c.b16 %v2859, %v2853
        %v3916 = vpack.c.b16 %v2860, %v2854
        %v3917 = vpack.c.b16 %v2867, %v2861
        %v3918 = vpack.c.b16 %v2868, %v2862
        %v3919 = vpack.c.b16 %v2869, %v2863
        %v3920 = vpack.c.b16 %v2870, %v2864
        %v3921 = vpack.c.b16 %v2871, %v2865
        %v3922 = vpack.c.b16 %v2872, %v2866
        %v3923 = vpack.c.b16 %v2879, %v2873
        %v3924 = vpack.c.b16 %v2880, %v2874
        %v3925 = vpack.c.b16 %v2881, %v2875
        %v3926 = vpack.c.b16 %v2882, %v2876
        %v3927 = vpack.c.b16 %v2883, %v2877
        %v3928 = vpack.c.b16 %v2884, %v2878
        %v3929 = vpack.c.b16 %v2891, %v2885
        %v3930 = vpack.c.b16 %v2892, %v2886
        %v3931 = vpack.c.b16 %v2893, %v2887
        %v3932 = vpack.c.b16 %v2894, %v2888
        %v3933 = vpack.c.b16 %v2895, %v2889
        %v3934 = vpack.c.b16 %v2896, %v2890
        %v3935 = vpack.c.b16 %v2903, %v2897
        %v3936 = vpack.c.b16 %v2904, %v2898
        %v3937 = vpack.c.b16 %v2905, %v2899
        %v3938 = vpack.c.b16 %v2906, %v2900
        %v3939 = vpack.c.b16 %v2907, %v2901
        %v3940 = vpack.c.b16 %v2908, %v2902
        %v3941 = vpack.c.b16 %v2915, %v2909
        %v3942 = vpack.c.b16 %v2916, %v2910
        %v3943 = vpack.c.b16 %v2917, %v2911
        %v3944 = vpack.c.b16 %v2918, %v2912
        %v3945 = vpack.c.b16 %v2919, %v2913
        %v3946 = vpack.c.b16 %v2920, %v2914
        %v3947 = vpack.c.b16 %v2927, %v2921
        %v3948 = vpack.c.b16 %v2928, %v2922
        %v3949 = vpack.c.b16 %v2929, %v2923
        %v3950 = vpack.c.b16 %v2930, %v2924
        %v3951 = vpack.c.b16 %v2931, %v2925
        %v3952 = vpack.c.b16 %v2932, %v2926
        %v3953 = vpack.c.b16 %v2939, %v2933
        %v3954 = vpack.c.b16 %v2940, %v2934
        %v3955 = vpack.c.b16 %v2941, %v2935
        %v3956 = vpack.c.b16 %v2942, %v2936
        %v3957 = vpack.c.b16 %v2943, %v2937
        %v3958 = vpack.c.b16 %v2944, %v2938
        %v3959 = vpack.c.b16 %v2951, %v2945
        %v3960 = vpack.c.b16 %v2952, %v2946
        %v3961 = vpack.c.b16 %v2953, %v2947
        %v3962 = vpack.c.b16 %v2954, %v2948
        %v3963 = vpack.c.b16 %v2955, %v2949
        %v3964 = vpack.c.b16 %v2956, %v2950
        %v3965 = vpack.c.b16 %v2963, %v2957
        %v3966 = vpack.c.b16 %v2964, %v2958
        %v3967 = vpack.c.b16 %v2965, %v2959
        %v3968 = vpack.c.b16 %v2966, %v2960
        %v3969 = vpack.c.b16 %v2967, %v2961
        %v3970 = vpack.c.b16 %v2968, %v2962
        %v3971 = vpack.c.b16 %v2975, %v2969
        %v3972 = vpack.c.b16 %v2976, %v2970
        %v3973 = vpack.c.b16 %v2977, %v2971
        %v3974 = vpack.c.b16 %v2978, %v2972
        %v3975 = vpack.c.b16 %v2979, %v2973
        %v3976 = vpack.c.b16 %v2980, %v2974
        %v3977 = vpack.c.b16 %v2987, %v2981
        %v3978 = vpack.c.b16 %v2988, %v2982
        %v3979 = vpack.c.b16 %v2989, %v2983
        %v3980 = vpack.c.b16 %v2990, %v2984
        %v3981 = vpack.c.b16 %v2991, %v2985
        %v3982 = vpack.c.b16 %v2992, %v2986
        %v3983 = vpack.c.b16 %v2999, %v2993
        %v3984 = vpack.c.b16 %v3000, %v2994
        %v3985 = vpack.c.b16 %v3001, %v2995
        %v3986 = vpack.c.b16 %v3002, %v2996
        %v3987 = vpack.c.b16 %v3003, %v2997
        %v3988 = vpack.c.b16 %v3004, %v2998
        %v3989 = vpack.c.b16 %v3011, %v3005
        %v3990 = vpack.c.b16 %v3012, %v3006
        %v3991 = vpack.c.b16 %v3013, %v3007
        %v3992 = vpack.c.b16 %v3014, %v3008
        %v3993 = vpack.c.b16 %v3015, %v3009
        %v3994 = vpack.c.b16 %v3016, %v3010
        %v3995 = vpack.c.b16 %v3023, %v3017
        %v3996 = vpack.c.b16 %v3024, %v3018
        %v3997 = vpack.c.b16 %v3025, %v3019
        %v3998 = vpack.c.b16 %v3026, %v3020
        %v3999 = vpack.c.b16 %v3027, %v3021
        %v4000 = vpack.c.b16 %v3028, %v3022
        %v4001 = vpack.c.b16 %v3035, %v3029
        %v4002 = vpack.c.b16 %v3036, %v3030
        %v4003 = vpack.c.b16 %v3037, %v3031
        %v4004 = vpack.c.b16 %v3038, %v3032
        %v4005 = vpack.c.b16 %v3039, %v3033
        %v4006 = vpack.c.b16 %v3040, %v3034
        %v4007 = vpack.c.b16 %v3047, %v3041
        %v4008 = vpack.c.b16 %v3048, %v3042
        %v4009 = vpack.c.b16 %v3049, %v3043
        %v4010 = vpack.c.b16 %v3050, %v3044
        %v4011 = vpack.c.b16 %v3051, %v3045
        %v4012 = vpack.c.b16 %v3052, %v3046
        %v4013 = vpack.c.b16 %v3059, %v3053
        %v4014 = vpack.c.b16 %v3060, %v3054
        %v4015 = vpack.c.b16 %v3061, %v3055
        %v4016 = vpack.c.b16 %v3062, %v3056
        %v4017 = vpack.c.b16 %v3063, %v3057
        %v4018 = vpack.c.b16 %v3064, %v3058
        %v4019 = vpack.c.b16 %v3071, %v3065
        %v4020 = vpack.c.b16 %v3072, %v3066
        %v4021 = vpack.c.b16 %v3073, %v3067
        %v4022 = vpack.c.b16 %v3074, %v3068
        %v4023 = vpack.c.b16 %v3075, %v3069
        %v4024 = vpack.c.b16 %v3076, %v3070
        %v4025 = vpack.c.b16 %v3083, %v3077
        %v4026 = vpack.c.b16 %v3084, %v3078
        %v4027 = vpack.c.b16 %v3085, %v3079
        %v4028 = vpack.c.b16 %v3086, %v3080
        %v4029 = vpack.c.b16 %v3087, %v3081
        %v4030 = vpack.c.b16 %v3088, %v3082
        %v4031 = vpack.c.b16 %v3095, %v3089
        %v4032 = vpack.c.b16 %v3096, %v3090
        %v4033 = vpack.c.b16 %v3097, %v3091
        %v4034 = vpack.c.b16 %v3098, %v3092
        %v4035 = vpack.c.b16 %v3099, %v3093
        %v4036 = vpack.c.b16 %v3100, %v3094
        %v4037 = vpack.c.b16 %v3107, %v3101
        %v4038 = vpack.c.b16 %v3108, %v3102
        %v4039 = vpack.c.b16 %v3109, %v3103
        %v4040 = vpack.c.b16 %v3110, %v3104
        %v4041 = vpack.c.b16 %v3111, %v3105
        %v4042 = vpack.c.b16 %v3112, %v3106
        %v4043 = vpack.c.b16 %v3119, %v3113
        %v4044 = vpack.c.b16 %v3120, %v3114
        %v4045 = vpack.c.b16 %v3121, %v3115
        %v4046 = vpack.c.b16 %v3122, %v3116
        %v4047 = vpack.c.b16 %v3123, %v3117
        %v4048 = vpack.c.b16 %v3124, %v3118
        %v4049 = vpack.c.b16 %v3131, %v3125
        %v4050 = vpack.c.b16 %v3132, %v3126
        %v4051 = vpack.c.b16 %v3133, %v3127
        %v4052 = vpack.c.b16 %v3134, %v3128
        %v4053 = vpack.c.b16 %v3135, %v3129
        %v4054 = vpack.c.b16 %v3136, %v3130
        %v4055 = vpack.c.b16 %v3143, %v3137
        %v4056 = vpack.c.b16 %v3144, %v3138
        %v4057 = vpack.c.b16 %v3145, %v3139
        %v4058 = vpack.c.b16 %v3146, %v3140
        %v4059 = vpack.c.b16 %v3147, %v3141
        %v4060 = vpack.c.b16 %v3148, %v3142
        %v4061 = vpack.c.b16 %v3155, %v3149
        %v4062 = vpack.c.b16 %v3156, %v3150
        %v4063 = vpack.c.b16 %v3157, %v3151
        %v4064 = vpack.c.b16 %v3158, %v3152
        %v4065 = vpack.c.b16 %v3159, %v3153
        %v4066 = vpack.c.b16 %v3160, %v3154
        %v4067 = vpack.c.b16 %v3167, %v3161
        %v4068 = vpack.c.b16 %v3168, %v3162
        %v4069 = vpack.c.b16 %v3169, %v3163
        %v4070 = vpack.c.b16 %v3170, %v3164
        %v4071 = vpack.c.b16 %v3171, %v3165
        %v4072 = vpack.c.b16 %v3172, %v3166
        %v4073 = vpack.c.b16 %v3179, %v3173
        %v4074 = vpack.c.b16 %v3180, %v3174
        %v4075 = vpack.c.b16 %v3181, %v3175
        %v4076 = vpack.c.b16 %v3182, %v3176
        %v4077 = vpack.c.b16 %v3183, %v3177
        %v4078 = vpack.c.b16 %v3184, %v3178
        %v4079 = vpack.c.b16 %v3191, %v3185
        %v4080 = vpack.c.b16 %v3192, %v3186
        %v4081 = vpack.c.b16 %v3193, %v3187
        %v4082 = vpack.c.b16 %v3194, %v3188
        %v4083 = vpack.c.b16 %v3195, %v3189
        %v4084 = vpack.c.b16 %v3196, %v3190
        %v4085 = vpack.c.b16 %v3203, %v3197
        %v4086 = vpack.c.b16 %v3204, %v3198
        %v4087 = vpack.c.b16 %v3205, %v3199
        %v4088 = vpack.c.b16 %v3206, %v3200
        %v4089 = vpack.c.b16 %v3207, %v3201
        %v4090 = vpack.c.b16 %v3208, %v3202
        %v4091 = vpack.c.b16 %v3215, %v3209
        %v4092 = vpack.c.b16 %v3216, %v3210
        %v4093 = vpack.c.b16 %v3217, %v3211
        %v4094 = vpack.c.b16 %v3218, %v3212
        %v4095 = vpack.c.b16 %v3219, %v3213
        %v4096 = vpack.c.b16 %v3220, %v3214
        %v4097 = vpack.c.b16 %v3227, %v3221
        %v4098 = vpack.c.b16 %v3228, %v3222
        %v4099 = vpack.c.b16 %v3229, %v3223
        %v4100 = vpack.c.b16 %v3230, %v3224
        %v4101 = vpack.c.b16 %v3231, %v3225
        %v4102 = vpack.c.b16 %v3232, %v3226
        %v4103 = vpack.c.b16 %v3239, %v3233
        %v4104 = vpack.c.b16 %v3240, %v3234
        %v4105 = vpack.c.b16 %v3241, %v3235
        %v4106 = vpack.c.b16 %v3242, %v3236
        %v4107 = vpack.c.b16 %v3243, %v3237
        %v4108 = vpack.c.b16 %v3244, %v3238
        %v4109 = vpack.c.b16 %v3251, %v3245
        %v4110 = vpack.c.b16 %v3252, %v3246
        %v4111 = vpack.c.b16 %v3253, %v3247
        %v4112 = vpack.c.b16 %v3254, %v3248
        %v4113 = vpack.c.b16 %v3255, %v3249
        %v4114 = vpack.c.b16 %v3256, %v3250
        %v4115 = vpack.c.b16 %v3263, %v3257
        %v4116 = vpack.c.b16 %v3264, %v3258
        %v4117 = vpack.c.b16 %v3265, %v3259
        %v4118 = vpack.c.b16 %v3266, %v3260
        %v4119 = vpack.c.b16 %v3267, %v3261
        %v4120 = vpack.c.b16 %v3268, %v3262
        %v4121 = vpack.c.b16 %v3275, %v3269
        %v4122 = vpack.c.b16 %v3276, %v3270
        %v4123 = vpack.c.b16 %v3277, %v3271
        %v4124 = vpack.c.b16 %v3278, %v3272
        %v4125 = vpack.c.b16 %v3279, %v3273
        %v4126 = vpack.c.b16 %v3280, %v3274
        %v4127 = vpack.c.b16 %v3287, %v3281
        %v4128 = vpack.c.b16 %v3288, %v3282
        %v4129 = vpack.c.b16 %v3289, %v3283
        %v4130 = vpack.c.b16 %v3290, %v3284
        %v4131 = vpack.c.b16 %v3291, %v3285
        %v4132 = vpack.c.b16 %v3292, %v3286
        %v4133 = vpack.c.b16 %v3299, %v3293
        %v4134 = vpack.c.b16 %v3300, %v3294
        %v4135 = vpack.c.b16 %v3301, %v3295
        %v4136 = vpack.c.b16 %v3302, %v3296
        %v4137 = vpack.c.b16 %v3303, %v3297
        %v4138 = vpack.c.b16 %v3304, %v3298
        %v4139 = vpack.c.b16 %v3311, %v3305
        %v4140 = vpack.c.b16 %v3312, %v3306
        %v4141 = vpack.c.b16 %v3313, %v3307
        %v4142 = vpack.c.b16 %v3314, %v3308
        %v4143 = vpack.c.b16 %v3315, %v3309
        %v4144 = vpack.c.b16 %v3316, %v3310
        %v4145 = vpack.c.b16 %v3323, %v3317
        %v4146 = vpack.c.b16 %v3324, %v3318
        %v4147 = vpack.c.b16 %v3325, %v3319
        %v4148 = vpack.c.b16 %v3326, %v3320
        %v4149 = vpack.c.b16 %v3327, %v3321
        %v4150 = vpack.c.b16 %v3328, %v3322
        %v4151 = vpack.c.b16 %v3335, %v3329
        %v4152 = vpack.c.b16 %v3336, %v3330
        %v4153 = vpack.c.b16 %v3337, %v3331
        %v4154 = vpack.c.b16 %v3338, %v3332
        %v4155 = vpack.c.b16 %v3339, %v3333
        %v4156 = vpack.c.b16 %v3340, %v3334
        %v4157 = vpack.c.b16 %v3347, %v3341
        %v4158 = vpack.c.b16 %v3348, %v3342
        %v4159 = vpack.c.b16 %v3349, %v3343
        %v4160 = vpack.c.b16 %v3350, %v3344
        %v4161 = vpack.c.b16 %v3351, %v3345
        %v4162 = vpack.c.b16 %v3352, %v3346
        %v4163 = vpack.c.b16 %v3359, %v3353
        %v4164 = vpack.c.b16 %v3360, %v3354
        %v4165 = vpack.c.b16 %v3361, %v3355
        %v4166 = vpack.c.b16 %v3362, %v3356
        %v4167 = vpack.c.b16 %v3363, %v3357
        %v4168 = vpack.c.b16 %v3364, %v3358
        %v4169 = vpack.c.b16 %v3371, %v3365
        %v4170 = vpack.c.b16 %v3372, %v3366
        %v4171 = vpack.c.b16 %v3373, %v3367
        %v4172 = vpack.c.b16 %v3374, %v3368
        %v4173 = vpack.c.b16 %v3375, %v3369
        %v4174 = vpack.c.b16 %v3376, %v3370
        %v4175 = vpack.c.b16 %v3383, %v3377
        %v4176 = vpack.c.b16 %v3384, %v3378
        %v4177 = vpack.c.b16 %v3385, %v3379
        %v4178 = vpack.c.b16 %v3386, %v3380
        %v4179 = vpack.c.b16 %v3387, %v3381
        %v4180 = vpack.c.b16 %v3388, %v3382
        %v4181 = vpack.c.b16 %v3395, %v3389
        %v4182 = vpack.c.b16 %v3396, %v3390
        %v4183 = vpack.c.b16 %v3397, %v3391
        %v4184 = vpack.c.b16 %v3398, %v3392
        %v4185 = vpack.c.b16 %v3399, %v3393
        %v4186 = vpack.c.b16 %v3400, %v3394
        %v4187 = vpack.c.b16 %v3407, %v3401
        %v4188 = vpack.c.b16 %v3408, %v3402
        %v4189 = vpack.c.b16 %v3409, %v3403
        %v4190 = vpack.c.b16 %v3410, %v3404
        %v4191 = vpack.c.b16 %v3411, %v3405
        %v4192 = vpack.c.b16 %v3412, %v3406
        %v4193 = vpack.c.b16 %v3419, %v3413
        %v4194 = vpack.c.b16 %v3420, %v3414
        %v4195 = vpack.c.b16 %v3421, %v3415
        %v4196 = vpack.c.b16 %v3422, %v3416
        %v4197 = vpack.c.b16 %v3423, %v3417
        %v4198 = vpack.c.b16 %v3424, %v3418
        %v4199 = vpack.c.b16 %v3431, %v3425
        %v4200 = vpack.c.b16 %v3432, %v3426
        %v4201 = vpack.c.b16 %v3433, %v3427
        %v4202 = vpack.c.b16 %v3434, %v3428
        %v4203 = vpack.c.b16 %v3435, %v3429
        %v4204 = vpack.c.b16 %v3436, %v3430
        %v4205 = vpack.c.b16 %v3443, %v3437
        %v4206 = vpack.c.b16 %v3444, %v3438
        %v4207 = vpack.c.b16 %v3445, %v3439
        %v4208 = vpack.c.b16 %v3446, %v3440
        %v4209 = vpack.c.b16 %v3447, %v3441
        %v4210 = vpack.c.b16 %v3448, %v3442
        %v4211 = vpack.c.b16 %v3455, %v3449
        %v4212 = vpack.c.b16 %v3456, %v3450
        %v4213 = vpack.c.b16 %v3457, %v3451
        %v4214 = vpack.c.b16 %v3458, %v3452
        %v4215 = vpack.c.b16 %v3459, %v3453
        %v4216 = vpack.c.b16 %v3460, %v3454
        %v4217 = vpack.c.b16 %v3467, %v3461
        %v4218 = vpack.c.b16 %v3468, %v3462
        %v4219 = vpack.c.b16 %v3469, %v3463
        %v4220 = vpack.c.b16 %v3470, %v3464
        %v4221 = vpack.c.b16 %v3471, %v3465
        %v4222 = vpack.c.b16 %v3472, %v3466
        %v4223 = vpack.c.b16 %v3479, %v3473
        %v4224 = vpack.c.b16 %v3480, %v3474
        %v4225 = vpack.c.b16 %v3481, %v3475
        %v4226 = vpack.c.b16 %v3482, %v3476
        %v4227 = vpack.c.b16 %v3483, %v3477
        %v4228 = vpack.c.b16 %v3484, %v3478
        %v4229 = vpack.c.b16 %v3491, %v3485
        %v4230 = vpack.c.b16 %v3492, %v3486
        %v4231 = vpack.c.b16 %v3493, %v3487
        %v4232 = vpack.c.b16 %v3494, %v3488
        %v4233 = vpack.c.b16 %v3495, %v3489
        %v4234 = vpack.c.b16 %v3496, %v3490
        %v4235 = vpack.c.b16 %v3503, %v3497
        %v4236 = vpack.c.b16 %v3504, %v3498
        %v4237 = vpack.c.b16 %v3505, %v3499
        %v4238 = vpack.c.b16 %v3506, %v3500
        %v4239 = vpack.c.b16 %v3507, %v3501
        %v4240 = vpack.c.b16 %v3508, %v3502
        %v4241 = vpack.c.b16 %v3515, %v3509
        %v4242 = vpack.c.b16 %v3516, %v3510
        %v4243 = vpack.c.b16 %v3517, %v3511
        %v4244 = vpack.c.b16 %v3518, %v3512
        %v4245 = vpack.c.b16 %v3519, %v3513
        %v4246 = vpack.c.b16 %v3520, %v3514
        %v4247 = vpack.c.b16 %v3527, %v3521
        %v4248 = vpack.c.b16 %v3528, %v3522
        %v4249 = vpack.c.b16 %v3529, %v3523
        %v4250 = vpack.c.b16 %v3530, %v3524
        %v4251 = vpack.c.b16 %v3531, %v3525
        %v4252 = vpack.c.b16 %v3532, %v3526
        %v4253 = vpack.c.b16 %v3539, %v3533
        %v4254 = vpack.c.b16 %v3540, %v3534
        %v4255 = vpack.c.b16 %v3541, %v3535
        %v4256 = vpack.c.b16 %v3542, %v3536
        %v4257 = vpack.c.b16 %v3543, %v3537
        %v4258 = vpack.c.b16 %v3544, %v3538
        %v4259 = vpack.c.b16 %v3551, %v3545
        %v4260 = vpack.c.b16 %v3552, %v3546
        %v4261 = vpack.c.b16 %v3553, %v3547
        %v4262 = vpack.c.b16 %v3554, %v3548
        %v4263 = vpack.c.b16 %v3555, %v3549
        %v4264 = vpack.c.b16 %v3556, %v3550
        %v4265 = vpack.c.b16 %v3563, %v3557
        %v4266 = vpack.c.b16 %v3564, %v3558
        %v4267 = vpack.c.b16 %v3565, %v3559
        %v4268 = vpack.c.b16 %v3566, %v3560
        %v4269 = vpack.c.b16 %v3567, %v3561
        %v4270 = vpack.c.b16 %v3568, %v3562
        %v4271 = vpack.c.b16 %v3575, %v3569
        %v4272 = vpack.c.b16 %v3576, %v3570
        %v4273 = vpack.c.b16 %v3577, %v3571
        %v4274 = vpack.c.b16 %v3578, %v3572
        %v4275 = vpack.c.b16 %v3579, %v3573
        %v4276 = vpack.c.b16 %v3580, %v3574
        %v4277 = vpack.c.b16 %v3587, %v3581
        %v4278 = vpack.c.b16 %v3588, %v3582
        %v4279 = vpack.c.b16 %v3589, %v3583
        %v4280 = vpack.c.b16 %v3590, %v3584
        %v4281 = vpack.c.b16 %v3591, %v3585
        %v4282 = vpack.c.b16 %v3592, %v3586
        %v4283 = vpack.c.b16 %v3599, %v3593
        %v4284 = vpack.c.b16 %v3600, %v3594
        %v4285 = vpack.c.b16 %v3601, %v3595
        %v4286 = vpack.c.b16 %v3602, %v3596
        %v4287 = vpack.c.b16 %v3603, %v3597
        %v4288 = vpack.c.b16 %v3604, %v3598
        %v4289 = vpack.c.b16 %v3611, %v3605
        %v4290 = vpack.c.b16 %v3612, %v3606
        %v4291 = vpack.c.b16 %v3613, %v3607
        %v4292 = vpack.c.b16 %v3614, %v3608
        %v4293 = vpack.c.b16 %v3615, %v3609
        %v4294 = vpack.c.b16 %v3616, %v3610
        %v4295 = vpack.c.b16 %v3623, %v3617
        %v4296 = vpack.c.b16 %v3624, %v3618
        %v4297 = vpack.c.b16 %v3625, %v3619
        %v4298 = vpack.c.b16 %v3626, %v3620
        %v4299 = vpack.c.b16 %v3627, %v3621
        %v4300 = vpack.c.b16 %v3628, %v3622
        %v4301 = vpack.c.b16 %v3635, %v3629
        %v4302 = vpack.c.b16 %v3636, %v3630
        %v4303 = vpack.c.b16 %v3637, %v3631
        %v4304 = vpack.c.b16 %v3638, %v3632
        %v4305 = vpack.c.b16 %v3639, %v3633
        %v4306 = vpack.c.b16 %v3640, %v3634
        %v4307 = vpack.c.b16 %v3647, %v3641
        %v4308 = vpack.c.b16 %v3648, %v3642
        %v4309 = vpack.c.b16 %v3649, %v3643
        %v4310 = vpack.c.b16 %v3650, %v3644
        %v4311 = vpack.c.b16 %v3651, %v3645
        %v4312 = vpack.c.b16 %v3652, %v3646
        %v4313 = vpack.c.b16 %v3659, %v3653
        %v4314 = vpack.c.b16 %v3660, %v3654
        %v4315 = vpack.c.b16 %v3661, %v3655
        %v4316 = vpack.c.b16 %v3662, %v3656
        %v4317 = vpack.c.b16 %v3663, %v3657
        %v4318 = vpack.c.b16 %v3664, %v3658
        %v4319 = vpack.c.b16 %v3671, %v3665
        %v4320 = vpack.c.b16 %v3672, %v3666
        %v4321 = vpack.c.b16 %v3673, %v3667
        %v4322 = vpack.c.b16 %v3674, %v3668
        %v4323 = vpack.c.b16 %v3675, %v3669
        %v4324 = vpack.c.b16 %v3676, %v3670
        %v4325 = vpack.c.b16 %v3683, %v3677
        %v4326 = vpack.c.b16 %v3684, %v3678
        %v4327 = vpack.c.b16 %v3685, %v3679
        %v4328 = vpack.c.b16 %v3686, %v3680
        %v4329 = vpack.c.b16 %v3687, %v3681
        %v4330 = vpack.c.b16 %v3688, %v3682
        %v4331 = vpack.c.b16 %v3695, %v3689
        %v4332 = vpack.c.b16 %v3696, %v3690
        %v4333 = vpack.c.b16 %v3697, %v3691
        %v4334 = vpack.c.b16 %v3698, %v3692
        %v4335 = vpack.c.b16 %v3699, %v3693
        %v4336 = vpack.c.b16 %v3700, %v3694
        %v4337 = vpack.c.b16 %v3707, %v3701
        %v4338 = vpack.c.b16 %v3708, %v3702
        %v4339 = vpack.c.b16 %v3709, %v3703
        %v4340 = vpack.c.b16 %v3710, %v3704
        %v4341 = vpack.c.b16 %v3711, %v3705
        %v4342 = vpack.c.b16 %v3712, %v3706
        %v4343 = vpack.c.b16 %v3719, %v3713
        %v4344 = vpack.c.b16 %v3720, %v3714
        %v4345 = vpack.c.b16 %v3721, %v3715
        %v4346 = vpack.c.b16 %v3722, %v3716
        %v4347 = vpack.c.b16 %v3723, %v3717
        %v4348 = vpack.c.b16 %v3724, %v3718
        %v4349 = vpack.c.b16 %v3731, %v3725
        %v4350 = vpack.c.b16 %v3732, %v3726
        %v4351 = vpack.c.b16 %v3733, %v3727
        %v4352 = vpack.c.b16 %v3734, %v3728
        %v4353 = vpack.c.b16 %v3735, %v3729
        %v4354 = vpack.c.b16 %v3736, %v3730
        %v4355 = vpack.c.b16 %v3743, %v3737
        %v4356 = vpack.c.b16 %v3744, %v3738
        %v4357 = vpack.c.b16 %v3745, %v3739
        %v4358 = vpack.c.b16 %v3746, %v3740
        %v4359 = vpack.c.b16 %v3747, %v3741
        %v4360 = vpack.c.b16 %v3748, %v3742
        %v4361 = vpack.c.b16 %v3755, %v3749
        %v4362 = vpack.c.b16 %v3756, %v3750
        %v4363 = vpack.c.b16 %v3757, %v3751
        %v4364 = vpack.c.b16 %v3758, %v3752
        %v4365 = vpack.c.b16 %v3759, %v3753
        %v4366 = vpack.c.b16 %v3760, %v3754
        %v4367 = vpack.c.b16 %v3767, %v3761
        %v4368 = vpack.c.b16 %v3768, %v3762
        %v4369 = vpack.c.b16 %v3769, %v3763
        %v4370 = vpack.c.b16 %v3770, %v3764
        %v4371 = vpack.c.b16 %v3771, %v3765
        %v4372 = vpack.c.b16 %v3772, %v3766
        %v4373 = vpack.c.b16 %v3779, %v3773
        %v4374 = vpack.c.b16 %v3780, %v3774
        %v4375 = vpack.c.b16 %v3781, %v3775
        %v4376 = vpack.c.b16 %v3782, %v3776
        %v4377 = vpack.c.b16 %v3783, %v3777
        %v4378 = vpack.c.b16 %v3784, %v3778
        %v4379 = vpack.c.b16 %v3791, %v3785
        %v4380 = vpack.c.b16 %v3792, %v3786
        %v4381 = vpack.c.b16 %v3793, %v3787
        %v4382 = vpack.c.b16 %v3794, %v3788
        %v4383 = vpack.c.b16 %v3795, %v3789
        %v4384 = vpack.c.b16 %v3796, %v3790
        %v4385 = vpack.c.b16 %v3803, %v3797
        %v4386 = vpack.c.b16 %v3804, %v3798
        %v4387 = vpack.c.b16 %v3805, %v3799
        %v4388 = vpack.c.b16 %v3806, %v3800
        %v4389 = vpack.c.b16 %v3807, %v3801
        %v4390 = vpack.c.b16 %v3808, %v3802
        %v4391 = vpack.c.b16 %v3815, %v3809
        %v4392 = vpack.c.b16 %v3816, %v3810
        %v4393 = vpack.c.b16 %v3817, %v3811
        %v4394 = vpack.c.b16 %v3818, %v3812
        %v4395 = vpack.c.b16 %v3819, %v3813
        %v4396 = vpack.c.b16 %v3820, %v3814
        %4973 = vmatprep.subr.bf16.mxu0 %v3822
        %4974 = vmatpush1.bf16.msra.mxu0 %v3821
        %4975 = vmatprep.subr.bf16.mxu0 %v3828
        %4976 = vmatpush1.bf16.msra.mxu0 %v3827
        %4977 = vmatprep.subr.bf16.mxu0 %v3834
        %4978 = vmatpush1.bf16.msra.mxu0 %v3833
        %4979 = vmatprep.subr.bf16.mxu0 %v3840
        %4980 = vmatpush1.bf16.msra.mxu0 %v3839
        %4981 = vmatprep.subr.bf16.mxu0 %v3846
        %4982 = vmatpush1.bf16.msra.mxu0 %v3845
        %4983 = vmatprep.subr.bf16.mxu0 %v3852
        %4984 = vmatpush1.bf16.msra.mxu0 %v3851
        %4985 = vmatprep.subr.bf16.mxu0 %v3858
        %4986 = vmatpush1.bf16.msra.mxu0 %v3857
        %4987 = vmatprep.subr.bf16.mxu0 %v3864
        %4988 = vmatpush1.bf16.msra.mxu0 %v3863
        %4989 = vmatprep.subr.bf16.mxu0 %v3870
        %4990 = vmatpush1.bf16.msra.mxu0 %v3869
        %4991 = vmatprep.subr.bf16.mxu0 %v3876
        %4992 = vmatpush1.bf16.msra.mxu0 %v3875
        %4993 = vmatprep.subr.bf16.mxu0 %v3882
        %4994 = vmatpush1.bf16.msra.mxu0 %v3881
        %4995 = vmatprep.subr.bf16.mxu0 %v3888
        %4996 = vmatpush1.bf16.msra.mxu0 %v3887
        %4997 = vmatprep.subr.bf16.mxu0 %v3894
        %4998 = vmatpush1.bf16.msra.mxu0 %v3893
        %4999 = vmatprep.subr.bf16.mxu0 %v3900
        %5000 = vmatpush1.bf16.msra.mxu0 %v3899
        %5001 = vmatprep.subr.bf16.mxu0 %v3906
        %5002 = vmatpush1.bf16.msra.mxu0 %v3905
        %5003 = vmatprep.subr.bf16.mxu0 %v3912
        %5004 = vmatpush1.bf16.msra.mxu0 %v3911
        %5005 = vmatprep.mubr.bf16.mxu0 %v2070
        %5006 = vmatmul.mubr.bf16.gmra.mrb[0].mxu0 %v2069
        %v5007 = vpop.f32.mrb[0].mxu0
        %v5008 = vadd.f32 %v2006, %v5007
        %v5009 = vpop.f32.mrb[0].mxu0
        %v5010 = vadd.f32 %v2010, %v5009
        %v5011 = vpop.f32.mrb[0].mxu0
        %v5012 = vadd.f32 %v2006, %v5011
        %v5013 = vpop.f32.mrb[0].mxu0
        %v5014 = vadd.f32 %v2010, %v5013
        %5015 = vdwg.mxu0
        %5016 = vmatprep.subr.bf16.mxu0 %v3918
        %5017 = vmatpush1.bf16.msra.mxu0 %v3917
        %5018 = vmatprep.subr.bf16.mxu0 %v3924
        %5019 = vmatpush1.bf16.msra.mxu0 %v3923
        %5020 = vmatprep.subr.bf16.mxu0 %v3930
        %5021 = vmatpush1.bf16.msra.mxu0 %v3929
        %5022 = vmatprep.subr.bf16.mxu0 %v3936
        %5023 = vmatpush1.bf16.msra.mxu0 %v3935
        %5024 = vmatprep.subr.bf16.mxu0 %v3942
        %5025 = vmatpush1.bf16.msra.mxu0 %v3941
        %5026 = vmatprep.subr.bf16.mxu0 %v3948
        %5027 = vmatpush1.bf16.msra.mxu0 %v3947
        %5028 = vmatprep.subr.bf16.mxu0 %v3954
        %5029 = vmatpush1.bf16.msra.mxu0 %v3953
        %5030 = vmatprep.subr.bf16.mxu0 %v3960
        %5031 = vmatpush1.bf16.msra.mxu0 %v3959
        %5032 = vmatprep.subr.bf16.mxu0 %v3966
        %5033 = vmatpush1.bf16.msra.mxu0 %v3965
        %5034 = vmatprep.subr.bf16.mxu0 %v3972
        %5035 = vmatpush1.bf16.msra.mxu0 %v3971
        %5036 = vmatprep.subr.bf16.mxu0 %v3978
        %5037 = vmatpush1.bf16.msra.mxu0 %v3977
        %5038 = vmatprep.subr.bf16.mxu0 %v3984
        %5039 = vmatpush1.bf16.msra.mxu0 %v3983
        %5040 = vmatprep.subr.bf16.mxu0 %v3990
        %5041 = vmatpush1.bf16.msra.mxu0 %v3989
        %5042 = vmatprep.subr.bf16.mxu0 %v3996
        %5043 = vmatpush1.bf16.msra.mxu0 %v3995
        %5044 = vmatprep.subr.bf16.mxu0 %v4002
        %5045 = vmatpush1.bf16.msra.mxu0 %v4001
        %5046 = vmatprep.subr.bf16.mxu0 %v4008
        %5047 = vmatpush1.bf16.msra.mxu0 %v4007
        %5048 = vmatprep.mubr.bf16.mxu0 %v2072
        %5049 = vmatmul.mubr.bf16.gmra.mrb[0].mxu0 %v2071
        %v5050 = vpop.f32.mrb[0].mxu0
        %v5051 = vadd.f32 %v5008, %v5050
        %v5052 = vpop.f32.mrb[0].mxu0
        %v5053 = vadd.f32 %v5010, %v5052
        %v5054 = vpop.f32.mrb[0].mxu0
        %v5055 = vadd.f32 %v5012, %v5054
        %v5056 = vpop.f32.mrb[0].mxu0
        %v5057 = vadd.f32 %v5014, %v5056
        %5058 = vdwg.mxu0
        %5059 = vmatprep.subr.bf16.mxu0 %v4014
        %5060 = vmatpush1.bf16.msra.mxu0 %v4013
        %5061 = vmatprep.subr.bf16.mxu0 %v4020
        %5062 = vmatpush1.bf16.msra.mxu0 %v4019
        %5063 = vmatprep.subr.bf16.mxu0 %v4026
        %5064 = vmatpush1.bf16.msra.mxu0 %v4025
        %5065 = vmatprep.subr.bf16.mxu0 %v4032
        %5066 = vmatpush1.bf16.msra.mxu0 %v4031
        %5067 = vmatprep.subr.bf16.mxu0 %v4038
        %5068 = vmatpush1.bf16.msra.mxu0 %v4037
        %5069 = vmatprep.subr.bf16.mxu0 %v4044
        %5070 = vmatpush1.bf16.msra.mxu0 %v4043
        %5071 = vmatprep.subr.bf16.mxu0 %v4050
        %5072 = vmatpush1.bf16.msra.mxu0 %v4049
        %5073 = vmatprep.subr.bf16.mxu0 %v4056
        %5074 = vmatpush1.bf16.msra.mxu0 %v4055
        %5075 = vmatprep.subr.bf16.mxu0 %v4062
        %5076 = vmatpush1.bf16.msra.mxu0 %v4061
        %5077 = vmatprep.subr.bf16.mxu0 %v4068
        %5078 = vmatpush1.bf16.msra.mxu0 %v4067
        %5079 = vmatprep.subr.bf16.mxu0 %v4074
        %5080 = vmatpush1.bf16.msra.mxu0 %v4073
        %5081 = vmatprep.subr.bf16.mxu0 %v4080
        %5082 = vmatpush1.bf16.msra.mxu0 %v4079
        %5083 = vmatprep.subr.bf16.mxu0 %v4086
        %5084 = vmatpush1.bf16.msra.mxu0 %v4085
        %5085 = vmatprep.subr.bf16.mxu0 %v4092
        %5086 = vmatpush1.bf16.msra.mxu0 %v4091
        %5087 = vmatprep.subr.bf16.mxu0 %v4098
        %5088 = vmatpush1.bf16.msra.mxu0 %v4097
        %5089 = vmatprep.subr.bf16.mxu0 %v4104
        %5090 = vmatpush1.bf16.msra.mxu0 %v4103
        %5091 = vmatprep.mubr.bf16.mxu0 %v2074
        %5092 = vmatmul.mubr.bf16.gmra.mrb[0].mxu0 %v2073
        %v5093 = vpop.f32.mrb[0].mxu0
        %v5094 = vadd.f32 %v5051, %v5093
        %v5095 = vpop.f32.mrb[0].mxu0
        %v5096 = vadd.f32 %v5053, %v5095
        %v5097 = vpop.f32.mrb[0].mxu0
        %v5098 = vadd.f32 %v5055, %v5097
        %v5099 = vpop.f32.mrb[0].mxu0
        %v5100 = vadd.f32 %v5057, %v5099
        %5101 = vdwg.mxu0
        %5102 = vmatprep.subr.bf16.mxu0 %v4110
        %5103 = vmatpush1.bf16.msra.mxu0 %v4109
        %5104 = vmatprep.subr.bf16.mxu0 %v4116
        %5105 = vmatpush1.bf16.msra.mxu0 %v4115
        %5106 = vmatprep.subr.bf16.mxu0 %v4122
        %5107 = vmatpush1.bf16.msra.mxu0 %v4121
        %5108 = vmatprep.subr.bf16.mxu0 %v4128
        %5109 = vmatpush1.bf16.msra.mxu0 %v4127
        %5110 = vmatprep.subr.bf16.mxu0 %v4134
        %5111 = vmatpush1.bf16.msra.mxu0 %v4133
        %5112 = vmatprep.subr.bf16.mxu0 %v4140
        %5113 = vmatpush1.bf16.msra.mxu0 %v4139
        %5114 = vmatprep.subr.bf16.mxu0 %v4146
        %5115 = vmatpush1.bf16.msra.mxu0 %v4145
        %5116 = vmatprep.subr.bf16.mxu0 %v4152
        %5117 = vmatpush1.bf16.msra.mxu0 %v4151
        %5118 = vmatprep.subr.bf16.mxu0 %v4158
        %5119 = vmatpush1.bf16.msra.mxu0 %v4157
        %5120 = vmatprep.subr.bf16.mxu0 %v4164
        %5121 = vmatpush1.bf16.msra.mxu0 %v4163
        %5122 = vmatprep.subr.bf16.mxu0 %v4170
        %5123 = vmatpush1.bf16.msra.mxu0 %v4169
        %5124 = vmatprep.subr.bf16.mxu0 %v4176
        %5125 = vmatpush1.bf16.msra.mxu0 %v4175
        %5126 = vmatprep.subr.bf16.mxu0 %v4182
        %5127 = vmatpush1.bf16.msra.mxu0 %v4181
        %5128 = vmatprep.subr.bf16.mxu0 %v4188
        %5129 = vmatpush1.bf16.msra.mxu0 %v4187
        %5130 = vmatprep.subr.bf16.mxu0 %v4194
        %5131 = vmatpush1.bf16.msra.mxu0 %v4193
        %5132 = vmatprep.subr.bf16.mxu0 %v4200
        %5133 = vmatpush1.bf16.msra.mxu0 %v4199
        %5134 = vmatprep.mubr.bf16.mxu0 %v2076
        %5135 = vmatmul.mubr.bf16.gmra.mrb[0].mxu0 %v2075
        %v5136 = vpop.f32.mrb[0].mxu0
        %v5137 = vadd.f32 %v5094, %v5136
        %v5138 = vpop.f32.mrb[0].mxu0
        %v5139 = vadd.f32 %v5096, %v5138
        %v5140 = vpop.f32.mrb[0].mxu0
        %v5141 = vadd.f32 %v5098, %v5140
        %v5142 = vpop.f32.mrb[0].mxu0
        %v5143 = vadd.f32 %v5100, %v5142
        %5144 = vdwg.mxu0
        %5145 = vmatprep.subr.bf16.mxu0 %v4206
        %5146 = vmatpush1.bf16.msra.mxu0 %v4205
        %5147 = vmatprep.subr.bf16.mxu0 %v4212
        %5148 = vmatpush1.bf16.msra.mxu0 %v4211
        %5149 = vmatprep.subr.bf16.mxu0 %v4218
        %5150 = vmatpush1.bf16.msra.mxu0 %v4217
        %5151 = vmatprep.subr.bf16.mxu0 %v4224
        %5152 = vmatpush1.bf16.msra.mxu0 %v4223
        %5153 = vmatprep.subr.bf16.mxu0 %v4230
        %5154 = vmatpush1.bf16.msra.mxu0 %v4229
        %5155 = vmatprep.subr.bf16.mxu0 %v4236
        %5156 = vmatpush1.bf16.msra.mxu0 %v4235
        %5157 = vmatprep.subr.bf16.mxu0 %v4242
        %5158 = vmatpush1.bf16.msra.mxu0 %v4241
        %5159 = vmatprep.subr.bf16.mxu0 %v4248
        %5160 = vmatpush1.bf16.msra.mxu0 %v4247
        %5161 = vmatprep.subr.bf16.mxu0 %v4254
        %5162 = vmatpush1.bf16.msra.mxu0 %v4253
        %5163 = vmatprep.subr.bf16.mxu0 %v4260
        %5164 = vmatpush1.bf16.msra.mxu0 %v4259
        %5165 = vmatprep.subr.bf16.mxu0 %v4266
        %5166 = vmatpush1.bf16.msra.mxu0 %v4265
        %5167 = vmatprep.subr.bf16.mxu0 %v4272
        %5168 = vmatpush1.bf16.msra.mxu0 %v4271
        %5169 = vmatprep.subr.bf16.mxu0 %v4278
        %5170 = vmatpush1.bf16.msra.mxu0 %v4277
        %5171 = vmatprep.subr.bf16.mxu0 %v4284
        %5172 = vmatpush1.bf16.msra.mxu0 %v4283
        %5173 = vmatprep.subr.bf16.mxu0 %v4290
        %5174 = vmatpush1.bf16.msra.mxu0 %v4289
        %5175 = vmatprep.subr.bf16.mxu0 %v4296
        %5176 = vmatpush1.bf16.msra.mxu0 %v4295
        %5177 = vmatprep.mubr.bf16.mxu0 %v2078
        %5178 = vmatmul.mubr.bf16.gmra.mrb[0].mxu0 %v2077
        %v5179 = vpop.f32.mrb[0].mxu0
        %v5180 = vadd.f32 %v5137, %v5179
        %v5181 = vpop.f32.mrb[0].mxu0
        %v5182 = vadd.f32 %v5139, %v5181
        %v5183 = vpop.f32.mrb[0].mxu0
        %v5184 = vadd.f32 %v5141, %v5183
        %v5185 = vpop.f32.mrb[0].mxu0
        %v5186 = vadd.f32 %v5143, %v5185
        %5187 = vdwg.mxu0
        %5188 = vmatprep.subr.bf16.mxu0 %v4302
        %5189 = vmatpush1.bf16.msra.mxu0 %v4301
        %5190 = vmatprep.subr.bf16.mxu0 %v4308
        %5191 = vmatpush1.bf16.msra.mxu0 %v4307
        %5192 = vmatprep.subr.bf16.mxu0 %v4314
        %5193 = vmatpush1.bf16.msra.mxu0 %v4313
        %5194 = vmatprep.subr.bf16.mxu0 %v4320
        %5195 = vmatpush1.bf16.msra.mxu0 %v4319
        %5196 = vmatprep.subr.bf16.mxu0 %v4326
        %5197 = vmatpush1.bf16.msra.mxu0 %v4325
        %5198 = vmatprep.subr.bf16.mxu0 %v4332
        %5199 = vmatpush1.bf16.msra.mxu0 %v4331
        %5200 = vmatprep.subr.bf16.mxu0 %v4338
        %5201 = vmatpush1.bf16.msra.mxu0 %v4337
        %5202 = vmatprep.subr.bf16.mxu0 %v4344
        %5203 = vmatpush1.bf16.msra.mxu0 %v4343
        %5204 = vmatprep.subr.bf16.mxu0 %v4350
        %5205 = vmatpush1.bf16.msra.mxu0 %v4349
        %5206 = vmatprep.subr.bf16.mxu0 %v4356
        %5207 = vmatpush1.bf16.msra.mxu0 %v4355
        %5208 = vmatprep.subr.bf16.mxu0 %v4362
        %5209 = vmatpush1.bf16.msra.mxu0 %v4361
        %5210 = vmatprep.subr.bf16.mxu0 %v4368
        %5211 = vmatpush1.bf16.msra.mxu0 %v4367
        %5212 = vmatprep.subr.bf16.mxu0 %v4374
        %5213 = vmatpush1.bf16.msra.mxu0 %v4373
        %5214 = vmatprep.subr.bf16.mxu0 %v4380
        %5215 = vmatpush1.bf16.msra.mxu0 %v4379
        %5216 = vmatprep.subr.bf16.mxu0 %v4386
        %5217 = vmatpush1.bf16.msra.mxu0 %v4385
        %5218 = vmatprep.subr.bf16.mxu0 %v4392
        %5219 = vmatpush1.bf16.msra.mxu0 %v4391
        %5220 = vmatprep.mubr.bf16.mxu0 %v2080
        %5221 = vmatmul.mubr.bf16.gmra.mrb[0].mxu0 %v2079
        %v5222 = vpop.f32.mrb[0].mxu0
        %v5223 = vadd.f32 %v5180, %v5222
        %v5224 = vpop.f32.mrb[0].mxu0
        %v5225 = vadd.f32 %v5182, %v5224
        %v5226 = vpop.f32.mrb[0].mxu0
        %v5227 = vadd.f32 %v5184, %v5226
        %v5228 = vpop.f32.mrb[0].mxu0
        %v5229 = vadd.f32 %v5186, %v5228
        %5230 = vdwg.mxu0
        %5231 = vmatprep.subr.bf16.mxu0 %v3824
        %5232 = vmatpush1.bf16.msra.mxu0 %v3823
        %5233 = vmatprep.subr.bf16.mxu0 %v3830
        %5234 = vmatpush1.bf16.msra.mxu0 %v3829
        %5235 = vmatprep.subr.bf16.mxu0 %v3836
        %5236 = vmatpush1.bf16.msra.mxu0 %v3835
        %5237 = vmatprep.subr.bf16.mxu0 %v3842
        %5238 = vmatpush1.bf16.msra.mxu0 %v3841
        %5239 = vmatprep.subr.bf16.mxu0 %v3848
        %5240 = vmatpush1.bf16.msra.mxu0 %v3847
        %5241 = vmatprep.subr.bf16.mxu0 %v3854
        %5242 = vmatpush1.bf16.msra.mxu0 %v3853
        %5243 = vmatprep.subr.bf16.mxu0 %v3860
        %5244 = vmatpush1.bf16.msra.mxu0 %v3859
        %5245 = vmatprep.subr.bf16.mxu0 %v3866
        %5246 = vmatpush1.bf16.msra.mxu0 %v3865
        %5247 = vmatprep.subr.bf16.mxu0 %v3872
        %5248 = vmatpush1.bf16.msra.mxu0 %v3871
        %5249 = vmatprep.subr.bf16.mxu0 %v3878
        %5250 = vmatpush1.bf16.msra.mxu0 %v3877
        %5251 = vmatprep.subr.bf16.mxu0 %v3884
        %5252 = vmatpush1.bf16.msra.mxu0 %v3883
        %5253 = vmatprep.subr.bf16.mxu0 %v3890
        %5254 = vmatpush1.bf16.msra.mxu0 %v3889
        %5255 = vmatprep.subr.bf16.mxu0 %v3896
        %5256 = vmatpush1.bf16.msra.mxu0 %v3895
        %5257 = vmatprep.subr.bf16.mxu0 %v3902
        %5258 = vmatpush1.bf16.msra.mxu0 %v3901
        %5259 = vmatprep.subr.bf16.mxu0 %v3908
        %5260 = vmatpush1.bf16.msra.mxu0 %v3907
        %5261 = vmatprep.subr.bf16.mxu0 %v3914
        %5262 = vmatpush1.bf16.msra.mxu0 %v3913
        %5263 = vmatprep.mubr.bf16.mxu0 %v2070
        %5264 = vmatmul.mubr.bf16.gmra.mrb[0].mxu0 %v2069
        %v5265 = vpop.f32.mrb[0].mxu0
        %v5266 = vadd.f32 %v2014, %v5265
        %v5267 = vpop.f32.mrb[0].mxu0
        %v5268 = vadd.f32 %v2018, %v5267
        %v5269 = vpop.f32.mrb[0].mxu0
        %v5270 = vadd.f32 %v2014, %v5269
        %v5271 = vpop.f32.mrb[0].mxu0
        %v5272 = vadd.f32 %v2018, %v5271
        %5273 = vdwg.mxu0
        %5274 = vmatprep.subr.bf16.mxu0 %v3920
        %5275 = vmatpush1.bf16.msra.mxu0 %v3919
        %5276 = vmatprep.subr.bf16.mxu0 %v3926
        %5277 = vmatpush1.bf16.msra.mxu0 %v3925
        %5278 = vmatprep.subr.bf16.mxu0 %v3932
        %5279 = vmatpush1.bf16.msra.mxu0 %v3931
        %5280 = vmatprep.subr.bf16.mxu0 %v3938
        %5281 = vmatpush1.bf16.msra.mxu0 %v3937
        %5282 = vmatprep.subr.bf16.mxu0 %v3944
        %5283 = vmatpush1.bf16.msra.mxu0 %v3943
        %5284 = vmatprep.subr.bf16.mxu0 %v3950
        %5285 = vmatpush1.bf16.msra.mxu0 %v3949
        %5286 = vmatprep.subr.bf16.mxu0 %v3956
        %5287 = vmatpush1.bf16.msra.mxu0 %v3955
        %5288 = vmatprep.subr.bf16.mxu0 %v3962
        %5289 = vmatpush1.bf16.msra.mxu0 %v3961
        %5290 = vmatprep.subr.bf16.mxu0 %v3968
        %5291 = vmatpush1.bf16.msra.mxu0 %v3967
        %5292 = vmatprep.subr.bf16.mxu0 %v3974
        %5293 = vmatpush1.bf16.msra.mxu0 %v3973
        %5294 = vmatprep.subr.bf16.mxu0 %v3980
        %5295 = vmatpush1.bf16.msra.mxu0 %v3979
        %5296 = vmatprep.subr.bf16.mxu0 %v3986
        %5297 = vmatpush1.bf16.msra.mxu0 %v3985
        %5298 = vmatprep.subr.bf16.mxu0 %v3992
        %5299 = vmatpush1.bf16.msra.mxu0 %v3991
        %5300 = vmatprep.subr.bf16.mxu0 %v3998
        %5301 = vmatpush1.bf16.msra.mxu0 %v3997
        %5302 = vmatprep.subr.bf16.mxu0 %v4004
        %5303 = vmatpush1.bf16.msra.mxu0 %v4003
        %5304 = vmatprep.subr.bf16.mxu0 %v4010
        %5305 = vmatpush1.bf16.msra.mxu0 %v4009
        %5306 = vmatprep.mubr.bf16.mxu0 %v2072
        %5307 = vmatmul.mubr.bf16.gmra.mrb[0].mxu0 %v2071
        %v5308 = vpop.f32.mrb[0].mxu0
        %v5309 = vadd.f32 %v5266, %v5308
        %v5310 = vpop.f32.mrb[0].mxu0
        %v5311 = vadd.f32 %v5268, %v5310
        %v5312 = vpop.f32.mrb[0].mxu0
        %v5313 = vadd.f32 %v5270, %v5312
        %v5314 = vpop.f32.mrb[0].mxu0
        %v5315 = vadd.f32 %v5272, %v5314
        %5316 = vdwg.mxu0
        %5317 = vmatprep.subr.bf16.mxu0 %v4016
        %5318 = vmatpush1.bf16.msra.mxu0 %v4015
        %5319 = vmatprep.subr.bf16.mxu0 %v4022
        %5320 = vmatpush1.bf16.msra.mxu0 %v4021
        %5321 = vmatprep.subr.bf16.mxu0 %v4028
        %5322 = vmatpush1.bf16.msra.mxu0 %v4027
        %5323 = vmatprep.subr.bf16.mxu0 %v4034
        %5324 = vmatpush1.bf16.msra.mxu0 %v4033
        %5325 = vmatprep.subr.bf16.mxu0 %v4040
        %5326 = vmatpush1.bf16.msra.mxu0 %v4039
        %5327 = vmatprep.subr.bf16.mxu0 %v4046
        %5328 = vmatpush1.bf16.msra.mxu0 %v4045
        %5329 = vmatprep.subr.bf16.mxu0 %v4052
        %5330 = vmatpush1.bf16.msra.mxu0 %v4051
        %5331 = vmatprep.subr.bf16.mxu0 %v4058
        %5332 = vmatpush1.bf16.msra.mxu0 %v4057
        %5333 = vmatprep.subr.bf16.mxu0 %v4064
        %5334 = vmatpush1.bf16.msra.mxu0 %v4063
        %5335 = vmatprep.subr.bf16.mxu0 %v4070
        %5336 = vmatpush1.bf16.msra.mxu0 %v4069
        %5337 = vmatprep.subr.bf16.mxu0 %v4076
        %5338 = vmatpush1.bf16.msra.mxu0 %v4075
        %5339 = vmatprep.subr.bf16.mxu0 %v4082
        %5340 = vmatpush1.bf16.msra.mxu0 %v4081
        %5341 = vmatprep.subr.bf16.mxu0 %v4088
        %5342 = vmatpush1.bf16.msra.mxu0 %v4087
        %5343 = vmatprep.subr.bf16.mxu0 %v4094
        %5344 = vmatpush1.bf16.msra.mxu0 %v4093
        %5345 = vmatprep.subr.bf16.mxu0 %v4100
        %5346 = vmatpush1.bf16.msra.mxu0 %v4099
        %5347 = vmatprep.subr.bf16.mxu0 %v4106
        %5348 = vmatpush1.bf16.msra.mxu0 %v4105
        %5349 = vmatprep.mubr.bf16.mxu0 %v2074
        %5350 = vmatmul.mubr.bf16.gmra.mrb[0].mxu0 %v2073
        %v5351 = vpop.f32.mrb[0].mxu0
        %v5352 = vadd.f32 %v5309, %v5351
        %v5353 = vpop.f32.mrb[0].mxu0
        %v5354 = vadd.f32 %v5311, %v5353
        %v5355 = vpop.f32.mrb[0].mxu0
        %v5356 = vadd.f32 %v5313, %v5355
        %v5357 = vpop.f32.mrb[0].mxu0
        %v5358 = vadd.f32 %v5315, %v5357
        %5359 = vdwg.mxu0
        %5360 = vmatprep.subr.bf16.mxu0 %v4112
        %5361 = vmatpush1.bf16.msra.mxu0 %v4111
        %5362 = vmatprep.subr.bf16.mxu0 %v4118
        %5363 = vmatpush1.bf16.msra.mxu0 %v4117
        %5364 = vmatprep.subr.bf16.mxu0 %v4124
        %5365 = vmatpush1.bf16.msra.mxu0 %v4123
        %5366 = vmatprep.subr.bf16.mxu0 %v4130
        %5367 = vmatpush1.bf16.msra.mxu0 %v4129
        %5368 = vmatprep.subr.bf16.mxu0 %v4136
        %5369 = vmatpush1.bf16.msra.mxu0 %v4135
        %5370 = vmatprep.subr.bf16.mxu0 %v4142
        %5371 = vmatpush1.bf16.msra.mxu0 %v4141
        %5372 = vmatprep.subr.bf16.mxu0 %v4148
        %5373 = vmatpush1.bf16.msra.mxu0 %v4147
        %5374 = vmatprep.subr.bf16.mxu0 %v4154
        %5375 = vmatpush1.bf16.msra.mxu0 %v4153
        %5376 = vmatprep.subr.bf16.mxu0 %v4160
        %5377 = vmatpush1.bf16.msra.mxu0 %v4159
        %5378 = vmatprep.subr.bf16.mxu0 %v4166
        %5379 = vmatpush1.bf16.msra.mxu0 %v4165
        %5380 = vmatprep.subr.bf16.mxu0 %v4172
        %5381 = vmatpush1.bf16.msra.mxu0 %v4171
        %5382 = vmatprep.subr.bf16.mxu0 %v4178
        %5383 = vmatpush1.bf16.msra.mxu0 %v4177
        %5384 = vmatprep.subr.bf16.mxu0 %v4184
        %5385 = vmatpush1.bf16.msra.mxu0 %v4183
        %5386 = vmatprep.subr.bf16.mxu0 %v4190
        %5387 = vmatpush1.bf16.msra.mxu0 %v4189
        %5388 = vmatprep.subr.bf16.mxu0 %v4196
        %5389 = vmatpush1.bf16.msra.mxu0 %v4195
        %5390 = vmatprep.subr.bf16.mxu0 %v4202
        %5391 = vmatpush1.bf16.msra.mxu0 %v4201
        %5392 = vmatprep.mubr.bf16.mxu0 %v2076
        %5393 = vmatmul.mubr.bf16.gmra.mrb[0].mxu0 %v2075
        %v5394 = vpop.f32.mrb[0].mxu0
        %v5395 = vadd.f32 %v5352, %v5394
        %v5396 = vpop.f32.mrb[0].mxu0
        %v5397 = vadd.f32 %v5354, %v5396
        %v5398 = vpop.f32.mrb[0].mxu0
        %v5399 = vadd.f32 %v5356, %v5398
        %v5400 = vpop.f32.mrb[0].mxu0
        %v5401 = vadd.f32 %v5358, %v5400
        %5402 = vdwg.mxu0
        %5403 = vmatprep.subr.bf16.mxu0 %v4208
        %5404 = vmatpush1.bf16.msra.mxu0 %v4207
        %5405 = vmatprep.subr.bf16.mxu0 %v4214
        %5406 = vmatpush1.bf16.msra.mxu0 %v4213
        %5407 = vmatprep.subr.bf16.mxu0 %v4220
        %5408 = vmatpush1.bf16.msra.mxu0 %v4219
        %5409 = vmatprep.subr.bf16.mxu0 %v4226
        %5410 = vmatpush1.bf16.msra.mxu0 %v4225
        %5411 = vmatprep.subr.bf16.mxu0 %v4232
        %5412 = vmatpush1.bf16.msra.mxu0 %v4231
        %5413 = vmatprep.subr.bf16.mxu0 %v4238
        %5414 = vmatpush1.bf16.msra.mxu0 %v4237
        %5415 = vmatprep.subr.bf16.mxu0 %v4244
        %5416 = vmatpush1.bf16.msra.mxu0 %v4243
        %5417 = vmatprep.subr.bf16.mxu0 %v4250
        %5418 = vmatpush1.bf16.msra.mxu0 %v4249
        %5419 = vmatprep.subr.bf16.mxu0 %v4256
        %5420 = vmatpush1.bf16.msra.mxu0 %v4255
        %5421 = vmatprep.subr.bf16.mxu0 %v4262
        %5422 = vmatpush1.bf16.msra.mxu0 %v4261
        %5423 = vmatprep.subr.bf16.mxu0 %v4268
        %5424 = vmatpush1.bf16.msra.mxu0 %v4267
        %5425 = vmatprep.subr.bf16.mxu0 %v4274
        %5426 = vmatpush1.bf16.msra.mxu0 %v4273
        %5427 = vmatprep.subr.bf16.mxu0 %v4280
        %5428 = vmatpush1.bf16.msra.mxu0 %v4279
        %5429 = vmatprep.subr.bf16.mxu0 %v4286
        %5430 = vmatpush1.bf16.msra.mxu0 %v4285
        %5431 = vmatprep.subr.bf16.mxu0 %v4292
        %5432 = vmatpush1.bf16.msra.mxu0 %v4291
        %5433 = vmatprep.subr.bf16.mxu0 %v4298
        %5434 = vmatpush1.bf16.msra.mxu0 %v4297
        %5435 = vmatprep.mubr.bf16.mxu0 %v2078
        %5436 = vmatmul.mubr.bf16.gmra.mrb[0].mxu0 %v2077
        %v5437 = vpop.f32.mrb[0].mxu0
        %v5438 = vadd.f32 %v5395, %v5437
        %v5439 = vpop.f32.mrb[0].mxu0
        %v5440 = vadd.f32 %v5397, %v5439
        %v5441 = vpop.f32.mrb[0].mxu0
        %v5442 = vadd.f32 %v5399, %v5441
        %v5443 = vpop.f32.mrb[0].mxu0
        %v5444 = vadd.f32 %v5401, %v5443
        %5445 = vdwg.mxu0
        %5446 = vmatprep.subr.bf16.mxu0 %v4304
        %5447 = vmatpush1.bf16.msra.mxu0 %v4303
        %5448 = vmatprep.subr.bf16.mxu0 %v4310
        %5449 = vmatpush1.bf16.msra.mxu0 %v4309
        %5450 = vmatprep.subr.bf16.mxu0 %v4316
        %5451 = vmatpush1.bf16.msra.mxu0 %v4315
        %5452 = vmatprep.subr.bf16.mxu0 %v4322
        %5453 = vmatpush1.bf16.msra.mxu0 %v4321
        %5454 = vmatprep.subr.bf16.mxu0 %v4328
        %5455 = vmatpush1.bf16.msra.mxu0 %v4327
        %5456 = vmatprep.subr.bf16.mxu0 %v4334
        %5457 = vmatpush1.bf16.msra.mxu0 %v4333
        %5458 = vmatprep.subr.bf16.mxu0 %v4340
        %5459 = vmatpush1.bf16.msra.mxu0 %v4339
        %5460 = vmatprep.subr.bf16.mxu0 %v4346
        %5461 = vmatpush1.bf16.msra.mxu0 %v4345
        %5462 = vmatprep.subr.bf16.mxu0 %v4352
        %5463 = vmatpush1.bf16.msra.mxu0 %v4351
        %5464 = vmatprep.subr.bf16.mxu0 %v4358
        %5465 = vmatpush1.bf16.msra.mxu0 %v4357
        %5466 = vmatprep.subr.bf16.mxu0 %v4364
        %5467 = vmatpush1.bf16.msra.mxu0 %v4363
        %5468 = vmatprep.subr.bf16.mxu0 %v4370
        %5469 = vmatpush1.bf16.msra.mxu0 %v4369
        %5470 = vmatprep.subr.bf16.mxu0 %v4376
        %5471 = vmatpush1.bf16.msra.mxu0 %v4375
        %5472 = vmatprep.subr.bf16.mxu0 %v4382
        %5473 = vmatpush1.bf16.msra.mxu0 %v4381
        %5474 = vmatprep.subr.bf16.mxu0 %v4388
        %5475 = vmatpush1.bf16.msra.mxu0 %v4387
        %5476 = vmatprep.subr.bf16.mxu0 %v4394
        %5477 = vmatpush1.bf16.msra.mxu0 %v4393
        %5478 = vmatprep.mubr.bf16.mxu0 %v2080
        %5479 = vmatmul.mubr.bf16.gmra.mrb[0].mxu0 %v2079
        %v5480 = vpop.f32.mrb[0].mxu0
        %v5481 = vadd.f32 %v5438, %v5480
        %v5482 = vpop.f32.mrb[0].mxu0
        %v5483 = vadd.f32 %v5440, %v5482
        %v5484 = vpop.f32.mrb[0].mxu0
        %v5485 = vadd.f32 %v5442, %v5484
        %v5486 = vpop.f32.mrb[0].mxu0
        %v5487 = vadd.f32 %v5444, %v5486
        %5488 = vdwg.mxu0
        %5489 = vmatprep.subr.bf16.mxu0 %v3826
        %5490 = vmatpush1.bf16.msra.mxu0 %v3825
        %5491 = vmatprep.subr.bf16.mxu0 %v3832
        %5492 = vmatpush1.bf16.msra.mxu0 %v3831
        %5493 = vmatprep.subr.bf16.mxu0 %v3838
        %5494 = vmatpush1.bf16.msra.mxu0 %v3837
        %5495 = vmatprep.subr.bf16.mxu0 %v3844
        %5496 = vmatpush1.bf16.msra.mxu0 %v3843
        %5497 = vmatprep.subr.bf16.mxu0 %v3850
        %5498 = vmatpush1.bf16.msra.mxu0 %v3849
        %5499 = vmatprep.subr.bf16.mxu0 %v3856
        %5500 = vmatpush1.bf16.msra.mxu0 %v3855
        %5501 = vmatprep.subr.bf16.mxu0 %v3862
        %5502 = vmatpush1.bf16.msra.mxu0 %v3861
        %5503 = vmatprep.subr.bf16.mxu0 %v3868
        %5504 = vmatpush1.bf16.msra.mxu0 %v3867
        %5505 = vmatprep.subr.bf16.mxu0 %v3874
        %5506 = vmatpush1.bf16.msra.mxu0 %v3873
        %5507 = vmatprep.subr.bf16.mxu0 %v3880
        %5508 = vmatpush1.bf16.msra.mxu0 %v3879
        %5509 = vmatprep.subr.bf16.mxu0 %v3886
        %5510 = vmatpush1.bf16.msra.mxu0 %v3885
        %5511 = vmatprep.subr.bf16.mxu0 %v3892
        %5512 = vmatpush1.bf16.msra.mxu0 %v3891
        %5513 = vmatprep.subr.bf16.mxu0 %v3898
        %5514 = vmatpush1.bf16.msra.mxu0 %v3897
        %5515 = vmatprep.subr.bf16.mxu0 %v3904
        %5516 = vmatpush1.bf16.msra.mxu0 %v3903
        %5517 = vmatprep.subr.bf16.mxu0 %v3910
        %5518 = vmatpush1.bf16.msra.mxu0 %v3909
        %5519 = vmatprep.subr.bf16.mxu0 %v3916
        %5520 = vmatpush1.bf16.msra.mxu0 %v3915
        %5521 = vmatprep.mubr.bf16.mxu0 %v2070
        %5522 = vmatmul.mubr.bf16.gmra.mrb[0].mxu0 %v2069
        %v5523 = vpop.f32.mrb[0].mxu0
        %v5524 = vadd.f32 %v2022, %v5523
        %v5525 = vpop.f32.mrb[0].mxu0
        %v5526 = vadd.f32 %v2026, %v5525
        %v5527 = vpop.f32.mrb[0].mxu0
        %v5528 = vadd.f32 %v2022, %v5527
        %v5529 = vpop.f32.mrb[0].mxu0
        %v5530 = vadd.f32 %v2026, %v5529
        %5531 = vdwg.mxu0
        %5532 = vmatprep.subr.bf16.mxu0 %v3922
        %5533 = vmatpush1.bf16.msra.mxu0 %v3921
        %5534 = vmatprep.subr.bf16.mxu0 %v3928
        %5535 = vmatpush1.bf16.msra.mxu0 %v3927
        %5536 = vmatprep.subr.bf16.mxu0 %v3934
        %5537 = vmatpush1.bf16.msra.mxu0 %v3933
        %5538 = vmatprep.subr.bf16.mxu0 %v3940
        %5539 = vmatpush1.bf16.msra.mxu0 %v3939
        %5540 = vmatprep.subr.bf16.mxu0 %v3946
        %5541 = vmatpush1.bf16.msra.mxu0 %v3945
        %5542 = vmatprep.subr.bf16.mxu0 %v3952
        %5543 = vmatpush1.bf16.msra.mxu0 %v3951
        %5544 = vmatprep.subr.bf16.mxu0 %v3958
        %5545 = vmatpush1.bf16.msra.mxu0 %v3957
        %5546 = vmatprep.subr.bf16.mxu0 %v3964
        %5547 = vmatpush1.bf16.msra.mxu0 %v3963
        %5548 = vmatprep.subr.bf16.mxu0 %v3970
        %5549 = vmatpush1.bf16.msra.mxu0 %v3969
        %5550 = vmatprep.subr.bf16.mxu0 %v3976
        %5551 = vmatpush1.bf16.msra.mxu0 %v3975
        %5552 = vmatprep.subr.bf16.mxu0 %v3982
        %5553 = vmatpush1.bf16.msra.mxu0 %v3981
        %5554 = vmatprep.subr.bf16.mxu0 %v3988
        %5555 = vmatpush1.bf16.msra.mxu0 %v3987
        %5556 = vmatprep.subr.bf16.mxu0 %v3994
        %5557 = vmatpush1.bf16.msra.mxu0 %v3993
        %5558 = vmatprep.subr.bf16.mxu0 %v4000
        %5559 = vmatpush1.bf16.msra.mxu0 %v3999
        %5560 = vmatprep.subr.bf16.mxu0 %v4006
        %5561 = vmatpush1.bf16.msra.mxu0 %v4005
        %5562 = vmatprep.subr.bf16.mxu0 %v4012
        %5563 = vmatpush1.bf16.msra.mxu0 %v4011
        %5564 = vmatprep.mubr.bf16.mxu0 %v2072
        %5565 = vmatmul.mubr.bf16.gmra.mrb[0].mxu0 %v2071
        %v5566 = vpop.f32.mrb[0].mxu0
        %v5567 = vadd.f32 %v5524, %v5566
        %v5568 = vpop.f32.mrb[0].mxu0
        %v5569 = vadd.f32 %v5526, %v5568
        %v5570 = vpop.f32.mrb[0].mxu0
        %v5571 = vadd.f32 %v5528, %v5570
        %v5572 = vpop.f32.mrb[0].mxu0
        %v5573 = vadd.f32 %v5530, %v5572
        %5574 = vdwg.mxu0
        %5575 = vmatprep.subr.bf16.mxu0 %v4018
        %5576 = vmatpush1.bf16.msra.mxu0 %v4017
        %5577 = vmatprep.subr.bf16.mxu0 %v4024
        %5578 = vmatpush1.bf16.msra.mxu0 %v4023
        %5579 = vmatprep.subr.bf16.mxu0 %v4030
        %5580 = vmatpush1.bf16.msra.mxu0 %v4029
        %5581 = vmatprep.subr.bf16.mxu0 %v4036
        %5582 = vmatpush1.bf16.msra.mxu0 %v4035
        %5583 = vmatprep.subr.bf16.mxu0 %v4042
        %5584 = vmatpush1.bf16.msra.mxu0 %v4041
        %5585 = vmatprep.subr.bf16.mxu0 %v4048
        %5586 = vmatpush1.bf16.msra.mxu0 %v4047
        %5587 = vmatprep.subr.bf16.mxu0 %v4054
        %5588 = vmatpush1.bf16.msra.mxu0 %v4053
        %5589 = vmatprep.subr.bf16.mxu0 %v4060
        %5590 = vmatpush1.bf16.msra.mxu0 %v4059
        %5591 = vmatprep.subr.bf16.mxu0 %v4066
        %5592 = vmatpush1.bf16.msra.mxu0 %v4065
        %5593 = vmatprep.subr.bf16.mxu0 %v4072
        %5594 = vmatpush1.bf16.msra.mxu0 %v4071
        %5595 = vmatprep.subr.bf16.mxu0 %v4078
        %5596 = vmatpush1.bf16.msra.mxu0 %v4077
        %5597 = vmatprep.subr.bf16.mxu0 %v4084
        %5598 = vmatpush1.bf16.msra.mxu0 %v4083
        %5599 = vmatprep.subr.bf16.mxu0 %v4090
        %5600 = vmatpush1.bf16.msra.mxu0 %v4089
        %5601 = vmatprep.subr.bf16.mxu0 %v4096
        %5602 = vmatpush1.bf16.msra.mxu0 %v4095
        %5603 = vmatprep.subr.bf16.mxu0 %v4102
        %5604 = vmatpush1.bf16.msra.mxu0 %v4101
        %5605 = vmatprep.subr.bf16.mxu0 %v4108
        %5606 = vmatpush1.bf16.msra.mxu0 %v4107
        %5607 = vmatprep.mubr.bf16.mxu0 %v2074
        %5608 = vmatmul.mubr.bf16.gmra.mrb[0].mxu0 %v2073
        %v5609 = vpop.f32.mrb[0].mxu0
        %v5610 = vadd.f32 %v5567, %v5609
        %v5611 = vpop.f32.mrb[0].mxu0
        %v5612 = vadd.f32 %v5569, %v5611
        %v5613 = vpop.f32.mrb[0].mxu0
        %v5614 = vadd.f32 %v5571, %v5613
        %v5615 = vpop.f32.mrb[0].mxu0
        %v5616 = vadd.f32 %v5573, %v5615
        %5617 = vdwg.mxu0
        %5618 = vmatprep.subr.bf16.mxu0 %v4114
        %5619 = vmatpush1.bf16.msra.mxu0 %v4113
        %5620 = vmatprep.subr.bf16.mxu0 %v4120
        %5621 = vmatpush1.bf16.msra.mxu0 %v4119
        %5622 = vmatprep.subr.bf16.mxu0 %v4126
        %5623 = vmatpush1.bf16.msra.mxu0 %v4125
        %5624 = vmatprep.subr.bf16.mxu0 %v4132
        %5625 = vmatpush1.bf16.msra.mxu0 %v4131
        %5626 = vmatprep.subr.bf16.mxu0 %v4138
        %5627 = vmatpush1.bf16.msra.mxu0 %v4137
        %5628 = vmatprep.subr.bf16.mxu0 %v4144
        %5629 = vmatpush1.bf16.msra.mxu0 %v4143
        %5630 = vmatprep.subr.bf16.mxu0 %v4150
        %5631 = vmatpush1.bf16.msra.mxu0 %v4149
        %5632 = vmatprep.subr.bf16.mxu0 %v4156
        %5633 = vmatpush1.bf16.msra.mxu0 %v4155
        %5634 = vmatprep.subr.bf16.mxu0 %v4162
        %5635 = vmatpush1.bf16.msra.mxu0 %v4161
        %5636 = vmatprep.subr.bf16.mxu0 %v4168
        %5637 = vmatpush1.bf16.msra.mxu0 %v4167
        %5638 = vmatprep.subr.bf16.mxu0 %v4174
        %5639 = vmatpush1.bf16.msra.mxu0 %v4173
        %5640 = vmatprep.subr.bf16.mxu0 %v4180
        %5641 = vmatpush1.bf16.msra.mxu0 %v4179
        %5642 = vmatprep.subr.bf16.mxu0 %v4186
        %5643 = vmatpush1.bf16.msra.mxu0 %v4185
        %5644 = vmatprep.subr.bf16.mxu0 %v4192
        %5645 = vmatpush1.bf16.msra.mxu0 %v4191
        %5646 = vmatprep.subr.bf16.mxu0 %v4198
        %5647 = vmatpush1.bf16.msra.mxu0 %v4197
        %5648 = vmatprep.subr.bf16.mxu0 %v4204
        %5649 = vmatpush1.bf16.msra.mxu0 %v4203
        %5650 = vmatprep.mubr.bf16.mxu0 %v2076
        %5651 = vmatmul.mubr.bf16.gmra.mrb[0].mxu0 %v2075
        %v5652 = vpop.f32.mrb[0].mxu0
        %v5653 = vadd.f32 %v5610, %v5652
        %v5654 = vpop.f32.mrb[0].mxu0
        %v5655 = vadd.f32 %v5612, %v5654
        %v5656 = vpop.f32.mrb[0].mxu0
        %v5657 = vadd.f32 %v5614, %v5656
        %v5658 = vpop.f32.mrb[0].mxu0
        %v5659 = vadd.f32 %v5616, %v5658
        %5660 = vdwg.mxu0
        %5661 = vmatprep.subr.bf16.mxu0 %v4210
        %5662 = vmatpush1.bf16.msra.mxu0 %v4209
        %5663 = vmatprep.subr.bf16.mxu0 %v4216
        %5664 = vmatpush1.bf16.msra.mxu0 %v4215
        %5665 = vmatprep.subr.bf16.mxu0 %v4222
        %5666 = vmatpush1.bf16.msra.mxu0 %v4221
        %5667 = vmatprep.subr.bf16.mxu0 %v4228
        %5668 = vmatpush1.bf16.msra.mxu0 %v4227
        %5669 = vmatprep.subr.bf16.mxu0 %v4234
        %5670 = vmatpush1.bf16.msra.mxu0 %v4233
        %5671 = vmatprep.subr.bf16.mxu0 %v4240
        %5672 = vmatpush1.bf16.msra.mxu0 %v4239
        %5673 = vmatprep.subr.bf16.mxu0 %v4246
        %5674 = vmatpush1.bf16.msra.mxu0 %v4245
        %5675 = vmatprep.subr.bf16.mxu0 %v4252
        %5676 = vmatpush1.bf16.msra.mxu0 %v4251
        %5677 = vmatprep.subr.bf16.mxu0 %v4258
        %5678 = vmatpush1.bf16.msra.mxu0 %v4257
        %5679 = vmatprep.subr.bf16.mxu0 %v4264
        %5680 = vmatpush1.bf16.msra.mxu0 %v4263
        %5681 = vmatprep.subr.bf16.mxu0 %v4270
        %5682 = vmatpush1.bf16.msra.mxu0 %v4269
        %5683 = vmatprep.subr.bf16.mxu0 %v4276
        %5684 = vmatpush1.bf16.msra.mxu0 %v4275
        %5685 = vmatprep.subr.bf16.mxu0 %v4282
        %5686 = vmatpush1.bf16.msra.mxu0 %v4281
        %5687 = vmatprep.subr.bf16.mxu0 %v4288
        %5688 = vmatpush1.bf16.msra.mxu0 %v4287
        %5689 = vmatprep.subr.bf16.mxu0 %v4294
        %5690 = vmatpush1.bf16.msra.mxu0 %v4293
        %5691 = vmatprep.subr.bf16.mxu0 %v4300
        %5692 = vmatpush1.bf16.msra.mxu0 %v4299
        %5693 = vmatprep.mubr.bf16.mxu0 %v2078
        %5694 = vmatmul.mubr.bf16.gmra.mrb[0].mxu0 %v2077
        %v5695 = vpop.f32.mrb[0].mxu0
        %v5696 = vadd.f32 %v5653, %v5695
        %v5697 = vpop.f32.mrb[0].mxu0
        %v5698 = vadd.f32 %v5655, %v5697
        %v5699 = vpop.f32.mrb[0].mxu0
        %v5700 = vadd.f32 %v5657, %v5699
        %v5701 = vpop.f32.mrb[0].mxu0
        %v5702 = vadd.f32 %v5659, %v5701
        %5703 = vdwg.mxu0
        %5704 = vmatprep.subr.bf16.mxu0 %v4306
        %5705 = vmatpush1.bf16.msra.mxu0 %v4305
        %5706 = vmatprep.subr.bf16.mxu0 %v4312
        %5707 = vmatpush1.bf16.msra.mxu0 %v4311
        %5708 = vmatprep.subr.bf16.mxu0 %v4318
        %5709 = vmatpush1.bf16.msra.mxu0 %v4317
        %5710 = vmatprep.subr.bf16.mxu0 %v4324
        %5711 = vmatpush1.bf16.msra.mxu0 %v4323
        %5712 = vmatprep.subr.bf16.mxu0 %v4330
        %5713 = vmatpush1.bf16.msra.mxu0 %v4329
        %5714 = vmatprep.subr.bf16.mxu0 %v4336
        %5715 = vmatpush1.bf16.msra.mxu0 %v4335
        %5716 = vmatprep.subr.bf16.mxu0 %v4342
        %5717 = vmatpush1.bf16.msra.mxu0 %v4341
        %5718 = vmatprep.subr.bf16.mxu0 %v4348
        %5719 = vmatpush1.bf16.msra.mxu0 %v4347
        %5720 = vmatprep.subr.bf16.mxu0 %v4354
        %5721 = vmatpush1.bf16.msra.mxu0 %v4353
        %5722 = vmatprep.subr.bf16.mxu0 %v4360
        %5723 = vmatpush1.bf16.msra.mxu0 %v4359
        %5724 = vmatprep.subr.bf16.mxu0 %v4366
        %5725 = vmatpush1.bf16.msra.mxu0 %v4365
        %5726 = vmatprep.subr.bf16.mxu0 %v4372
        %5727 = vmatpush1.bf16.msra.mxu0 %v4371
        %5728 = vmatprep.subr.bf16.mxu0 %v4378
        %5729 = vmatpush1.bf16.msra.mxu0 %v4377
        %5730 = vmatprep.subr.bf16.mxu0 %v4384
        %5731 = vmatpush1.bf16.msra.mxu0 %v4383
        %5732 = vmatprep.subr.bf16.mxu0 %v4390
        %5733 = vmatpush1.bf16.msra.mxu0 %v4389
        %5734 = vmatprep.subr.bf16.mxu0 %v4396
        %5735 = vmatpush1.bf16.msra.mxu0 %v4395
        %5736 = vmatprep.mubr.bf16.mxu0 %v2080
        %5737 = vmatmul.mubr.bf16.gmra.mrb[0].mxu0 %v2079
        %v5738 = vpop.f32.mrb[0].mxu0
        %v5739 = vadd.f32 %v5696, %v5738
        %v5740 = vpop.f32.mrb[0].mxu0
        %v5741 = vadd.f32 %v5698, %v5740
        %v5742 = vpop.f32.mrb[0].mxu0
        %v5743 = vadd.f32 %v5700, %v5742
        %v5744 = vpop.f32.mrb[0].mxu0
        %v5745 = vadd.f32 %v5702, %v5744
        %5746 = vdwg.mxu0
        %v5747 = vmax.f32 %v5223, 0.0
        %v5748 = vmax.f32 %v5225, 0.0
        %v5749 = vmax.f32 %v5481, 0.0
        %v5750 = vmax.f32 %v5483, 0.0
        %v5751 = vmax.f32 %v5739, 0.0
        %v5752 = vmax.f32 %v5741, 0.0
        %v5753 = vmax.f32 %v5227, 0.0
        %v5754 = vmax.f32 %v5229, 0.0
        %v5755 = vmax.f32 %v5485, 0.0
        %v5756 = vmax.f32 %v5487, 0.0
        %v5757 = vmax.f32 %v5743, 0.0
        %v5758 = vmax.f32 %v5745, 0.0
        %v5759 = vpack.c.bf16 %v5753, %v5747
        %v5760 = vpack.c.bf16 %v5754, %v5748
        %v5761 = vpack.c.bf16 %v5755, %v5749
        %v5762 = vpack.c.bf16 %v5756, %v5750
        %v5763 = vpack.c.bf16 %v5757, %v5751
        %v5764 = vpack.c.bf16 %v5758, %v5752
        %v5765 = vld [vmem:[%s1406] sm:$0xff]
        %v5766 = vld [vmem:[%s1406 + $0x8] sm:$0xff]
        %v5767 = vld [vmem:[%s1406 + $0x10] sm:$0xff]
        %v5768 = vld [vmem:[%s1406 + $0x18] sm:$0xff]
        %v5769 = vld [vmem:[%s1406 + $0x20] sm:$0xff]
        %v5770 = vld [vmem:[%s1406 + $0x28] sm:$0xff]
        %v5771 = vld [vmem:[%s1406 + $0x30] sm:$0xff]
        %v5772 = vld [vmem:[%s1406 + $0x38] sm:$0xff]
        %v5773 = vld [vmem:[%s1406 + $0x40] sm:$0xff]
        %v5774 = vld [vmem:[%s1406 + $0x48] sm:$0xff]
        %v5775 = vld [vmem:[%s1406 + $0x50] sm:$0xff]
        %v5776 = vld [vmem:[%s1406 + $0x58] sm:$0xff]
        %v5777 = vld [vmem:[%s1406 + $0x60] sm:$0xff]
        %v5778 = vld [vmem:[%s1406 + $0x68] sm:$0xff]
        %v5779 = vld [vmem:[%s1406 + $0x70] sm:$0xff]
        %v5780 = vld [vmem:[%s1406 + $0x78] sm:$0xff]
        %v5781 = vld [vmem:[%s1406 + $0x80] sm:$0xff]
        %v5782 = vld [vmem:[%s1406 + $0x88] sm:$0xff]
        %v5783 = vld [vmem:[%s1406 + $0x90] sm:$0xff]
        %v5784 = vld [vmem:[%s1406 + $0x98] sm:$0xff]
        %v5785 = vld [vmem:[%s1406 + $0xa0] sm:$0xff]
        %v5786 = vld [vmem:[%s1406 + $0xa8] sm:$0xff]
        %v5787 = vld [vmem:[%s1406 + $0xb0] sm:$0xff]
        %v5788 = vld [vmem:[%s1406 + $0xb8] sm:$0xff]
        %v5789 = vld [vmem:[%s1406 + $0xc0] sm:$0xff]
        %v5790 = vld [vmem:[%s1406 + $0xc8] sm:$0xff]
        %v5791 = vld [vmem:[%s1406 + $0xd0] sm:$0xff]
        %v5792 = vld [vmem:[%s1406 + $0xd8] sm:$0xff]
        %v5793 = vld [vmem:[%s1406 + $0xe0] sm:$0xff]
        %v5794 = vld [vmem:[%s1406 + $0xe8] sm:$0xff]
        %v5795 = vld [vmem:[%s1406 + $0xf0] sm:$0xff]
        %v5796 = vld [vmem:[%s1406 + $0xf8] sm:$0xff]
        %v5797 = vld [vmem:[%s1406 + $0x100] sm:$0xff]
        %v5798 = vld [vmem:[%s1406 + $0x108] sm:$0xff]
        %v5799 = vld [vmem:[%s1406 + $0x110] sm:$0xff]
        %v5800 = vld [vmem:[%s1406 + $0x118] sm:$0xff]
        %v5801 = vld [vmem:[%s1406 + $0x120] sm:$0xff]
        %v5802 = vld [vmem:[%s1406 + $0x128] sm:$0xff]
        %v5803 = vld [vmem:[%s1406 + $0x130] sm:$0xff]
        %v5804 = vld [vmem:[%s1406 + $0x138] sm:$0xff]
        %v5805 = vld [vmem:[%s1406 + $0x140] sm:$0xff]
        %v5806 = vld [vmem:[%s1406 + $0x148] sm:$0xff]
        %v5807 = vld [vmem:[%s1406 + $0x150] sm:$0xff]
        %v5808 = vld [vmem:[%s1406 + $0x158] sm:$0xff]
        %v5809 = vld [vmem:[%s1406 + $0x160] sm:$0xff]
        %v5810 = vld [vmem:[%s1406 + $0x168] sm:$0xff]
        %v5811 = vld [vmem:[%s1406 + $0x170] sm:$0xff]
        %v5812 = vld [vmem:[%s1406 + $0x178] sm:$0xff]
        %v5813 = vld [vmem:[%s1406 + $0x180] sm:$0xff]
        %v5814 = vld [vmem:[%s1406 + $0x188] sm:$0xff]
        %v5815 = vld [vmem:[%s1406 + $0x190] sm:$0xff]
        %v5816 = vld [vmem:[%s1406 + $0x198] sm:$0xff]
        %v5817 = vld [vmem:[%s1406 + $0x1a0] sm:$0xff]
        %v5818 = vld [vmem:[%s1406 + $0x1a8] sm:$0xff]
        %v5819 = vld [vmem:[%s1406 + $0x1b0] sm:$0xff]
        %v5820 = vld [vmem:[%s1406 + $0x1b8] sm:$0xff]
        %v5821 = vld [vmem:[%s1406 + $0x1c0] sm:$0xff]
        %v5822 = vld [vmem:[%s1406 + $0x1c8] sm:$0xff]
        %v5823 = vld [vmem:[%s1406 + $0x1d0] sm:$0xff]
        %v5824 = vld [vmem:[%s1406 + $0x1d8] sm:$0xff]
        %v5825 = vld [vmem:[%s1406 + $0x1e0] sm:$0xff]
        %v5826 = vld [vmem:[%s1406 + $0x1e8] sm:$0xff]
        %v5827 = vld [vmem:[%s1406 + $0x1f0] sm:$0xff]
        %v5828 = vld [vmem:[%s1406 + $0x1f8] sm:$0xff]
        %v5829 = vld [vmem:[%s1406 + $0x200] sm:$0xff]
        %v5830 = vld [vmem:[%s1406 + $0x208] sm:$0xff]
        %v5831 = vld [vmem:[%s1406 + $0x210] sm:$0xff]
        %v5832 = vld [vmem:[%s1406 + $0x218] sm:$0xff]
        %v5833 = vld [vmem:[%s1406 + $0x220] sm:$0xff]
        %v5834 = vld [vmem:[%s1406 + $0x228] sm:$0xff]
        %v5835 = vld [vmem:[%s1406 + $0x230] sm:$0xff]
        %v5836 = vld [vmem:[%s1406 + $0x238] sm:$0xff]
        %v5837 = vld [vmem:[%s1406 + $0x240] sm:$0xff]
        %v5838 = vld [vmem:[%s1406 + $0x248] sm:$0xff]
        %v5839 = vld [vmem:[%s1406 + $0x250] sm:$0xff]
        %v5840 = vld [vmem:[%s1406 + $0x258] sm:$0xff]
        %v5841 = vld [vmem:[%s1406 + $0x260] sm:$0xff]
        %v5842 = vld [vmem:[%s1406 + $0x268] sm:$0xff]
        %v5843 = vld [vmem:[%s1406 + $0x270] sm:$0xff]
        %v5844 = vld [vmem:[%s1406 + $0x278] sm:$0xff]
        %v5845 = vld [vmem:[%s1406 + $0x280] sm:$0xff]
        %v5846 = vld [vmem:[%s1406 + $0x288] sm:$0xff]
        %v5847 = vld [vmem:[%s1406 + $0x290] sm:$0xff]
        %v5848 = vld [vmem:[%s1406 + $0x298] sm:$0xff]
        %v5849 = vld [vmem:[%s1406 + $0x2a0] sm:$0xff]
        %v5850 = vld [vmem:[%s1406 + $0x2a8] sm:$0xff]
        %v5851 = vld [vmem:[%s1406 + $0x2b0] sm:$0xff]
        %v5852 = vld [vmem:[%s1406 + $0x2b8] sm:$0xff]
        %v5853 = vld [vmem:[%s1406 + $0x2c0] sm:$0xff]
        %v5854 = vld [vmem:[%s1406 + $0x2c8] sm:$0xff]
        %v5855 = vld [vmem:[%s1406 + $0x2d0] sm:$0xff]
        %v5856 = vld [vmem:[%s1406 + $0x2d8] sm:$0xff]
        %v5857 = vld [vmem:[%s1406 + $0x2e0] sm:$0xff]
        %v5858 = vld [vmem:[%s1406 + $0x2e8] sm:$0xff]
        %v5859 = vld [vmem:[%s1406 + $0x2f0] sm:$0xff]
        %v5860 = vld [vmem:[%s1406 + $0x2f8] sm:$0xff]
        %v5861 = vld [vmem:[%s1406 + $0x300] sm:$0xff]
        %v5862 = vld [vmem:[%s1406 + $0x308] sm:$0xff]
        %v5863 = vld [vmem:[%s1406 + $0x310] sm:$0xff]
        %v5864 = vld [vmem:[%s1406 + $0x318] sm:$0xff]
        %v5865 = vld [vmem:[%s1406 + $0x320] sm:$0xff]
        %v5866 = vld [vmem:[%s1406 + $0x328] sm:$0xff]
        %v5867 = vld [vmem:[%s1406 + $0x330] sm:$0xff]
        %v5868 = vld [vmem:[%s1406 + $0x338] sm:$0xff]
        %v5869 = vld [vmem:[%s1406 + $0x340] sm:$0xff]
        %v5870 = vld [vmem:[%s1406 + $0x348] sm:$0xff]
        %v5871 = vld [vmem:[%s1406 + $0x350] sm:$0xff]
        %v5872 = vld [vmem:[%s1406 + $0x358] sm:$0xff]
        %v5873 = vld [vmem:[%s1406 + $0x360] sm:$0xff]
        %v5874 = vld [vmem:[%s1406 + $0x368] sm:$0xff]
        %v5875 = vld [vmem:[%s1406 + $0x370] sm:$0xff]
        %v5876 = vld [vmem:[%s1406 + $0x378] sm:$0xff]
        %v5877 = vld [vmem:[%s1406 + $0x380] sm:$0xff]
        %v5878 = vld [vmem:[%s1406 + $0x388] sm:$0xff]
        %v5879 = vld [vmem:[%s1406 + $0x390] sm:$0xff]
        %v5880 = vld [vmem:[%s1406 + $0x398] sm:$0xff]
        %v5881 = vld [vmem:[%s1406 + $0x3a0] sm:$0xff]
        %v5882 = vld [vmem:[%s1406 + $0x3a8] sm:$0xff]
        %v5883 = vld [vmem:[%s1406 + $0x3b0] sm:$0xff]
        %v5884 = vld [vmem:[%s1406 + $0x3b8] sm:$0xff]
        %v5885 = vld [vmem:[%s1406 + $0x3c0] sm:$0xff]
        %v5886 = vld [vmem:[%s1406 + $0x3c8] sm:$0xff]
        %v5887 = vld [vmem:[%s1406 + $0x3d0] sm:$0xff]
        %v5888 = vld [vmem:[%s1406 + $0x3d8] sm:$0xff]
        %v5889 = vld [vmem:[%s1406 + $0x3e0] sm:$0xff]
        %v5890 = vld [vmem:[%s1406 + $0x3e8] sm:$0xff]
        %v5891 = vld [vmem:[%s1406 + $0x3f0] sm:$0xff]
        %v5892 = vld [vmem:[%s1406 + $0x3f8] sm:$0xff]
        %v5893 = vld [vmem:[%s1406 + $0x400] sm:$0xff]
        %v5894 = vld [vmem:[%s1406 + $0x408] sm:$0xff]
        %v5895 = vld [vmem:[%s1406 + $0x410] sm:$0xff]
        %v5896 = vld [vmem:[%s1406 + $0x418] sm:$0xff]
        %v5897 = vld [vmem:[%s1406 + $0x420] sm:$0xff]
        %v5898 = vld [vmem:[%s1406 + $0x428] sm:$0xff]
        %v5899 = vld [vmem:[%s1406 + $0x430] sm:$0xff]
        %v5900 = vld [vmem:[%s1406 + $0x438] sm:$0xff]
        %v5901 = vld [vmem:[%s1406 + $0x440] sm:$0xff]
        %v5902 = vld [vmem:[%s1406 + $0x448] sm:$0xff]
        %v5903 = vld [vmem:[%s1406 + $0x450] sm:$0xff]
        %v5904 = vld [vmem:[%s1406 + $0x458] sm:$0xff]
        %v5905 = vld [vmem:[%s1406 + $0x460] sm:$0xff]
        %v5906 = vld [vmem:[%s1406 + $0x468] sm:$0xff]
        %v5907 = vld [vmem:[%s1406 + $0x470] sm:$0xff]
        %v5908 = vld [vmem:[%s1406 + $0x478] sm:$0xff]
        %v5909 = vld [vmem:[%s1406 + $0x480] sm:$0xff]
        %v5910 = vld [vmem:[%s1406 + $0x488] sm:$0xff]
        %v5911 = vld [vmem:[%s1406 + $0x490] sm:$0xff]
        %v5912 = vld [vmem:[%s1406 + $0x498] sm:$0xff]
        %v5913 = vld [vmem:[%s1406 + $0x4a0] sm:$0xff]
        %v5914 = vld [vmem:[%s1406 + $0x4a8] sm:$0xff]
        %v5915 = vld [vmem:[%s1406 + $0x4b0] sm:$0xff]
        %v5916 = vld [vmem:[%s1406 + $0x4b8] sm:$0xff]
        %v5917 = vld [vmem:[%s1406 + $0x4c0] sm:$0xff]
        %v5918 = vld [vmem:[%s1406 + $0x4c8] sm:$0xff]
        %v5919 = vld [vmem:[%s1406 + $0x4d0] sm:$0xff]
        %v5920 = vld [vmem:[%s1406 + $0x4d8] sm:$0xff]
        %v5921 = vld [vmem:[%s1406 + $0x4e0] sm:$0xff]
        %v5922 = vld [vmem:[%s1406 + $0x4e8] sm:$0xff]
        %v5923 = vld [vmem:[%s1406 + $0x4f0] sm:$0xff]
        %v5924 = vld [vmem:[%s1406 + $0x4f8] sm:$0xff]
        %v5925 = vld [vmem:[%s1406 + $0x500] sm:$0xff]
        %v5926 = vld [vmem:[%s1406 + $0x508] sm:$0xff]
        %v5927 = vld [vmem:[%s1406 + $0x510] sm:$0xff]
        %v5928 = vld [vmem:[%s1406 + $0x518] sm:$0xff]
        %v5929 = vld [vmem:[%s1406 + $0x520] sm:$0xff]
        %v5930 = vld [vmem:[%s1406 + $0x528] sm:$0xff]
        %v5931 = vld [vmem:[%s1406 + $0x530] sm:$0xff]
        %v5932 = vld [vmem:[%s1406 + $0x538] sm:$0xff]
        %v5933 = vld [vmem:[%s1406 + $0x540] sm:$0xff]
        %v5934 = vld [vmem:[%s1406 + $0x548] sm:$0xff]
        %v5935 = vld [vmem:[%s1406 + $0x550] sm:$0xff]
        %v5936 = vld [vmem:[%s1406 + $0x558] sm:$0xff]
        %v5937 = vld [vmem:[%s1406 + $0x560] sm:$0xff]
        %v5938 = vld [vmem:[%s1406 + $0x568] sm:$0xff]
        %v5939 = vld [vmem:[%s1406 + $0x570] sm:$0xff]
        %v5940 = vld [vmem:[%s1406 + $0x578] sm:$0xff]
        %v5941 = vld [vmem:[%s1406 + $0x580] sm:$0xff]
        %v5942 = vld [vmem:[%s1406 + $0x588] sm:$0xff]
        %v5943 = vld [vmem:[%s1406 + $0x590] sm:$0xff]
        %v5944 = vld [vmem:[%s1406 + $0x598] sm:$0xff]
        %v5945 = vld [vmem:[%s1406 + $0x5a0] sm:$0xff]
        %v5946 = vld [vmem:[%s1406 + $0x5a8] sm:$0xff]
        %v5947 = vld [vmem:[%s1406 + $0x5b0] sm:$0xff]
        %v5948 = vld [vmem:[%s1406 + $0x5b8] sm:$0xff]
        %v5949 = vld [vmem:[%s1406 + $0x5c0] sm:$0xff]
        %v5950 = vld [vmem:[%s1406 + $0x5c8] sm:$0xff]
        %v5951 = vld [vmem:[%s1406 + $0x5d0] sm:$0xff]
        %v5952 = vld [vmem:[%s1406 + $0x5d8] sm:$0xff]
        %v5953 = vld [vmem:[%s1406 + $0x5e0] sm:$0xff]
        %v5954 = vld [vmem:[%s1406 + $0x5e8] sm:$0xff]
        %v5955 = vld [vmem:[%s1406 + $0x5f0] sm:$0xff]
        %v5956 = vld [vmem:[%s1406 + $0x5f8] sm:$0xff]
        %v6149 = vunpack.c.l.b16 %v5765
        %v6150 = vunpack.c.h.b16 %v5765
        %v6151 = vunpack.c.l.b16 %v5766
        %v6152 = vunpack.c.h.b16 %v5766
        %v6153 = vunpack.c.l.b16 %v5767
        %v6154 = vunpack.c.h.b16 %v5767
        %v6155 = vunpack.c.l.b16 %v5768
        %v6156 = vunpack.c.h.b16 %v5768
        %v6157 = vunpack.c.l.b16 %v5769
        %v6158 = vunpack.c.h.b16 %v5769
        %v6159 = vunpack.c.l.b16 %v5770
        %v6160 = vunpack.c.h.b16 %v5770
        %v6161 = vunpack.c.l.b16 %v5771
        %v6162 = vunpack.c.h.b16 %v5771
        %v6163 = vunpack.c.l.b16 %v5772
        %v6164 = vunpack.c.h.b16 %v5772
        %v6165 = vunpack.c.l.b16 %v5773
        %v6166 = vunpack.c.h.b16 %v5773
        %v6167 = vunpack.c.l.b16 %v5774
        %v6168 = vunpack.c.h.b16 %v5774
        %v6169 = vunpack.c.l.b16 %v5775
        %v6170 = vunpack.c.h.b16 %v5775
        %v6171 = vunpack.c.l.b16 %v5776
        %v6172 = vunpack.c.h.b16 %v5776
        %v6173 = vunpack.c.l.b16 %v5777
        %v6174 = vunpack.c.h.b16 %v5777
        %v6175 = vunpack.c.l.b16 %v5778
        %v6176 = vunpack.c.h.b16 %v5778
        %v6177 = vunpack.c.l.b16 %v5779
        %v6178 = vunpack.c.h.b16 %v5779
        %v6179 = vunpack.c.l.b16 %v5780
        %v6180 = vunpack.c.h.b16 %v5780
        %v6181 = vunpack.c.l.b16 %v5781
        %v6182 = vunpack.c.h.b16 %v5781
        %v6183 = vunpack.c.l.b16 %v5782
        %v6184 = vunpack.c.h.b16 %v5782
        %v6185 = vunpack.c.l.b16 %v5783
        %v6186 = vunpack.c.h.b16 %v5783
        %v6187 = vunpack.c.l.b16 %v5784
        %v6188 = vunpack.c.h.b16 %v5784
        %v6189 = vunpack.c.l.b16 %v5785
        %v6190 = vunpack.c.h.b16 %v5785
        %v6191 = vunpack.c.l.b16 %v5786
        %v6192 = vunpack.c.h.b16 %v5786
        %v6193 = vunpack.c.l.b16 %v5787
        %v6194 = vunpack.c.h.b16 %v5787
        %v6195 = vunpack.c.l.b16 %v5788
        %v6196 = vunpack.c.h.b16 %v5788
        %v6197 = vunpack.c.l.b16 %v5789
        %v6198 = vunpack.c.h.b16 %v5789
        %v6199 = vunpack.c.l.b16 %v5790
        %v6200 = vunpack.c.h.b16 %v5790
        %v6201 = vunpack.c.l.b16 %v5791
        %v6202 = vunpack.c.h.b16 %v5791
        %v6203 = vunpack.c.l.b16 %v5792
        %v6204 = vunpack.c.h.b16 %v5792
        %v6205 = vunpack.c.l.b16 %v5793
        %v6206 = vunpack.c.h.b16 %v5793
        %v6207 = vunpack.c.l.b16 %v5794
        %v6208 = vunpack.c.h.b16 %v5794
        %v6209 = vunpack.c.l.b16 %v5795
        %v6210 = vunpack.c.h.b16 %v5795
        %v6211 = vunpack.c.l.b16 %v5796
        %v6212 = vunpack.c.h.b16 %v5796
        %v6213 = vunpack.c.l.b16 %v5797
        %v6214 = vunpack.c.h.b16 %v5797
        %v6215 = vunpack.c.l.b16 %v5798
        %v6216 = vunpack.c.h.b16 %v5798
        %v6217 = vunpack.c.l.b16 %v5799
        %v6218 = vunpack.c.h.b16 %v5799
        %v6219 = vunpack.c.l.b16 %v5800
        %v6220 = vunpack.c.h.b16 %v5800
        %v6221 = vunpack.c.l.b16 %v5801
        %v6222 = vunpack.c.h.b16 %v5801
        %v6223 = vunpack.c.l.b16 %v5802
        %v6224 = vunpack.c.h.b16 %v5802
        %v6225 = vunpack.c.l.b16 %v5803
        %v6226 = vunpack.c.h.b16 %v5803
        %v6227 = vunpack.c.l.b16 %v5804
        %v6228 = vunpack.c.h.b16 %v5804
        %v6229 = vunpack.c.l.b16 %v5805
        %v6230 = vunpack.c.h.b16 %v5805
        %v6231 = vunpack.c.l.b16 %v5806
        %v6232 = vunpack.c.h.b16 %v5806
        %v6233 = vunpack.c.l.b16 %v5807
        %v6234 = vunpack.c.h.b16 %v5807
        %v6235 = vunpack.c.l.b16 %v5808
        %v6236 = vunpack.c.h.b16 %v5808
        %v6237 = vunpack.c.l.b16 %v5809
        %v6238 = vunpack.c.h.b16 %v5809
        %v6239 = vunpack.c.l.b16 %v5810
        %v6240 = vunpack.c.h.b16 %v5810
        %v6241 = vunpack.c.l.b16 %v5811
        %v6242 = vunpack.c.h.b16 %v5811
        %v6243 = vunpack.c.l.b16 %v5812
        %v6244 = vunpack.c.h.b16 %v5812
        %v6245 = vunpack.c.l.b16 %v5813
        %v6246 = vunpack.c.h.b16 %v5813
        %v6247 = vunpack.c.l.b16 %v5814
        %v6248 = vunpack.c.h.b16 %v5814
        %v6249 = vunpack.c.l.b16 %v5815
        %v6250 = vunpack.c.h.b16 %v5815
        %v6251 = vunpack.c.l.b16 %v5816
        %v6252 = vunpack.c.h.b16 %v5816
        %v6253 = vunpack.c.l.b16 %v5817
        %v6254 = vunpack.c.h.b16 %v5817
        %v6255 = vunpack.c.l.b16 %v5818
        %v6256 = vunpack.c.h.b16 %v5818
        %v6257 = vunpack.c.l.b16 %v5819
        %v6258 = vunpack.c.h.b16 %v5819
        %v6259 = vunpack.c.l.b16 %v5820
        %v6260 = vunpack.c.h.b16 %v5820
        %v6261 = vunpack.c.l.b16 %v5821
        %v6262 = vunpack.c.h.b16 %v5821
        %v6263 = vunpack.c.l.b16 %v5822
        %v6264 = vunpack.c.h.b16 %v5822
        %v6265 = vunpack.c.l.b16 %v5823
        %v6266 = vunpack.c.h.b16 %v5823
        %v6267 = vunpack.c.l.b16 %v5824
        %v6268 = vunpack.c.h.b16 %v5824
        %v6269 = vunpack.c.l.b16 %v5825
        %v6270 = vunpack.c.h.b16 %v5825
        %v6271 = vunpack.c.l.b16 %v5826
        %v6272 = vunpack.c.h.b16 %v5826
        %v6273 = vunpack.c.l.b16 %v5827
        %v6274 = vunpack.c.h.b16 %v5827
        %v6275 = vunpack.c.l.b16 %v5828
        %v6276 = vunpack.c.h.b16 %v5828
        %v6277 = vunpack.c.l.b16 %v5829
        %v6278 = vunpack.c.h.b16 %v5829
        %v6279 = vunpack.c.l.b16 %v5830
        %v6280 = vunpack.c.h.b16 %v5830
        %v6281 = vunpack.c.l.b16 %v5831
        %v6282 = vunpack.c.h.b16 %v5831
        %v6283 = vunpack.c.l.b16 %v5832
        %v6284 = vunpack.c.h.b16 %v5832
        %v6285 = vunpack.c.l.b16 %v5833
        %v6286 = vunpack.c.h.b16 %v5833
        %v6287 = vunpack.c.l.b16 %v5834
        %v6288 = vunpack.c.h.b16 %v5834
        %v6289 = vunpack.c.l.b16 %v5835
        %v6290 = vunpack.c.h.b16 %v5835
        %v6291 = vunpack.c.l.b16 %v5836
        %v6292 = vunpack.c.h.b16 %v5836
        %v6293 = vunpack.c.l.b16 %v5837
        %v6294 = vunpack.c.h.b16 %v5837
        %v6295 = vunpack.c.l.b16 %v5838
        %v6296 = vunpack.c.h.b16 %v5838
        %v6297 = vunpack.c.l.b16 %v5839
        %v6298 = vunpack.c.h.b16 %v5839
        %v6299 = vunpack.c.l.b16 %v5840
        %v6300 = vunpack.c.h.b16 %v5840
        %v6301 = vunpack.c.l.b16 %v5841
        %v6302 = vunpack.c.h.b16 %v5841
        %v6303 = vunpack.c.l.b16 %v5842
        %v6304 = vunpack.c.h.b16 %v5842
        %v6305 = vunpack.c.l.b16 %v5843
        %v6306 = vunpack.c.h.b16 %v5843
        %v6307 = vunpack.c.l.b16 %v5844
        %v6308 = vunpack.c.h.b16 %v5844
        %v6309 = vunpack.c.l.b16 %v5845
        %v6310 = vunpack.c.h.b16 %v5845
        %v6311 = vunpack.c.l.b16 %v5846
        %v6312 = vunpack.c.h.b16 %v5846
        %v6313 = vunpack.c.l.b16 %v5847
        %v6314 = vunpack.c.h.b16 %v5847
        %v6315 = vunpack.c.l.b16 %v5848
        %v6316 = vunpack.c.h.b16 %v5848
        %v6317 = vunpack.c.l.b16 %v5849
        %v6318 = vunpack.c.h.b16 %v5849
        %v6319 = vunpack.c.l.b16 %v5850
        %v6320 = vunpack.c.h.b16 %v5850
        %v6321 = vunpack.c.l.b16 %v5851
        %v6322 = vunpack.c.h.b16 %v5851
        %v6323 = vunpack.c.l.b16 %v5852
        %v6324 = vunpack.c.h.b16 %v5852
        %v6325 = vunpack.c.l.b16 %v5853
        %v6326 = vunpack.c.h.b16 %v5853
        %v6327 = vunpack.c.l.b16 %v5854
        %v6328 = vunpack.c.h.b16 %v5854
        %v6329 = vunpack.c.l.b16 %v5855
        %v6330 = vunpack.c.h.b16 %v5855
        %v6331 = vunpack.c.l.b16 %v5856
        %v6332 = vunpack.c.h.b16 %v5856
        %v6333 = vunpack.c.l.b16 %v5857
        %v6334 = vunpack.c.h.b16 %v5857
        %v6335 = vunpack.c.l.b16 %v5858
        %v6336 = vunpack.c.h.b16 %v5858
        %v6337 = vunpack.c.l.b16 %v5859
        %v6338 = vunpack.c.h.b16 %v5859
        %v6339 = vunpack.c.l.b16 %v5860
        %v6340 = vunpack.c.h.b16 %v5860
        %v6341 = vunpack.c.l.b16 %v5861
        %v6342 = vunpack.c.h.b16 %v5861
        %v6343 = vunpack.c.l.b16 %v5862
        %v6344 = vunpack.c.h.b16 %v5862
        %v6345 = vunpack.c.l.b16 %v5863
        %v6346 = vunpack.c.h.b16 %v5863
        %v6347 = vunpack.c.l.b16 %v5864
        %v6348 = vunpack.c.h.b16 %v5864
        %v6349 = vunpack.c.l.b16 %v5865
        %v6350 = vunpack.c.h.b16 %v5865
        %v6351 = vunpack.c.l.b16 %v5866
        %v6352 = vunpack.c.h.b16 %v5866
        %v6353 = vunpack.c.l.b16 %v5867
        %v6354 = vunpack.c.h.b16 %v5867
        %v6355 = vunpack.c.l.b16 %v5868
        %v6356 = vunpack.c.h.b16 %v5868
        %v6357 = vunpack.c.l.b16 %v5869
        %v6358 = vunpack.c.h.b16 %v5869
        %v6359 = vunpack.c.l.b16 %v5870
        %v6360 = vunpack.c.h.b16 %v5870
        %v6361 = vunpack.c.l.b16 %v5871
        %v6362 = vunpack.c.h.b16 %v5871
        %v6363 = vunpack.c.l.b16 %v5872
        %v6364 = vunpack.c.h.b16 %v5872
        %v6365 = vunpack.c.l.b16 %v5873
        %v6366 = vunpack.c.h.b16 %v5873
        %v6367 = vunpack.c.l.b16 %v5874
        %v6368 = vunpack.c.h.b16 %v5874
        %v6369 = vunpack.c.l.b16 %v5875
        %v6370 = vunpack.c.h.b16 %v5875
        %v6371 = vunpack.c.l.b16 %v5876
        %v6372 = vunpack.c.h.b16 %v5876
        %v6373 = vunpack.c.l.b16 %v5877
        %v6374 = vunpack.c.h.b16 %v5877
        %v6375 = vunpack.c.l.b16 %v5878
        %v6376 = vunpack.c.h.b16 %v5878
        %v6377 = vunpack.c.l.b16 %v5879
        %v6378 = vunpack.c.h.b16 %v5879
        %v6379 = vunpack.c.l.b16 %v5880
        %v6380 = vunpack.c.h.b16 %v5880
        %v6381 = vunpack.c.l.b16 %v5881
        %v6382 = vunpack.c.h.b16 %v5881
        %v6383 = vunpack.c.l.b16 %v5882
        %v6384 = vunpack.c.h.b16 %v5882
        %v6385 = vunpack.c.l.b16 %v5883
        %v6386 = vunpack.c.h.b16 %v5883
        %v6387 = vunpack.c.l.b16 %v5884
        %v6388 = vunpack.c.h.b16 %v5884
        %v6389 = vunpack.c.l.b16 %v5885
        %v6390 = vunpack.c.h.b16 %v5885
        %v6391 = vunpack.c.l.b16 %v5886
        %v6392 = vunpack.c.h.b16 %v5886
        %v6393 = vunpack.c.l.b16 %v5887
        %v6394 = vunpack.c.h.b16 %v5887
        %v6395 = vunpack.c.l.b16 %v5888
        %v6396 = vunpack.c.h.b16 %v5888
        %v6397 = vunpack.c.l.b16 %v5889
        %v6398 = vunpack.c.h.b16 %v5889
        %v6399 = vunpack.c.l.b16 %v5890
        %v6400 = vunpack.c.h.b16 %v5890
        %v6401 = vunpack.c.l.b16 %v5891
        %v6402 = vunpack.c.h.b16 %v5891
        %v6403 = vunpack.c.l.b16 %v5892
        %v6404 = vunpack.c.h.b16 %v5892
        %v6405 = vunpack.c.l.b16 %v5893
        %v6406 = vunpack.c.h.b16 %v5893
        %v6407 = vunpack.c.l.b16 %v5894
        %v6408 = vunpack.c.h.b16 %v5894
        %v6409 = vunpack.c.l.b16 %v5895
        %v6410 = vunpack.c.h.b16 %v5895
        %v6411 = vunpack.c.l.b16 %v5896
        %v6412 = vunpack.c.h.b16 %v5896
        %v6413 = vunpack.c.l.b16 %v5897
        %v6414 = vunpack.c.h.b16 %v5897
        %v6415 = vunpack.c.l.b16 %v5898
        %v6416 = vunpack.c.h.b16 %v5898
        %v6417 = vunpack.c.l.b16 %v5899
        %v6418 = vunpack.c.h.b16 %v5899
        %v6419 = vunpack.c.l.b16 %v5900
        %v6420 = vunpack.c.h.b16 %v5900
        %v6421 = vunpack.c.l.b16 %v5901
        %v6422 = vunpack.c.h.b16 %v5901
        %v6423 = vunpack.c.l.b16 %v5902
        %v6424 = vunpack.c.h.b16 %v5902
        %v6425 = vunpack.c.l.b16 %v5903
        %v6426 = vunpack.c.h.b16 %v5903
        %v6427 = vunpack.c.l.b16 %v5904
        %v6428 = vunpack.c.h.b16 %v5904
        %v6429 = vunpack.c.l.b16 %v5905
        %v6430 = vunpack.c.h.b16 %v5905
        %v6431 = vunpack.c.l.b16 %v5906
        %v6432 = vunpack.c.h.b16 %v5906
        %v6433 = vunpack.c.l.b16 %v5907
        %v6434 = vunpack.c.h.b16 %v5907
        %v6435 = vunpack.c.l.b16 %v5908
        %v6436 = vunpack.c.h.b16 %v5908
        %v6437 = vunpack.c.l.b16 %v5909
        %v6438 = vunpack.c.h.b16 %v5909
        %v6439 = vunpack.c.l.b16 %v5910
        %v6440 = vunpack.c.h.b16 %v5910
        %v6441 = vunpack.c.l.b16 %v5911
        %v6442 = vunpack.c.h.b16 %v5911
        %v6443 = vunpack.c.l.b16 %v5912
        %v6444 = vunpack.c.h.b16 %v5912
        %v6445 = vunpack.c.l.b16 %v5913
        %v6446 = vunpack.c.h.b16 %v5913
        %v6447 = vunpack.c.l.b16 %v5914
        %v6448 = vunpack.c.h.b16 %v5914
        %v6449 = vunpack.c.l.b16 %v5915
        %v6450 = vunpack.c.h.b16 %v5915
        %v6451 = vunpack.c.l.b16 %v5916
        %v6452 = vunpack.c.h.b16 %v5916
        %v6453 = vunpack.c.l.b16 %v5917
        %v6454 = vunpack.c.h.b16 %v5917
        %v6455 = vunpack.c.l.b16 %v5918
        %v6456 = vunpack.c.h.b16 %v5918
        %v6457 = vunpack.c.l.b16 %v5919
        %v6458 = vunpack.c.h.b16 %v5919
        %v6459 = vunpack.c.l.b16 %v5920
        %v6460 = vunpack.c.h.b16 %v5920
        %v6461 = vunpack.c.l.b16 %v5921
        %v6462 = vunpack.c.h.b16 %v5921
        %v6463 = vunpack.c.l.b16 %v5922
        %v6464 = vunpack.c.h.b16 %v5922
        %v6465 = vunpack.c.l.b16 %v5923
        %v6466 = vunpack.c.h.b16 %v5923
        %v6467 = vunpack.c.l.b16 %v5924
        %v6468 = vunpack.c.h.b16 %v5924
        %v6469 = vunpack.c.l.b16 %v5925
        %v6470 = vunpack.c.h.b16 %v5925
        %v6471 = vunpack.c.l.b16 %v5926
        %v6472 = vunpack.c.h.b16 %v5926
        %v6473 = vunpack.c.l.b16 %v5927
        %v6474 = vunpack.c.h.b16 %v5927
        %v6475 = vunpack.c.l.b16 %v5928
        %v6476 = vunpack.c.h.b16 %v5928
        %v6477 = vunpack.c.l.b16 %v5929
        %v6478 = vunpack.c.h.b16 %v5929
        %v6479 = vunpack.c.l.b16 %v5930
        %v6480 = vunpack.c.h.b16 %v5930
        %v6481 = vunpack.c.l.b16 %v5931
        %v6482 = vunpack.c.h.b16 %v5931
        %v6483 = vunpack.c.l.b16 %v5932
        %v6484 = vunpack.c.h.b16 %v5932
        %v6485 = vunpack.c.l.b16 %v5933
        %v6486 = vunpack.c.h.b16 %v5933
        %v6487 = vunpack.c.l.b16 %v5934
        %v6488 = vunpack.c.h.b16 %v5934
        %v6489 = vunpack.c.l.b16 %v5935
        %v6490 = vunpack.c.h.b16 %v5935
        %v6491 = vunpack.c.l.b16 %v5936
        %v6492 = vunpack.c.h.b16 %v5936
        %v6493 = vunpack.c.l.b16 %v5937
        %v6494 = vunpack.c.h.b16 %v5937
        %v6495 = vunpack.c.l.b16 %v5938
        %v6496 = vunpack.c.h.b16 %v5938
        %v6497 = vunpack.c.l.b16 %v5939
        %v6498 = vunpack.c.h.b16 %v5939
        %v6499 = vunpack.c.l.b16 %v5940
        %v6500 = vunpack.c.h.b16 %v5940
        %v6501 = vunpack.c.l.b16 %v5941
        %v6502 = vunpack.c.h.b16 %v5941
        %v6503 = vunpack.c.l.b16 %v5942
        %v6504 = vunpack.c.h.b16 %v5942
        %v6505 = vunpack.c.l.b16 %v5943
        %v6506 = vunpack.c.h.b16 %v5943
        %v6507 = vunpack.c.l.b16 %v5944
        %v6508 = vunpack.c.h.b16 %v5944
        %v6509 = vunpack.c.l.b16 %v5945
        %v6510 = vunpack.c.h.b16 %v5945
        %v6511 = vunpack.c.l.b16 %v5946
        %v6512 = vunpack.c.h.b16 %v5946
        %v6513 = vunpack.c.l.b16 %v5947
        %v6514 = vunpack.c.h.b16 %v5947
        %v6515 = vunpack.c.l.b16 %v5948
        %v6516 = vunpack.c.h.b16 %v5948
        %v6517 = vunpack.c.l.b16 %v5949
        %v6518 = vunpack.c.h.b16 %v5949
        %v6519 = vunpack.c.l.b16 %v5950
        %v6520 = vunpack.c.h.b16 %v5950
        %v6521 = vunpack.c.l.b16 %v5951
        %v6522 = vunpack.c.h.b16 %v5951
        %v6523 = vunpack.c.l.b16 %v5952
        %v6524 = vunpack.c.h.b16 %v5952
        %v6525 = vunpack.c.l.b16 %v5953
        %v6526 = vunpack.c.h.b16 %v5953
        %v6527 = vunpack.c.l.b16 %v5954
        %v6528 = vunpack.c.h.b16 %v5954
        %v6529 = vunpack.c.l.b16 %v5955
        %v6530 = vunpack.c.h.b16 %v5955
        %v6531 = vunpack.c.l.b16 %v5956
        %v6532 = vunpack.c.h.b16 %v5956
        %v6533 = vpack.c.b16 %v6153, %v6149
        %v6534 = vpack.c.b16 %v6154, %v6150
        %v6535 = vpack.c.b16 %v6155, %v6151
        %v6536 = vpack.c.b16 %v6156, %v6152
        %v6537 = vpack.c.b16 %v6161, %v6157
        %v6538 = vpack.c.b16 %v6162, %v6158
        %v6539 = vpack.c.b16 %v6163, %v6159
        %v6540 = vpack.c.b16 %v6164, %v6160
        %v6541 = vpack.c.b16 %v6169, %v6165
        %v6542 = vpack.c.b16 %v6170, %v6166
        %v6543 = vpack.c.b16 %v6171, %v6167
        %v6544 = vpack.c.b16 %v6172, %v6168
        %v6545 = vpack.c.b16 %v6177, %v6173
        %v6546 = vpack.c.b16 %v6178, %v6174
        %v6547 = vpack.c.b16 %v6179, %v6175
        %v6548 = vpack.c.b16 %v6180, %v6176
        %v6549 = vpack.c.b16 %v6185, %v6181
        %v6550 = vpack.c.b16 %v6186, %v6182
        %v6551 = vpack.c.b16 %v6187, %v6183
        %v6552 = vpack.c.b16 %v6188, %v6184
        %v6553 = vpack.c.b16 %v6193, %v6189
        %v6554 = vpack.c.b16 %v6194, %v6190
        %v6555 = vpack.c.b16 %v6195, %v6191
        %v6556 = vpack.c.b16 %v6196, %v6192
        %v6557 = vpack.c.b16 %v6201, %v6197
        %v6558 = vpack.c.b16 %v6202, %v6198
        %v6559 = vpack.c.b16 %v6203, %v6199
        %v6560 = vpack.c.b16 %v6204, %v6200
        %v6561 = vpack.c.b16 %v6209, %v6205
        %v6562 = vpack.c.b16 %v6210, %v6206
        %v6563 = vpack.c.b16 %v6211, %v6207
        %v6564 = vpack.c.b16 %v6212, %v6208
        %v6565 = vpack.c.b16 %v6217, %v6213
        %v6566 = vpack.c.b16 %v6218, %v6214
        %v6567 = vpack.c.b16 %v6219, %v6215
        %v6568 = vpack.c.b16 %v6220, %v6216
        %v6569 = vpack.c.b16 %v6225, %v6221
        %v6570 = vpack.c.b16 %v6226, %v6222
        %v6571 = vpack.c.b16 %v6227, %v6223
        %v6572 = vpack.c.b16 %v6228, %v6224
        %v6573 = vpack.c.b16 %v6233, %v6229
        %v6574 = vpack.c.b16 %v6234, %v6230
        %v6575 = vpack.c.b16 %v6235, %v6231
        %v6576 = vpack.c.b16 %v6236, %v6232
        %v6577 = vpack.c.b16 %v6241, %v6237
        %v6578 = vpack.c.b16 %v6242, %v6238
        %v6579 = vpack.c.b16 %v6243, %v6239
        %v6580 = vpack.c.b16 %v6244, %v6240
        %v6581 = vpack.c.b16 %v6249, %v6245
        %v6582 = vpack.c.b16 %v6250, %v6246
        %v6583 = vpack.c.b16 %v6251, %v6247
        %v6584 = vpack.c.b16 %v6252, %v6248
        %v6585 = vpack.c.b16 %v6257, %v6253
        %v6586 = vpack.c.b16 %v6258, %v6254
        %v6587 = vpack.c.b16 %v6259, %v6255
        %v6588 = vpack.c.b16 %v6260, %v6256
        %v6589 = vpack.c.b16 %v6265, %v6261
        %v6590 = vpack.c.b16 %v6266, %v6262
        %v6591 = vpack.c.b16 %v6267, %v6263
        %v6592 = vpack.c.b16 %v6268, %v6264
        %v6593 = vpack.c.b16 %v6273, %v6269
        %v6594 = vpack.c.b16 %v6274, %v6270
        %v6595 = vpack.c.b16 %v6275, %v6271
        %v6596 = vpack.c.b16 %v6276, %v6272
        %v6597 = vpack.c.b16 %v6281, %v6277
        %v6598 = vpack.c.b16 %v6282, %v6278
        %v6599 = vpack.c.b16 %v6283, %v6279
        %v6600 = vpack.c.b16 %v6284, %v6280
        %v6601 = vpack.c.b16 %v6289, %v6285
        %v6602 = vpack.c.b16 %v6290, %v6286
        %v6603 = vpack.c.b16 %v6291, %v6287
        %v6604 = vpack.c.b16 %v6292, %v6288
        %v6605 = vpack.c.b16 %v6297, %v6293
        %v6606 = vpack.c.b16 %v6298, %v6294
        %v6607 = vpack.c.b16 %v6299, %v6295
        %v6608 = vpack.c.b16 %v6300, %v6296
        %v6609 = vpack.c.b16 %v6305, %v6301
        %v6610 = vpack.c.b16 %v6306, %v6302
        %v6611 = vpack.c.b16 %v6307, %v6303
        %v6612 = vpack.c.b16 %v6308, %v6304
        %v6613 = vpack.c.b16 %v6313, %v6309
        %v6614 = vpack.c.b16 %v6314, %v6310
        %v6615 = vpack.c.b16 %v6315, %v6311
        %v6616 = vpack.c.b16 %v6316, %v6312
        %v6617 = vpack.c.b16 %v6321, %v6317
        %v6618 = vpack.c.b16 %v6322, %v6318
        %v6619 = vpack.c.b16 %v6323, %v6319
        %v6620 = vpack.c.b16 %v6324, %v6320
        %v6621 = vpack.c.b16 %v6329, %v6325
        %v6622 = vpack.c.b16 %v6330, %v6326
        %v6623 = vpack.c.b16 %v6331, %v6327
        %v6624 = vpack.c.b16 %v6332, %v6328
        %v6625 = vpack.c.b16 %v6337, %v6333
        %v6626 = vpack.c.b16 %v6338, %v6334
        %v6627 = vpack.c.b16 %v6339, %v6335
        %v6628 = vpack.c.b16 %v6340, %v6336
        %v6629 = vpack.c.b16 %v6345, %v6341
        %v6630 = vpack.c.b16 %v6346, %v6342
        %v6631 = vpack.c.b16 %v6347, %v6343
        %v6632 = vpack.c.b16 %v6348, %v6344
        %v6633 = vpack.c.b16 %v6353, %v6349
        %v6634 = vpack.c.b16 %v6354, %v6350
        %v6635 = vpack.c.b16 %v6355, %v6351
        %v6636 = vpack.c.b16 %v6356, %v6352
        %v6637 = vpack.c.b16 %v6361, %v6357
        %v6638 = vpack.c.b16 %v6362, %v6358
        %v6639 = vpack.c.b16 %v6363, %v6359
        %v6640 = vpack.c.b16 %v6364, %v6360
        %v6641 = vpack.c.b16 %v6369, %v6365
        %v6642 = vpack.c.b16 %v6370, %v6366
        %v6643 = vpack.c.b16 %v6371, %v6367
        %v6644 = vpack.c.b16 %v6372, %v6368
        %v6645 = vpack.c.b16 %v6377, %v6373
        %v6646 = vpack.c.b16 %v6378, %v6374
        %v6647 = vpack.c.b16 %v6379, %v6375
        %v6648 = vpack.c.b16 %v6380, %v6376
        %v6649 = vpack.c.b16 %v6385, %v6381
        %v6650 = vpack.c.b16 %v6386, %v6382
        %v6651 = vpack.c.b16 %v6387, %v6383
        %v6652 = vpack.c.b16 %v6388, %v6384
        %v6653 = vpack.c.b16 %v6393, %v6389
        %v6654 = vpack.c.b16 %v6394, %v6390
        %v6655 = vpack.c.b16 %v6395, %v6391
        %v6656 = vpack.c.b16 %v6396, %v6392
        %v6657 = vpack.c.b16 %v6401, %v6397
        %v6658 = vpack.c.b16 %v6402, %v6398
        %v6659 = vpack.c.b16 %v6403, %v6399
        %v6660 = vpack.c.b16 %v6404, %v6400
        %v6661 = vpack.c.b16 %v6409, %v6405
        %v6662 = vpack.c.b16 %v6410, %v6406
        %v6663 = vpack.c.b16 %v6411, %v6407
        %v6664 = vpack.c.b16 %v6412, %v6408
        %v6665 = vpack.c.b16 %v6417, %v6413
        %v6666 = vpack.c.b16 %v6418, %v6414
        %v6667 = vpack.c.b16 %v6419, %v6415
        %v6668 = vpack.c.b16 %v6420, %v6416
        %v6669 = vpack.c.b16 %v6425, %v6421
        %v6670 = vpack.c.b16 %v6426, %v6422
        %v6671 = vpack.c.b16 %v6427, %v6423
        %v6672 = vpack.c.b16 %v6428, %v6424
        %v6673 = vpack.c.b16 %v6433, %v6429
        %v6674 = vpack.c.b16 %v6434, %v6430
        %v6675 = vpack.c.b16 %v6435, %v6431
        %v6676 = vpack.c.b16 %v6436, %v6432
        %v6677 = vpack.c.b16 %v6441, %v6437
        %v6678 = vpack.c.b16 %v6442, %v6438
        %v6679 = vpack.c.b16 %v6443, %v6439
        %v6680 = vpack.c.b16 %v6444, %v6440
        %v6681 = vpack.c.b16 %v6449, %v6445
        %v6682 = vpack.c.b16 %v6450, %v6446
        %v6683 = vpack.c.b16 %v6451, %v6447
        %v6684 = vpack.c.b16 %v6452, %v6448
        %v6685 = vpack.c.b16 %v6457, %v6453
        %v6686 = vpack.c.b16 %v6458, %v6454
        %v6687 = vpack.c.b16 %v6459, %v6455
        %v6688 = vpack.c.b16 %v6460, %v6456
        %v6689 = vpack.c.b16 %v6465, %v6461
        %v6690 = vpack.c.b16 %v6466, %v6462
        %v6691 = vpack.c.b16 %v6467, %v6463
        %v6692 = vpack.c.b16 %v6468, %v6464
        %v6693 = vpack.c.b16 %v6473, %v6469
        %v6694 = vpack.c.b16 %v6474, %v6470
        %v6695 = vpack.c.b16 %v6475, %v6471
        %v6696 = vpack.c.b16 %v6476, %v6472
        %v6697 = vpack.c.b16 %v6481, %v6477
        %v6698 = vpack.c.b16 %v6482, %v6478
        %v6699 = vpack.c.b16 %v6483, %v6479
        %v6700 = vpack.c.b16 %v6484, %v6480
        %v6701 = vpack.c.b16 %v6489, %v6485
        %v6702 = vpack.c.b16 %v6490, %v6486
        %v6703 = vpack.c.b16 %v6491, %v6487
        %v6704 = vpack.c.b16 %v6492, %v6488
        %v6705 = vpack.c.b16 %v6497, %v6493
        %v6706 = vpack.c.b16 %v6498, %v6494
        %v6707 = vpack.c.b16 %v6499, %v6495
        %v6708 = vpack.c.b16 %v6500, %v6496
        %v6709 = vpack.c.b16 %v6505, %v6501
        %v6710 = vpack.c.b16 %v6506, %v6502
        %v6711 = vpack.c.b16 %v6507, %v6503
        %v6712 = vpack.c.b16 %v6508, %v6504
        %v6713 = vpack.c.b16 %v6513, %v6509
        %v6714 = vpack.c.b16 %v6514, %v6510
        %v6715 = vpack.c.b16 %v6515, %v6511
        %v6716 = vpack.c.b16 %v6516, %v6512
        %v6717 = vpack.c.b16 %v6521, %v6517
        %v6718 = vpack.c.b16 %v6522, %v6518
        %v6719 = vpack.c.b16 %v6523, %v6519
        %v6720 = vpack.c.b16 %v6524, %v6520
        %v6721 = vpack.c.b16 %v6529, %v6525
        %v6722 = vpack.c.b16 %v6530, %v6526
        %v6723 = vpack.c.b16 %v6531, %v6527
        %v6724 = vpack.c.b16 %v6532, %v6528
        %6917 = vmatprep.subr.bf16.mxu0 %v6534
        %6918 = vmatpush1.bf16.msra.mxu0 %v6533
        %6919 = vmatprep.subr.bf16.mxu0 %v6538
        %6920 = vmatpush1.bf16.msra.mxu0 %v6537
        %6921 = vmatprep.subr.bf16.mxu0 %v6542
        %6922 = vmatpush1.bf16.msra.mxu0 %v6541
        %6923 = vmatprep.subr.bf16.mxu0 %v6546
        %6924 = vmatpush1.bf16.msra.mxu0 %v6545
        %6925 = vmatprep.subr.bf16.mxu0 %v6550
        %6926 = vmatpush1.bf16.msra.mxu0 %v6549
        %6927 = vmatprep.subr.bf16.mxu0 %v6554
        %6928 = vmatpush1.bf16.msra.mxu0 %v6553
        %6929 = vmatprep.subr.bf16.mxu0 %v6558
        %6930 = vmatpush1.bf16.msra.mxu0 %v6557
        %6931 = vmatprep.subr.bf16.mxu0 %v6562
        %6932 = vmatpush1.bf16.msra.mxu0 %v6561
        %6933 = vmatprep.subr.bf16.mxu0 %v6566
        %6934 = vmatpush1.bf16.msra.mxu0 %v6565
        %6935 = vmatprep.subr.bf16.mxu0 %v6570
        %6936 = vmatpush1.bf16.msra.mxu0 %v6569
        %6937 = vmatprep.subr.bf16.mxu0 %v6574
        %6938 = vmatpush1.bf16.msra.mxu0 %v6573
        %6939 = vmatprep.subr.bf16.mxu0 %v6578
        %6940 = vmatpush1.bf16.msra.mxu0 %v6577
        %6941 = vmatprep.subr.bf16.mxu0 %v6582
        %6942 = vmatpush1.bf16.msra.mxu0 %v6581
        %6943 = vmatprep.subr.bf16.mxu0 %v6586
        %6944 = vmatpush1.bf16.msra.mxu0 %v6585
        %6945 = vmatprep.subr.bf16.mxu0 %v6590
        %6946 = vmatpush1.bf16.msra.mxu0 %v6589
        %6947 = vmatprep.subr.bf16.mxu0 %v6594
        %6948 = vmatpush1.bf16.msra.mxu0 %v6593
        %6949 = vmatprep.mubr.bf16.mxu0 %v5760
        %6950 = vmatmul.mubr.bf16.gmra.mrb[0].mxu0 %v5759
        %v6951 = vpop.f32.mrb[0].mxu0
        %v6952 = vadd.f32 0.0, %v6951
        %v6953 = vpop.f32.mrb[0].mxu0
        %v6954 = vadd.f32 0.0, %v6953
        %v6955 = vpop.f32.mrb[0].mxu0
        %v6956 = vadd.f32 0.0, %v6955
        %v6957 = vpop.f32.mrb[0].mxu0
        %v6958 = vadd.f32 0.0, %v6957
        %6959 = vdwg.mxu0
        %6960 = vmatprep.subr.bf16.mxu0 %v6598
        %6961 = vmatpush1.bf16.msra.mxu0 %v6597
        %6962 = vmatprep.subr.bf16.mxu0 %v6602
        %6963 = vmatpush1.bf16.msra.mxu0 %v6601
        %6964 = vmatprep.subr.bf16.mxu0 %v6606
        %6965 = vmatpush1.bf16.msra.mxu0 %v6605
        %6966 = vmatprep.subr.bf16.mxu0 %v6610
        %6967 = vmatpush1.bf16.msra.mxu0 %v6609
        %6968 = vmatprep.subr.bf16.mxu0 %v6614
        %6969 = vmatpush1.bf16.msra.mxu0 %v6613
        %6970 = vmatprep.subr.bf16.mxu0 %v6618
        %6971 = vmatpush1.bf16.msra.mxu0 %v6617
        %6972 = vmatprep.subr.bf16.mxu0 %v6622
        %6973 = vmatpush1.bf16.msra.mxu0 %v6621
        %6974 = vmatprep.subr.bf16.mxu0 %v6626
        %6975 = vmatpush1.bf16.msra.mxu0 %v6625
        %6976 = vmatprep.subr.bf16.mxu0 %v6630
        %6977 = vmatpush1.bf16.msra.mxu0 %v6629
        %6978 = vmatprep.subr.bf16.mxu0 %v6634
        %6979 = vmatpush1.bf16.msra.mxu0 %v6633
        %6980 = vmatprep.subr.bf16.mxu0 %v6638
        %6981 = vmatpush1.bf16.msra.mxu0 %v6637
        %6982 = vmatprep.subr.bf16.mxu0 %v6642
        %6983 = vmatpush1.bf16.msra.mxu0 %v6641
        %6984 = vmatprep.subr.bf16.mxu0 %v6646
        %6985 = vmatpush1.bf16.msra.mxu0 %v6645
        %6986 = vmatprep.subr.bf16.mxu0 %v6650
        %6987 = vmatpush1.bf16.msra.mxu0 %v6649
        %6988 = vmatprep.subr.bf16.mxu0 %v6654
        %6989 = vmatpush1.bf16.msra.mxu0 %v6653
        %6990 = vmatprep.subr.bf16.mxu0 %v6658
        %6991 = vmatpush1.bf16.msra.mxu0 %v6657
        %6992 = vmatprep.mubr.bf16.mxu0 %v5762
        %6993 = vmatmul.mubr.bf16.gmra.mrb[0].mxu0 %v5761
        %v6994 = vpop.f32.mrb[0].mxu0
        %v6995 = vadd.f32 %v6952, %v6994
        %v6996 = vpop.f32.mrb[0].mxu0
        %v6997 = vadd.f32 %v6954, %v6996
        %v6998 = vpop.f32.mrb[0].mxu0
        %v6999 = vadd.f32 %v6956, %v6998
        %v7000 = vpop.f32.mrb[0].mxu0
        %v7001 = vadd.f32 %v6958, %v7000
        %7002 = vdwg.mxu0
        %7003 = vmatprep.subr.bf16.mxu0 %v6662
        %7004 = vmatpush1.bf16.msra.mxu0 %v6661
        %7005 = vmatprep.subr.bf16.mxu0 %v6666
        %7006 = vmatpush1.bf16.msra.mxu0 %v6665
        %7007 = vmatprep.subr.bf16.mxu0 %v6670
        %7008 = vmatpush1.bf16.msra.mxu0 %v6669
        %7009 = vmatprep.subr.bf16.mxu0 %v6674
        %7010 = vmatpush1.bf16.msra.mxu0 %v6673
        %7011 = vmatprep.subr.bf16.mxu0 %v6678
        %7012 = vmatpush1.bf16.msra.mxu0 %v6677
        %7013 = vmatprep.subr.bf16.mxu0 %v6682
        %7014 = vmatpush1.bf16.msra.mxu0 %v6681
        %7015 = vmatprep.subr.bf16.mxu0 %v6686
        %7016 = vmatpush1.bf16.msra.mxu0 %v6685
        %7017 = vmatprep.subr.bf16.mxu0 %v6690
        %7018 = vmatpush1.bf16.msra.mxu0 %v6689
        %7019 = vmatprep.subr.bf16.mxu0 %v6694
        %7020 = vmatpush1.bf16.msra.mxu0 %v6693
        %7021 = vmatprep.subr.bf16.mxu0 %v6698
        %7022 = vmatpush1.bf16.msra.mxu0 %v6697
        %7023 = vmatprep.subr.bf16.mxu0 %v6702
        %7024 = vmatpush1.bf16.msra.mxu0 %v6701
        %7025 = vmatprep.subr.bf16.mxu0 %v6706
        %7026 = vmatpush1.bf16.msra.mxu0 %v6705
        %7027 = vmatprep.subr.bf16.mxu0 %v6710
        %7028 = vmatpush1.bf16.msra.mxu0 %v6709
        %7029 = vmatprep.subr.bf16.mxu0 %v6714
        %7030 = vmatpush1.bf16.msra.mxu0 %v6713
        %7031 = vmatprep.subr.bf16.mxu0 %v6718
        %7032 = vmatpush1.bf16.msra.mxu0 %v6717
        %7033 = vmatprep.subr.bf16.mxu0 %v6722
        %7034 = vmatpush1.bf16.msra.mxu0 %v6721
        %7035 = vmatprep.mubr.bf16.mxu0 %v5764
        %7036 = vmatmul.mubr.bf16.gmra.mrb[0].mxu0 %v5763
        %v7037 = vpop.f32.mrb[0].mxu0
        %v7038 = vadd.f32 %v6995, %v7037
        %v7039 = vpop.f32.mrb[0].mxu0
        %v7040 = vadd.f32 %v6997, %v7039
        %v7041 = vpop.f32.mrb[0].mxu0
        %v7042 = vadd.f32 %v6999, %v7041
        %v7043 = vpop.f32.mrb[0].mxu0
        %v7044 = vadd.f32 %v7001, %v7043
        %7045 = vdwg.mxu0
        %7046 = vmatprep.subr.bf16.mxu0 %v6536
        %7047 = vmatpush1.bf16.msra.mxu0 %v6535
        %7048 = vmatprep.subr.bf16.mxu0 %v6540
        %7049 = vmatpush1.bf16.msra.mxu0 %v6539
        %7050 = vmatprep.subr.bf16.mxu0 %v6544
        %7051 = vmatpush1.bf16.msra.mxu0 %v6543
        %7052 = vmatprep.subr.bf16.mxu0 %v6548
        %7053 = vmatpush1.bf16.msra.mxu0 %v6547
        %7054 = vmatprep.subr.bf16.mxu0 %v6552
        %7055 = vmatpush1.bf16.msra.mxu0 %v6551
        %7056 = vmatprep.subr.bf16.mxu0 %v6556
        %7057 = vmatpush1.bf16.msra.mxu0 %v6555
        %7058 = vmatprep.subr.bf16.mxu0 %v6560
        %7059 = vmatpush1.bf16.msra.mxu0 %v6559
        %7060 = vmatprep.subr.bf16.mxu0 %v6564
        %7061 = vmatpush1.bf16.msra.mxu0 %v6563
        %7062 = vmatprep.subr.bf16.mxu0 %v6568
        %7063 = vmatpush1.bf16.msra.mxu0 %v6567
        %7064 = vmatprep.subr.bf16.mxu0 %v6572
        %7065 = vmatpush1.bf16.msra.mxu0 %v6571
        %7066 = vmatprep.subr.bf16.mxu0 %v6576
        %7067 = vmatpush1.bf16.msra.mxu0 %v6575
        %7068 = vmatprep.subr.bf16.mxu0 %v6580
        %7069 = vmatpush1.bf16.msra.mxu0 %v6579
        %7070 = vmatprep.subr.bf16.mxu0 %v6584
        %7071 = vmatpush1.bf16.msra.mxu0 %v6583
        %7072 = vmatprep.subr.bf16.mxu0 %v6588
        %7073 = vmatpush1.bf16.msra.mxu0 %v6587
        %7074 = vmatprep.subr.bf16.mxu0 %v6592
        %7075 = vmatpush1.bf16.msra.mxu0 %v6591
        %7076 = vmatprep.subr.bf16.mxu0 %v6596
        %7077 = vmatpush1.bf16.msra.mxu0 %v6595
        %7078 = vmatprep.mubr.bf16.mxu0 %v5760
        %7079 = vmatmul.mubr.bf16.gmra.mrb[0].mxu0 %v5759
        %v7080 = vpop.f32.mrb[0].mxu0
        %v7081 = vadd.f32 0.0, %v7080
        %v7082 = vpop.f32.mrb[0].mxu0
        %v7083 = vadd.f32 0.0, %v7082
        %v7084 = vpop.f32.mrb[0].mxu0
        %v7085 = vadd.f32 0.0, %v7084
        %v7086 = vpop.f32.mrb[0].mxu0
        %v7087 = vadd.f32 0.0, %v7086
        %7088 = vdwg.mxu0
        %7089 = vmatprep.subr.bf16.mxu0 %v6600
        %7090 = vmatpush1.bf16.msra.mxu0 %v6599
        %7091 = vmatprep.subr.bf16.mxu0 %v6604
        %7092 = vmatpush1.bf16.msra.mxu0 %v6603
        %7093 = vmatprep.subr.bf16.mxu0 %v6608
        %7094 = vmatpush1.bf16.msra.mxu0 %v6607
        %7095 = vmatprep.subr.bf16.mxu0 %v6612
        %7096 = vmatpush1.bf16.msra.mxu0 %v6611
        %7097 = vmatprep.subr.bf16.mxu0 %v6616
        %7098 = vmatpush1.bf16.msra.mxu0 %v6615
        %7099 = vmatprep.subr.bf16.mxu0 %v6620
        %7100 = vmatpush1.bf16.msra.mxu0 %v6619
        %7101 = vmatprep.subr.bf16.mxu0 %v6624
        %7102 = vmatpush1.bf16.msra.mxu0 %v6623
        %7103 = vmatprep.subr.bf16.mxu0 %v6628
        %7104 = vmatpush1.bf16.msra.mxu0 %v6627
        %7105 = vmatprep.subr.bf16.mxu0 %v6632
        %7106 = vmatpush1.bf16.msra.mxu0 %v6631
        %7107 = vmatprep.subr.bf16.mxu0 %v6636
        %7108 = vmatpush1.bf16.msra.mxu0 %v6635
        %7109 = vmatprep.subr.bf16.mxu0 %v6640
        %7110 = vmatpush1.bf16.msra.mxu0 %v6639
        %7111 = vmatprep.subr.bf16.mxu0 %v6644
        %7112 = vmatpush1.bf16.msra.mxu0 %v6643
        %7113 = vmatprep.subr.bf16.mxu0 %v6648
        %7114 = vmatpush1.bf16.msra.mxu0 %v6647
        %7115 = vmatprep.subr.bf16.mxu0 %v6652
        %7116 = vmatpush1.bf16.msra.mxu0 %v6651
        %7117 = vmatprep.subr.bf16.mxu0 %v6656
        %7118 = vmatpush1.bf16.msra.mxu0 %v6655
        %7119 = vmatprep.subr.bf16.mxu0 %v6660
        %7120 = vmatpush1.bf16.msra.mxu0 %v6659
        %7121 = vmatprep.mubr.bf16.mxu0 %v5762
        %7122 = vmatmul.mubr.bf16.gmra.mrb[0].mxu0 %v5761
        %v7123 = vpop.f32.mrb[0].mxu0
        %v7124 = vadd.f32 %v7081, %v7123
        %v7125 = vpop.f32.mrb[0].mxu0
        %v7126 = vadd.f32 %v7083, %v7125
        %v7127 = vpop.f32.mrb[0].mxu0
        %v7128 = vadd.f32 %v7085, %v7127
        %v7129 = vpop.f32.mrb[0].mxu0
        %v7130 = vadd.f32 %v7087, %v7129
        %7131 = vdwg.mxu0
        %7132 = vmatprep.subr.bf16.mxu0 %v6664
        %7133 = vmatpush1.bf16.msra.mxu0 %v6663
        %7134 = vmatprep.subr.bf16.mxu0 %v6668
        %7135 = vmatpush1.bf16.msra.mxu0 %v6667
        %7136 = vmatprep.subr.bf16.mxu0 %v6672
        %7137 = vmatpush1.bf16.msra.mxu0 %v6671
        %7138 = vmatprep.subr.bf16.mxu0 %v6676
        %7139 = vmatpush1.bf16.msra.mxu0 %v6675
        %7140 = vmatprep.subr.bf16.mxu0 %v6680
        %7141 = vmatpush1.bf16.msra.mxu0 %v6679
        %7142 = vmatprep.subr.bf16.mxu0 %v6684
        %7143 = vmatpush1.bf16.msra.mxu0 %v6683
        %7144 = vmatprep.subr.bf16.mxu0 %v6688
        %7145 = vmatpush1.bf16.msra.mxu0 %v6687
        %7146 = vmatprep.subr.bf16.mxu0 %v6692
        %7147 = vmatpush1.bf16.msra.mxu0 %v6691
        %7148 = vmatprep.subr.bf16.mxu0 %v6696
        %7149 = vmatpush1.bf16.msra.mxu0 %v6695
        %7150 = vmatprep.subr.bf16.mxu0 %v6700
        %7151 = vmatpush1.bf16.msra.mxu0 %v6699
        %7152 = vmatprep.subr.bf16.mxu0 %v6704
        %7153 = vmatpush1.bf16.msra.mxu0 %v6703
        %7154 = vmatprep.subr.bf16.mxu0 %v6708
        %7155 = vmatpush1.bf16.msra.mxu0 %v6707
        %7156 = vmatprep.subr.bf16.mxu0 %v6712
        %7157 = vmatpush1.bf16.msra.mxu0 %v6711
        %7158 = vmatprep.subr.bf16.mxu0 %v6716
        %7159 = vmatpush1.bf16.msra.mxu0 %v6715
        %7160 = vmatprep.subr.bf16.mxu0 %v6720
        %7161 = vmatpush1.bf16.msra.mxu0 %v6719
        %7162 = vmatprep.subr.bf16.mxu0 %v6724
        %7163 = vmatpush1.bf16.msra.mxu0 %v6723
        %7164 = vmatprep.mubr.bf16.mxu0 %v5764
        %7165 = vmatmul.mubr.bf16.gmra.mrb[0].mxu0 %v5763
        %v7166 = vpop.f32.mrb[0].mxu0
        %v7167 = vadd.f32 %v7124, %v7166
        %v7168 = vpop.f32.mrb[0].mxu0
        %v7169 = vadd.f32 %v7126, %v7168
        %v7170 = vpop.f32.mrb[0].mxu0
        %v7171 = vadd.f32 %v7128, %v7170
        %v7172 = vpop.f32.mrb[0].mxu0
        %v7173 = vadd.f32 %v7130, %v7172
        %7174 = vdwg.mxu0
        %7175 = vst [vmem:[%s1412] sm:$0xff] %v7038
        %7176 = vst [vmem:[%s1412 + $0x8] sm:$0xff] %v7040
        %7177 = vst [vmem:[%s1412 + $0x10] sm:$0xff] %v7167
        %7178 = vst [vmem:[%s1412 + $0x18] sm:$0xff] %v7169
        %7179 = vst [vmem:[%s1412 + $0x20] sm:$0xff] %v7042
        %7180 = vst [vmem:[%s1412 + $0x28] sm:$0xff] %v7044
        %7181 = vst [vmem:[%s1412 + $0x30] sm:$0xff] %v7171
        %7182 = vst [vmem:[%s1412 + $0x38] sm:$0xff] %v7173
        %p7183 = scmp.lt.s32.totalorder %s15, 1
        %s7184 = scalar_select %p7183, %s15, 1
        %s7185 = smul.addr %s7184, 8
        %s7186 = smul.addr %s7185, 8
        %s7187 = scalar_lea.vmem %s4, %s7186
        // Predicated region
        $region60: #{net_forward.5} parent=54 // pred_check
          %p7188 = pneg %p132
        $region61: #{net_forward.5} parent=54 // pred_check_branch
          %7190 = sbr.rel (%p7188) target = $region63
        $region62: #{net_forward.5} parent=54 // pred_region
          _
        $region63: #{net_forward.5} parent=54 // pred_fallthru
          _
      $region55: #{net_forward.5} parent=5 // pred_fallthru
        _
      %p7191 = scmp.le.s32.totalorder 2, %s10
      // Predicated region
      $region64: #{net_forward.5} parent=5 // pred_check
        %p7192 = pneg %p7191
      $region65: #{net_forward.5} parent=5 // pred_check_branch
        %7194 = sbr.rel (%p7192) target = $region67
      $region66: #{net_forward.5} parent=5 // pred_region
        %s7195 = ssub.s32 %s10, 2
        // Predicated region
        $region68: #{net_forward.5} parent=66 // pred_check
          %p7196 = pneg %p138
        $region69: #{net_forward.5} parent=66 // pred_check_branch
          %7198 = sbr.rel (%p7196) target = $region71
        $region70: #{net_forward.5} parent=66 // pred_region
          %p7199 = scmp.lt.s32.totalorder %s16, 1
          %s7200 = scalar_select %p7199, %s16, 1
          %s7201 = smul.addr %s7200, 8
          %s7202 = smul.addr %s7201, 8
          %s7203 = scalar_lea.vmem %s4, %s7202
        $region71: #{net_forward.5} parent=66 // pred_fallthru
          _
      $region67: #{net_forward.5} parent=5 // pred_fallthru
        _
    $region6: #{net_forward.5} parent=1 // loop_footer
      %s14 = sadd.s32 1, %s10
    $region7: #{net_forward.5} parent=1 // loop_footer_branch
      %9 = sbr.rel target = $region3
    $region8: #{net_forward.5} parent=1 // loop_exit
      _

</llo_original>
